<compile_context>
chip_gen: v7x
topology: tpu7x:2x2x1
jax: 0.10.0
libtpu: 0.0.40
codegen_flags: <defaults>
</compile_context>

<pallas_src>
import functools

import jax
import jax.numpy as jnp
from jax import lax
from jax.experimental import pallas as pl
from jax.experimental.pallas import tpu as pltpu

EPS = 1e-5


def _round_up(x, m):
    return ((x + m - 1) // m) * m


# ---------------------------------------------------------------------------
# Kernel 1: fused BN(affine) + ReLU + 1x1 Conv3d, with fused BN2 partial stats
# ---------------------------------------------------------------------------
def _bn_relu_conv1x1_kernel(x_ref, scale_ref, shift_ref, w_ref, b_ref,
                            h_ref, psum_ref, pssq_ref, *, m_valid, masked):
    # x_ref: (TM, Cin) rows = flattened (n,d,h,w); scale/shift: (1, Cin)
    a = jnp.maximum(x_ref[...] * scale_ref[...] + shift_ref[...], 0.0)
    tm, ci = a.shape
    co = w_ref.shape[1]

    if ci <= 8:
        # Tiny contraction dim: skip the MXU, do Cin VPU fused multiply-adds.
        h = jnp.zeros((tm, co), jnp.float32) + b_ref[...]
        for c in range(ci):
            h = h + a[:, c:c + 1] * w_ref[pl.ds(c, 1), :]
    else:
        h = jnp.dot(a, w_ref[...], preferred_element_type=jnp.float32) + b_ref[...]

    h_ref[...] = h.astype(h_ref.dtype)

    # Partial sums for BN2 statistics (mask out padded tail rows if any),
    # so the wrapper never has to re-read h1 from HBM.
    if masked:
        row = pl.program_id(0) * tm + lax.broadcasted_iota(jnp.int32, (tm, 1), 0)
        h = jnp.where(row < m_valid, h, 0.0)
    psum_ref[0] = jnp.sum(h, axis=0, keepdims=True)
    pssq_ref[0] = jnp.sum(h * h, axis=0, keepdims=True)


# ---------------------------------------------------------------------------
# Kernel 2: fused BN(affine) + ReLU + 3x3x3 Conv3d (padding=1)
#           im2col over (kh,kw) -> 3 matmuls over kd with K = 9*C
# ---------------------------------------------------------------------------
def _bn_relu_conv3x3_kernel(h_ref, scale_ref, shift_ref, w_ref, b_ref, o_ref,
                            pad_ref, aug_ref):
    _, D, H, W, C = h_ref.shape
    Co = w_ref.shape[2]
    f32 = jnp.float32

    # fused BN + ReLU (scale/shift are (1, C), broadcast over (D,H,W,C))
    a = jnp.maximum(h_ref[0] * scale_ref[...] + shift_ref[...], 0.0)

    # Zero only the halo shell (surface, not volume).  Done every step so it is
    # correct regardless of how a "parallel" grid axis is sharded across cores.
    zd = jnp.zeros((1, H + 2, W + 2, C), f32)
    pad_ref[pl.ds(0, 1), :, :, :] = zd
    pad_ref[pl.ds(D + 1, 1), :, :, :] = zd
    zh = jnp.zeros((D + 2, 1, W + 2, C), f32)
    pad_ref[:, pl.ds(0, 1), :, :] = zh
    pad_ref[:, pl.ds(H + 1, 1), :, :] = zh
    zw = jnp.zeros((D + 2, H + 2, 1, C), f32)
    pad_ref[:, :, pl.ds(0, 1), :] = zw
    pad_ref[:, :, pl.ds(W + 1, 1), :] = zw
    # interior (fully overwritten every step)
    pad_ref[pl.ds(1, D), pl.ds(1, H), pl.ds(1, W), :] = a

    # im2col over (kh, kw): aug[dp*H*W + h*W + w, (kh*3+kw)*C + c]
    #                         = pad[dp, h+kh, w+kw, c]
    for kh in range(3):
        for kw in range(3):
            g = kh * 3 + kw
            win = pad_ref[:, pl.ds(kh, H), pl.ds(kw, W), :]     # (D+2, H, W, C)
            aug_ref[:, pl.ds(g * C, C)] = win.reshape((D + 2) * H * W, C)

    # 3 matmuls over kd with K = 9*C; accumulate in registers, write once.
    acc = jnp.zeros((D * H * W, Co), f32) + b_ref[...]
    for kd in range(3):
        acc = acc + jnp.dot(
            aug_ref[pl.ds(kd * H * W, D * H * W), :],
            w_ref[kd],
            preferred_element_type=f32,
        )
    o_ref[0] = acc.reshape(D, H, W, Co).astype(o_ref.dtype)


# ---------------------------------------------------------------------------
# Parameters (deterministic synthetic init; conv2 weight kept in DHWIO layout)
# ---------------------------------------------------------------------------
def init_params(key, c_in, c_out):
    ks = jax.random.split(key, 8)
    p = {}
    p["gamma1"] = jax.random.uniform(ks[0], (c_in,), jnp.float32, 0.5, 1.5)
    p["beta1"] = 0.1 * jax.random.normal(ks[1], (c_in,), jnp.float32)
    p["w1"] = jax.random.normal(ks[2], (c_in, c_out), jnp.float32) / jnp.sqrt(c_in)
    p["b1"] = 0.1 * jax.random.normal(ks[3], (c_out,), jnp.float32)
    p["gamma2"] = jax.random.uniform(ks[4], (c_out,), jnp.float32, 0.5, 1.5)
    p["beta2"] = 0.1 * jax.random.normal(ks[5], (c_out,), jnp.float32)
    p["w2"] = jax.random.normal(ks[6], (3, 3, 3, c_out, c_out), jnp.float32) / jnp.sqrt(
        27.0 * c_out
    )
    p["b2"] = 0.1 * jax.random.normal(ks[7], (c_out,), jnp.float32)
    return p


# ---------------------------------------------------------------------------
# Forward wrapper
# ---------------------------------------------------------------------------
@jax.jit
def double_conv3d(x_ncdhw, p):
    N, Ci, D, H, W = x_ncdhw.shape
    Co = p["w1"].shape[1]

    x = jnp.transpose(x_ncdhw, (0, 2, 3, 4, 1)).astype(jnp.float32)  # NDHWC
    M = N * D * H * W
    xf = x.reshape(M, Ci)

    # --- BN1 batch statistics (training-mode), folded into affine scale/shift.
    #     Must precede kernel 1; a single fused XLA reduction pass over x.
    mean1 = jnp.mean(xf, axis=0)
    var1 = jnp.mean((xf - mean1) ** 2, axis=0)
    scale1 = p["gamma1"] / jnp.sqrt(var1 + EPS)
    shift1 = p["beta1"] - mean1 * scale1

    # --- Kernel 1: BN1 + ReLU + 1x1 conv, with fused BN2 partial statistics.
    TM = min(1024, _round_up(M, 8))
    Mp = _round_up(M, TM)
    if Mp != M:
        xf_p = jnp.concatenate(
            [xf, jnp.zeros((Mp - M, Ci), jnp.float32)], axis=0)
    else:
        xf_p = xf
    G = Mp // TM

    h1, psum, pssq = pl.pallas_call(
        functools.partial(_bn_relu_conv1x1_kernel, m_valid=M, masked=(Mp != M)),
        out_shape=(
            jax.ShapeDtypeStruct((Mp, Co), jnp.float32),
            jax.ShapeDtypeStruct((G, 1, Co), jnp.float32),
            jax.ShapeDtypeStruct((G, 1, Co), jnp.float32),
        ),
        grid=(G,),
        in_specs=[
            pl.BlockSpec((TM, Ci), lambda i: (i, 0)),
            pl.BlockSpec((1, Ci), lambda i: (0, 0)),
            pl.BlockSpec((1, Ci), lambda i: (0, 0)),
            pl.BlockSpec((Ci, Co), lambda i: (0, 0)),
            pl.BlockSpec((1, Co), lambda i: (0, 0)),
        ],
        out_specs=(
            pl.BlockSpec((TM, Co), lambda i: (i, 0)),
            pl.BlockSpec((1, 1, Co), lambda i: (i, 0, 0)),
            pl.BlockSpec((1, 1, Co), lambda i: (i, 0, 0)),
        ),
        compiler_params=pltpu.CompilerParams(dimension_semantics=("parallel",)),
    )(xf_p, scale1.reshape(1, Ci), shift1.reshape(1, Ci),
      p["w1"], p["b1"].reshape(1, Co))

    # --- BN2 statistics from the fused per-tile partial sums (no re-read of h1)
    tot = jnp.sum(psum, axis=(0, 1))
    totsq = jnp.sum(pssq, axis=(0, 1))
    mean2 = tot / M
    var2 = jnp.maximum(totsq / M - mean2 * mean2, 0.0)  # biased, like PyTorch
    scale2 = p["gamma2"] / jnp.sqrt(var2 + EPS)
    shift2 = p["beta2"] - mean2 * scale2

    # --- Kernel 2: BN2 + ReLU + 3x3x3 conv (padding=1), per batch element.
    h1_5d = h1[:M].reshape(N, D, H, W, Co)
    w2r = p["w2"].reshape(3, 9 * Co, Co)  # (kd, (kh,kw,ci), co), row-major

    # TODO(synk): for realistic DenseNet slabs (e.g. 32^3 x 64ch) tile D with a
    # 1-plane halo so the padded/im2col scratch fits v7x's 64 MiB VMEM.
    out = pl.pallas_call(
        _bn_relu_conv3x3_kernel,
        out_shape=jax.ShapeDtypeStruct((N, D, H, W, Co), jnp.float32),
        grid=(N,),
        in_specs=[
            pl.BlockSpec((1, D, H, W, Co), lambda n: (n, 0, 0, 0, 0)),
            pl.BlockSpec((1, Co), lambda n: (0, 0)),
            pl.BlockSpec((1, Co), lambda n: (0, 0)),
            pl.BlockSpec((3, 9 * Co, Co), lambda n: (0, 0, 0)),
            pl.BlockSpec((1, Co), lambda n: (0, 0)),
        ],
        out_specs=pl.BlockSpec((1, D, H, W, Co), lambda n: (n, 0, 0, 0, 0)),
        scratch_shapes=[
            pltpu.VMEM((D + 2, H + 2, W + 2, Co), jnp.float32),       # padded act
            pltpu.VMEM(((D + 2) * H * W, 9 * Co), jnp.float32),       # im2col
        ],
        compiler_params=pltpu.CompilerParams(
            dimension_semantics=("parallel",),
            vmem_limit_bytes=32 * 1024 * 1024,
        ),
    )(h1_5d, scale2.reshape(1, Co), shift2.reshape(1, Co),
      w2r, p["b2"].reshape(1, Co))

    return jnp.transpose(out, (0, 4, 1, 2, 3))  # back to NCDHW


# ---------------------------------------------------------------------------
# Pure-JAX reference (same semantics) for a correctness check
# ---------------------------------------------------------------------------
def reference(x_ncdhw, p):
    x = jnp.transpose(x_ncdhw, (0, 2, 3, 4, 1)).astype(jnp.float32)
    mean1 = jnp.mean(x, axis=(0, 1, 2, 3))
    var1 = jnp.mean((x - mean1) ** 2, axis=(0, 1, 2, 3))
    a1 = jnp.maximum(
        (x - mean1) / jnp.sqrt(var1 + EPS) * p["gamma1"] + p["beta1"], 0.0
    )
    h1 = jnp.einsum("ndhwc,co->ndhwo", a1, p["w1"]) + p["b1"]
    mean2 = jnp.mean(h1, axis=(0, 1, 2, 3))
    var2 = jnp.mean((h1 - mean2) ** 2, axis=(0, 1, 2, 3))
    a2 = jnp.maximum(
        (h1 - mean2) / jnp.sqrt(var2 + EPS) * p["gamma2"] + p["beta2"], 0.0
    )
    out = lax.conv_general_dilated(
        a2, p["w2"], window_strides=(1, 1, 1), padding=[(1, 1)] * 3,
        dimension_numbers=("NDHWC", "DHWIO", "NDHWC"),
    ) + p["b2"]
    return jnp.transpose(out, (0, 4, 1, 2, 3))


if __name__ == "__main__":
    N, C_IN, C_OUT, D, H, W = 2, 4, 8, 8, 8, 8

    key = jax.random.PRNGKey(0)
    kx, kp = jax.random.split(key)
    x = jax.random.normal(kx, (N, C_IN, D, H, W), jnp.float32)  # NCDHW (PyTorch)
    params = init_params(kp, C_IN, C_OUT)

    y = jax.block_until_ready(double_conv3d(x, params))
    y_ref = jax.block_until_ready(reference(x, params))

    assert y.shape == (N, C_OUT, D, H, W)
    assert jnp.allclose(y, y_ref, atol=5e-4, rtol=5e-4), (
        float(jnp.max(jnp.abs(y - y_ref)))
    )
    print("KERNEL_OK")
</pallas_src>

<mosaic_0001>
module attributes {stable_mosaic.version = 11 : i64} {
  func.func @_bn_relu_conv1x1_kernel(%arg0: i32, %arg1: memref<1024x4xf32, #tpu.memory_space<vmem>>, %arg2: memref<1x4xf32, #tpu.memory_space<vmem>>, %arg3: memref<1x4xf32, #tpu.memory_space<vmem>>, %arg4: memref<4x8xf32, #tpu.memory_space<vmem>>, %arg5: memref<1x8xf32, #tpu.memory_space<vmem>>, %arg6: memref<1024x8xf32, #tpu.memory_space<vmem>>, %arg7: memref<1x1x8xf32, #tpu.memory_space<vmem>>, %arg8: memref<1x1x8xf32, #tpu.memory_space<vmem>>) attributes {dimension_semantics = [#tpu.dimension_semantics<parallel>], iteration_bounds = array<i64: 1>, scalar_prefetch = 0 : i64, scratch_operands = 0 : i64, tpu.core_type = #tpu.core_type<tc>, window_params = [{transform_indices = @transform_0, window_bounds = array<i64: 1024, 4>}, {pipeline_mode = #tpu.pipeline_mode<synchronous>, transform_indices = @transform_1, window_bounds = array<i64: 1, 4>}, {pipeline_mode = #tpu.pipeline_mode<synchronous>, transform_indices = @transform_2, window_bounds = array<i64: 1, 4>}, {pipeline_mode = #tpu.pipeline_mode<synchronous>, transform_indices = @transform_3, window_bounds = array<i64: 4, 8>}, {pipeline_mode = #tpu.pipeline_mode<synchronous>, transform_indices = @transform_4, window_bounds = array<i64: 1, 8>}, {transform_indices = @transform_5, window_bounds = array<i64: 1024, 8>}, {transform_indices = @transform_6, window_bounds = array<i64: 1, 1, 8>}, {transform_indices = @transform_7, window_bounds = array<i64: 1, 1, 8>}]} {
    %c0 = arith.constant 0 : index
    %c0_0 = arith.constant 0 : index
    %0 = vector.load %arg1[%c0, %c0_0] : memref<1024x4xf32, #tpu.memory_space<vmem>>, vector<1024x4xf32>
    %c0_1 = arith.constant 0 : index
    %c0_2 = arith.constant 0 : index
    %1 = vector.load %arg2[%c0_1, %c0_2] : memref<1x4xf32, #tpu.memory_space<vmem>>, vector<1x4xf32>
    %2 = vector.broadcast %1 : vector<1x4xf32> to vector<1024x4xf32>
    %3 = arith.mulf %0, %2 : vector<1024x4xf32>
    %c0_3 = arith.constant 0 : index
    %c0_4 = arith.constant 0 : index
    %4 = vector.load %arg3[%c0_3, %c0_4] : memref<1x4xf32, #tpu.memory_space<vmem>>, vector<1x4xf32>
    %5 = vector.broadcast %4 : vector<1x4xf32> to vector<1024x4xf32>
    %6 = arith.addf %3, %5 : vector<1024x4xf32>
    %cst = arith.constant 0.000000e+00 : f32
    %7 = vector.broadcast %cst : f32 to vector<1024x4xf32>
    %8 = arith.maximumf %6, %7 : vector<1024x4xf32>
    %cst_5 = arith.constant 0.000000e+00 : f32
    %9 = vector.broadcast %cst_5 : f32 to vector<1024x8xf32>
    %c0_6 = arith.constant 0 : index
    %c0_7 = arith.constant 0 : index
    %10 = vector.load %arg5[%c0_6, %c0_7] : memref<1x8xf32, #tpu.memory_space<vmem>>, vector<1x8xf32>
    %11 = vector.broadcast %10 : vector<1x8xf32> to vector<1024x8xf32>
    %12 = arith.addf %9, %11 : vector<1024x8xf32>
    %13 = vector.extract_strided_slice %8 {offsets = [0, 0], sizes = [1024, 1], strides = [1, 1]} : vector<1024x4xf32> to vector<1024x1xf32>
    %c0_8 = arith.constant 0 : index
    %c0_9 = arith.constant 0 : index
    %14 = vector.load %arg4[%c0_8, %c0_9] : memref<4x8xf32, #tpu.memory_space<vmem>>, vector<1x8xf32>
    %15 = vector.broadcast %13 : vector<1024x1xf32> to vector<1024x8xf32>
    %16 = vector.broadcast %14 : vector<1x8xf32> to vector<1024x8xf32>
    %17 = arith.mulf %15, %16 : vector<1024x8xf32>
    %18 = arith.addf %12, %17 : vector<1024x8xf32>
    %19 = vector.extract_strided_slice %8 {offsets = [0, 1], sizes = [1024, 1], strides = [1, 1]} : vector<1024x4xf32> to vector<1024x1xf32>
    %c1 = arith.constant 1 : index
    %c0_10 = arith.constant 0 : index
    %20 = vector.load %arg4[%c1, %c0_10] : memref<4x8xf32, #tpu.memory_space<vmem>>, vector<1x8xf32>
    %21 = vector.broadcast %19 : vector<1024x1xf32> to vector<1024x8xf32>
    %22 = vector.broadcast %20 : vector<1x8xf32> to vector<1024x8xf32>
    %23 = arith.mulf %21, %22 : vector<1024x8xf32>
    %24 = arith.addf %18, %23 : vector<1024x8xf32>
    %25 = vector.extract_strided_slice %8 {offsets = [0, 2], sizes = [1024, 1], strides = [1, 1]} : vector<1024x4xf32> to vector<1024x1xf32>
    %c2 = arith.constant 2 : index
    %c0_11 = arith.constant 0 : index
    %26 = vector.load %arg4[%c2, %c0_11] : memref<4x8xf32, #tpu.memory_space<vmem>>, vector<1x8xf32>
    %27 = vector.broadcast %25 : vector<1024x1xf32> to vector<1024x8xf32>
    %28 = vector.broadcast %26 : vector<1x8xf32> to vector<1024x8xf32>
    %29 = arith.mulf %27, %28 : vector<1024x8xf32>
    %30 = arith.addf %24, %29 : vector<1024x8xf32>
    %31 = vector.extract_strided_slice %8 {offsets = [0, 3], sizes = [1024, 1], strides = [1, 1]} : vector<1024x4xf32> to vector<1024x1xf32>
    %c3 = arith.constant 3 : index
    %c0_12 = arith.constant 0 : index
    %32 = vector.load %arg4[%c3, %c0_12] : memref<4x8xf32, #tpu.memory_space<vmem>>, vector<1x8xf32>
    %33 = vector.broadcast %31 : vector<1024x1xf32> to vector<1024x8xf32>
    %34 = vector.broadcast %32 : vector<1x8xf32> to vector<1024x8xf32>
    %35 = arith.mulf %33, %34 : vector<1024x8xf32>
    %36 = arith.addf %30, %35 : vector<1024x8xf32>
    %c0_13 = arith.constant 0 : index
    %c0_14 = arith.constant 0 : index
    %37 = vector.load %arg6[%c0_13, %c0_14] : memref<1024x8xf32, #tpu.memory_space<vmem>>, vector<1024x8xf32>
    tpu.vector_store %arg6[%c0_13, %c0_14], %36 {strides = array<i32>} : memref<1024x8xf32, #tpu.memory_space<vmem>>, vector<1024x8xf32>,
    %cst_15 = arith.constant dense<0.000000e+00> : vector<8xf32>
    %38 = vector.multi_reduction <add>, %36, %cst_15 [0] : vector<1024x8xf32> to vector<8xf32>
    %39 = vector.shape_cast %38 : vector<8xf32> to vector<1x8xf32>
    %c0_16 = arith.constant 0 : index
    %c0_17 = arith.constant 0 : index
    %c0_18 = arith.constant 0 : index
    %40 = vector.load %arg7[%c0_16, %c0_17, %c0_18] : memref<1x1x8xf32, #tpu.memory_space<vmem>>, vector<1x1x8xf32>
    %41 = vector.shape_cast %40 : vector<1x1x8xf32> to vector<1x8xf32>
    %42 = vector.shape_cast %39 : vector<1x8xf32> to vector<1x1x8xf32>
    tpu.vector_store %arg7[%c0_16, %c0_17, %c0_18], %42 {strides = array<i32>} : memref<1x1x8xf32, #tpu.memory_space<vmem>>, vector<1x1x8xf32>,
    %43 = arith.mulf %36, %36 : vector<1024x8xf32>
    %cst_19 = arith.constant dense<0.000000e+00> : vector<8xf32>
    %44 = vector.multi_reduction <add>, %43, %cst_19 [0] : vector<1024x8xf32> to vector<8xf32>
    %45 = vector.shape_cast %44 : vector<8xf32> to vector<1x8xf32>
    %c0_20 = arith.constant 0 : index
    %c0_21 = arith.constant 0 : index
    %c0_22 = arith.constant 0 : index
    %46 = vector.load %arg8[%c0_20, %c0_21, %c0_22] : memref<1x1x8xf32, #tpu.memory_space<vmem>>, vector<1x1x8xf32>
    %47 = vector.shape_cast %46 : vector<1x1x8xf32> to vector<1x8xf32>
    %48 = vector.shape_cast %45 : vector<1x8xf32> to vector<1x1x8xf32>
    tpu.vector_store %arg8[%c0_20, %c0_21, %c0_22], %48 {strides = array<i32>} : memref<1x1x8xf32, #tpu.memory_space<vmem>>, vector<1x1x8xf32>,
    return
  }
  func.func @transform_0(%arg0: i32) -> (i32, i32) {
    %c0_i32 = arith.constant 0 : i32
    %c0_i32_0 = arith.constant 0 : i32
    return %arg0, %c0_i32 : i32, i32
  }
  func.func @transform_1(%arg0: i32) -> (i32, i32) {
    %c0_i32 = arith.constant 0 : i32
    %c0_i32_0 = arith.constant 0 : i32
    %c0_i32_1 = arith.constant 0 : i32
    return %c0_i32, %c0_i32_0 : i32, i32
  }
  func.func @transform_2(%arg0: i32) -> (i32, i32) {
    %c0_i32 = arith.constant 0 : i32
    %c0_i32_0 = arith.constant 0 : i32
    %c0_i32_1 = arith.constant 0 : i32
    return %c0_i32, %c0_i32_0 : i32, i32
  }
  func.func @transform_3(%arg0: i32) -> (i32, i32) {
    %c0_i32 = arith.constant 0 : i32
    %c0_i32_0 = arith.constant 0 : i32
    %c0_i32_1 = arith.constant 0 : i32
    return %c0_i32, %c0_i32_0 : i32, i32
  }
  func.func @transform_4(%arg0: i32) -> (i32, i32) {
    %c0_i32 = arith.constant 0 : i32
    %c0_i32_0 = arith.constant 0 : i32
    %c0_i32_1 = arith.constant 0 : i32
    return %c0_i32, %c0_i32_0 : i32, i32
  }
  func.func @transform_5(%arg0: i32) -> (i32, i32) {
    %c0_i32 = arith.constant 0 : i32
    %c0_i32_0 = arith.constant 0 : i32
    return %arg0, %c0_i32 : i32, i32
  }
  func.func @transform_6(%arg0: i32) -> (i32, i32, i32) {
    %c0_i32 = arith.constant 0 : i32
    %c0_i32_0 = arith.constant 0 : i32
    %c0_i32_1 = arith.constant 0 : i32
    return %arg0, %c0_i32, %c0_i32_0 : i32, i32, i32
  }
  func.func @transform_7(%arg0: i32) -> (i32, i32, i32) {
    %c0_i32 = arith.constant 0 : i32
    %c0_i32_0 = arith.constant 0 : i32
    %c0_i32_1 = arith.constant 0 : i32
    return %arg0, %c0_i32, %c0_i32_0 : i32, i32, i32
  }
}

module attributes {stable_mosaic.version = 11 : i64} {
  func.func @_bn_relu_conv3x3_kernel(%arg0: i32, %arg1: memref<1x8x8x8x8xf32, #tpu.memory_space<vmem>>, %arg2: memref<1x8xf32, #tpu.memory_space<vmem>>, %arg3: memref<1x8xf32, #tpu.memory_space<vmem>>, %arg4: memref<3x72x8xf32, #tpu.memory_space<vmem>>, %arg5: memref<1x8xf32, #tpu.memory_space<vmem>>, %arg6: memref<1x8x8x8x8xf32, #tpu.memory_space<vmem>>, %arg7: memref<10x10x10x8xf32, #tpu.memory_space<vmem>>, %arg8: memref<640x72xf32, #tpu.memory_space<vmem>>) attributes {dimension_semantics = [#tpu.dimension_semantics<parallel>], iteration_bounds = array<i64: 2>, scalar_prefetch = 0 : i64, scratch_operands = 2 : i64, tpu.core_type = #tpu.core_type<tc>, window_params = [{transform_indices = @transform_0, window_bounds = array<i64: 1, 8, 8, 8, 8>}, {pipeline_mode = #tpu.pipeline_mode<synchronous>, transform_indices = @transform_1, window_bounds = array<i64: 1, 8>}, {pipeline_mode = #tpu.pipeline_mode<synchronous>, transform_indices = @transform_2, window_bounds = array<i64: 1, 8>}, {pipeline_mode = #tpu.pipeline_mode<synchronous>, transform_indices = @transform_3, window_bounds = array<i64: 3, 72, 8>}, {pipeline_mode = #tpu.pipeline_mode<synchronous>, transform_indices = @transform_4, window_bounds = array<i64: 1, 8>}, {transform_indices = @transform_5, window_bounds = array<i64: 1, 8, 8, 8, 8>}]} {
    %c0 = arith.constant 0 : index
    %c0_0 = arith.constant 0 : index
    %c0_1 = arith.constant 0 : index
    %c0_2 = arith.constant 0 : index
    %c0_3 = arith.constant 0 : index
    %0 = vector.load %arg1[%c0, %c0_0, %c0_1, %c0_2, %c0_3] : memref<1x8x8x8x8xf32, #tpu.memory_space<vmem>>, vector<1x8x8x8x8xf32>
    %1 = vector.shape_cast %0 : vector<1x8x8x8x8xf32> to vector<8x8x8x8xf32>
    %c0_4 = arith.constant 0 : index
    %c0_5 = arith.constant 0 : index
    %2 = vector.load %arg2[%c0_4, %c0_5] : memref<1x8xf32, #tpu.memory_space<vmem>>, vector<1x8xf32>
    %3 = vector.shape_cast %2 : vector<1x8xf32> to vector<1x1x1x8xf32>
    %4 = vector.broadcast %3 : vector<1x1x1x8xf32> to vector<8x8x8x8xf32>
    %5 = arith.mulf %1, %4 : vector<8x8x8x8xf32>
    %c0_6 = arith.constant 0 : index
    %c0_7 = arith.constant 0 : index
    %6 = vector.load %arg3[%c0_6, %c0_7] : memref<1x8xf32, #tpu.memory_space<vmem>>, vector<1x8xf32>
    %7 = vector.shape_cast %6 : vector<1x8xf32> to vector<1x1x1x8xf32>
    %8 = vector.broadcast %7 : vector<1x1x1x8xf32> to vector<8x8x8x8xf32>
    %9 = arith.addf %5, %8 : vector<8x8x8x8xf32>
    %cst = arith.constant 0.000000e+00 : f32
    %10 = vector.broadcast %cst : f32 to vector<8x8x8x8xf32>
    %11 = arith.maximumf %9, %10 : vector<8x8x8x8xf32>
    %cst_8 = arith.constant 0.000000e+00 : f32
    %12 = vector.broadcast %cst_8 : f32 to vector<1x10x10x8xf32>
    %c0_9 = arith.constant 0 : index
    %c0_10 = arith.constant 0 : index
    %c0_11 = arith.constant 0 : index
    %c0_12 = arith.constant 0 : index
    %13 = vector.load %arg7[%c0_9, %c0_10, %c0_11, %c0_12] : memref<10x10x10x8xf32, #tpu.memory_space<vmem>>, vector<1x10x10x8xf32>
    tpu.vector_store %arg7[%c0_9, %c0_10, %c0_11, %c0_12], %12 {strides = array<i32>} : memref<10x10x10x8xf32, #tpu.memory_space<vmem>>, vector<1x10x10x8xf32>,
    %c9 = arith.constant 9 : index
    %c0_13 = arith.constant 0 : index
    %c0_14 = arith.constant 0 : index
    %c0_15 = arith.constant 0 : index
    %14 = vector.load %arg7[%c9, %c0_13, %c0_14, %c0_15] : memref<10x10x10x8xf32, #tpu.memory_space<vmem>>, vector<1x10x10x8xf32>
    tpu.vector_store %arg7[%c9, %c0_13, %c0_14, %c0_15], %12 {strides = array<i32>} : memref<10x10x10x8xf32, #tpu.memory_space<vmem>>, vector<1x10x10x8xf32>,
    %cst_16 = arith.constant 0.000000e+00 : f32
    %15 = vector.broadcast %cst_16 : f32 to vector<10x1x10x8xf32>
    %c0_17 = arith.constant 0 : index
    %c0_18 = arith.constant 0 : index
    %c0_19 = arith.constant 0 : index
    %c0_20 = arith.constant 0 : index
    %16 = vector.load %arg7[%c0_17, %c0_18, %c0_19, %c0_20] : memref<10x10x10x8xf32, #tpu.memory_space<vmem>>, vector<10x1x10x8xf32>
    tpu.vector_store %arg7[%c0_17, %c0_18, %c0_19, %c0_20], %15 {strides = array<i32>} : memref<10x10x10x8xf32, #tpu.memory_space<vmem>>, vector<10x1x10x8xf32>,
    %c0_21 = arith.constant 0 : index
    %c9_22 = arith.constant 9 : index
    %c0_23 = arith.constant 0 : index
    %c0_24 = arith.constant 0 : index
    %17 = vector.load %arg7[%c0_21, %c9_22, %c0_23, %c0_24] : memref<10x10x10x8xf32, #tpu.memory_space<vmem>>, vector<10x1x10x8xf32>
    tpu.vector_store %arg7[%c0_21, %c9_22, %c0_23, %c0_24], %15 {strides = array<i32>} : memref<10x10x10x8xf32, #tpu.memory_space<vmem>>, vector<10x1x10x8xf32>,
    %cst_25 = arith.constant 0.000000e+00 : f32
    %18 = vector.broadcast %cst_25 : f32 to vector<10x10x1x8xf32>
    %c0_26 = arith.constant 0 : index
    %c0_27 = arith.constant 0 : index
    %c0_28 = arith.constant 0 : index
    %c0_29 = arith.constant 0 : index
    %19 = vector.load %arg7[%c0_26, %c0_27, %c0_28, %c0_29] : memref<10x10x10x8xf32, #tpu.memory_space<vmem>>, vector<10x10x1x8xf32>
    tpu.vector_store %arg7[%c0_26, %c0_27, %c0_28, %c0_29], %18 {strides = array<i32>} : memref<10x10x10x8xf32, #tpu.memory_space<vmem>>, vector<10x10x1x8xf32>,
    %c0_30 = arith.constant 0 : index
    %c0_31 = arith.constant 0 : index
    %c9_32 = arith.constant 9 : index
    %c0_33 = arith.constant 0 : index
    %20 = vector.load %arg7[%c0_30, %c0_31, %c9_32, %c0_33] : memref<10x10x10x8xf32, #tpu.memory_space<vmem>>, vector<10x10x1x8xf32>
    tpu.vector_store %arg7[%c0_30, %c0_31, %c9_32, %c0_33], %18 {strides = array<i32>} : memref<10x10x10x8xf32, #tpu.memory_space<vmem>>, vector<10x10x1x8xf32>,
    %c1 = arith.constant 1 : index
    %c1_34 = arith.constant 1 : index
    %c1_35 = arith.constant 1 : index
    %c0_36 = arith.constant 0 : index
    %21 = vector.load %arg7[%c1, %c1_34, %c1_35, %c0_36] : memref<10x10x10x8xf32, #tpu.memory_space<vmem>>, vector<8x8x8x8xf32>
    tpu.vector_store %arg7[%c1, %c1_34, %c1_35, %c0_36], %11 {strides = array<i32>} : memref<10x10x10x8xf32, #tpu.memory_space<vmem>>, vector<8x8x8x8xf32>,
    %c0_37 = arith.constant 0 : index
    %c0_38 = arith.constant 0 : index
    %c0_39 = arith.constant 0 : index
    %c0_40 = arith.constant 0 : index
    %22 = vector.load %arg7[%c0_37, %c0_38, %c0_39, %c0_40] : memref<10x10x10x8xf32, #tpu.memory_space<vmem>>, vector<10x8x8x8xf32>
    %23 = vector.shape_cast %22 : vector<10x8x8x8xf32> to vector<640x8xf32>
    %c0_41 = arith.constant 0 : index
    %c0_42 = arith.constant 0 : index
    %24 = vector.load %arg8[%c0_41, %c0_42] : memref<640x72xf32, #tpu.memory_space<vmem>>, vector<640x8xf32>
    tpu.vector_store %arg8[%c0_41, %c0_42], %23 {strides = array<i32>} : memref<640x72xf32, #tpu.memory_space<vmem>>, vector<640x8xf32>,
    %c0_43 = arith.constant 0 : index
    %c0_44 = arith.constant 0 : index
    %c1_45 = arith.constant 1 : index
    %c0_46 = arith.constant 0 : index
    %25 = vector.load %arg7[%c0_43, %c0_44, %c1_45, %c0_46] : memref<10x10x10x8xf32, #tpu.memory_space<vmem>>, vector<10x8x8x8xf32>
    %26 = vector.shape_cast %25 : vector<10x8x8x8xf32> to vector<640x8xf32>
    %c0_47 = arith.constant 0 : index
    %c8 = arith.constant 8 : index
    %27 = vector.load %arg8[%c0_47, %c8] : memref<640x72xf32, #tpu.memory_space<vmem>>, vector<640x8xf32>
    tpu.vector_store %arg8[%c0_47, %c8], %26 {strides = array<i32>} : memref<640x72xf32, #tpu.memory_space<vmem>>, vector<640x8xf32>,
    %c0_48 = arith.constant 0 : index
    %c0_49 = arith.constant 0 : index
    %c2 = arith.constant 2 : index
    %c0_50 = arith.constant 0 : index
    %28 = vector.load %arg7[%c0_48, %c0_49, %c2, %c0_50] : memref<10x10x10x8xf32, #tpu.memory_space<vmem>>, vector<10x8x8x8xf32>
    %29 = vector.shape_cast %28 : vector<10x8x8x8xf32> to vector<640x8xf32>
    %c0_51 = arith.constant 0 : index
    %c16 = arith.constant 16 : index
    %30 = vector.load %arg8[%c0_51, %c16] : memref<640x72xf32, #tpu.memory_space<vmem>>, vector<640x8xf32>
    tpu.vector_store %arg8[%c0_51, %c16], %29 {strides = array<i32>} : memref<640x72xf32, #tpu.memory_space<vmem>>, vector<640x8xf32>,
    %c0_52 = arith.constant 0 : index
    %c1_53 = arith.constant 1 : index
    %c0_54 = arith.constant 0 : index
    %c0_55 = arith.constant 0 : index
    %31 = vector.load %arg7[%c0_52, %c1_53, %c0_54, %c0_55] : memref<10x10x10x8xf32, #tpu.memory_space<vmem>>, vector<10x8x8x8xf32>
    %32 = vector.shape_cast %31 : vector<10x8x8x8xf32> to vector<640x8xf32>
    %c0_56 = arith.constant 0 : index
    %c24 = arith.constant 24 : index
    %33 = vector.load %arg8[%c0_56, %c24] : memref<640x72xf32, #tpu.memory_space<vmem>>, vector<640x8xf32>
    tpu.vector_store %arg8[%c0_56, %c24], %32 {strides = array<i32>} : memref<640x72xf32, #tpu.memory_space<vmem>>, vector<640x8xf32>,
    %c0_57 = arith.constant 0 : index
    %c1_58 = arith.constant 1 : index
    %c1_59 = arith.constant 1 : index
    %c0_60 = arith.constant 0 : index
    %34 = vector.load %arg7[%c0_57, %c1_58, %c1_59, %c0_60] : memref<10x10x10x8xf32, #tpu.memory_space<vmem>>, vector<10x8x8x8xf32>
    %35 = vector.shape_cast %34 : vector<10x8x8x8xf32> to vector<640x8xf32>
    %c0_61 = arith.constant 0 : index
    %c32 = arith.constant 32 : index
    %36 = vector.load %arg8[%c0_61, %c32] : memref<640x72xf32, #tpu.memory_space<vmem>>, vector<640x8xf32>
    tpu.vector_store %arg8[%c0_61, %c32], %35 {strides = array<i32>} : memref<640x72xf32, #tpu.memory_space<vmem>>, vector<640x8xf32>,
    %c0_62 = arith.constant 0 : index
    %c1_63 = arith.constant 1 : index
    %c2_64 = arith.constant 2 : index
    %c0_65 = arith.constant 0 : index
    %37 = vector.load %arg7[%c0_62, %c1_63, %c2_64, %c0_65] : memref<10x10x10x8xf32, #tpu.memory_space<vmem>>, vector<10x8x8x8xf32>
    %38 = vector.shape_cast %37 : vector<10x8x8x8xf32> to vector<640x8xf32>
    %c0_66 = arith.constant 0 : index
    %c40 = arith.constant 40 : index
    %39 = vector.load %arg8[%c0_66, %c40] : memref<640x72xf32, #tpu.memory_space<vmem>>, vector<640x8xf32>
    tpu.vector_store %arg8[%c0_66, %c40], %38 {strides = array<i32>} : memref<640x72xf32, #tpu.memory_space<vmem>>, vector<640x8xf32>,
    %c0_67 = arith.constant 0 : index
    %c2_68 = arith.constant 2 : index
    %c0_69 = arith.constant 0 : index
    %c0_70 = arith.constant 0 : index
    %40 = vector.load %arg7[%c0_67, %c2_68, %c0_69, %c0_70] : memref<10x10x10x8xf32, #tpu.memory_space<vmem>>, vector<10x8x8x8xf32>
    %41 = vector.shape_cast %40 : vector<10x8x8x8xf32> to vector<640x8xf32>
    %c0_71 = arith.constant 0 : index
    %c48 = arith.constant 48 : index
    %42 = vector.load %arg8[%c0_71, %c48] : memref<640x72xf32, #tpu.memory_space<vmem>>, vector<640x8xf32>
    tpu.vector_store %arg8[%c0_71, %c48], %41 {strides = array<i32>} : memref<640x72xf32, #tpu.memory_space<vmem>>, vector<640x8xf32>,
    %c0_72 = arith.constant 0 : index
    %c2_73 = arith.constant 2 : index
    %c1_74 = arith.constant 1 : index
    %c0_75 = arith.constant 0 : index
    %43 = vector.load %arg7[%c0_72, %c2_73, %c1_74, %c0_75] : memref<10x10x10x8xf32, #tpu.memory_space<vmem>>, vector<10x8x8x8xf32>
    %44 = vector.shape_cast %43 : vector<10x8x8x8xf32> to vector<640x8xf32>
    %c0_76 = arith.constant 0 : index
    %c56 = arith.constant 56 : index
    %45 = vector.load %arg8[%c0_76, %c56] : memref<640x72xf32, #tpu.memory_space<vmem>>, vector<640x8xf32>
    tpu.vector_store %arg8[%c0_76, %c56], %44 {strides = array<i32>} : memref<640x72xf32, #tpu.memory_space<vmem>>, vector<640x8xf32>,
    %c0_77 = arith.constant 0 : index
    %c2_78 = arith.constant 2 : index
    %c2_79 = arith.constant 2 : index
    %c0_80 = arith.constant 0 : index
    %46 = vector.load %arg7[%c0_77, %c2_78, %c2_79, %c0_80] : memref<10x10x10x8xf32, #tpu.memory_space<vmem>>, vector<10x8x8x8xf32>
    %47 = vector.shape_cast %46 : vector<10x8x8x8xf32> to vector<640x8xf32>
    %c0_81 = arith.constant 0 : index
    %c64 = arith.constant 64 : index
    %48 = vector.load %arg8[%c0_81, %c64] : memref<640x72xf32, #tpu.memory_space<vmem>>, vector<640x8xf32>
    tpu.vector_store %arg8[%c0_81, %c64], %47 {strides = array<i32>} : memref<640x72xf32, #tpu.memory_space<vmem>>, vector<640x8xf32>,
    %cst_82 = arith.constant 0.000000e+00 : f32
    %49 = vector.broadcast %cst_82 : f32 to vector<512x8xf32>
    %c0_83 = arith.constant 0 : index
    %c0_84 = arith.constant 0 : index
    %50 = vector.load %arg5[%c0_83, %c0_84] : memref<1x8xf32, #tpu.memory_space<vmem>>, vector<1x8xf32>
    %51 = vector.broadcast %50 : vector<1x8xf32> to vector<512x8xf32>
    %52 = arith.addf %49, %51 : vector<512x8xf32>
    %c0_85 = arith.constant 0 : index
    %c0_86 = arith.constant 0 : index
    %53 = vector.load %arg8[%c0_85, %c0_86] : memref<640x72xf32, #tpu.memory_space<vmem>>, vector<512x72xf32>
    %c0_87 = arith.constant 0 : index
    %c0_88 = arith.constant 0 : index
    %c0_89 = arith.constant 0 : index
    %54 = vector.load %arg4[%c0_87, %c0_88, %c0_89] : memref<3x72x8xf32, #tpu.memory_space<vmem>>, vector<1x72x8xf32>
    %55 = vector.shape_cast %54 : vector<1x72x8xf32> to vector<72x8xf32>
    %cst_90 = arith.constant dense<0.000000e+00> : vector<512x8xf32>
    %56 = tpu.matmul %53, %55, %cst_90 {dimension_numbers = #tpu.dot_dimension_numbers<[1], [0], [0], [1], [0, 0, 1, 1], [], []>} : vector<512x72xf32>, vector<72x8xf32>, vector<512x8xf32> -> vector<512x8xf32>
    %57 = arith.addf %52, %56 : vector<512x8xf32>
    %c64_91 = arith.constant 64 : index
    %c0_92 = arith.constant 0 : index
    %58 = vector.load %arg8[%c64_91, %c0_92] : memref<640x72xf32, #tpu.memory_space<vmem>>, vector<512x72xf32>
    %c1_93 = arith.constant 1 : index
    %c0_94 = arith.constant 0 : index
    %c0_95 = arith.constant 0 : index
    %59 = vector.load %arg4[%c1_93, %c0_94, %c0_95] : memref<3x72x8xf32, #tpu.memory_space<vmem>>, vector<1x72x8xf32>
    %60 = vector.shape_cast %59 : vector<1x72x8xf32> to vector<72x8xf32>
    %cst_96 = arith.constant dense<0.000000e+00> : vector<512x8xf32>
    %61 = tpu.matmul %58, %60, %cst_96 {dimension_numbers = #tpu.dot_dimension_numbers<[1], [0], [0], [1], [0, 0, 1, 1], [], []>} : vector<512x72xf32>, vector<72x8xf32>, vector<512x8xf32> -> vector<512x8xf32>
    %62 = arith.addf %57, %61 : vector<512x8xf32>
    %c128 = arith.constant 128 : index
    %c0_97 = arith.constant 0 : index
    %63 = vector.load %arg8[%c128, %c0_97] : memref<640x72xf32, #tpu.memory_space<vmem>>, vector<512x72xf32>
    %c2_98 = arith.constant 2 : index
    %c0_99 = arith.constant 0 : index
    %c0_100 = arith.constant 0 : index
    %64 = vector.load %arg4[%c2_98, %c0_99, %c0_100] : memref<3x72x8xf32, #tpu.memory_space<vmem>>, vector<1x72x8xf32>
    %65 = vector.shape_cast %64 : vector<1x72x8xf32> to vector<72x8xf32>
    %cst_101 = arith.constant dense<0.000000e+00> : vector<512x8xf32>
    %66 = tpu.matmul %63, %65, %cst_101 {dimension_numbers = #tpu.dot_dimension_numbers<[1], [0], [0], [1], [0, 0, 1, 1], [], []>} : vector<512x72xf32>, vector<72x8xf32>, vector<512x8xf32> -> vector<512x8xf32>
    %67 = arith.addf %62, %66 : vector<512x8xf32>
    %68 = vector.shape_cast %67 : vector<512x8xf32> to vector<8x8x8x8xf32>
    %c0_102 = arith.constant 0 : index
    %c0_103 = arith.constant 0 : index
    %c0_104 = arith.constant 0 : index
    %c0_105 = arith.constant 0 : index
    %c0_106 = arith.constant 0 : index
    %69 = vector.load %arg6[%c0_102, %c0_103, %c0_104, %c0_105, %c0_106] : memref<1x8x8x8x8xf32, #tpu.memory_space<vmem>>, vector<1x8x8x8x8xf32>
    %70 = vector.shape_cast %69 : vector<1x8x8x8x8xf32> to vector<8x8x8x8xf32>
    %71 = vector.shape_cast %68 : vector<8x8x8x8xf32> to vector<1x8x8x8x8xf32>
    tpu.vector_store %arg6[%c0_102, %c0_103, %c0_104, %c0_105, %c0_106], %71 {strides = array<i32>} : memref<1x8x8x8x8xf32, #tpu.memory_space<vmem>>, vector<1x8x8x8x8xf32>,
    return
  }
  func.func @transform_0(%arg0: i32) -> (i32, i32, i32, i32, i32) {
    %c0_i32 = arith.constant 0 : i32
    %c0_i32_0 = arith.constant 0 : i32
    %c0_i32_1 = arith.constant 0 : i32
    %c0_i32_2 = arith.constant 0 : i32
    %c0_i32_3 = arith.constant 0 : i32
    return %arg0, %c0_i32, %c0_i32_0, %c0_i32_1, %c0_i32_2 : i32, i32, i32, i32, i32
  }
  func.func @transform_1(%arg0: i32) -> (i32, i32) {
    %c0_i32 = arith.constant 0 : i32
    %c0_i32_0 = arith.constant 0 : i32
    %c0_i32_1 = arith.constant 0 : i32
    return %c0_i32, %c0_i32_0 : i32, i32
  }
  func.func @transform_2(%arg0: i32) -> (i32, i32) {
    %c0_i32 = arith.constant 0 : i32
    %c0_i32_0 = arith.constant 0 : i32
    %c0_i32_1 = arith.constant 0 : i32
    return %c0_i32, %c0_i32_0 : i32, i32
  }
  func.func @transform_3(%arg0: i32) -> (i32, i32, i32) {
    %c0_i32 = arith.constant 0 : i32
    %c0_i32_0 = arith.constant 0 : i32
    %c0_i32_1 = arith.constant 0 : i32
    %c0_i32_2 = arith.constant 0 : i32
    return %c0_i32, %c0_i32_0, %c0_i32_1 : i32, i32, i32
  }
  func.func @transform_4(%arg0: i32) -> (i32, i32) {
    %c0_i32 = arith.constant 0 : i32
    %c0_i32_0 = arith.constant 0 : i32
    %c0_i32_1 = arith.constant 0 : i32
    return %c0_i32, %c0_i32_0 : i32, i32
  }
  func.func @transform_5(%arg0: i32) -> (i32, i32, i32, i32, i32) {
    %c0_i32 = arith.constant 0 : i32
    %c0_i32_0 = arith.constant 0 : i32
    %c0_i32_1 = arith.constant 0 : i32
    %c0_i32_2 = arith.constant 0 : i32
    %c0_i32_3 = arith.constant 0 : i32
    return %arg0, %c0_i32, %c0_i32_0, %c0_i32_1, %c0_i32_2 : i32, i32, i32, i32, i32
  }
}

</mosaic_0001>

<llo_original>
// kernel: double_conv3d.2
$region0: #{double_conv3d.2}
  #allocation0 [shape = 'u32[]', space=smem, size = 0x4, offset = 0x4, fixed_abs, tag = 'smem constant byte address 0x4 - core index']
  #allocation1 [shape = 'u32[144,128]{1,0:T(1,128)}', space=vmem, size = 0x12000, scoped, tag = 'internal scratch']
  %s0 = inlined_call_operand.vmem [shape: f32[1024,4], index: 0, kind: input, shape index: {}]
  %s1 = inlined_call_operand.vmem [shape: f32[1,4], index: 1, kind: input, shape index: {}]
  %s2 = inlined_call_operand.vmem [shape: f32[1,4], index: 2, kind: input, shape index: {}]
  %s3 = inlined_call_operand.vmem [shape: f32[4,8], index: 3, kind: input, shape index: {}]
  %s4 = inlined_call_operand.vmem [shape: f32[1,8], index: 4, kind: input, shape index: {}]
  %s5 = inlined_call_operand.vmem [shape: f32[1024,8], index: 5, kind: output, shape index: {0}]
  %s6 = inlined_call_operand.vmem [shape: f32[1,1,8], index: 6, kind: output, shape index: {1}]
  %s7 = inlined_call_operand.vmem [shape: f32[1,1,8], index: 7, kind: output, shape index: {2}]
  %8 = xla_tuple %s5, %s6, %s7
  %s9 = sld [smem:[#allocation0]]
  $region46: #{double_conv3d.2} parent=0
    _
  %s11 = ssub.s32 1, %s9
  %s12 = scalar_select 0, %s11, %s9
  // Predicated region
  $region2: #{double_conv3d.2} parent=0 // pred_check
    _
  $region3: #{double_conv3d.2} parent=0 // pred_check_branch
    %14 = sbr.rel (0) target = $region5
  $region4: #{double_conv3d.2} parent=0 // pred_region
    _
  $region5: #{double_conv3d.2} parent=0 // pred_fallthru
    _
  // Predicated region
  $region6: #{double_conv3d.2} parent=0 // pred_check
    _
  $region7: #{double_conv3d.2} parent=0 // pred_check_branch
    %16 = sbr.rel (0) target = $region9
  $region8: #{double_conv3d.2} parent=0 // pred_region
    _
  $region9: #{double_conv3d.2} parent=0 // pred_fallthru
    _
  // Predicated region
  $region10: #{double_conv3d.2} parent=0 // pred_check
    _
  $region11: #{double_conv3d.2} parent=0 // pred_check_branch
    %18 = sbr.rel (0) target = $region13
  $region12: #{double_conv3d.2} parent=0 // pred_region
    _
  $region13: #{double_conv3d.2} parent=0 // pred_fallthru
    _
  // Predicated region
  $region14: #{double_conv3d.2} parent=0 // pred_check
    _
  $region15: #{double_conv3d.2} parent=0 // pred_check_branch
    %20 = sbr.rel (0) target = $region17
  $region16: #{double_conv3d.2} parent=0 // pred_region
    _
  $region17: #{double_conv3d.2} parent=0 // pred_fallthru
    _
  // Predicated region
  $region18: #{double_conv3d.2} parent=0 // pred_check
    _
  $region19: #{double_conv3d.2} parent=0 // pred_check_branch
    %22 = sbr.rel (0) target = $region21
  $region20: #{double_conv3d.2} parent=0 // pred_region
    _
  $region21: #{double_conv3d.2} parent=0 // pred_fallthru
    _
  %v23 = vld [vmem:[%s0] sm:$0xff]
  %v24 = vld [vmem:[%s0 + $0x8] sm:$0xff]
  %v25 = vld [vmem:[%s0 + $0x10] sm:$0xff]
  %v26 = vld [vmem:[%s0 + $0x18] sm:$0xff]
  %v27 = vld [vmem:[%s0 + $0x20] sm:$0xff]
  %v28 = vld [vmem:[%s0 + $0x28] sm:$0xff]
  %v29 = vld [vmem:[%s0 + $0x30] sm:$0xff]
  %v30 = vld [vmem:[%s0 + $0x38] sm:$0xff]
  %v31 = vld [vmem:[%s0 + $0x40] sm:$0xff]
  %v32 = vld [vmem:[%s0 + $0x48] sm:$0xff]
  %v33 = vld [vmem:[%s0 + $0x50] sm:$0xff]
  %v34 = vld [vmem:[%s0 + $0x58] sm:$0xff]
  %v35 = vld [vmem:[%s0 + $0x60] sm:$0xff]
  %v36 = vld [vmem:[%s0 + $0x68] sm:$0xff]
  %v37 = vld [vmem:[%s0 + $0x70] sm:$0xff]
  %v38 = vld [vmem:[%s0 + $0x78] sm:$0xff]
  %v39 = vld [vmem:[%s0 + $0x80] sm:$0xff]
  %v40 = vld [vmem:[%s0 + $0x88] sm:$0xff]
  %v41 = vld [vmem:[%s0 + $0x90] sm:$0xff]
  %v42 = vld [vmem:[%s0 + $0x98] sm:$0xff]
  %v43 = vld [vmem:[%s0 + $0xa0] sm:$0xff]
  %v44 = vld [vmem:[%s0 + $0xa8] sm:$0xff]
  %v45 = vld [vmem:[%s0 + $0xb0] sm:$0xff]
  %v46 = vld [vmem:[%s0 + $0xb8] sm:$0xff]
  %v47 = vld [vmem:[%s0 + $0xc0] sm:$0xff]
  %v48 = vld [vmem:[%s0 + $0xc8] sm:$0xff]
  %v49 = vld [vmem:[%s0 + $0xd0] sm:$0xff]
  %v50 = vld [vmem:[%s0 + $0xd8] sm:$0xff]
  %v51 = vld [vmem:[%s0 + $0xe0] sm:$0xff]
  %v52 = vld [vmem:[%s0 + $0xe8] sm:$0xff]
  %v53 = vld [vmem:[%s0 + $0xf0] sm:$0xff]
  %v54 = vld [vmem:[%s0 + $0xf8] sm:$0xff]
  %v55 = vld [vmem:[%s0 + $0x100] sm:$0xff]
  %v56 = vld [vmem:[%s0 + $0x108] sm:$0xff]
  %v57 = vld [vmem:[%s0 + $0x110] sm:$0xff]
  %v58 = vld [vmem:[%s0 + $0x118] sm:$0xff]
  %v59 = vld [vmem:[%s0 + $0x120] sm:$0xff]
  %v60 = vld [vmem:[%s0 + $0x128] sm:$0xff]
  %v61 = vld [vmem:[%s0 + $0x130] sm:$0xff]
  %v62 = vld [vmem:[%s0 + $0x138] sm:$0xff]
  %v63 = vld [vmem:[%s0 + $0x140] sm:$0xff]
  %v64 = vld [vmem:[%s0 + $0x148] sm:$0xff]
  %v65 = vld [vmem:[%s0 + $0x150] sm:$0xff]
  %v66 = vld [vmem:[%s0 + $0x158] sm:$0xff]
  %v67 = vld [vmem:[%s0 + $0x160] sm:$0xff]
  %v68 = vld [vmem:[%s0 + $0x168] sm:$0xff]
  %v69 = vld [vmem:[%s0 + $0x170] sm:$0xff]
  %v70 = vld [vmem:[%s0 + $0x178] sm:$0xff]
  %v71 = vld [vmem:[%s0 + $0x180] sm:$0xff]
  %v72 = vld [vmem:[%s0 + $0x188] sm:$0xff]
  %v73 = vld [vmem:[%s0 + $0x190] sm:$0xff]
  %v74 = vld [vmem:[%s0 + $0x198] sm:$0xff]
  %v75 = vld [vmem:[%s0 + $0x1a0] sm:$0xff]
  %v76 = vld [vmem:[%s0 + $0x1a8] sm:$0xff]
  %v77 = vld [vmem:[%s0 + $0x1b0] sm:$0xff]
  %v78 = vld [vmem:[%s0 + $0x1b8] sm:$0xff]
  %v79 = vld [vmem:[%s0 + $0x1c0] sm:$0xff]
  %v80 = vld [vmem:[%s0 + $0x1c8] sm:$0xff]
  %v81 = vld [vmem:[%s0 + $0x1d0] sm:$0xff]
  %v82 = vld [vmem:[%s0 + $0x1d8] sm:$0xff]
  %v83 = vld [vmem:[%s0 + $0x1e0] sm:$0xff]
  %v84 = vld [vmem:[%s0 + $0x1e8] sm:$0xff]
  %v85 = vld [vmem:[%s0 + $0x1f0] sm:$0xff]
  %v86 = vld [vmem:[%s0 + $0x1f8] sm:$0xff]
  %v87 = vld [vmem:[%s0 + $0x200] sm:$0xff]
  %v88 = vld [vmem:[%s0 + $0x208] sm:$0xff]
  %v89 = vld [vmem:[%s0 + $0x210] sm:$0xff]
  %v90 = vld [vmem:[%s0 + $0x218] sm:$0xff]
  %v91 = vld [vmem:[%s0 + $0x220] sm:$0xff]
  %v92 = vld [vmem:[%s0 + $0x228] sm:$0xff]
  %v93 = vld [vmem:[%s0 + $0x230] sm:$0xff]
  %v94 = vld [vmem:[%s0 + $0x238] sm:$0xff]
  %v95 = vld [vmem:[%s0 + $0x240] sm:$0xff]
  %v96 = vld [vmem:[%s0 + $0x248] sm:$0xff]
  %v97 = vld [vmem:[%s0 + $0x250] sm:$0xff]
  %v98 = vld [vmem:[%s0 + $0x258] sm:$0xff]
  %v99 = vld [vmem:[%s0 + $0x260] sm:$0xff]
  %v100 = vld [vmem:[%s0 + $0x268] sm:$0xff]
  %v101 = vld [vmem:[%s0 + $0x270] sm:$0xff]
  %v102 = vld [vmem:[%s0 + $0x278] sm:$0xff]
  %v103 = vld [vmem:[%s0 + $0x280] sm:$0xff]
  %v104 = vld [vmem:[%s0 + $0x288] sm:$0xff]
  %v105 = vld [vmem:[%s0 + $0x290] sm:$0xff]
  %v106 = vld [vmem:[%s0 + $0x298] sm:$0xff]
  %v107 = vld [vmem:[%s0 + $0x2a0] sm:$0xff]
  %v108 = vld [vmem:[%s0 + $0x2a8] sm:$0xff]
  %v109 = vld [vmem:[%s0 + $0x2b0] sm:$0xff]
  %v110 = vld [vmem:[%s0 + $0x2b8] sm:$0xff]
  %v111 = vld [vmem:[%s0 + $0x2c0] sm:$0xff]
  %v112 = vld [vmem:[%s0 + $0x2c8] sm:$0xff]
  %v113 = vld [vmem:[%s0 + $0x2d0] sm:$0xff]
  %v114 = vld [vmem:[%s0 + $0x2d8] sm:$0xff]
  %v115 = vld [vmem:[%s0 + $0x2e0] sm:$0xff]
  %v116 = vld [vmem:[%s0 + $0x2e8] sm:$0xff]
  %v117 = vld [vmem:[%s0 + $0x2f0] sm:$0xff]
  %v118 = vld [vmem:[%s0 + $0x2f8] sm:$0xff]
  %v119 = vld [vmem:[%s0 + $0x300] sm:$0xff]
  %v120 = vld [vmem:[%s0 + $0x308] sm:$0xff]
  %v121 = vld [vmem:[%s0 + $0x310] sm:$0xff]
  %v122 = vld [vmem:[%s0 + $0x318] sm:$0xff]
  %v123 = vld [vmem:[%s0 + $0x320] sm:$0xff]
  %v124 = vld [vmem:[%s0 + $0x328] sm:$0xff]
  %v125 = vld [vmem:[%s0 + $0x330] sm:$0xff]
  %v126 = vld [vmem:[%s0 + $0x338] sm:$0xff]
  %v127 = vld [vmem:[%s0 + $0x340] sm:$0xff]
  %v128 = vld [vmem:[%s0 + $0x348] sm:$0xff]
  %v129 = vld [vmem:[%s0 + $0x350] sm:$0xff]
  %v130 = vld [vmem:[%s0 + $0x358] sm:$0xff]
  %v131 = vld [vmem:[%s0 + $0x360] sm:$0xff]
  %v132 = vld [vmem:[%s0 + $0x368] sm:$0xff]
  %v133 = vld [vmem:[%s0 + $0x370] sm:$0xff]
  %v134 = vld [vmem:[%s0 + $0x378] sm:$0xff]
  %v135 = vld [vmem:[%s0 + $0x380] sm:$0xff]
  %v136 = vld [vmem:[%s0 + $0x388] sm:$0xff]
  %v137 = vld [vmem:[%s0 + $0x390] sm:$0xff]
  %v138 = vld [vmem:[%s0 + $0x398] sm:$0xff]
  %v139 = vld [vmem:[%s0 + $0x3a0] sm:$0xff]
  %v140 = vld [vmem:[%s0 + $0x3a8] sm:$0xff]
  %v141 = vld [vmem:[%s0 + $0x3b0] sm:$0xff]
  %v142 = vld [vmem:[%s0 + $0x3b8] sm:$0xff]
  %v143 = vld [vmem:[%s0 + $0x3c0] sm:$0xff]
  %v144 = vld [vmem:[%s0 + $0x3c8] sm:$0xff]
  %v145 = vld [vmem:[%s0 + $0x3d0] sm:$0xff]
  %v146 = vld [vmem:[%s0 + $0x3d8] sm:$0xff]
  %v147 = vld [vmem:[%s0 + $0x3e0] sm:$0xff]
  %v148 = vld [vmem:[%s0 + $0x3e8] sm:$0xff]
  %v149 = vld [vmem:[%s0 + $0x3f0] sm:$0xff]
  %v150 = vld [vmem:[%s0 + $0x3f8] sm:$0xff]
  %v151 = vld [vmem:[%s1] sm:$0x1]
  %v153 = vlaneseq
  %v154 = vshrl.u32 %v153, 7
  %v155 = vsub.s32 0, %v154
  %v156 = vrot.slane %v151, %v155
  %v158 = vmul.f32 %v23, %v156
  %v159 = vmul.f32 %v24, %v156
  %v160 = vmul.f32 %v25, %v156
  %v161 = vmul.f32 %v26, %v156
  %v162 = vmul.f32 %v27, %v156
  %v163 = vmul.f32 %v28, %v156
  %v164 = vmul.f32 %v29, %v156
  %v165 = vmul.f32 %v30, %v156
  %v166 = vmul.f32 %v31, %v156
  %v167 = vmul.f32 %v32, %v156
  %v168 = vmul.f32 %v33, %v156
  %v169 = vmul.f32 %v34, %v156
  %v170 = vmul.f32 %v35, %v156
  %v171 = vmul.f32 %v36, %v156
  %v172 = vmul.f32 %v37, %v156
  %v173 = vmul.f32 %v38, %v156
  %v174 = vmul.f32 %v39, %v156
  %v175 = vmul.f32 %v40, %v156
  %v176 = vmul.f32 %v41, %v156
  %v177 = vmul.f32 %v42, %v156
  %v178 = vmul.f32 %v43, %v156
  %v179 = vmul.f32 %v44, %v156
  %v180 = vmul.f32 %v45, %v156
  %v181 = vmul.f32 %v46, %v156
  %v182 = vmul.f32 %v47, %v156
  %v183 = vmul.f32 %v48, %v156
  %v184 = vmul.f32 %v49, %v156
  %v185 = vmul.f32 %v50, %v156
  %v186 = vmul.f32 %v51, %v156
  %v187 = vmul.f32 %v52, %v156
  %v188 = vmul.f32 %v53, %v156
  %v189 = vmul.f32 %v54, %v156
  %v190 = vmul.f32 %v55, %v156
  %v191 = vmul.f32 %v56, %v156
  %v192 = vmul.f32 %v57, %v156
  %v193 = vmul.f32 %v58, %v156
  %v194 = vmul.f32 %v59, %v156
  %v195 = vmul.f32 %v60, %v156
  %v196 = vmul.f32 %v61, %v156
  %v197 = vmul.f32 %v62, %v156
  %v198 = vmul.f32 %v63, %v156
  %v199 = vmul.f32 %v64, %v156
  %v200 = vmul.f32 %v65, %v156
  %v201 = vmul.f32 %v66, %v156
  %v202 = vmul.f32 %v67, %v156
  %v203 = vmul.f32 %v68, %v156
  %v204 = vmul.f32 %v69, %v156
  %v205 = vmul.f32 %v70, %v156
  %v206 = vmul.f32 %v71, %v156
  %v207 = vmul.f32 %v72, %v156
  %v208 = vmul.f32 %v73, %v156
  %v209 = vmul.f32 %v74, %v156
  %v210 = vmul.f32 %v75, %v156
  %v211 = vmul.f32 %v76, %v156
  %v212 = vmul.f32 %v77, %v156
  %v213 = vmul.f32 %v78, %v156
  %v214 = vmul.f32 %v79, %v156
  %v215 = vmul.f32 %v80, %v156
  %v216 = vmul.f32 %v81, %v156
  %v217 = vmul.f32 %v82, %v156
  %v218 = vmul.f32 %v83, %v156
  %v219 = vmul.f32 %v84, %v156
  %v220 = vmul.f32 %v85, %v156
  %v221 = vmul.f32 %v86, %v156
  %v222 = vmul.f32 %v87, %v156
  %v223 = vmul.f32 %v88, %v156
  %v224 = vmul.f32 %v89, %v156
  %v225 = vmul.f32 %v90, %v156
  %v226 = vmul.f32 %v91, %v156
  %v227 = vmul.f32 %v92, %v156
  %v228 = vmul.f32 %v93, %v156
  %v229 = vmul.f32 %v94, %v156
  %v230 = vmul.f32 %v95, %v156
  %v231 = vmul.f32 %v96, %v156
  %v232 = vmul.f32 %v97, %v156
  %v233 = vmul.f32 %v98, %v156
  %v234 = vmul.f32 %v99, %v156
  %v235 = vmul.f32 %v100, %v156
  %v236 = vmul.f32 %v101, %v156
  %v237 = vmul.f32 %v102, %v156
  %v238 = vmul.f32 %v103, %v156
  %v239 = vmul.f32 %v104, %v156
  %v240 = vmul.f32 %v105, %v156
  %v241 = vmul.f32 %v106, %v156
  %v242 = vmul.f32 %v107, %v156
  %v243 = vmul.f32 %v108, %v156
  %v244 = vmul.f32 %v109, %v156
  %v245 = vmul.f32 %v110, %v156
  %v246 = vmul.f32 %v111, %v156
  %v247 = vmul.f32 %v112, %v156
  %v248 = vmul.f32 %v113, %v156
  %v249 = vmul.f32 %v114, %v156
  %v250 = vmul.f32 %v115, %v156
  %v251 = vmul.f32 %v116, %v156
  %v252 = vmul.f32 %v117, %v156
  %v253 = vmul.f32 %v118, %v156
  %v254 = vmul.f32 %v119, %v156
  %v255 = vmul.f32 %v120, %v156
  %v256 = vmul.f32 %v121, %v156
  %v257 = vmul.f32 %v122, %v156
  %v258 = vmul.f32 %v123, %v156
  %v259 = vmul.f32 %v124, %v156
  %v260 = vmul.f32 %v125, %v156
  %v261 = vmul.f32 %v126, %v156
  %v262 = vmul.f32 %v127, %v156
  %v263 = vmul.f32 %v128, %v156
  %v264 = vmul.f32 %v129, %v156
  %v265 = vmul.f32 %v130, %v156
  %v266 = vmul.f32 %v131, %v156
  %v267 = vmul.f32 %v132, %v156
  %v268 = vmul.f32 %v133, %v156
  %v269 = vmul.f32 %v134, %v156
  %v270 = vmul.f32 %v135, %v156
  %v271 = vmul.f32 %v136, %v156
  %v272 = vmul.f32 %v137, %v156
  %v273 = vmul.f32 %v138, %v156
  %v274 = vmul.f32 %v139, %v156
  %v275 = vmul.f32 %v140, %v156
  %v276 = vmul.f32 %v141, %v156
  %v277 = vmul.f32 %v142, %v156
  %v278 = vmul.f32 %v143, %v156
  %v279 = vmul.f32 %v144, %v156
  %v280 = vmul.f32 %v145, %v156
  %v281 = vmul.f32 %v146, %v156
  %v282 = vmul.f32 %v147, %v156
  %v283 = vmul.f32 %v148, %v156
  %v284 = vmul.f32 %v149, %v156
  %v285 = vmul.f32 %v150, %v156
  %v286 = vld [vmem:[%s2] sm:$0x1]
  %v288 = vlaneseq
  %v289 = vshrl.u32 %v288, 7
  %v290 = vsub.s32 0, %v289
  %v291 = vrot.slane %v286, %v290
  %v293 = vadd.f32 %v158, %v291
  %v294 = vadd.f32 %v159, %v291
  %v295 = vadd.f32 %v160, %v291
  %v296 = vadd.f32 %v161, %v291
  %v297 = vadd.f32 %v162, %v291
  %v298 = vadd.f32 %v163, %v291
  %v299 = vadd.f32 %v164, %v291
  %v300 = vadd.f32 %v165, %v291
  %v301 = vadd.f32 %v166, %v291
  %v302 = vadd.f32 %v167, %v291
  %v303 = vadd.f32 %v168, %v291
  %v304 = vadd.f32 %v169, %v291
  %v305 = vadd.f32 %v170, %v291
  %v306 = vadd.f32 %v171, %v291
  %v307 = vadd.f32 %v172, %v291
  %v308 = vadd.f32 %v173, %v291
  %v309 = vadd.f32 %v174, %v291
  %v310 = vadd.f32 %v175, %v291
  %v311 = vadd.f32 %v176, %v291
  %v312 = vadd.f32 %v177, %v291
  %v313 = vadd.f32 %v178, %v291
  %v314 = vadd.f32 %v179, %v291
  %v315 = vadd.f32 %v180, %v291
  %v316 = vadd.f32 %v181, %v291
  %v317 = vadd.f32 %v182, %v291
  %v318 = vadd.f32 %v183, %v291
  %v319 = vadd.f32 %v184, %v291
  %v320 = vadd.f32 %v185, %v291
  %v321 = vadd.f32 %v186, %v291
  %v322 = vadd.f32 %v187, %v291
  %v323 = vadd.f32 %v188, %v291
  %v324 = vadd.f32 %v189, %v291
  %v325 = vadd.f32 %v190, %v291
  %v326 = vadd.f32 %v191, %v291
  %v327 = vadd.f32 %v192, %v291
  %v328 = vadd.f32 %v193, %v291
  %v329 = vadd.f32 %v194, %v291
  %v330 = vadd.f32 %v195, %v291
  %v331 = vadd.f32 %v196, %v291
  %v332 = vadd.f32 %v197, %v291
  %v333 = vadd.f32 %v198, %v291
  %v334 = vadd.f32 %v199, %v291
  %v335 = vadd.f32 %v200, %v291
  %v336 = vadd.f32 %v201, %v291
  %v337 = vadd.f32 %v202, %v291
  %v338 = vadd.f32 %v203, %v291
  %v339 = vadd.f32 %v204, %v291
  %v340 = vadd.f32 %v205, %v291
  %v341 = vadd.f32 %v206, %v291
  %v342 = vadd.f32 %v207, %v291
  %v343 = vadd.f32 %v208, %v291
  %v344 = vadd.f32 %v209, %v291
  %v345 = vadd.f32 %v210, %v291
  %v346 = vadd.f32 %v211, %v291
  %v347 = vadd.f32 %v212, %v291
  %v348 = vadd.f32 %v213, %v291
  %v349 = vadd.f32 %v214, %v291
  %v350 = vadd.f32 %v215, %v291
  %v351 = vadd.f32 %v216, %v291
  %v352 = vadd.f32 %v217, %v291
  %v353 = vadd.f32 %v218, %v291
  %v354 = vadd.f32 %v219, %v291
  %v355 = vadd.f32 %v220, %v291
  %v356 = vadd.f32 %v221, %v291
  %v357 = vadd.f32 %v222, %v291
  %v358 = vadd.f32 %v223, %v291
  %v359 = vadd.f32 %v224, %v291
  %v360 = vadd.f32 %v225, %v291
  %v361 = vadd.f32 %v226, %v291
  %v362 = vadd.f32 %v227, %v291
  %v363 = vadd.f32 %v228, %v291
  %v364 = vadd.f32 %v229, %v291
  %v365 = vadd.f32 %v230, %v291
  %v366 = vadd.f32 %v231, %v291
  %v367 = vadd.f32 %v232, %v291
  %v368 = vadd.f32 %v233, %v291
  %v369 = vadd.f32 %v234, %v291
  %v370 = vadd.f32 %v235, %v291
  %v371 = vadd.f32 %v236, %v291
  %v372 = vadd.f32 %v237, %v291
  %v373 = vadd.f32 %v238, %v291
  %v374 = vadd.f32 %v239, %v291
  %v375 = vadd.f32 %v240, %v291
  %v376 = vadd.f32 %v241, %v291
  %v377 = vadd.f32 %v242, %v291
  %v378 = vadd.f32 %v243, %v291
  %v379 = vadd.f32 %v244, %v291
  %v380 = vadd.f32 %v245, %v291
  %v381 = vadd.f32 %v246, %v291
  %v382 = vadd.f32 %v247, %v291
  %v383 = vadd.f32 %v248, %v291
  %v384 = vadd.f32 %v249, %v291
  %v385 = vadd.f32 %v250, %v291
  %v386 = vadd.f32 %v251, %v291
  %v387 = vadd.f32 %v252, %v291
  %v388 = vadd.f32 %v253, %v291
  %v389 = vadd.f32 %v254, %v291
  %v390 = vadd.f32 %v255, %v291
  %v391 = vadd.f32 %v256, %v291
  %v392 = vadd.f32 %v257, %v291
  %v393 = vadd.f32 %v258, %v291
  %v394 = vadd.f32 %v259, %v291
  %v395 = vadd.f32 %v260, %v291
  %v396 = vadd.f32 %v261, %v291
  %v397 = vadd.f32 %v262, %v291
  %v398 = vadd.f32 %v263, %v291
  %v399 = vadd.f32 %v264, %v291
  %v400 = vadd.f32 %v265, %v291
  %v401 = vadd.f32 %v266, %v291
  %v402 = vadd.f32 %v267, %v291
  %v403 = vadd.f32 %v268, %v291
  %v404 = vadd.f32 %v269, %v291
  %v405 = vadd.f32 %v270, %v291
  %v406 = vadd.f32 %v271, %v291
  %v407 = vadd.f32 %v272, %v291
  %v408 = vadd.f32 %v273, %v291
  %v409 = vadd.f32 %v274, %v291
  %v410 = vadd.f32 %v275, %v291
  %v411 = vadd.f32 %v276, %v291
  %v412 = vadd.f32 %v277, %v291
  %v413 = vadd.f32 %v278, %v291
  %v414 = vadd.f32 %v279, %v291
  %v415 = vadd.f32 %v280, %v291
  %v416 = vadd.f32 %v281, %v291
  %v417 = vadd.f32 %v282, %v291
  %v418 = vadd.f32 %v283, %v291
  %v419 = vadd.f32 %v284, %v291
  %v420 = vadd.f32 %v285, %v291
  %v421 = vmax.f32 %v293, 0.0
  %v422 = vmax.f32 %v294, 0.0
  %v423 = vmax.f32 %v295, 0.0
  %v424 = vmax.f32 %v296, 0.0
  %v425 = vmax.f32 %v297, 0.0
  %v426 = vmax.f32 %v298, 0.0
  %v427 = vmax.f32 %v299, 0.0
  %v428 = vmax.f32 %v300, 0.0
  %v429 = vmax.f32 %v301, 0.0
  %v430 = vmax.f32 %v302, 0.0
  %v431 = vmax.f32 %v303, 0.0
  %v432 = vmax.f32 %v304, 0.0
  %v433 = vmax.f32 %v305, 0.0
  %v434 = vmax.f32 %v306, 0.0
  %v435 = vmax.f32 %v307, 0.0
  %v436 = vmax.f32 %v308, 0.0
  %v437 = vmax.f32 %v309, 0.0
  %v438 = vmax.f32 %v310, 0.0
  %v439 = vmax.f32 %v311, 0.0
  %v440 = vmax.f32 %v312, 0.0
  %v441 = vmax.f32 %v313, 0.0
  %v442 = vmax.f32 %v314, 0.0
  %v443 = vmax.f32 %v315, 0.0
  %v444 = vmax.f32 %v316, 0.0
  %v445 = vmax.f32 %v317, 0.0
  %v446 = vmax.f32 %v318, 0.0
  %v447 = vmax.f32 %v319, 0.0
  %v448 = vmax.f32 %v320, 0.0
  %v449 = vmax.f32 %v321, 0.0
  %v450 = vmax.f32 %v322, 0.0
  %v451 = vmax.f32 %v323, 0.0
  %v452 = vmax.f32 %v324, 0.0
  %v453 = vmax.f32 %v325, 0.0
  %v454 = vmax.f32 %v326, 0.0
  %v455 = vmax.f32 %v327, 0.0
  %v456 = vmax.f32 %v328, 0.0
  %v457 = vmax.f32 %v329, 0.0
  %v458 = vmax.f32 %v330, 0.0
  %v459 = vmax.f32 %v331, 0.0
  %v460 = vmax.f32 %v332, 0.0
  %v461 = vmax.f32 %v333, 0.0
  %v462 = vmax.f32 %v334, 0.0
  %v463 = vmax.f32 %v335, 0.0
  %v464 = vmax.f32 %v336, 0.0
  %v465 = vmax.f32 %v337, 0.0
  %v466 = vmax.f32 %v338, 0.0
  %v467 = vmax.f32 %v339, 0.0
  %v468 = vmax.f32 %v340, 0.0
  %v469 = vmax.f32 %v341, 0.0
  %v470 = vmax.f32 %v342, 0.0
  %v471 = vmax.f32 %v343, 0.0
  %v472 = vmax.f32 %v344, 0.0
  %v473 = vmax.f32 %v345, 0.0
  %v474 = vmax.f32 %v346, 0.0
  %v475 = vmax.f32 %v347, 0.0
  %v476 = vmax.f32 %v348, 0.0
  %v477 = vmax.f32 %v349, 0.0
  %v478 = vmax.f32 %v350, 0.0
  %v479 = vmax.f32 %v351, 0.0
  %v480 = vmax.f32 %v352, 0.0
  %v481 = vmax.f32 %v353, 0.0
  %v482 = vmax.f32 %v354, 0.0
  %v483 = vmax.f32 %v355, 0.0
  %v484 = vmax.f32 %v356, 0.0
  %v485 = vmax.f32 %v357, 0.0
  %v486 = vmax.f32 %v358, 0.0
  %v487 = vmax.f32 %v359, 0.0
  %v488 = vmax.f32 %v360, 0.0
  %v489 = vmax.f32 %v361, 0.0
  %v490 = vmax.f32 %v362, 0.0
  %v491 = vmax.f32 %v363, 0.0
  %v492 = vmax.f32 %v364, 0.0
  %v493 = vmax.f32 %v365, 0.0
  %v494 = vmax.f32 %v366, 0.0
  %v495 = vmax.f32 %v367, 0.0
  %v496 = vmax.f32 %v368, 0.0
  %v497 = vmax.f32 %v369, 0.0
  %v498 = vmax.f32 %v370, 0.0
  %v499 = vmax.f32 %v371, 0.0
  %v500 = vmax.f32 %v372, 0.0
  %v501 = vmax.f32 %v373, 0.0
  %v502 = vmax.f32 %v374, 0.0
  %v503 = vmax.f32 %v375, 0.0
  %v504 = vmax.f32 %v376, 0.0
  %v505 = vmax.f32 %v377, 0.0
  %v506 = vmax.f32 %v378, 0.0
  %v507 = vmax.f32 %v379, 0.0
  %v508 = vmax.f32 %v380, 0.0
  %v509 = vmax.f32 %v381, 0.0
  %v510 = vmax.f32 %v382, 0.0
  %v511 = vmax.f32 %v383, 0.0
  %v512 = vmax.f32 %v384, 0.0
  %v513 = vmax.f32 %v385, 0.0
  %v514 = vmax.f32 %v386, 0.0
  %v515 = vmax.f32 %v387, 0.0
  %v516 = vmax.f32 %v388, 0.0
  %v517 = vmax.f32 %v389, 0.0
  %v518 = vmax.f32 %v390, 0.0
  %v519 = vmax.f32 %v391, 0.0
  %v520 = vmax.f32 %v392, 0.0
  %v521 = vmax.f32 %v393, 0.0
  %v522 = vmax.f32 %v394, 0.0
  %v523 = vmax.f32 %v395, 0.0
  %v524 = vmax.f32 %v396, 0.0
  %v525 = vmax.f32 %v397, 0.0
  %v526 = vmax.f32 %v398, 0.0
  %v527 = vmax.f32 %v399, 0.0
  %v528 = vmax.f32 %v400, 0.0
  %v529 = vmax.f32 %v401, 0.0
  %v530 = vmax.f32 %v402, 0.0
  %v531 = vmax.f32 %v403, 0.0
  %v532 = vmax.f32 %v404, 0.0
  %v533 = vmax.f32 %v405, 0.0
  %v534 = vmax.f32 %v406, 0.0
  %v535 = vmax.f32 %v407, 0.0
  %v536 = vmax.f32 %v408, 0.0
  %v537 = vmax.f32 %v409, 0.0
  %v538 = vmax.f32 %v410, 0.0
  %v539 = vmax.f32 %v411, 0.0
  %v540 = vmax.f32 %v412, 0.0
  %v541 = vmax.f32 %v413, 0.0
  %v542 = vmax.f32 %v414, 0.0
  %v543 = vmax.f32 %v415, 0.0
  %v544 = vmax.f32 %v416, 0.0
  %v545 = vmax.f32 %v417, 0.0
  %v546 = vmax.f32 %v418, 0.0
  %v547 = vmax.f32 %v419, 0.0
  %v548 = vmax.f32 %v420, 0.0
  %v549 = vld [vmem:[%s4] sm:$0x1]
  %v551 = vlaneseq
  %v552 = vshrl.u32 %v551, 7
  %v553 = vsub.s32 0, %v552
  %v554 = vrot.slane %v549, %v553
  %v556 = vadd.f32 %v554, 0.0
  %v557 = vld [vmem:[%s3] sm:$0x1]
  %559 = vset.pattern.permute.xlu0 0
  %560 = vperm.xlu0 %559, %v421
  %v561 = vpop.permute.xlu0 %560
  %564 = vset.pattern.permute.xlu0 0
  %565 = vperm.xlu0 %564, %v422
  %v566 = vpop.permute.xlu0 %565
  %569 = vset.pattern.permute.xlu0 0
  %570 = vperm.xlu0 %569, %v423
  %v571 = vpop.permute.xlu0 %570
  %574 = vset.pattern.permute.xlu0 0
  %575 = vperm.xlu0 %574, %v424
  %v576 = vpop.permute.xlu0 %575
  %579 = vset.pattern.permute.xlu0 0
  %580 = vperm.xlu0 %579, %v425
  %v581 = vpop.permute.xlu0 %580
  %584 = vset.pattern.permute.xlu0 0
  %585 = vperm.xlu0 %584, %v426
  %v586 = vpop.permute.xlu0 %585
  %589 = vset.pattern.permute.xlu0 0
  %590 = vperm.xlu0 %589, %v427
  %v591 = vpop.permute.xlu0 %590
  %594 = vset.pattern.permute.xlu0 0
  %595 = vperm.xlu0 %594, %v428
  %v596 = vpop.permute.xlu0 %595
  %599 = vset.pattern.permute.xlu0 0
  %600 = vperm.xlu0 %599, %v429
  %v601 = vpop.permute.xlu0 %600
  %604 = vset.pattern.permute.xlu0 0
  %605 = vperm.xlu0 %604, %v430
  %v606 = vpop.permute.xlu0 %605
  %609 = vset.pattern.permute.xlu0 0
  %610 = vperm.xlu0 %609, %v431
  %v611 = vpop.permute.xlu0 %610
  %614 = vset.pattern.permute.xlu0 0
  %615 = vperm.xlu0 %614, %v432
  %v616 = vpop.permute.xlu0 %615
  %619 = vset.pattern.permute.xlu0 0
  %620 = vperm.xlu0 %619, %v433
  %v621 = vpop.permute.xlu0 %620
  %624 = vset.pattern.permute.xlu0 0
  %625 = vperm.xlu0 %624, %v434
  %v626 = vpop.permute.xlu0 %625
  %629 = vset.pattern.permute.xlu0 0
  %630 = vperm.xlu0 %629, %v435
  %v631 = vpop.permute.xlu0 %630
  %634 = vset.pattern.permute.xlu0 0
  %635 = vperm.xlu0 %634, %v436
  %v636 = vpop.permute.xlu0 %635
  %639 = vset.pattern.permute.xlu0 0
  %640 = vperm.xlu0 %639, %v437
  %v641 = vpop.permute.xlu0 %640
  %644 = vset.pattern.permute.xlu0 0
  %645 = vperm.xlu0 %644, %v438
  %v646 = vpop.permute.xlu0 %645
  %649 = vset.pattern.permute.xlu0 0
  %650 = vperm.xlu0 %649, %v439
  %v651 = vpop.permute.xlu0 %650
  %654 = vset.pattern.permute.xlu0 0
  %655 = vperm.xlu0 %654, %v440
  %v656 = vpop.permute.xlu0 %655
  %659 = vset.pattern.permute.xlu0 0
  %660 = vperm.xlu0 %659, %v441
  %v661 = vpop.permute.xlu0 %660
  %664 = vset.pattern.permute.xlu0 0
  %665 = vperm.xlu0 %664, %v442
  %v666 = vpop.permute.xlu0 %665
  %669 = vset.pattern.permute.xlu0 0
  %670 = vperm.xlu0 %669, %v443
  %v671 = vpop.permute.xlu0 %670
  %674 = vset.pattern.permute.xlu0 0
  %675 = vperm.xlu0 %674, %v444
  %v676 = vpop.permute.xlu0 %675
  %679 = vset.pattern.permute.xlu0 0
  %680 = vperm.xlu0 %679, %v445
  %v681 = vpop.permute.xlu0 %680
  %684 = vset.pattern.permute.xlu0 0
  %685 = vperm.xlu0 %684, %v446
  %v686 = vpop.permute.xlu0 %685
  %689 = vset.pattern.permute.xlu0 0
  %690 = vperm.xlu0 %689, %v447
  %v691 = vpop.permute.xlu0 %690
  %694 = vset.pattern.permute.xlu0 0
  %695 = vperm.xlu0 %694, %v448
  %v696 = vpop.permute.xlu0 %695
  %699 = vset.pattern.permute.xlu0 0
  %700 = vperm.xlu0 %699, %v449
  %v701 = vpop.permute.xlu0 %700
  %704 = vset.pattern.permute.xlu0 0
  %705 = vperm.xlu0 %704, %v450
  %v706 = vpop.permute.xlu0 %705
  %709 = vset.pattern.permute.xlu0 0
  %710 = vperm.xlu0 %709, %v451
  %v711 = vpop.permute.xlu0 %710
  %714 = vset.pattern.permute.xlu0 0
  %715 = vperm.xlu0 %714, %v452
  %v716 = vpop.permute.xlu0 %715
  %719 = vset.pattern.permute.xlu0 0
  %720 = vperm.xlu0 %719, %v453
  %v721 = vpop.permute.xlu0 %720
  %724 = vset.pattern.permute.xlu0 0
  %725 = vperm.xlu0 %724, %v454
  %v726 = vpop.permute.xlu0 %725
  %729 = vset.pattern.permute.xlu0 0
  %730 = vperm.xlu0 %729, %v455
  %v731 = vpop.permute.xlu0 %730
  %734 = vset.pattern.permute.xlu0 0
  %735 = vperm.xlu0 %734, %v456
  %v736 = vpop.permute.xlu0 %735
  %739 = vset.pattern.permute.xlu0 0
  %740 = vperm.xlu0 %739, %v457
  %v741 = vpop.permute.xlu0 %740
  %744 = vset.pattern.permute.xlu0 0
  %745 = vperm.xlu0 %744, %v458
  %v746 = vpop.permute.xlu0 %745
  %749 = vset.pattern.permute.xlu0 0
  %750 = vperm.xlu0 %749, %v459
  %v751 = vpop.permute.xlu0 %750
  %754 = vset.pattern.permute.xlu0 0
  %755 = vperm.xlu0 %754, %v460
  %v756 = vpop.permute.xlu0 %755
  %759 = vset.pattern.permute.xlu0 0
  %760 = vperm.xlu0 %759, %v461
  %v761 = vpop.permute.xlu0 %760
  %764 = vset.pattern.permute.xlu0 0
  %765 = vperm.xlu0 %764, %v462
  %v766 = vpop.permute.xlu0 %765
  %769 = vset.pattern.permute.xlu0 0
  %770 = vperm.xlu0 %769, %v463
  %v771 = vpop.permute.xlu0 %770
  %774 = vset.pattern.permute.xlu0 0
  %775 = vperm.xlu0 %774, %v464
  %v776 = vpop.permute.xlu0 %775
  %779 = vset.pattern.permute.xlu0 0
  %780 = vperm.xlu0 %779, %v465
  %v781 = vpop.permute.xlu0 %780
  %784 = vset.pattern.permute.xlu0 0
  %785 = vperm.xlu0 %784, %v466
  %v786 = vpop.permute.xlu0 %785
  %789 = vset.pattern.permute.xlu0 0
  %790 = vperm.xlu0 %789, %v467
  %v791 = vpop.permute.xlu0 %790
  %794 = vset.pattern.permute.xlu0 0
  %795 = vperm.xlu0 %794, %v468
  %v796 = vpop.permute.xlu0 %795
  %799 = vset.pattern.permute.xlu0 0
  %800 = vperm.xlu0 %799, %v469
  %v801 = vpop.permute.xlu0 %800
  %804 = vset.pattern.permute.xlu0 0
  %805 = vperm.xlu0 %804, %v470
  %v806 = vpop.permute.xlu0 %805
  %809 = vset.pattern.permute.xlu0 0
  %810 = vperm.xlu0 %809, %v471
  %v811 = vpop.permute.xlu0 %810
  %814 = vset.pattern.permute.xlu0 0
  %815 = vperm.xlu0 %814, %v472
  %v816 = vpop.permute.xlu0 %815
  %819 = vset.pattern.permute.xlu0 0
  %820 = vperm.xlu0 %819, %v473
  %v821 = vpop.permute.xlu0 %820
  %824 = vset.pattern.permute.xlu0 0
  %825 = vperm.xlu0 %824, %v474
  %v826 = vpop.permute.xlu0 %825
  %829 = vset.pattern.permute.xlu0 0
  %830 = vperm.xlu0 %829, %v475
  %v831 = vpop.permute.xlu0 %830
  %834 = vset.pattern.permute.xlu0 0
  %835 = vperm.xlu0 %834, %v476
  %v836 = vpop.permute.xlu0 %835
  %839 = vset.pattern.permute.xlu0 0
  %840 = vperm.xlu0 %839, %v477
  %v841 = vpop.permute.xlu0 %840
  %844 = vset.pattern.permute.xlu0 0
  %845 = vperm.xlu0 %844, %v478
  %v846 = vpop.permute.xlu0 %845
  %849 = vset.pattern.permute.xlu0 0
  %850 = vperm.xlu0 %849, %v479
  %v851 = vpop.permute.xlu0 %850
  %854 = vset.pattern.permute.xlu0 0
  %855 = vperm.xlu0 %854, %v480
  %v856 = vpop.permute.xlu0 %855
  %859 = vset.pattern.permute.xlu0 0
  %860 = vperm.xlu0 %859, %v481
  %v861 = vpop.permute.xlu0 %860
  %864 = vset.pattern.permute.xlu0 0
  %865 = vperm.xlu0 %864, %v482
  %v866 = vpop.permute.xlu0 %865
  %869 = vset.pattern.permute.xlu0 0
  %870 = vperm.xlu0 %869, %v483
  %v871 = vpop.permute.xlu0 %870
  %874 = vset.pattern.permute.xlu0 0
  %875 = vperm.xlu0 %874, %v484
  %v876 = vpop.permute.xlu0 %875
  %879 = vset.pattern.permute.xlu0 0
  %880 = vperm.xlu0 %879, %v485
  %v881 = vpop.permute.xlu0 %880
  %884 = vset.pattern.permute.xlu0 0
  %885 = vperm.xlu0 %884, %v486
  %v886 = vpop.permute.xlu0 %885
  %889 = vset.pattern.permute.xlu0 0
  %890 = vperm.xlu0 %889, %v487
  %v891 = vpop.permute.xlu0 %890
  %894 = vset.pattern.permute.xlu0 0
  %895 = vperm.xlu0 %894, %v488
  %v896 = vpop.permute.xlu0 %895
  %899 = vset.pattern.permute.xlu0 0
  %900 = vperm.xlu0 %899, %v489
  %v901 = vpop.permute.xlu0 %900
  %904 = vset.pattern.permute.xlu0 0
  %905 = vperm.xlu0 %904, %v490
  %v906 = vpop.permute.xlu0 %905
  %909 = vset.pattern.permute.xlu0 0
  %910 = vperm.xlu0 %909, %v491
  %v911 = vpop.permute.xlu0 %910
  %914 = vset.pattern.permute.xlu0 0
  %915 = vperm.xlu0 %914, %v492
  %v916 = vpop.permute.xlu0 %915
  %919 = vset.pattern.permute.xlu0 0
  %920 = vperm.xlu0 %919, %v493
  %v921 = vpop.permute.xlu0 %920
  %924 = vset.pattern.permute.xlu0 0
  %925 = vperm.xlu0 %924, %v494
  %v926 = vpop.permute.xlu0 %925
  %929 = vset.pattern.permute.xlu0 0
  %930 = vperm.xlu0 %929, %v495
  %v931 = vpop.permute.xlu0 %930
  %934 = vset.pattern.permute.xlu0 0
  %935 = vperm.xlu0 %934, %v496
  %v936 = vpop.permute.xlu0 %935
  %939 = vset.pattern.permute.xlu0 0
  %940 = vperm.xlu0 %939, %v497
  %v941 = vpop.permute.xlu0 %940
  %944 = vset.pattern.permute.xlu0 0
  %945 = vperm.xlu0 %944, %v498
  %v946 = vpop.permute.xlu0 %945
  %949 = vset.pattern.permute.xlu0 0
  %950 = vperm.xlu0 %949, %v499
  %v951 = vpop.permute.xlu0 %950
  %954 = vset.pattern.permute.xlu0 0
  %955 = vperm.xlu0 %954, %v500
  %v956 = vpop.permute.xlu0 %955
  %959 = vset.pattern.permute.xlu0 0
  %960 = vperm.xlu0 %959, %v501
  %v961 = vpop.permute.xlu0 %960
  %964 = vset.pattern.permute.xlu0 0
  %965 = vperm.xlu0 %964, %v502
  %v966 = vpop.permute.xlu0 %965
  %969 = vset.pattern.permute.xlu0 0
  %970 = vperm.xlu0 %969, %v503
  %v971 = vpop.permute.xlu0 %970
  %974 = vset.pattern.permute.xlu0 0
  %975 = vperm.xlu0 %974, %v504
  %v976 = vpop.permute.xlu0 %975
  %979 = vset.pattern.permute.xlu0 0
  %980 = vperm.xlu0 %979, %v505
  %v981 = vpop.permute.xlu0 %980
  %984 = vset.pattern.permute.xlu0 0
  %985 = vperm.xlu0 %984, %v506
  %v986 = vpop.permute.xlu0 %985
  %989 = vset.pattern.permute.xlu0 0
  %990 = vperm.xlu0 %989, %v507
  %v991 = vpop.permute.xlu0 %990
  %994 = vset.pattern.permute.xlu0 0
  %995 = vperm.xlu0 %994, %v508
  %v996 = vpop.permute.xlu0 %995
  %999 = vset.pattern.permute.xlu0 0
  %1000 = vperm.xlu0 %999, %v509
  %v1001 = vpop.permute.xlu0 %1000
  %1004 = vset.pattern.permute.xlu0 0
  %1005 = vperm.xlu0 %1004, %v510
  %v1006 = vpop.permute.xlu0 %1005
  %1009 = vset.pattern.permute.xlu0 0
  %1010 = vperm.xlu0 %1009, %v511
  %v1011 = vpop.permute.xlu0 %1010
  %1014 = vset.pattern.permute.xlu0 0
  %1015 = vperm.xlu0 %1014, %v512
  %v1016 = vpop.permute.xlu0 %1015
  %1019 = vset.pattern.permute.xlu0 0
  %1020 = vperm.xlu0 %1019, %v513
  %v1021 = vpop.permute.xlu0 %1020
  %1024 = vset.pattern.permute.xlu0 0
  %1025 = vperm.xlu0 %1024, %v514
  %v1026 = vpop.permute.xlu0 %1025
  %1029 = vset.pattern.permute.xlu0 0
  %1030 = vperm.xlu0 %1029, %v515
  %v1031 = vpop.permute.xlu0 %1030
  %1034 = vset.pattern.permute.xlu0 0
  %1035 = vperm.xlu0 %1034, %v516
  %v1036 = vpop.permute.xlu0 %1035
  %1039 = vset.pattern.permute.xlu0 0
  %1040 = vperm.xlu0 %1039, %v517
  %v1041 = vpop.permute.xlu0 %1040
  %1044 = vset.pattern.permute.xlu0 0
  %1045 = vperm.xlu0 %1044, %v518
  %v1046 = vpop.permute.xlu0 %1045
  %1049 = vset.pattern.permute.xlu0 0
  %1050 = vperm.xlu0 %1049, %v519
  %v1051 = vpop.permute.xlu0 %1050
  %1054 = vset.pattern.permute.xlu0 0
  %1055 = vperm.xlu0 %1054, %v520
  %v1056 = vpop.permute.xlu0 %1055
  %1059 = vset.pattern.permute.xlu0 0
  %1060 = vperm.xlu0 %1059, %v521
  %v1061 = vpop.permute.xlu0 %1060
  %1064 = vset.pattern.permute.xlu0 0
  %1065 = vperm.xlu0 %1064, %v522
  %v1066 = vpop.permute.xlu0 %1065
  %1069 = vset.pattern.permute.xlu0 0
  %1070 = vperm.xlu0 %1069, %v523
  %v1071 = vpop.permute.xlu0 %1070
  %1074 = vset.pattern.permute.xlu0 0
  %1075 = vperm.xlu0 %1074, %v524
  %v1076 = vpop.permute.xlu0 %1075
  %1079 = vset.pattern.permute.xlu0 0
  %1080 = vperm.xlu0 %1079, %v525
  %v1081 = vpop.permute.xlu0 %1080
  %1084 = vset.pattern.permute.xlu0 0
  %1085 = vperm.xlu0 %1084, %v526
  %v1086 = vpop.permute.xlu0 %1085
  %1089 = vset.pattern.permute.xlu0 0
  %1090 = vperm.xlu0 %1089, %v527
  %v1091 = vpop.permute.xlu0 %1090
  %1094 = vset.pattern.permute.xlu0 0
  %1095 = vperm.xlu0 %1094, %v528
  %v1096 = vpop.permute.xlu0 %1095
  %1099 = vset.pattern.permute.xlu0 0
  %1100 = vperm.xlu0 %1099, %v529
  %v1101 = vpop.permute.xlu0 %1100
  %1104 = vset.pattern.permute.xlu0 0
  %1105 = vperm.xlu0 %1104, %v530
  %v1106 = vpop.permute.xlu0 %1105
  %1109 = vset.pattern.permute.xlu0 0
  %1110 = vperm.xlu0 %1109, %v531
  %v1111 = vpop.permute.xlu0 %1110
  %1114 = vset.pattern.permute.xlu0 0
  %1115 = vperm.xlu0 %1114, %v532
  %v1116 = vpop.permute.xlu0 %1115
  %1119 = vset.pattern.permute.xlu0 0
  %1120 = vperm.xlu0 %1119, %v533
  %v1121 = vpop.permute.xlu0 %1120
  %1124 = vset.pattern.permute.xlu0 0
  %1125 = vperm.xlu0 %1124, %v534
  %v1126 = vpop.permute.xlu0 %1125
  %1129 = vset.pattern.permute.xlu0 0
  %1130 = vperm.xlu0 %1129, %v535
  %v1131 = vpop.permute.xlu0 %1130
  %1134 = vset.pattern.permute.xlu0 0
  %1135 = vperm.xlu0 %1134, %v536
  %v1136 = vpop.permute.xlu0 %1135
  %1139 = vset.pattern.permute.xlu0 0
  %1140 = vperm.xlu0 %1139, %v537
  %v1141 = vpop.permute.xlu0 %1140
  %1144 = vset.pattern.permute.xlu0 0
  %1145 = vperm.xlu0 %1144, %v538
  %v1146 = vpop.permute.xlu0 %1145
  %1149 = vset.pattern.permute.xlu0 0
  %1150 = vperm.xlu0 %1149, %v539
  %v1151 = vpop.permute.xlu0 %1150
  %1154 = vset.pattern.permute.xlu0 0
  %1155 = vperm.xlu0 %1154, %v540
  %v1156 = vpop.permute.xlu0 %1155
  %1159 = vset.pattern.permute.xlu0 0
  %1160 = vperm.xlu0 %1159, %v541
  %v1161 = vpop.permute.xlu0 %1160
  %1164 = vset.pattern.permute.xlu0 0
  %1165 = vperm.xlu0 %1164, %v542
  %v1166 = vpop.permute.xlu0 %1165
  %1169 = vset.pattern.permute.xlu0 0
  %1170 = vperm.xlu0 %1169, %v543
  %v1171 = vpop.permute.xlu0 %1170
  %1174 = vset.pattern.permute.xlu0 0
  %1175 = vperm.xlu0 %1174, %v544
  %v1176 = vpop.permute.xlu0 %1175
  %1179 = vset.pattern.permute.xlu0 0
  %1180 = vperm.xlu0 %1179, %v545
  %v1181 = vpop.permute.xlu0 %1180
  %1184 = vset.pattern.permute.xlu0 0
  %1185 = vperm.xlu0 %1184, %v546
  %v1186 = vpop.permute.xlu0 %1185
  %1189 = vset.pattern.permute.xlu0 0
  %1190 = vperm.xlu0 %1189, %v547
  %v1191 = vpop.permute.xlu0 %1190
  %1194 = vset.pattern.permute.xlu0 0
  %1195 = vperm.xlu0 %1194, %v548
  %v1196 = vpop.permute.xlu0 %1195
  %v1198 = vlaneseq
  %v1199 = vshrl.u32 %v1198, 7
  %v1200 = vsub.s32 0, %v1199
  %v1201 = vrot.slane %v557, %v1200
  %v1202 = vmul.f32 %v561, %v1201
  %v1203 = vmul.f32 %v566, %v1201
  %v1204 = vmul.f32 %v571, %v1201
  %v1205 = vmul.f32 %v576, %v1201
  %v1206 = vmul.f32 %v581, %v1201
  %v1207 = vmul.f32 %v586, %v1201
  %v1208 = vmul.f32 %v591, %v1201
  %v1209 = vmul.f32 %v596, %v1201
  %v1210 = vmul.f32 %v601, %v1201
  %v1211 = vmul.f32 %v606, %v1201
  %v1212 = vmul.f32 %v611, %v1201
  %v1213 = vmul.f32 %v616, %v1201
  %v1214 = vmul.f32 %v621, %v1201
  %v1215 = vmul.f32 %v626, %v1201
  %v1216 = vmul.f32 %v631, %v1201
  %v1217 = vmul.f32 %v636, %v1201
  %v1218 = vmul.f32 %v641, %v1201
  %v1219 = vmul.f32 %v646, %v1201
  %v1220 = vmul.f32 %v651, %v1201
  %v1221 = vmul.f32 %v656, %v1201
  %v1222 = vmul.f32 %v661, %v1201
  %v1223 = vmul.f32 %v666, %v1201
  %v1224 = vmul.f32 %v671, %v1201
  %v1225 = vmul.f32 %v676, %v1201
  %v1226 = vmul.f32 %v681, %v1201
  %v1227 = vmul.f32 %v686, %v1201
  %v1228 = vmul.f32 %v691, %v1201
  %v1229 = vmul.f32 %v696, %v1201
  %v1230 = vmul.f32 %v701, %v1201
  %v1231 = vmul.f32 %v706, %v1201
  %v1232 = vmul.f32 %v711, %v1201
  %v1233 = vmul.f32 %v716, %v1201
  %v1234 = vmul.f32 %v721, %v1201
  %v1235 = vmul.f32 %v726, %v1201
  %v1236 = vmul.f32 %v731, %v1201
  %v1237 = vmul.f32 %v736, %v1201
  %v1238 = vmul.f32 %v741, %v1201
  %v1239 = vmul.f32 %v746, %v1201
  %v1240 = vmul.f32 %v751, %v1201
  %v1241 = vmul.f32 %v756, %v1201
  %v1242 = vmul.f32 %v761, %v1201
  %v1243 = vmul.f32 %v766, %v1201
  %v1244 = vmul.f32 %v771, %v1201
  %v1245 = vmul.f32 %v776, %v1201
  %v1246 = vmul.f32 %v781, %v1201
  %v1247 = vmul.f32 %v786, %v1201
  %v1248 = vmul.f32 %v791, %v1201
  %v1249 = vmul.f32 %v796, %v1201
  %v1250 = vmul.f32 %v801, %v1201
  %v1251 = vmul.f32 %v806, %v1201
  %v1252 = vmul.f32 %v811, %v1201
  %v1253 = vmul.f32 %v816, %v1201
  %v1254 = vmul.f32 %v821, %v1201
  %v1255 = vmul.f32 %v826, %v1201
  %v1256 = vmul.f32 %v831, %v1201
  %v1257 = vmul.f32 %v836, %v1201
  %v1258 = vmul.f32 %v841, %v1201
  %v1259 = vmul.f32 %v846, %v1201
  %v1260 = vmul.f32 %v851, %v1201
  %v1261 = vmul.f32 %v856, %v1201
  %v1262 = vmul.f32 %v861, %v1201
  %v1263 = vmul.f32 %v866, %v1201
  %v1264 = vmul.f32 %v871, %v1201
  %v1265 = vmul.f32 %v876, %v1201
  %v1266 = vmul.f32 %v881, %v1201
  %v1267 = vmul.f32 %v886, %v1201
  %v1268 = vmul.f32 %v891, %v1201
  %v1269 = vmul.f32 %v896, %v1201
  %v1270 = vmul.f32 %v901, %v1201
  %v1271 = vmul.f32 %v906, %v1201
  %v1272 = vmul.f32 %v911, %v1201
  %v1273 = vmul.f32 %v916, %v1201
  %v1274 = vmul.f32 %v921, %v1201
  %v1275 = vmul.f32 %v926, %v1201
  %v1276 = vmul.f32 %v931, %v1201
  %v1277 = vmul.f32 %v936, %v1201
  %v1278 = vmul.f32 %v941, %v1201
  %v1279 = vmul.f32 %v946, %v1201
  %v1280 = vmul.f32 %v951, %v1201
  %v1281 = vmul.f32 %v956, %v1201
  %v1282 = vmul.f32 %v961, %v1201
  %v1283 = vmul.f32 %v966, %v1201
  %v1284 = vmul.f32 %v971, %v1201
  %v1285 = vmul.f32 %v976, %v1201
  %v1286 = vmul.f32 %v981, %v1201
  %v1287 = vmul.f32 %v986, %v1201
  %v1288 = vmul.f32 %v991, %v1201
  %v1289 = vmul.f32 %v996, %v1201
  %v1290 = vmul.f32 %v1001, %v1201
  %v1291 = vmul.f32 %v1006, %v1201
  %v1292 = vmul.f32 %v1011, %v1201
  %v1293 = vmul.f32 %v1016, %v1201
  %v1294 = vmul.f32 %v1021, %v1201
  %v1295 = vmul.f32 %v1026, %v1201
  %v1296 = vmul.f32 %v1031, %v1201
  %v1297 = vmul.f32 %v1036, %v1201
  %v1298 = vmul.f32 %v1041, %v1201
  %v1299 = vmul.f32 %v1046, %v1201
  %v1300 = vmul.f32 %v1051, %v1201
  %v1301 = vmul.f32 %v1056, %v1201
  %v1302 = vmul.f32 %v1061, %v1201
  %v1303 = vmul.f32 %v1066, %v1201
  %v1304 = vmul.f32 %v1071, %v1201
  %v1305 = vmul.f32 %v1076, %v1201
  %v1306 = vmul.f32 %v1081, %v1201
  %v1307 = vmul.f32 %v1086, %v1201
  %v1308 = vmul.f32 %v1091, %v1201
  %v1309 = vmul.f32 %v1096, %v1201
  %v1310 = vmul.f32 %v1101, %v1201
  %v1311 = vmul.f32 %v1106, %v1201
  %v1312 = vmul.f32 %v1111, %v1201
  %v1313 = vmul.f32 %v1116, %v1201
  %v1314 = vmul.f32 %v1121, %v1201
  %v1315 = vmul.f32 %v1126, %v1201
  %v1316 = vmul.f32 %v1131, %v1201
  %v1317 = vmul.f32 %v1136, %v1201
  %v1318 = vmul.f32 %v1141, %v1201
  %v1319 = vmul.f32 %v1146, %v1201
  %v1320 = vmul.f32 %v1151, %v1201
  %v1321 = vmul.f32 %v1156, %v1201
  %v1322 = vmul.f32 %v1161, %v1201
  %v1323 = vmul.f32 %v1166, %v1201
  %v1324 = vmul.f32 %v1171, %v1201
  %v1325 = vmul.f32 %v1176, %v1201
  %v1326 = vmul.f32 %v1181, %v1201
  %v1327 = vmul.f32 %v1186, %v1201
  %v1328 = vmul.f32 %v1191, %v1201
  %v1329 = vmul.f32 %v1196, %v1201
  %v1330 = vadd.f32 %v556, %v1202
  %v1331 = vadd.f32 %v556, %v1203
  %v1332 = vadd.f32 %v556, %v1204
  %v1333 = vadd.f32 %v556, %v1205
  %v1334 = vadd.f32 %v556, %v1206
  %v1335 = vadd.f32 %v556, %v1207
  %v1336 = vadd.f32 %v556, %v1208
  %v1337 = vadd.f32 %v556, %v1209
  %v1338 = vadd.f32 %v556, %v1210
  %v1339 = vadd.f32 %v556, %v1211
  %v1340 = vadd.f32 %v556, %v1212
  %v1341 = vadd.f32 %v556, %v1213
  %v1342 = vadd.f32 %v556, %v1214
  %v1343 = vadd.f32 %v556, %v1215
  %v1344 = vadd.f32 %v556, %v1216
  %v1345 = vadd.f32 %v556, %v1217
  %v1346 = vadd.f32 %v556, %v1218
  %v1347 = vadd.f32 %v556, %v1219
  %v1348 = vadd.f32 %v556, %v1220
  %v1349 = vadd.f32 %v556, %v1221
  %v1350 = vadd.f32 %v556, %v1222
  %v1351 = vadd.f32 %v556, %v1223
  %v1352 = vadd.f32 %v556, %v1224
  %v1353 = vadd.f32 %v556, %v1225
  %v1354 = vadd.f32 %v556, %v1226
  %v1355 = vadd.f32 %v556, %v1227
  %v1356 = vadd.f32 %v556, %v1228
  %v1357 = vadd.f32 %v556, %v1229
  %v1358 = vadd.f32 %v556, %v1230
  %v1359 = vadd.f32 %v556, %v1231
  %v1360 = vadd.f32 %v556, %v1232
  %v1361 = vadd.f32 %v556, %v1233
  %v1362 = vadd.f32 %v556, %v1234
  %v1363 = vadd.f32 %v556, %v1235
  %v1364 = vadd.f32 %v556, %v1236
  %v1365 = vadd.f32 %v556, %v1237
  %v1366 = vadd.f32 %v556, %v1238
  %v1367 = vadd.f32 %v556, %v1239
  %v1368 = vadd.f32 %v556, %v1240
  %v1369 = vadd.f32 %v556, %v1241
  %v1370 = vadd.f32 %v556, %v1242
  %v1371 = vadd.f32 %v556, %v1243
  %v1372 = vadd.f32 %v556, %v1244
  %v1373 = vadd.f32 %v556, %v1245
  %v1374 = vadd.f32 %v556, %v1246
  %v1375 = vadd.f32 %v556, %v1247
  %v1376 = vadd.f32 %v556, %v1248
  %v1377 = vadd.f32 %v556, %v1249
  %v1378 = vadd.f32 %v556, %v1250
  %v1379 = vadd.f32 %v556, %v1251
  %v1380 = vadd.f32 %v556, %v1252
  %v1381 = vadd.f32 %v556, %v1253
  %v1382 = vadd.f32 %v556, %v1254
  %v1383 = vadd.f32 %v556, %v1255
  %v1384 = vadd.f32 %v556, %v1256
  %v1385 = vadd.f32 %v556, %v1257
  %v1386 = vadd.f32 %v556, %v1258
  %v1387 = vadd.f32 %v556, %v1259
  %v1388 = vadd.f32 %v556, %v1260
  %v1389 = vadd.f32 %v556, %v1261
  %v1390 = vadd.f32 %v556, %v1262
  %v1391 = vadd.f32 %v556, %v1263
  %v1392 = vadd.f32 %v556, %v1264
  %v1393 = vadd.f32 %v556, %v1265
  %v1394 = vadd.f32 %v556, %v1266
  %v1395 = vadd.f32 %v556, %v1267
  %v1396 = vadd.f32 %v556, %v1268
  %v1397 = vadd.f32 %v556, %v1269
  %v1398 = vadd.f32 %v556, %v1270
  %v1399 = vadd.f32 %v556, %v1271
  %v1400 = vadd.f32 %v556, %v1272
  %v1401 = vadd.f32 %v556, %v1273
  %v1402 = vadd.f32 %v556, %v1274
  %v1403 = vadd.f32 %v556, %v1275
  %v1404 = vadd.f32 %v556, %v1276
  %v1405 = vadd.f32 %v556, %v1277
  %v1406 = vadd.f32 %v556, %v1278
  %v1407 = vadd.f32 %v556, %v1279
  %v1408 = vadd.f32 %v556, %v1280
  %v1409 = vadd.f32 %v556, %v1281
  %v1410 = vadd.f32 %v556, %v1282
  %v1411 = vadd.f32 %v556, %v1283
  %v1412 = vadd.f32 %v556, %v1284
  %v1413 = vadd.f32 %v556, %v1285
  %v1414 = vadd.f32 %v556, %v1286
  %v1415 = vadd.f32 %v556, %v1287
  %v1416 = vadd.f32 %v556, %v1288
  %v1417 = vadd.f32 %v556, %v1289
  %v1418 = vadd.f32 %v556, %v1290
  %v1419 = vadd.f32 %v556, %v1291
  %v1420 = vadd.f32 %v556, %v1292
  %v1421 = vadd.f32 %v556, %v1293
  %v1422 = vadd.f32 %v556, %v1294
  %v1423 = vadd.f32 %v556, %v1295
  %v1424 = vadd.f32 %v556, %v1296
  %v1425 = vadd.f32 %v556, %v1297
  %v1426 = vadd.f32 %v556, %v1298
  %v1427 = vadd.f32 %v556, %v1299
  %v1428 = vadd.f32 %v556, %v1300
  %v1429 = vadd.f32 %v556, %v1301
  %v1430 = vadd.f32 %v556, %v1302
  %v1431 = vadd.f32 %v556, %v1303
  %v1432 = vadd.f32 %v556, %v1304
  %v1433 = vadd.f32 %v556, %v1305
  %v1434 = vadd.f32 %v556, %v1306
  %v1435 = vadd.f32 %v556, %v1307
  %v1436 = vadd.f32 %v556, %v1308
  %v1437 = vadd.f32 %v556, %v1309
  %v1438 = vadd.f32 %v556, %v1310
  %v1439 = vadd.f32 %v556, %v1311
  %v1440 = vadd.f32 %v556, %v1312
  %v1441 = vadd.f32 %v556, %v1313
  %v1442 = vadd.f32 %v556, %v1314
  %v1443 = vadd.f32 %v556, %v1315
  %v1444 = vadd.f32 %v556, %v1316
  %v1445 = vadd.f32 %v556, %v1317
  %v1446 = vadd.f32 %v556, %v1318
  %v1447 = vadd.f32 %v556, %v1319
  %v1448 = vadd.f32 %v556, %v1320
  %v1449 = vadd.f32 %v556, %v1321
  %v1450 = vadd.f32 %v556, %v1322
  %v1451 = vadd.f32 %v556, %v1323
  %v1452 = vadd.f32 %v556, %v1324
  %v1453 = vadd.f32 %v556, %v1325
  %v1454 = vadd.f32 %v556, %v1326
  %v1455 = vadd.f32 %v556, %v1327
  %v1456 = vadd.f32 %v556, %v1328
  %v1457 = vadd.f32 %v556, %v1329
  %v1458 = vld [vmem:[%s3 + $0x1] sm:$0x1]
  %1459 = vset.pattern.permute.xlu0 1
  %1460 = vperm.xlu0 %1459, %v421
  %v1461 = vpop.permute.xlu0 %1460
  %1463 = vset.pattern.permute.xlu0 1
  %1464 = vperm.xlu0 %1463, %v422
  %v1465 = vpop.permute.xlu0 %1464
  %1467 = vset.pattern.permute.xlu0 1
  %1468 = vperm.xlu0 %1467, %v423
  %v1469 = vpop.permute.xlu0 %1468
  %1471 = vset.pattern.permute.xlu0 1
  %1472 = vperm.xlu0 %1471, %v424
  %v1473 = vpop.permute.xlu0 %1472
  %1475 = vset.pattern.permute.xlu0 1
  %1476 = vperm.xlu0 %1475, %v425
  %v1477 = vpop.permute.xlu0 %1476
  %1479 = vset.pattern.permute.xlu0 1
  %1480 = vperm.xlu0 %1479, %v426
  %v1481 = vpop.permute.xlu0 %1480
  %1483 = vset.pattern.permute.xlu0 1
  %1484 = vperm.xlu0 %1483, %v427
  %v1485 = vpop.permute.xlu0 %1484
  %1487 = vset.pattern.permute.xlu0 1
  %1488 = vperm.xlu0 %1487, %v428
  %v1489 = vpop.permute.xlu0 %1488
  %1491 = vset.pattern.permute.xlu0 1
  %1492 = vperm.xlu0 %1491, %v429
  %v1493 = vpop.permute.xlu0 %1492
  %1495 = vset.pattern.permute.xlu0 1
  %1496 = vperm.xlu0 %1495, %v430
  %v1497 = vpop.permute.xlu0 %1496
  %1499 = vset.pattern.permute.xlu0 1
  %1500 = vperm.xlu0 %1499, %v431
  %v1501 = vpop.permute.xlu0 %1500
  %1503 = vset.pattern.permute.xlu0 1
  %1504 = vperm.xlu0 %1503, %v432
  %v1505 = vpop.permute.xlu0 %1504
  %1507 = vset.pattern.permute.xlu0 1
  %1508 = vperm.xlu0 %1507, %v433
  %v1509 = vpop.permute.xlu0 %1508
  %1511 = vset.pattern.permute.xlu0 1
  %1512 = vperm.xlu0 %1511, %v434
  %v1513 = vpop.permute.xlu0 %1512
  %1515 = vset.pattern.permute.xlu0 1
  %1516 = vperm.xlu0 %1515, %v435
  %v1517 = vpop.permute.xlu0 %1516
  %1519 = vset.pattern.permute.xlu0 1
  %1520 = vperm.xlu0 %1519, %v436
  %v1521 = vpop.permute.xlu0 %1520
  %1523 = vset.pattern.permute.xlu0 1
  %1524 = vperm.xlu0 %1523, %v437
  %v1525 = vpop.permute.xlu0 %1524
  %1527 = vset.pattern.permute.xlu0 1
  %1528 = vperm.xlu0 %1527, %v438
  %v1529 = vpop.permute.xlu0 %1528
  %1531 = vset.pattern.permute.xlu0 1
  %1532 = vperm.xlu0 %1531, %v439
  %v1533 = vpop.permute.xlu0 %1532
  %1535 = vset.pattern.permute.xlu0 1
  %1536 = vperm.xlu0 %1535, %v440
  %v1537 = vpop.permute.xlu0 %1536
  %1539 = vset.pattern.permute.xlu0 1
  %1540 = vperm.xlu0 %1539, %v441
  %v1541 = vpop.permute.xlu0 %1540
  %1543 = vset.pattern.permute.xlu0 1
  %1544 = vperm.xlu0 %1543, %v442
  %v1545 = vpop.permute.xlu0 %1544
  %1547 = vset.pattern.permute.xlu0 1
  %1548 = vperm.xlu0 %1547, %v443
  %v1549 = vpop.permute.xlu0 %1548
  %1551 = vset.pattern.permute.xlu0 1
  %1552 = vperm.xlu0 %1551, %v444
  %v1553 = vpop.permute.xlu0 %1552
  %1555 = vset.pattern.permute.xlu0 1
  %1556 = vperm.xlu0 %1555, %v445
  %v1557 = vpop.permute.xlu0 %1556
  %1559 = vset.pattern.permute.xlu0 1
  %1560 = vperm.xlu0 %1559, %v446
  %v1561 = vpop.permute.xlu0 %1560
  %1563 = vset.pattern.permute.xlu0 1
  %1564 = vperm.xlu0 %1563, %v447
  %v1565 = vpop.permute.xlu0 %1564
  %1567 = vset.pattern.permute.xlu0 1
  %1568 = vperm.xlu0 %1567, %v448
  %v1569 = vpop.permute.xlu0 %1568
  %1571 = vset.pattern.permute.xlu0 1
  %1572 = vperm.xlu0 %1571, %v449
  %v1573 = vpop.permute.xlu0 %1572
  %1575 = vset.pattern.permute.xlu0 1
  %1576 = vperm.xlu0 %1575, %v450
  %v1577 = vpop.permute.xlu0 %1576
  %1579 = vset.pattern.permute.xlu0 1
  %1580 = vperm.xlu0 %1579, %v451
  %v1581 = vpop.permute.xlu0 %1580
  %1583 = vset.pattern.permute.xlu0 1
  %1584 = vperm.xlu0 %1583, %v452
  %v1585 = vpop.permute.xlu0 %1584
  %1587 = vset.pattern.permute.xlu0 1
  %1588 = vperm.xlu0 %1587, %v453
  %v1589 = vpop.permute.xlu0 %1588
  %1591 = vset.pattern.permute.xlu0 1
  %1592 = vperm.xlu0 %1591, %v454
  %v1593 = vpop.permute.xlu0 %1592
  %1595 = vset.pattern.permute.xlu0 1
  %1596 = vperm.xlu0 %1595, %v455
  %v1597 = vpop.permute.xlu0 %1596
  %1599 = vset.pattern.permute.xlu0 1
  %1600 = vperm.xlu0 %1599, %v456
  %v1601 = vpop.permute.xlu0 %1600
  %1603 = vset.pattern.permute.xlu0 1
  %1604 = vperm.xlu0 %1603, %v457
  %v1605 = vpop.permute.xlu0 %1604
  %1607 = vset.pattern.permute.xlu0 1
  %1608 = vperm.xlu0 %1607, %v458
  %v1609 = vpop.permute.xlu0 %1608
  %1611 = vset.pattern.permute.xlu0 1
  %1612 = vperm.xlu0 %1611, %v459
  %v1613 = vpop.permute.xlu0 %1612
  %1615 = vset.pattern.permute.xlu0 1
  %1616 = vperm.xlu0 %1615, %v460
  %v1617 = vpop.permute.xlu0 %1616
  %1619 = vset.pattern.permute.xlu0 1
  %1620 = vperm.xlu0 %1619, %v461
  %v1621 = vpop.permute.xlu0 %1620
  %1623 = vset.pattern.permute.xlu0 1
  %1624 = vperm.xlu0 %1623, %v462
  %v1625 = vpop.permute.xlu0 %1624
  %1627 = vset.pattern.permute.xlu0 1
  %1628 = vperm.xlu0 %1627, %v463
  %v1629 = vpop.permute.xlu0 %1628
  %1631 = vset.pattern.permute.xlu0 1
  %1632 = vperm.xlu0 %1631, %v464
  %v1633 = vpop.permute.xlu0 %1632
  %1635 = vset.pattern.permute.xlu0 1
  %1636 = vperm.xlu0 %1635, %v465
  %v1637 = vpop.permute.xlu0 %1636
  %1639 = vset.pattern.permute.xlu0 1
  %1640 = vperm.xlu0 %1639, %v466
  %v1641 = vpop.permute.xlu0 %1640
  %1643 = vset.pattern.permute.xlu0 1
  %1644 = vperm.xlu0 %1643, %v467
  %v1645 = vpop.permute.xlu0 %1644
  %1647 = vset.pattern.permute.xlu0 1
  %1648 = vperm.xlu0 %1647, %v468
  %v1649 = vpop.permute.xlu0 %1648
  %1651 = vset.pattern.permute.xlu0 1
  %1652 = vperm.xlu0 %1651, %v469
  %v1653 = vpop.permute.xlu0 %1652
  %1655 = vset.pattern.permute.xlu0 1
  %1656 = vperm.xlu0 %1655, %v470
  %v1657 = vpop.permute.xlu0 %1656
  %1659 = vset.pattern.permute.xlu0 1
  %1660 = vperm.xlu0 %1659, %v471
  %v1661 = vpop.permute.xlu0 %1660
  %1663 = vset.pattern.permute.xlu0 1
  %1664 = vperm.xlu0 %1663, %v472
  %v1665 = vpop.permute.xlu0 %1664
  %1667 = vset.pattern.permute.xlu0 1
  %1668 = vperm.xlu0 %1667, %v473
  %v1669 = vpop.permute.xlu0 %1668
  %1671 = vset.pattern.permute.xlu0 1
  %1672 = vperm.xlu0 %1671, %v474
  %v1673 = vpop.permute.xlu0 %1672
  %1675 = vset.pattern.permute.xlu0 1
  %1676 = vperm.xlu0 %1675, %v475
  %v1677 = vpop.permute.xlu0 %1676
  %1679 = vset.pattern.permute.xlu0 1
  %1680 = vperm.xlu0 %1679, %v476
  %v1681 = vpop.permute.xlu0 %1680
  %1683 = vset.pattern.permute.xlu0 1
  %1684 = vperm.xlu0 %1683, %v477
  %v1685 = vpop.permute.xlu0 %1684
  %1687 = vset.pattern.permute.xlu0 1
  %1688 = vperm.xlu0 %1687, %v478
  %v1689 = vpop.permute.xlu0 %1688
  %1691 = vset.pattern.permute.xlu0 1
  %1692 = vperm.xlu0 %1691, %v479
  %v1693 = vpop.permute.xlu0 %1692
  %1695 = vset.pattern.permute.xlu0 1
  %1696 = vperm.xlu0 %1695, %v480
  %v1697 = vpop.permute.xlu0 %1696
  %1699 = vset.pattern.permute.xlu0 1
  %1700 = vperm.xlu0 %1699, %v481
  %v1701 = vpop.permute.xlu0 %1700
  %1703 = vset.pattern.permute.xlu0 1
  %1704 = vperm.xlu0 %1703, %v482
  %v1705 = vpop.permute.xlu0 %1704
  %1707 = vset.pattern.permute.xlu0 1
  %1708 = vperm.xlu0 %1707, %v483
  %v1709 = vpop.permute.xlu0 %1708
  %1711 = vset.pattern.permute.xlu0 1
  %1712 = vperm.xlu0 %1711, %v484
  %v1713 = vpop.permute.xlu0 %1712
  %1715 = vset.pattern.permute.xlu0 1
  %1716 = vperm.xlu0 %1715, %v485
  %v1717 = vpop.permute.xlu0 %1716
  %1719 = vset.pattern.permute.xlu0 1
  %1720 = vperm.xlu0 %1719, %v486
  %v1721 = vpop.permute.xlu0 %1720
  %1723 = vset.pattern.permute.xlu0 1
  %1724 = vperm.xlu0 %1723, %v487
  %v1725 = vpop.permute.xlu0 %1724
  %1727 = vset.pattern.permute.xlu0 1
  %1728 = vperm.xlu0 %1727, %v488
  %v1729 = vpop.permute.xlu0 %1728
  %1731 = vset.pattern.permute.xlu0 1
  %1732 = vperm.xlu0 %1731, %v489
  %v1733 = vpop.permute.xlu0 %1732
  %1735 = vset.pattern.permute.xlu0 1
  %1736 = vperm.xlu0 %1735, %v490
  %v1737 = vpop.permute.xlu0 %1736
  %1739 = vset.pattern.permute.xlu0 1
  %1740 = vperm.xlu0 %1739, %v491
  %v1741 = vpop.permute.xlu0 %1740
  %1743 = vset.pattern.permute.xlu0 1
  %1744 = vperm.xlu0 %1743, %v492
  %v1745 = vpop.permute.xlu0 %1744
  %1747 = vset.pattern.permute.xlu0 1
  %1748 = vperm.xlu0 %1747, %v493
  %v1749 = vpop.permute.xlu0 %1748
  %1751 = vset.pattern.permute.xlu0 1
  %1752 = vperm.xlu0 %1751, %v494
  %v1753 = vpop.permute.xlu0 %1752
  %1755 = vset.pattern.permute.xlu0 1
  %1756 = vperm.xlu0 %1755, %v495
  %v1757 = vpop.permute.xlu0 %1756
  %1759 = vset.pattern.permute.xlu0 1
  %1760 = vperm.xlu0 %1759, %v496
  %v1761 = vpop.permute.xlu0 %1760
  %1763 = vset.pattern.permute.xlu0 1
  %1764 = vperm.xlu0 %1763, %v497
  %v1765 = vpop.permute.xlu0 %1764
  %1767 = vset.pattern.permute.xlu0 1
  %1768 = vperm.xlu0 %1767, %v498
  %v1769 = vpop.permute.xlu0 %1768
  %1771 = vset.pattern.permute.xlu0 1
  %1772 = vperm.xlu0 %1771, %v499
  %v1773 = vpop.permute.xlu0 %1772
  %1775 = vset.pattern.permute.xlu0 1
  %1776 = vperm.xlu0 %1775, %v500
  %v1777 = vpop.permute.xlu0 %1776
  %1779 = vset.pattern.permute.xlu0 1
  %1780 = vperm.xlu0 %1779, %v501
  %v1781 = vpop.permute.xlu0 %1780
  %1783 = vset.pattern.permute.xlu0 1
  %1784 = vperm.xlu0 %1783, %v502
  %v1785 = vpop.permute.xlu0 %1784
  %1787 = vset.pattern.permute.xlu0 1
  %1788 = vperm.xlu0 %1787, %v503
  %v1789 = vpop.permute.xlu0 %1788
  %1791 = vset.pattern.permute.xlu0 1
  %1792 = vperm.xlu0 %1791, %v504
  %v1793 = vpop.permute.xlu0 %1792
  %1795 = vset.pattern.permute.xlu0 1
  %1796 = vperm.xlu0 %1795, %v505
  %v1797 = vpop.permute.xlu0 %1796
  %1799 = vset.pattern.permute.xlu0 1
  %1800 = vperm.xlu0 %1799, %v506
  %v1801 = vpop.permute.xlu0 %1800
  %1803 = vset.pattern.permute.xlu0 1
  %1804 = vperm.xlu0 %1803, %v507
  %v1805 = vpop.permute.xlu0 %1804
  %1807 = vset.pattern.permute.xlu0 1
  %1808 = vperm.xlu0 %1807, %v508
  %v1809 = vpop.permute.xlu0 %1808
  %1811 = vset.pattern.permute.xlu0 1
  %1812 = vperm.xlu0 %1811, %v509
  %v1813 = vpop.permute.xlu0 %1812
  %1815 = vset.pattern.permute.xlu0 1
  %1816 = vperm.xlu0 %1815, %v510
  %v1817 = vpop.permute.xlu0 %1816
  %1819 = vset.pattern.permute.xlu0 1
  %1820 = vperm.xlu0 %1819, %v511
  %v1821 = vpop.permute.xlu0 %1820
  %1823 = vset.pattern.permute.xlu0 1
  %1824 = vperm.xlu0 %1823, %v512
  %v1825 = vpop.permute.xlu0 %1824
  %1827 = vset.pattern.permute.xlu0 1
  %1828 = vperm.xlu0 %1827, %v513
  %v1829 = vpop.permute.xlu0 %1828
  %1831 = vset.pattern.permute.xlu0 1
  %1832 = vperm.xlu0 %1831, %v514
  %v1833 = vpop.permute.xlu0 %1832
  %1835 = vset.pattern.permute.xlu0 1
  %1836 = vperm.xlu0 %1835, %v515
  %v1837 = vpop.permute.xlu0 %1836
  %1839 = vset.pattern.permute.xlu0 1
  %1840 = vperm.xlu0 %1839, %v516
  %v1841 = vpop.permute.xlu0 %1840
  %1843 = vset.pattern.permute.xlu0 1
  %1844 = vperm.xlu0 %1843, %v517
  %v1845 = vpop.permute.xlu0 %1844
  %1847 = vset.pattern.permute.xlu0 1
  %1848 = vperm.xlu0 %1847, %v518
  %v1849 = vpop.permute.xlu0 %1848
  %1851 = vset.pattern.permute.xlu0 1
  %1852 = vperm.xlu0 %1851, %v519
  %v1853 = vpop.permute.xlu0 %1852
  %1855 = vset.pattern.permute.xlu0 1
  %1856 = vperm.xlu0 %1855, %v520
  %v1857 = vpop.permute.xlu0 %1856
  %1859 = vset.pattern.permute.xlu0 1
  %1860 = vperm.xlu0 %1859, %v521
  %v1861 = vpop.permute.xlu0 %1860
  %1863 = vset.pattern.permute.xlu0 1
  %1864 = vperm.xlu0 %1863, %v522
  %v1865 = vpop.permute.xlu0 %1864
  %1867 = vset.pattern.permute.xlu0 1
  %1868 = vperm.xlu0 %1867, %v523
  %v1869 = vpop.permute.xlu0 %1868
  %1871 = vset.pattern.permute.xlu0 1
  %1872 = vperm.xlu0 %1871, %v524
  %v1873 = vpop.permute.xlu0 %1872
  %1875 = vset.pattern.permute.xlu0 1
  %1876 = vperm.xlu0 %1875, %v525
  %v1877 = vpop.permute.xlu0 %1876
  %1879 = vset.pattern.permute.xlu0 1
  %1880 = vperm.xlu0 %1879, %v526
  %v1881 = vpop.permute.xlu0 %1880
  %1883 = vset.pattern.permute.xlu0 1
  %1884 = vperm.xlu0 %1883, %v527
  %v1885 = vpop.permute.xlu0 %1884
  %1887 = vset.pattern.permute.xlu0 1
  %1888 = vperm.xlu0 %1887, %v528
  %v1889 = vpop.permute.xlu0 %1888
  %1891 = vset.pattern.permute.xlu0 1
  %1892 = vperm.xlu0 %1891, %v529
  %v1893 = vpop.permute.xlu0 %1892
  %1895 = vset.pattern.permute.xlu0 1
  %1896 = vperm.xlu0 %1895, %v530
  %v1897 = vpop.permute.xlu0 %1896
  %1899 = vset.pattern.permute.xlu0 1
  %1900 = vperm.xlu0 %1899, %v531
  %v1901 = vpop.permute.xlu0 %1900
  %1903 = vset.pattern.permute.xlu0 1
  %1904 = vperm.xlu0 %1903, %v532
  %v1905 = vpop.permute.xlu0 %1904
  %1907 = vset.pattern.permute.xlu0 1
  %1908 = vperm.xlu0 %1907, %v533
  %v1909 = vpop.permute.xlu0 %1908
  %1911 = vset.pattern.permute.xlu0 1
  %1912 = vperm.xlu0 %1911, %v534
  %v1913 = vpop.permute.xlu0 %1912
  %1915 = vset.pattern.permute.xlu0 1
  %1916 = vperm.xlu0 %1915, %v535
  %v1917 = vpop.permute.xlu0 %1916
  %1919 = vset.pattern.permute.xlu0 1
  %1920 = vperm.xlu0 %1919, %v536
  %v1921 = vpop.permute.xlu0 %1920
  %1923 = vset.pattern.permute.xlu0 1
  %1924 = vperm.xlu0 %1923, %v537
  %v1925 = vpop.permute.xlu0 %1924
  %1927 = vset.pattern.permute.xlu0 1
  %1928 = vperm.xlu0 %1927, %v538
  %v1929 = vpop.permute.xlu0 %1928
  %1931 = vset.pattern.permute.xlu0 1
  %1932 = vperm.xlu0 %1931, %v539
  %v1933 = vpop.permute.xlu0 %1932
  %1935 = vset.pattern.permute.xlu0 1
  %1936 = vperm.xlu0 %1935, %v540
  %v1937 = vpop.permute.xlu0 %1936
  %1939 = vset.pattern.permute.xlu0 1
  %1940 = vperm.xlu0 %1939, %v541
  %v1941 = vpop.permute.xlu0 %1940
  %1943 = vset.pattern.permute.xlu0 1
  %1944 = vperm.xlu0 %1943, %v542
  %v1945 = vpop.permute.xlu0 %1944
  %1947 = vset.pattern.permute.xlu0 1
  %1948 = vperm.xlu0 %1947, %v543
  %v1949 = vpop.permute.xlu0 %1948
  %1951 = vset.pattern.permute.xlu0 1
  %1952 = vperm.xlu0 %1951, %v544
  %v1953 = vpop.permute.xlu0 %1952
  %1955 = vset.pattern.permute.xlu0 1
  %1956 = vperm.xlu0 %1955, %v545
  %v1957 = vpop.permute.xlu0 %1956
  %1959 = vset.pattern.permute.xlu0 1
  %1960 = vperm.xlu0 %1959, %v546
  %v1961 = vpop.permute.xlu0 %1960
  %1963 = vset.pattern.permute.xlu0 1
  %1964 = vperm.xlu0 %1963, %v547
  %v1965 = vpop.permute.xlu0 %1964
  %1967 = vset.pattern.permute.xlu0 1
  %1968 = vperm.xlu0 %1967, %v548
  %v1969 = vpop.permute.xlu0 %1968
  %v1971 = vlaneseq
  %v1972 = vshrl.u32 %v1971, 7
  %v1973 = vsub.s32 0, %v1972
  %v1974 = vrot.slane %v1458, %v1973
  %v1975 = vmul.f32 %v1461, %v1974
  %v1976 = vmul.f32 %v1465, %v1974
  %v1977 = vmul.f32 %v1469, %v1974
  %v1978 = vmul.f32 %v1473, %v1974
  %v1979 = vmul.f32 %v1477, %v1974
  %v1980 = vmul.f32 %v1481, %v1974
  %v1981 = vmul.f32 %v1485, %v1974
  %v1982 = vmul.f32 %v1489, %v1974
  %v1983 = vmul.f32 %v1493, %v1974
  %v1984 = vmul.f32 %v1497, %v1974
  %v1985 = vmul.f32 %v1501, %v1974
  %v1986 = vmul.f32 %v1505, %v1974
  %v1987 = vmul.f32 %v1509, %v1974
  %v1988 = vmul.f32 %v1513, %v1974
  %v1989 = vmul.f32 %v1517, %v1974
  %v1990 = vmul.f32 %v1521, %v1974
  %v1991 = vmul.f32 %v1525, %v1974
  %v1992 = vmul.f32 %v1529, %v1974
  %v1993 = vmul.f32 %v1533, %v1974
  %v1994 = vmul.f32 %v1537, %v1974
  %v1995 = vmul.f32 %v1541, %v1974
  %v1996 = vmul.f32 %v1545, %v1974
  %v1997 = vmul.f32 %v1549, %v1974
  %v1998 = vmul.f32 %v1553, %v1974
  %v1999 = vmul.f32 %v1557, %v1974
  %v2000 = vmul.f32 %v1561, %v1974
  %v2001 = vmul.f32 %v1565, %v1974
  %v2002 = vmul.f32 %v1569, %v1974
  %v2003 = vmul.f32 %v1573, %v1974
  %v2004 = vmul.f32 %v1577, %v1974
  %v2005 = vmul.f32 %v1581, %v1974
  %v2006 = vmul.f32 %v1585, %v1974
  %v2007 = vmul.f32 %v1589, %v1974
  %v2008 = vmul.f32 %v1593, %v1974
  %v2009 = vmul.f32 %v1597, %v1974
  %v2010 = vmul.f32 %v1601, %v1974
  %v2011 = vmul.f32 %v1605, %v1974
  %v2012 = vmul.f32 %v1609, %v1974
  %v2013 = vmul.f32 %v1613, %v1974
  %v2014 = vmul.f32 %v1617, %v1974
  %v2015 = vmul.f32 %v1621, %v1974
  %v2016 = vmul.f32 %v1625, %v1974
  %v2017 = vmul.f32 %v1629, %v1974
  %v2018 = vmul.f32 %v1633, %v1974
  %v2019 = vmul.f32 %v1637, %v1974
  %v2020 = vmul.f32 %v1641, %v1974
  %v2021 = vmul.f32 %v1645, %v1974
  %v2022 = vmul.f32 %v1649, %v1974
  %v2023 = vmul.f32 %v1653, %v1974
  %v2024 = vmul.f32 %v1657, %v1974
  %v2025 = vmul.f32 %v1661, %v1974
  %v2026 = vmul.f32 %v1665, %v1974
  %v2027 = vmul.f32 %v1669, %v1974
  %v2028 = vmul.f32 %v1673, %v1974
  %v2029 = vmul.f32 %v1677, %v1974
  %v2030 = vmul.f32 %v1681, %v1974
  %v2031 = vmul.f32 %v1685, %v1974
  %v2032 = vmul.f32 %v1689, %v1974
  %v2033 = vmul.f32 %v1693, %v1974
  %v2034 = vmul.f32 %v1697, %v1974
  %v2035 = vmul.f32 %v1701, %v1974
  %v2036 = vmul.f32 %v1705, %v1974
  %v2037 = vmul.f32 %v1709, %v1974
  %v2038 = vmul.f32 %v1713, %v1974
  %v2039 = vmul.f32 %v1717, %v1974
  %v2040 = vmul.f32 %v1721, %v1974
  %v2041 = vmul.f32 %v1725, %v1974
  %v2042 = vmul.f32 %v1729, %v1974
  %v2043 = vmul.f32 %v1733, %v1974
  %v2044 = vmul.f32 %v1737, %v1974
  %v2045 = vmul.f32 %v1741, %v1974
  %v2046 = vmul.f32 %v1745, %v1974
  %v2047 = vmul.f32 %v1749, %v1974
  %v2048 = vmul.f32 %v1753, %v1974
  %v2049 = vmul.f32 %v1757, %v1974
  %v2050 = vmul.f32 %v1761, %v1974
  %v2051 = vmul.f32 %v1765, %v1974
  %v2052 = vmul.f32 %v1769, %v1974
  %v2053 = vmul.f32 %v1773, %v1974
  %v2054 = vmul.f32 %v1777, %v1974
  %v2055 = vmul.f32 %v1781, %v1974
  %v2056 = vmul.f32 %v1785, %v1974
  %v2057 = vmul.f32 %v1789, %v1974
  %v2058 = vmul.f32 %v1793, %v1974
  %v2059 = vmul.f32 %v1797, %v1974
  %v2060 = vmul.f32 %v1801, %v1974
  %v2061 = vmul.f32 %v1805, %v1974
  %v2062 = vmul.f32 %v1809, %v1974
  %v2063 = vmul.f32 %v1813, %v1974
  %v2064 = vmul.f32 %v1817, %v1974
  %v2065 = vmul.f32 %v1821, %v1974
  %v2066 = vmul.f32 %v1825, %v1974
  %v2067 = vmul.f32 %v1829, %v1974
  %v2068 = vmul.f32 %v1833, %v1974
  %v2069 = vmul.f32 %v1837, %v1974
  %v2070 = vmul.f32 %v1841, %v1974
  %v2071 = vmul.f32 %v1845, %v1974
  %v2072 = vmul.f32 %v1849, %v1974
  %v2073 = vmul.f32 %v1853, %v1974
  %v2074 = vmul.f32 %v1857, %v1974
  %v2075 = vmul.f32 %v1861, %v1974
  %v2076 = vmul.f32 %v1865, %v1974
  %v2077 = vmul.f32 %v1869, %v1974
  %v2078 = vmul.f32 %v1873, %v1974
  %v2079 = vmul.f32 %v1877, %v1974
  %v2080 = vmul.f32 %v1881, %v1974
  %v2081 = vmul.f32 %v1885, %v1974
  %v2082 = vmul.f32 %v1889, %v1974
  %v2083 = vmul.f32 %v1893, %v1974
  %v2084 = vmul.f32 %v1897, %v1974
  %v2085 = vmul.f32 %v1901, %v1974
  %v2086 = vmul.f32 %v1905, %v1974
  %v2087 = vmul.f32 %v1909, %v1974
  %v2088 = vmul.f32 %v1913, %v1974
  %v2089 = vmul.f32 %v1917, %v1974
  %v2090 = vmul.f32 %v1921, %v1974
  %v2091 = vmul.f32 %v1925, %v1974
  %v2092 = vmul.f32 %v1929, %v1974
  %v2093 = vmul.f32 %v1933, %v1974
  %v2094 = vmul.f32 %v1937, %v1974
  %v2095 = vmul.f32 %v1941, %v1974
  %v2096 = vmul.f32 %v1945, %v1974
  %v2097 = vmul.f32 %v1949, %v1974
  %v2098 = vmul.f32 %v1953, %v1974
  %v2099 = vmul.f32 %v1957, %v1974
  %v2100 = vmul.f32 %v1961, %v1974
  %v2101 = vmul.f32 %v1965, %v1974
  %v2102 = vmul.f32 %v1969, %v1974
  %v2103 = vadd.f32 %v1330, %v1975
  %v2104 = vadd.f32 %v1331, %v1976
  %v2105 = vadd.f32 %v1332, %v1977
  %v2106 = vadd.f32 %v1333, %v1978
  %v2107 = vadd.f32 %v1334, %v1979
  %v2108 = vadd.f32 %v1335, %v1980
  %v2109 = vadd.f32 %v1336, %v1981
  %v2110 = vadd.f32 %v1337, %v1982
  %v2111 = vadd.f32 %v1338, %v1983
  %v2112 = vadd.f32 %v1339, %v1984
  %v2113 = vadd.f32 %v1340, %v1985
  %v2114 = vadd.f32 %v1341, %v1986
  %v2115 = vadd.f32 %v1342, %v1987
  %v2116 = vadd.f32 %v1343, %v1988
  %v2117 = vadd.f32 %v1344, %v1989
  %v2118 = vadd.f32 %v1345, %v1990
  %v2119 = vadd.f32 %v1346, %v1991
  %v2120 = vadd.f32 %v1347, %v1992
  %v2121 = vadd.f32 %v1348, %v1993
  %v2122 = vadd.f32 %v1349, %v1994
  %v2123 = vadd.f32 %v1350, %v1995
  %v2124 = vadd.f32 %v1351, %v1996
  %v2125 = vadd.f32 %v1352, %v1997
  %v2126 = vadd.f32 %v1353, %v1998
  %v2127 = vadd.f32 %v1354, %v1999
  %v2128 = vadd.f32 %v1355, %v2000
  %v2129 = vadd.f32 %v1356, %v2001
  %v2130 = vadd.f32 %v1357, %v2002
  %v2131 = vadd.f32 %v1358, %v2003
  %v2132 = vadd.f32 %v1359, %v2004
  %v2133 = vadd.f32 %v1360, %v2005
  %v2134 = vadd.f32 %v1361, %v2006
  %v2135 = vadd.f32 %v1362, %v2007
  %v2136 = vadd.f32 %v1363, %v2008
  %v2137 = vadd.f32 %v1364, %v2009
  %v2138 = vadd.f32 %v1365, %v2010
  %v2139 = vadd.f32 %v1366, %v2011
  %v2140 = vadd.f32 %v1367, %v2012
  %v2141 = vadd.f32 %v1368, %v2013
  %v2142 = vadd.f32 %v1369, %v2014
  %v2143 = vadd.f32 %v1370, %v2015
  %v2144 = vadd.f32 %v1371, %v2016
  %v2145 = vadd.f32 %v1372, %v2017
  %v2146 = vadd.f32 %v1373, %v2018
  %v2147 = vadd.f32 %v1374, %v2019
  %v2148 = vadd.f32 %v1375, %v2020
  %v2149 = vadd.f32 %v1376, %v2021
  %v2150 = vadd.f32 %v1377, %v2022
  %v2151 = vadd.f32 %v1378, %v2023
  %v2152 = vadd.f32 %v1379, %v2024
  %v2153 = vadd.f32 %v1380, %v2025
  %v2154 = vadd.f32 %v1381, %v2026
  %v2155 = vadd.f32 %v1382, %v2027
  %v2156 = vadd.f32 %v1383, %v2028
  %v2157 = vadd.f32 %v1384, %v2029
  %v2158 = vadd.f32 %v1385, %v2030
  %v2159 = vadd.f32 %v1386, %v2031
  %v2160 = vadd.f32 %v1387, %v2032
  %v2161 = vadd.f32 %v1388, %v2033
  %v2162 = vadd.f32 %v1389, %v2034
  %v2163 = vadd.f32 %v1390, %v2035
  %v2164 = vadd.f32 %v1391, %v2036
  %v2165 = vadd.f32 %v1392, %v2037
  %v2166 = vadd.f32 %v1393, %v2038
  %v2167 = vadd.f32 %v1394, %v2039
  %v2168 = vadd.f32 %v1395, %v2040
  %v2169 = vadd.f32 %v1396, %v2041
  %v2170 = vadd.f32 %v1397, %v2042
  %v2171 = vadd.f32 %v1398, %v2043
  %v2172 = vadd.f32 %v1399, %v2044
  %v2173 = vadd.f32 %v1400, %v2045
  %v2174 = vadd.f32 %v1401, %v2046
  %v2175 = vadd.f32 %v1402, %v2047
  %v2176 = vadd.f32 %v1403, %v2048
  %v2177 = vadd.f32 %v1404, %v2049
  %v2178 = vadd.f32 %v1405, %v2050
  %v2179 = vadd.f32 %v1406, %v2051
  %v2180 = vadd.f32 %v1407, %v2052
  %v2181 = vadd.f32 %v1408, %v2053
  %v2182 = vadd.f32 %v1409, %v2054
  %v2183 = vadd.f32 %v1410, %v2055
  %v2184 = vadd.f32 %v1411, %v2056
  %v2185 = vadd.f32 %v1412, %v2057
  %v2186 = vadd.f32 %v1413, %v2058
  %v2187 = vadd.f32 %v1414, %v2059
  %v2188 = vadd.f32 %v1415, %v2060
  %v2189 = vadd.f32 %v1416, %v2061
  %v2190 = vadd.f32 %v1417, %v2062
  %v2191 = vadd.f32 %v1418, %v2063
  %v2192 = vadd.f32 %v1419, %v2064
  %v2193 = vadd.f32 %v1420, %v2065
  %v2194 = vadd.f32 %v1421, %v2066
  %v2195 = vadd.f32 %v1422, %v2067
  %v2196 = vadd.f32 %v1423, %v2068
  %v2197 = vadd.f32 %v1424, %v2069
  %v2198 = vadd.f32 %v1425, %v2070
  %v2199 = vadd.f32 %v1426, %v2071
  %v2200 = vadd.f32 %v1427, %v2072
  %v2201 = vadd.f32 %v1428, %v2073
  %v2202 = vadd.f32 %v1429, %v2074
  %v2203 = vadd.f32 %v1430, %v2075
  %v2204 = vadd.f32 %v1431, %v2076
  %v2205 = vadd.f32 %v1432, %v2077
  %v2206 = vadd.f32 %v1433, %v2078
  %v2207 = vadd.f32 %v1434, %v2079
  %v2208 = vadd.f32 %v1435, %v2080
  %v2209 = vadd.f32 %v1436, %v2081
  %v2210 = vadd.f32 %v1437, %v2082
  %v2211 = vadd.f32 %v1438, %v2083
  %v2212 = vadd.f32 %v1439, %v2084
  %v2213 = vadd.f32 %v1440, %v2085
  %v2214 = vadd.f32 %v1441, %v2086
  %v2215 = vadd.f32 %v1442, %v2087
  %v2216 = vadd.f32 %v1443, %v2088
  %v2217 = vadd.f32 %v1444, %v2089
  %v2218 = vadd.f32 %v1445, %v2090
  %v2219 = vadd.f32 %v1446, %v2091
  %v2220 = vadd.f32 %v1447, %v2092
  %v2221 = vadd.f32 %v1448, %v2093
  %v2222 = vadd.f32 %v1449, %v2094
  %v2223 = vadd.f32 %v1450, %v2095
  %v2224 = vadd.f32 %v1451, %v2096
  %v2225 = vadd.f32 %v1452, %v2097
  %v2226 = vadd.f32 %v1453, %v2098
  %v2227 = vadd.f32 %v1454, %v2099
  %v2228 = vadd.f32 %v1455, %v2100
  %v2229 = vadd.f32 %v1456, %v2101
  %v2230 = vadd.f32 %v1457, %v2102
  %v2231 = vld [vmem:[%s3 + $0x2] sm:$0x1]
  %2232 = vset.pattern.permute.xlu0 2
  %2233 = vperm.xlu0 %2232, %v421
  %v2234 = vpop.permute.xlu0 %2233
  %2236 = vset.pattern.permute.xlu0 2
  %2237 = vperm.xlu0 %2236, %v422
  %v2238 = vpop.permute.xlu0 %2237
  %2240 = vset.pattern.permute.xlu0 2
  %2241 = vperm.xlu0 %2240, %v423
  %v2242 = vpop.permute.xlu0 %2241
  %2244 = vset.pattern.permute.xlu0 2
  %2245 = vperm.xlu0 %2244, %v424
  %v2246 = vpop.permute.xlu0 %2245
  %2248 = vset.pattern.permute.xlu0 2
  %2249 = vperm.xlu0 %2248, %v425
  %v2250 = vpop.permute.xlu0 %2249
  %2252 = vset.pattern.permute.xlu0 2
  %2253 = vperm.xlu0 %2252, %v426
  %v2254 = vpop.permute.xlu0 %2253
  %2256 = vset.pattern.permute.xlu0 2
  %2257 = vperm.xlu0 %2256, %v427
  %v2258 = vpop.permute.xlu0 %2257
  %2260 = vset.pattern.permute.xlu0 2
  %2261 = vperm.xlu0 %2260, %v428
  %v2262 = vpop.permute.xlu0 %2261
  %2264 = vset.pattern.permute.xlu0 2
  %2265 = vperm.xlu0 %2264, %v429
  %v2266 = vpop.permute.xlu0 %2265
  %2268 = vset.pattern.permute.xlu0 2
  %2269 = vperm.xlu0 %2268, %v430
  %v2270 = vpop.permute.xlu0 %2269
  %2272 = vset.pattern.permute.xlu0 2
  %2273 = vperm.xlu0 %2272, %v431
  %v2274 = vpop.permute.xlu0 %2273
  %2276 = vset.pattern.permute.xlu0 2
  %2277 = vperm.xlu0 %2276, %v432
  %v2278 = vpop.permute.xlu0 %2277
  %2280 = vset.pattern.permute.xlu0 2
  %2281 = vperm.xlu0 %2280, %v433
  %v2282 = vpop.permute.xlu0 %2281
  %2284 = vset.pattern.permute.xlu0 2
  %2285 = vperm.xlu0 %2284, %v434
  %v2286 = vpop.permute.xlu0 %2285
  %2288 = vset.pattern.permute.xlu0 2
  %2289 = vperm.xlu0 %2288, %v435
  %v2290 = vpop.permute.xlu0 %2289
  %2292 = vset.pattern.permute.xlu0 2
  %2293 = vperm.xlu0 %2292, %v436
  %v2294 = vpop.permute.xlu0 %2293
  %2296 = vset.pattern.permute.xlu0 2
  %2297 = vperm.xlu0 %2296, %v437
  %v2298 = vpop.permute.xlu0 %2297
  %2300 = vset.pattern.permute.xlu0 2
  %2301 = vperm.xlu0 %2300, %v438
  %v2302 = vpop.permute.xlu0 %2301
  %2304 = vset.pattern.permute.xlu0 2
  %2305 = vperm.xlu0 %2304, %v439
  %v2306 = vpop.permute.xlu0 %2305
  %2308 = vset.pattern.permute.xlu0 2
  %2309 = vperm.xlu0 %2308, %v440
  %v2310 = vpop.permute.xlu0 %2309
  %2312 = vset.pattern.permute.xlu0 2
  %2313 = vperm.xlu0 %2312, %v441
  %v2314 = vpop.permute.xlu0 %2313
  %2316 = vset.pattern.permute.xlu0 2
  %2317 = vperm.xlu0 %2316, %v442
  %v2318 = vpop.permute.xlu0 %2317
  %2320 = vset.pattern.permute.xlu0 2
  %2321 = vperm.xlu0 %2320, %v443
  %v2322 = vpop.permute.xlu0 %2321
  %2324 = vset.pattern.permute.xlu0 2
  %2325 = vperm.xlu0 %2324, %v444
  %v2326 = vpop.permute.xlu0 %2325
  %2328 = vset.pattern.permute.xlu0 2
  %2329 = vperm.xlu0 %2328, %v445
  %v2330 = vpop.permute.xlu0 %2329
  %2332 = vset.pattern.permute.xlu0 2
  %2333 = vperm.xlu0 %2332, %v446
  %v2334 = vpop.permute.xlu0 %2333
  %2336 = vset.pattern.permute.xlu0 2
  %2337 = vperm.xlu0 %2336, %v447
  %v2338 = vpop.permute.xlu0 %2337
  %2340 = vset.pattern.permute.xlu0 2
  %2341 = vperm.xlu0 %2340, %v448
  %v2342 = vpop.permute.xlu0 %2341
  %2344 = vset.pattern.permute.xlu0 2
  %2345 = vperm.xlu0 %2344, %v449
  %v2346 = vpop.permute.xlu0 %2345
  %2348 = vset.pattern.permute.xlu0 2
  %2349 = vperm.xlu0 %2348, %v450
  %v2350 = vpop.permute.xlu0 %2349
  %2352 = vset.pattern.permute.xlu0 2
  %2353 = vperm.xlu0 %2352, %v451
  %v2354 = vpop.permute.xlu0 %2353
  %2356 = vset.pattern.permute.xlu0 2
  %2357 = vperm.xlu0 %2356, %v452
  %v2358 = vpop.permute.xlu0 %2357
  %2360 = vset.pattern.permute.xlu0 2
  %2361 = vperm.xlu0 %2360, %v453
  %v2362 = vpop.permute.xlu0 %2361
  %2364 = vset.pattern.permute.xlu0 2
  %2365 = vperm.xlu0 %2364, %v454
  %v2366 = vpop.permute.xlu0 %2365
  %2368 = vset.pattern.permute.xlu0 2
  %2369 = vperm.xlu0 %2368, %v455
  %v2370 = vpop.permute.xlu0 %2369
  %2372 = vset.pattern.permute.xlu0 2
  %2373 = vperm.xlu0 %2372, %v456
  %v2374 = vpop.permute.xlu0 %2373
  %2376 = vset.pattern.permute.xlu0 2
  %2377 = vperm.xlu0 %2376, %v457
  %v2378 = vpop.permute.xlu0 %2377
  %2380 = vset.pattern.permute.xlu0 2
  %2381 = vperm.xlu0 %2380, %v458
  %v2382 = vpop.permute.xlu0 %2381
  %2384 = vset.pattern.permute.xlu0 2
  %2385 = vperm.xlu0 %2384, %v459
  %v2386 = vpop.permute.xlu0 %2385
  %2388 = vset.pattern.permute.xlu0 2
  %2389 = vperm.xlu0 %2388, %v460
  %v2390 = vpop.permute.xlu0 %2389
  %2392 = vset.pattern.permute.xlu0 2
  %2393 = vperm.xlu0 %2392, %v461
  %v2394 = vpop.permute.xlu0 %2393
  %2396 = vset.pattern.permute.xlu0 2
  %2397 = vperm.xlu0 %2396, %v462
  %v2398 = vpop.permute.xlu0 %2397
  %2400 = vset.pattern.permute.xlu0 2
  %2401 = vperm.xlu0 %2400, %v463
  %v2402 = vpop.permute.xlu0 %2401
  %2404 = vset.pattern.permute.xlu0 2
  %2405 = vperm.xlu0 %2404, %v464
  %v2406 = vpop.permute.xlu0 %2405
  %2408 = vset.pattern.permute.xlu0 2
  %2409 = vperm.xlu0 %2408, %v465
  %v2410 = vpop.permute.xlu0 %2409
  %2412 = vset.pattern.permute.xlu0 2
  %2413 = vperm.xlu0 %2412, %v466
  %v2414 = vpop.permute.xlu0 %2413
  %2416 = vset.pattern.permute.xlu0 2
  %2417 = vperm.xlu0 %2416, %v467
  %v2418 = vpop.permute.xlu0 %2417
  %2420 = vset.pattern.permute.xlu0 2
  %2421 = vperm.xlu0 %2420, %v468
  %v2422 = vpop.permute.xlu0 %2421
  %2424 = vset.pattern.permute.xlu0 2
  %2425 = vperm.xlu0 %2424, %v469
  %v2426 = vpop.permute.xlu0 %2425
  %2428 = vset.pattern.permute.xlu0 2
  %2429 = vperm.xlu0 %2428, %v470
  %v2430 = vpop.permute.xlu0 %2429
  %2432 = vset.pattern.permute.xlu0 2
  %2433 = vperm.xlu0 %2432, %v471
  %v2434 = vpop.permute.xlu0 %2433
  %2436 = vset.pattern.permute.xlu0 2
  %2437 = vperm.xlu0 %2436, %v472
  %v2438 = vpop.permute.xlu0 %2437
  %2440 = vset.pattern.permute.xlu0 2
  %2441 = vperm.xlu0 %2440, %v473
  %v2442 = vpop.permute.xlu0 %2441
  %2444 = vset.pattern.permute.xlu0 2
  %2445 = vperm.xlu0 %2444, %v474
  %v2446 = vpop.permute.xlu0 %2445
  %2448 = vset.pattern.permute.xlu0 2
  %2449 = vperm.xlu0 %2448, %v475
  %v2450 = vpop.permute.xlu0 %2449
  %2452 = vset.pattern.permute.xlu0 2
  %2453 = vperm.xlu0 %2452, %v476
  %v2454 = vpop.permute.xlu0 %2453
  %2456 = vset.pattern.permute.xlu0 2
  %2457 = vperm.xlu0 %2456, %v477
  %v2458 = vpop.permute.xlu0 %2457
  %2460 = vset.pattern.permute.xlu0 2
  %2461 = vperm.xlu0 %2460, %v478
  %v2462 = vpop.permute.xlu0 %2461
  %2464 = vset.pattern.permute.xlu0 2
  %2465 = vperm.xlu0 %2464, %v479
  %v2466 = vpop.permute.xlu0 %2465
  %2468 = vset.pattern.permute.xlu0 2
  %2469 = vperm.xlu0 %2468, %v480
  %v2470 = vpop.permute.xlu0 %2469
  %2472 = vset.pattern.permute.xlu0 2
  %2473 = vperm.xlu0 %2472, %v481
  %v2474 = vpop.permute.xlu0 %2473
  %2476 = vset.pattern.permute.xlu0 2
  %2477 = vperm.xlu0 %2476, %v482
  %v2478 = vpop.permute.xlu0 %2477
  %2480 = vset.pattern.permute.xlu0 2
  %2481 = vperm.xlu0 %2480, %v483
  %v2482 = vpop.permute.xlu0 %2481
  %2484 = vset.pattern.permute.xlu0 2
  %2485 = vperm.xlu0 %2484, %v484
  %v2486 = vpop.permute.xlu0 %2485
  %2488 = vset.pattern.permute.xlu0 2
  %2489 = vperm.xlu0 %2488, %v485
  %v2490 = vpop.permute.xlu0 %2489
  %2492 = vset.pattern.permute.xlu0 2
  %2493 = vperm.xlu0 %2492, %v486
  %v2494 = vpop.permute.xlu0 %2493
  %2496 = vset.pattern.permute.xlu0 2
  %2497 = vperm.xlu0 %2496, %v487
  %v2498 = vpop.permute.xlu0 %2497
  %2500 = vset.pattern.permute.xlu0 2
  %2501 = vperm.xlu0 %2500, %v488
  %v2502 = vpop.permute.xlu0 %2501
  %2504 = vset.pattern.permute.xlu0 2
  %2505 = vperm.xlu0 %2504, %v489
  %v2506 = vpop.permute.xlu0 %2505
  %2508 = vset.pattern.permute.xlu0 2
  %2509 = vperm.xlu0 %2508, %v490
  %v2510 = vpop.permute.xlu0 %2509
  %2512 = vset.pattern.permute.xlu0 2
  %2513 = vperm.xlu0 %2512, %v491
  %v2514 = vpop.permute.xlu0 %2513
  %2516 = vset.pattern.permute.xlu0 2
  %2517 = vperm.xlu0 %2516, %v492
  %v2518 = vpop.permute.xlu0 %2517
  %2520 = vset.pattern.permute.xlu0 2
  %2521 = vperm.xlu0 %2520, %v493
  %v2522 = vpop.permute.xlu0 %2521
  %2524 = vset.pattern.permute.xlu0 2
  %2525 = vperm.xlu0 %2524, %v494
  %v2526 = vpop.permute.xlu0 %2525
  %2528 = vset.pattern.permute.xlu0 2
  %2529 = vperm.xlu0 %2528, %v495
  %v2530 = vpop.permute.xlu0 %2529
  %2532 = vset.pattern.permute.xlu0 2
  %2533 = vperm.xlu0 %2532, %v496
  %v2534 = vpop.permute.xlu0 %2533
  %2536 = vset.pattern.permute.xlu0 2
  %2537 = vperm.xlu0 %2536, %v497
  %v2538 = vpop.permute.xlu0 %2537
  %2540 = vset.pattern.permute.xlu0 2
  %2541 = vperm.xlu0 %2540, %v498
  %v2542 = vpop.permute.xlu0 %2541
  %2544 = vset.pattern.permute.xlu0 2
  %2545 = vperm.xlu0 %2544, %v499
  %v2546 = vpop.permute.xlu0 %2545
  %2548 = vset.pattern.permute.xlu0 2
  %2549 = vperm.xlu0 %2548, %v500
  %v2550 = vpop.permute.xlu0 %2549
  %2552 = vset.pattern.permute.xlu0 2
  %2553 = vperm.xlu0 %2552, %v501
  %v2554 = vpop.permute.xlu0 %2553
  %2556 = vset.pattern.permute.xlu0 2
  %2557 = vperm.xlu0 %2556, %v502
  %v2558 = vpop.permute.xlu0 %2557
  %2560 = vset.pattern.permute.xlu0 2
  %2561 = vperm.xlu0 %2560, %v503
  %v2562 = vpop.permute.xlu0 %2561
  %2564 = vset.pattern.permute.xlu0 2
  %2565 = vperm.xlu0 %2564, %v504
  %v2566 = vpop.permute.xlu0 %2565
  %2568 = vset.pattern.permute.xlu0 2
  %2569 = vperm.xlu0 %2568, %v505
  %v2570 = vpop.permute.xlu0 %2569
  %2572 = vset.pattern.permute.xlu0 2
  %2573 = vperm.xlu0 %2572, %v506
  %v2574 = vpop.permute.xlu0 %2573
  %2576 = vset.pattern.permute.xlu0 2
  %2577 = vperm.xlu0 %2576, %v507
  %v2578 = vpop.permute.xlu0 %2577
  %2580 = vset.pattern.permute.xlu0 2
  %2581 = vperm.xlu0 %2580, %v508
  %v2582 = vpop.permute.xlu0 %2581
  %2584 = vset.pattern.permute.xlu0 2
  %2585 = vperm.xlu0 %2584, %v509
  %v2586 = vpop.permute.xlu0 %2585
  %2588 = vset.pattern.permute.xlu0 2
  %2589 = vperm.xlu0 %2588, %v510
  %v2590 = vpop.permute.xlu0 %2589
  %2592 = vset.pattern.permute.xlu0 2
  %2593 = vperm.xlu0 %2592, %v511
  %v2594 = vpop.permute.xlu0 %2593
  %2596 = vset.pattern.permute.xlu0 2
  %2597 = vperm.xlu0 %2596, %v512
  %v2598 = vpop.permute.xlu0 %2597
  %2600 = vset.pattern.permute.xlu0 2
  %2601 = vperm.xlu0 %2600, %v513
  %v2602 = vpop.permute.xlu0 %2601
  %2604 = vset.pattern.permute.xlu0 2
  %2605 = vperm.xlu0 %2604, %v514
  %v2606 = vpop.permute.xlu0 %2605
  %2608 = vset.pattern.permute.xlu0 2
  %2609 = vperm.xlu0 %2608, %v515
  %v2610 = vpop.permute.xlu0 %2609
  %2612 = vset.pattern.permute.xlu0 2
  %2613 = vperm.xlu0 %2612, %v516
  %v2614 = vpop.permute.xlu0 %2613
  %2616 = vset.pattern.permute.xlu0 2
  %2617 = vperm.xlu0 %2616, %v517
  %v2618 = vpop.permute.xlu0 %2617
  %2620 = vset.pattern.permute.xlu0 2
  %2621 = vperm.xlu0 %2620, %v518
  %v2622 = vpop.permute.xlu0 %2621
  %2624 = vset.pattern.permute.xlu0 2
  %2625 = vperm.xlu0 %2624, %v519
  %v2626 = vpop.permute.xlu0 %2625
  %2628 = vset.pattern.permute.xlu0 2
  %2629 = vperm.xlu0 %2628, %v520
  %v2630 = vpop.permute.xlu0 %2629
  %2632 = vset.pattern.permute.xlu0 2
  %2633 = vperm.xlu0 %2632, %v521
  %v2634 = vpop.permute.xlu0 %2633
  %2636 = vset.pattern.permute.xlu0 2
  %2637 = vperm.xlu0 %2636, %v522
  %v2638 = vpop.permute.xlu0 %2637
  %2640 = vset.pattern.permute.xlu0 2
  %2641 = vperm.xlu0 %2640, %v523
  %v2642 = vpop.permute.xlu0 %2641
  %2644 = vset.pattern.permute.xlu0 2
  %2645 = vperm.xlu0 %2644, %v524
  %v2646 = vpop.permute.xlu0 %2645
  %2648 = vset.pattern.permute.xlu0 2
  %2649 = vperm.xlu0 %2648, %v525
  %v2650 = vpop.permute.xlu0 %2649
  %2652 = vset.pattern.permute.xlu0 2
  %2653 = vperm.xlu0 %2652, %v526
  %v2654 = vpop.permute.xlu0 %2653
  %2656 = vset.pattern.permute.xlu0 2
  %2657 = vperm.xlu0 %2656, %v527
  %v2658 = vpop.permute.xlu0 %2657
  %2660 = vset.pattern.permute.xlu0 2
  %2661 = vperm.xlu0 %2660, %v528
  %v2662 = vpop.permute.xlu0 %2661
  %2664 = vset.pattern.permute.xlu0 2
  %2665 = vperm.xlu0 %2664, %v529
  %v2666 = vpop.permute.xlu0 %2665
  %2668 = vset.pattern.permute.xlu0 2
  %2669 = vperm.xlu0 %2668, %v530
  %v2670 = vpop.permute.xlu0 %2669
  %2672 = vset.pattern.permute.xlu0 2
  %2673 = vperm.xlu0 %2672, %v531
  %v2674 = vpop.permute.xlu0 %2673
  %2676 = vset.pattern.permute.xlu0 2
  %2677 = vperm.xlu0 %2676, %v532
  %v2678 = vpop.permute.xlu0 %2677
  %2680 = vset.pattern.permute.xlu0 2
  %2681 = vperm.xlu0 %2680, %v533
  %v2682 = vpop.permute.xlu0 %2681
  %2684 = vset.pattern.permute.xlu0 2
  %2685 = vperm.xlu0 %2684, %v534
  %v2686 = vpop.permute.xlu0 %2685
  %2688 = vset.pattern.permute.xlu0 2
  %2689 = vperm.xlu0 %2688, %v535
  %v2690 = vpop.permute.xlu0 %2689
  %2692 = vset.pattern.permute.xlu0 2
  %2693 = vperm.xlu0 %2692, %v536
  %v2694 = vpop.permute.xlu0 %2693
  %2696 = vset.pattern.permute.xlu0 2
  %2697 = vperm.xlu0 %2696, %v537
  %v2698 = vpop.permute.xlu0 %2697
  %2700 = vset.pattern.permute.xlu0 2
  %2701 = vperm.xlu0 %2700, %v538
  %v2702 = vpop.permute.xlu0 %2701
  %2704 = vset.pattern.permute.xlu0 2
  %2705 = vperm.xlu0 %2704, %v539
  %v2706 = vpop.permute.xlu0 %2705
  %2708 = vset.pattern.permute.xlu0 2
  %2709 = vperm.xlu0 %2708, %v540
  %v2710 = vpop.permute.xlu0 %2709
  %2712 = vset.pattern.permute.xlu0 2
  %2713 = vperm.xlu0 %2712, %v541
  %v2714 = vpop.permute.xlu0 %2713
  %2716 = vset.pattern.permute.xlu0 2
  %2717 = vperm.xlu0 %2716, %v542
  %v2718 = vpop.permute.xlu0 %2717
  %2720 = vset.pattern.permute.xlu0 2
  %2721 = vperm.xlu0 %2720, %v543
  %v2722 = vpop.permute.xlu0 %2721
  %2724 = vset.pattern.permute.xlu0 2
  %2725 = vperm.xlu0 %2724, %v544
  %v2726 = vpop.permute.xlu0 %2725
  %2728 = vset.pattern.permute.xlu0 2
  %2729 = vperm.xlu0 %2728, %v545
  %v2730 = vpop.permute.xlu0 %2729
  %2732 = vset.pattern.permute.xlu0 2
  %2733 = vperm.xlu0 %2732, %v546
  %v2734 = vpop.permute.xlu0 %2733
  %2736 = vset.pattern.permute.xlu0 2
  %2737 = vperm.xlu0 %2736, %v547
  %v2738 = vpop.permute.xlu0 %2737
  %2740 = vset.pattern.permute.xlu0 2
  %2741 = vperm.xlu0 %2740, %v548
  %v2742 = vpop.permute.xlu0 %2741
  %v2744 = vlaneseq
  %v2745 = vshrl.u32 %v2744, 7
  %v2746 = vsub.s32 0, %v2745
  %v2747 = vrot.slane %v2231, %v2746
  %v2748 = vmul.f32 %v2234, %v2747
  %v2749 = vmul.f32 %v2238, %v2747
  %v2750 = vmul.f32 %v2242, %v2747
  %v2751 = vmul.f32 %v2246, %v2747
  %v2752 = vmul.f32 %v2250, %v2747
  %v2753 = vmul.f32 %v2254, %v2747
  %v2754 = vmul.f32 %v2258, %v2747
  %v2755 = vmul.f32 %v2262, %v2747
  %v2756 = vmul.f32 %v2266, %v2747
  %v2757 = vmul.f32 %v2270, %v2747
  %v2758 = vmul.f32 %v2274, %v2747
  %v2759 = vmul.f32 %v2278, %v2747
  %v2760 = vmul.f32 %v2282, %v2747
  %v2761 = vmul.f32 %v2286, %v2747
  %v2762 = vmul.f32 %v2290, %v2747
  %v2763 = vmul.f32 %v2294, %v2747
  %v2764 = vmul.f32 %v2298, %v2747
  %v2765 = vmul.f32 %v2302, %v2747
  %v2766 = vmul.f32 %v2306, %v2747
  %v2767 = vmul.f32 %v2310, %v2747
  %v2768 = vmul.f32 %v2314, %v2747
  %v2769 = vmul.f32 %v2318, %v2747
  %v2770 = vmul.f32 %v2322, %v2747
  %v2771 = vmul.f32 %v2326, %v2747
  %v2772 = vmul.f32 %v2330, %v2747
  %v2773 = vmul.f32 %v2334, %v2747
  %v2774 = vmul.f32 %v2338, %v2747
  %v2775 = vmul.f32 %v2342, %v2747
  %v2776 = vmul.f32 %v2346, %v2747
  %v2777 = vmul.f32 %v2350, %v2747
  %v2778 = vmul.f32 %v2354, %v2747
  %v2779 = vmul.f32 %v2358, %v2747
  %v2780 = vmul.f32 %v2362, %v2747
  %v2781 = vmul.f32 %v2366, %v2747
  %v2782 = vmul.f32 %v2370, %v2747
  %v2783 = vmul.f32 %v2374, %v2747
  %v2784 = vmul.f32 %v2378, %v2747
  %v2785 = vmul.f32 %v2382, %v2747
  %v2786 = vmul.f32 %v2386, %v2747
  %v2787 = vmul.f32 %v2390, %v2747
  %v2788 = vmul.f32 %v2394, %v2747
  %v2789 = vmul.f32 %v2398, %v2747
  %v2790 = vmul.f32 %v2402, %v2747
  %v2791 = vmul.f32 %v2406, %v2747
  %v2792 = vmul.f32 %v2410, %v2747
  %v2793 = vmul.f32 %v2414, %v2747
  %v2794 = vmul.f32 %v2418, %v2747
  %v2795 = vmul.f32 %v2422, %v2747
  %v2796 = vmul.f32 %v2426, %v2747
  %v2797 = vmul.f32 %v2430, %v2747
  %v2798 = vmul.f32 %v2434, %v2747
  %v2799 = vmul.f32 %v2438, %v2747
  %v2800 = vmul.f32 %v2442, %v2747
  %v2801 = vmul.f32 %v2446, %v2747
  %v2802 = vmul.f32 %v2450, %v2747
  %v2803 = vmul.f32 %v2454, %v2747
  %v2804 = vmul.f32 %v2458, %v2747
  %v2805 = vmul.f32 %v2462, %v2747
  %v2806 = vmul.f32 %v2466, %v2747
  %v2807 = vmul.f32 %v2470, %v2747
  %v2808 = vmul.f32 %v2474, %v2747
  %v2809 = vmul.f32 %v2478, %v2747
  %v2810 = vmul.f32 %v2482, %v2747
  %v2811 = vmul.f32 %v2486, %v2747
  %v2812 = vmul.f32 %v2490, %v2747
  %v2813 = vmul.f32 %v2494, %v2747
  %v2814 = vmul.f32 %v2498, %v2747
  %v2815 = vmul.f32 %v2502, %v2747
  %v2816 = vmul.f32 %v2506, %v2747
  %v2817 = vmul.f32 %v2510, %v2747
  %v2818 = vmul.f32 %v2514, %v2747
  %v2819 = vmul.f32 %v2518, %v2747
  %v2820 = vmul.f32 %v2522, %v2747
  %v2821 = vmul.f32 %v2526, %v2747
  %v2822 = vmul.f32 %v2530, %v2747
  %v2823 = vmul.f32 %v2534, %v2747
  %v2824 = vmul.f32 %v2538, %v2747
  %v2825 = vmul.f32 %v2542, %v2747
  %v2826 = vmul.f32 %v2546, %v2747
  %v2827 = vmul.f32 %v2550, %v2747
  %v2828 = vmul.f32 %v2554, %v2747
  %v2829 = vmul.f32 %v2558, %v2747
  %v2830 = vmul.f32 %v2562, %v2747
  %v2831 = vmul.f32 %v2566, %v2747
  %v2832 = vmul.f32 %v2570, %v2747
  %v2833 = vmul.f32 %v2574, %v2747
  %v2834 = vmul.f32 %v2578, %v2747
  %v2835 = vmul.f32 %v2582, %v2747
  %v2836 = vmul.f32 %v2586, %v2747
  %v2837 = vmul.f32 %v2590, %v2747
  %v2838 = vmul.f32 %v2594, %v2747
  %v2839 = vmul.f32 %v2598, %v2747
  %v2840 = vmul.f32 %v2602, %v2747
  %v2841 = vmul.f32 %v2606, %v2747
  %v2842 = vmul.f32 %v2610, %v2747
  %v2843 = vmul.f32 %v2614, %v2747
  %v2844 = vmul.f32 %v2618, %v2747
  %v2845 = vmul.f32 %v2622, %v2747
  %v2846 = vmul.f32 %v2626, %v2747
  %v2847 = vmul.f32 %v2630, %v2747
  %v2848 = vmul.f32 %v2634, %v2747
  %v2849 = vmul.f32 %v2638, %v2747
  %v2850 = vmul.f32 %v2642, %v2747
  %v2851 = vmul.f32 %v2646, %v2747
  %v2852 = vmul.f32 %v2650, %v2747
  %v2853 = vmul.f32 %v2654, %v2747
  %v2854 = vmul.f32 %v2658, %v2747
  %v2855 = vmul.f32 %v2662, %v2747
  %v2856 = vmul.f32 %v2666, %v2747
  %v2857 = vmul.f32 %v2670, %v2747
  %v2858 = vmul.f32 %v2674, %v2747
  %v2859 = vmul.f32 %v2678, %v2747
  %v2860 = vmul.f32 %v2682, %v2747
  %v2861 = vmul.f32 %v2686, %v2747
  %v2862 = vmul.f32 %v2690, %v2747
  %v2863 = vmul.f32 %v2694, %v2747
  %v2864 = vmul.f32 %v2698, %v2747
  %v2865 = vmul.f32 %v2702, %v2747
  %v2866 = vmul.f32 %v2706, %v2747
  %v2867 = vmul.f32 %v2710, %v2747
  %v2868 = vmul.f32 %v2714, %v2747
  %v2869 = vmul.f32 %v2718, %v2747
  %v2870 = vmul.f32 %v2722, %v2747
  %v2871 = vmul.f32 %v2726, %v2747
  %v2872 = vmul.f32 %v2730, %v2747
  %v2873 = vmul.f32 %v2734, %v2747
  %v2874 = vmul.f32 %v2738, %v2747
  %v2875 = vmul.f32 %v2742, %v2747
  %v2876 = vadd.f32 %v2103, %v2748
  %v2877 = vadd.f32 %v2104, %v2749
  %v2878 = vadd.f32 %v2105, %v2750
  %v2879 = vadd.f32 %v2106, %v2751
  %v2880 = vadd.f32 %v2107, %v2752
  %v2881 = vadd.f32 %v2108, %v2753
  %v2882 = vadd.f32 %v2109, %v2754
  %v2883 = vadd.f32 %v2110, %v2755
  %v2884 = vadd.f32 %v2111, %v2756
  %v2885 = vadd.f32 %v2112, %v2757
  %v2886 = vadd.f32 %v2113, %v2758
  %v2887 = vadd.f32 %v2114, %v2759
  %v2888 = vadd.f32 %v2115, %v2760
  %v2889 = vadd.f32 %v2116, %v2761
  %v2890 = vadd.f32 %v2117, %v2762
  %v2891 = vadd.f32 %v2118, %v2763
  %v2892 = vadd.f32 %v2119, %v2764
  %v2893 = vadd.f32 %v2120, %v2765
  %v2894 = vadd.f32 %v2121, %v2766
  %v2895 = vadd.f32 %v2122, %v2767
  %v2896 = vadd.f32 %v2123, %v2768
  %v2897 = vadd.f32 %v2124, %v2769
  %v2898 = vadd.f32 %v2125, %v2770
  %v2899 = vadd.f32 %v2126, %v2771
  %v2900 = vadd.f32 %v2127, %v2772
  %v2901 = vadd.f32 %v2128, %v2773
  %v2902 = vadd.f32 %v2129, %v2774
  %v2903 = vadd.f32 %v2130, %v2775
  %v2904 = vadd.f32 %v2131, %v2776
  %v2905 = vadd.f32 %v2132, %v2777
  %v2906 = vadd.f32 %v2133, %v2778
  %v2907 = vadd.f32 %v2134, %v2779
  %v2908 = vadd.f32 %v2135, %v2780
  %v2909 = vadd.f32 %v2136, %v2781
  %v2910 = vadd.f32 %v2137, %v2782
  %v2911 = vadd.f32 %v2138, %v2783
  %v2912 = vadd.f32 %v2139, %v2784
  %v2913 = vadd.f32 %v2140, %v2785
  %v2914 = vadd.f32 %v2141, %v2786
  %v2915 = vadd.f32 %v2142, %v2787
  %v2916 = vadd.f32 %v2143, %v2788
  %v2917 = vadd.f32 %v2144, %v2789
  %v2918 = vadd.f32 %v2145, %v2790
  %v2919 = vadd.f32 %v2146, %v2791
  %v2920 = vadd.f32 %v2147, %v2792
  %v2921 = vadd.f32 %v2148, %v2793
  %v2922 = vadd.f32 %v2149, %v2794
  %v2923 = vadd.f32 %v2150, %v2795
  %v2924 = vadd.f32 %v2151, %v2796
  %v2925 = vadd.f32 %v2152, %v2797
  %v2926 = vadd.f32 %v2153, %v2798
  %v2927 = vadd.f32 %v2154, %v2799
  %v2928 = vadd.f32 %v2155, %v2800
  %v2929 = vadd.f32 %v2156, %v2801
  %v2930 = vadd.f32 %v2157, %v2802
  %v2931 = vadd.f32 %v2158, %v2803
  %v2932 = vadd.f32 %v2159, %v2804
  %v2933 = vadd.f32 %v2160, %v2805
  %v2934 = vadd.f32 %v2161, %v2806
  %v2935 = vadd.f32 %v2162, %v2807
  %v2936 = vadd.f32 %v2163, %v2808
  %v2937 = vadd.f32 %v2164, %v2809
  %v2938 = vadd.f32 %v2165, %v2810
  %v2939 = vadd.f32 %v2166, %v2811
  %v2940 = vadd.f32 %v2167, %v2812
  %v2941 = vadd.f32 %v2168, %v2813
  %v2942 = vadd.f32 %v2169, %v2814
  %v2943 = vadd.f32 %v2170, %v2815
  %v2944 = vadd.f32 %v2171, %v2816
  %v2945 = vadd.f32 %v2172, %v2817
  %v2946 = vadd.f32 %v2173, %v2818
  %v2947 = vadd.f32 %v2174, %v2819
  %v2948 = vadd.f32 %v2175, %v2820
  %v2949 = vadd.f32 %v2176, %v2821
  %v2950 = vadd.f32 %v2177, %v2822
  %v2951 = vadd.f32 %v2178, %v2823
  %v2952 = vadd.f32 %v2179, %v2824
  %v2953 = vadd.f32 %v2180, %v2825
  %v2954 = vadd.f32 %v2181, %v2826
  %v2955 = vadd.f32 %v2182, %v2827
  %v2956 = vadd.f32 %v2183, %v2828
  %v2957 = vadd.f32 %v2184, %v2829
  %v2958 = vadd.f32 %v2185, %v2830
  %v2959 = vadd.f32 %v2186, %v2831
  %v2960 = vadd.f32 %v2187, %v2832
  %v2961 = vadd.f32 %v2188, %v2833
  %v2962 = vadd.f32 %v2189, %v2834
  %v2963 = vadd.f32 %v2190, %v2835
  %v2964 = vadd.f32 %v2191, %v2836
  %v2965 = vadd.f32 %v2192, %v2837
  %v2966 = vadd.f32 %v2193, %v2838
  %v2967 = vadd.f32 %v2194, %v2839
  %v2968 = vadd.f32 %v2195, %v2840
  %v2969 = vadd.f32 %v2196, %v2841
  %v2970 = vadd.f32 %v2197, %v2842
  %v2971 = vadd.f32 %v2198, %v2843
  %v2972 = vadd.f32 %v2199, %v2844
  %v2973 = vadd.f32 %v2200, %v2845
  %v2974 = vadd.f32 %v2201, %v2846
  %v2975 = vadd.f32 %v2202, %v2847
  %v2976 = vadd.f32 %v2203, %v2848
  %v2977 = vadd.f32 %v2204, %v2849
  %v2978 = vadd.f32 %v2205, %v2850
  %v2979 = vadd.f32 %v2206, %v2851
  %v2980 = vadd.f32 %v2207, %v2852
  %v2981 = vadd.f32 %v2208, %v2853
  %v2982 = vadd.f32 %v2209, %v2854
  %v2983 = vadd.f32 %v2210, %v2855
  %v2984 = vadd.f32 %v2211, %v2856
  %v2985 = vadd.f32 %v2212, %v2857
  %v2986 = vadd.f32 %v2213, %v2858
  %v2987 = vadd.f32 %v2214, %v2859
  %v2988 = vadd.f32 %v2215, %v2860
  %v2989 = vadd.f32 %v2216, %v2861
  %v2990 = vadd.f32 %v2217, %v2862
  %v2991 = vadd.f32 %v2218, %v2863
  %v2992 = vadd.f32 %v2219, %v2864
  %v2993 = vadd.f32 %v2220, %v2865
  %v2994 = vadd.f32 %v2221, %v2866
  %v2995 = vadd.f32 %v2222, %v2867
  %v2996 = vadd.f32 %v2223, %v2868
  %v2997 = vadd.f32 %v2224, %v2869
  %v2998 = vadd.f32 %v2225, %v2870
  %v2999 = vadd.f32 %v2226, %v2871
  %v3000 = vadd.f32 %v2227, %v2872
  %v3001 = vadd.f32 %v2228, %v2873
  %v3002 = vadd.f32 %v2229, %v2874
  %v3003 = vadd.f32 %v2230, %v2875
  %v3004 = vld [vmem:[%s3 + $0x3] sm:$0x1]
  %3005 = vset.pattern.permute.xlu0 3
  %3006 = vperm.xlu0 %3005, %v421
  %v3007 = vpop.permute.xlu0 %3006
  %3009 = vset.pattern.permute.xlu0 3
  %3010 = vperm.xlu0 %3009, %v422
  %v3011 = vpop.permute.xlu0 %3010
  %3013 = vset.pattern.permute.xlu0 3
  %3014 = vperm.xlu0 %3013, %v423
  %v3015 = vpop.permute.xlu0 %3014
  %3017 = vset.pattern.permute.xlu0 3
  %3018 = vperm.xlu0 %3017, %v424
  %v3019 = vpop.permute.xlu0 %3018
  %3021 = vset.pattern.permute.xlu0 3
  %3022 = vperm.xlu0 %3021, %v425
  %v3023 = vpop.permute.xlu0 %3022
  %3025 = vset.pattern.permute.xlu0 3
  %3026 = vperm.xlu0 %3025, %v426
  %v3027 = vpop.permute.xlu0 %3026
  %3029 = vset.pattern.permute.xlu0 3
  %3030 = vperm.xlu0 %3029, %v427
  %v3031 = vpop.permute.xlu0 %3030
  %3033 = vset.pattern.permute.xlu0 3
  %3034 = vperm.xlu0 %3033, %v428
  %v3035 = vpop.permute.xlu0 %3034
  %3037 = vset.pattern.permute.xlu0 3
  %3038 = vperm.xlu0 %3037, %v429
  %v3039 = vpop.permute.xlu0 %3038
  %3041 = vset.pattern.permute.xlu0 3
  %3042 = vperm.xlu0 %3041, %v430
  %v3043 = vpop.permute.xlu0 %3042
  %3045 = vset.pattern.permute.xlu0 3
  %3046 = vperm.xlu0 %3045, %v431
  %v3047 = vpop.permute.xlu0 %3046
  %3049 = vset.pattern.permute.xlu0 3
  %3050 = vperm.xlu0 %3049, %v432
  %v3051 = vpop.permute.xlu0 %3050
  %3053 = vset.pattern.permute.xlu0 3
  %3054 = vperm.xlu0 %3053, %v433
  %v3055 = vpop.permute.xlu0 %3054
  %3057 = vset.pattern.permute.xlu0 3
  %3058 = vperm.xlu0 %3057, %v434
  %v3059 = vpop.permute.xlu0 %3058
  %3061 = vset.pattern.permute.xlu0 3
  %3062 = vperm.xlu0 %3061, %v435
  %v3063 = vpop.permute.xlu0 %3062
  %3065 = vset.pattern.permute.xlu0 3
  %3066 = vperm.xlu0 %3065, %v436
  %v3067 = vpop.permute.xlu0 %3066
  %3069 = vset.pattern.permute.xlu0 3
  %3070 = vperm.xlu0 %3069, %v437
  %v3071 = vpop.permute.xlu0 %3070
  %3073 = vset.pattern.permute.xlu0 3
  %3074 = vperm.xlu0 %3073, %v438
  %v3075 = vpop.permute.xlu0 %3074
  %3077 = vset.pattern.permute.xlu0 3
  %3078 = vperm.xlu0 %3077, %v439
  %v3079 = vpop.permute.xlu0 %3078
  %3081 = vset.pattern.permute.xlu0 3
  %3082 = vperm.xlu0 %3081, %v440
  %v3083 = vpop.permute.xlu0 %3082
  %3085 = vset.pattern.permute.xlu0 3
  %3086 = vperm.xlu0 %3085, %v441
  %v3087 = vpop.permute.xlu0 %3086
  %3089 = vset.pattern.permute.xlu0 3
  %3090 = vperm.xlu0 %3089, %v442
  %v3091 = vpop.permute.xlu0 %3090
  %3093 = vset.pattern.permute.xlu0 3
  %3094 = vperm.xlu0 %3093, %v443
  %v3095 = vpop.permute.xlu0 %3094
  %3097 = vset.pattern.permute.xlu0 3
  %3098 = vperm.xlu0 %3097, %v444
  %v3099 = vpop.permute.xlu0 %3098
  %3101 = vset.pattern.permute.xlu0 3
  %3102 = vperm.xlu0 %3101, %v445
  %v3103 = vpop.permute.xlu0 %3102
  %3105 = vset.pattern.permute.xlu0 3
  %3106 = vperm.xlu0 %3105, %v446
  %v3107 = vpop.permute.xlu0 %3106
  %3109 = vset.pattern.permute.xlu0 3
  %3110 = vperm.xlu0 %3109, %v447
  %v3111 = vpop.permute.xlu0 %3110
  %3113 = vset.pattern.permute.xlu0 3
  %3114 = vperm.xlu0 %3113, %v448
  %v3115 = vpop.permute.xlu0 %3114
  %3117 = vset.pattern.permute.xlu0 3
  %3118 = vperm.xlu0 %3117, %v449
  %v3119 = vpop.permute.xlu0 %3118
  %3121 = vset.pattern.permute.xlu0 3
  %3122 = vperm.xlu0 %3121, %v450
  %v3123 = vpop.permute.xlu0 %3122
  %3125 = vset.pattern.permute.xlu0 3
  %3126 = vperm.xlu0 %3125, %v451
  %v3127 = vpop.permute.xlu0 %3126
  %3129 = vset.pattern.permute.xlu0 3
  %3130 = vperm.xlu0 %3129, %v452
  %v3131 = vpop.permute.xlu0 %3130
  %3133 = vset.pattern.permute.xlu0 3
  %3134 = vperm.xlu0 %3133, %v453
  %v3135 = vpop.permute.xlu0 %3134
  %3137 = vset.pattern.permute.xlu0 3
  %3138 = vperm.xlu0 %3137, %v454
  %v3139 = vpop.permute.xlu0 %3138
  %3141 = vset.pattern.permute.xlu0 3
  %3142 = vperm.xlu0 %3141, %v455
  %v3143 = vpop.permute.xlu0 %3142
  %3145 = vset.pattern.permute.xlu0 3
  %3146 = vperm.xlu0 %3145, %v456
  %v3147 = vpop.permute.xlu0 %3146
  %3149 = vset.pattern.permute.xlu0 3
  %3150 = vperm.xlu0 %3149, %v457
  %v3151 = vpop.permute.xlu0 %3150
  %3153 = vset.pattern.permute.xlu0 3
  %3154 = vperm.xlu0 %3153, %v458
  %v3155 = vpop.permute.xlu0 %3154
  %3157 = vset.pattern.permute.xlu0 3
  %3158 = vperm.xlu0 %3157, %v459
  %v3159 = vpop.permute.xlu0 %3158
  %3161 = vset.pattern.permute.xlu0 3
  %3162 = vperm.xlu0 %3161, %v460
  %v3163 = vpop.permute.xlu0 %3162
  %3165 = vset.pattern.permute.xlu0 3
  %3166 = vperm.xlu0 %3165, %v461
  %v3167 = vpop.permute.xlu0 %3166
  %3169 = vset.pattern.permute.xlu0 3
  %3170 = vperm.xlu0 %3169, %v462
  %v3171 = vpop.permute.xlu0 %3170
  %3173 = vset.pattern.permute.xlu0 3
  %3174 = vperm.xlu0 %3173, %v463
  %v3175 = vpop.permute.xlu0 %3174
  %3177 = vset.pattern.permute.xlu0 3
  %3178 = vperm.xlu0 %3177, %v464
  %v3179 = vpop.permute.xlu0 %3178
  %3181 = vset.pattern.permute.xlu0 3
  %3182 = vperm.xlu0 %3181, %v465
  %v3183 = vpop.permute.xlu0 %3182
  %3185 = vset.pattern.permute.xlu0 3
  %3186 = vperm.xlu0 %3185, %v466
  %v3187 = vpop.permute.xlu0 %3186
  %3189 = vset.pattern.permute.xlu0 3
  %3190 = vperm.xlu0 %3189, %v467
  %v3191 = vpop.permute.xlu0 %3190
  %3193 = vset.pattern.permute.xlu0 3
  %3194 = vperm.xlu0 %3193, %v468
  %v3195 = vpop.permute.xlu0 %3194
  %3197 = vset.pattern.permute.xlu0 3
  %3198 = vperm.xlu0 %3197, %v469
  %v3199 = vpop.permute.xlu0 %3198
  %3201 = vset.pattern.permute.xlu0 3
  %3202 = vperm.xlu0 %3201, %v470
  %v3203 = vpop.permute.xlu0 %3202
  %3205 = vset.pattern.permute.xlu0 3
  %3206 = vperm.xlu0 %3205, %v471
  %v3207 = vpop.permute.xlu0 %3206
  %3209 = vset.pattern.permute.xlu0 3
  %3210 = vperm.xlu0 %3209, %v472
  %v3211 = vpop.permute.xlu0 %3210
  %3213 = vset.pattern.permute.xlu0 3
  %3214 = vperm.xlu0 %3213, %v473
  %v3215 = vpop.permute.xlu0 %3214
  %3217 = vset.pattern.permute.xlu0 3
  %3218 = vperm.xlu0 %3217, %v474
  %v3219 = vpop.permute.xlu0 %3218
  %3221 = vset.pattern.permute.xlu0 3
  %3222 = vperm.xlu0 %3221, %v475
  %v3223 = vpop.permute.xlu0 %3222
  %3225 = vset.pattern.permute.xlu0 3
  %3226 = vperm.xlu0 %3225, %v476
  %v3227 = vpop.permute.xlu0 %3226
  %3229 = vset.pattern.permute.xlu0 3
  %3230 = vperm.xlu0 %3229, %v477
  %v3231 = vpop.permute.xlu0 %3230
  %3233 = vset.pattern.permute.xlu0 3
  %3234 = vperm.xlu0 %3233, %v478
  %v3235 = vpop.permute.xlu0 %3234
  %3237 = vset.pattern.permute.xlu0 3
  %3238 = vperm.xlu0 %3237, %v479
  %v3239 = vpop.permute.xlu0 %3238
  %3241 = vset.pattern.permute.xlu0 3
  %3242 = vperm.xlu0 %3241, %v480
  %v3243 = vpop.permute.xlu0 %3242
  %3245 = vset.pattern.permute.xlu0 3
  %3246 = vperm.xlu0 %3245, %v481
  %v3247 = vpop.permute.xlu0 %3246
  %3249 = vset.pattern.permute.xlu0 3
  %3250 = vperm.xlu0 %3249, %v482
  %v3251 = vpop.permute.xlu0 %3250
  %3253 = vset.pattern.permute.xlu0 3
  %3254 = vperm.xlu0 %3253, %v483
  %v3255 = vpop.permute.xlu0 %3254
  %3257 = vset.pattern.permute.xlu0 3
  %3258 = vperm.xlu0 %3257, %v484
  %v3259 = vpop.permute.xlu0 %3258
  %3261 = vset.pattern.permute.xlu0 3
  %3262 = vperm.xlu0 %3261, %v485
  %v3263 = vpop.permute.xlu0 %3262
  %3265 = vset.pattern.permute.xlu0 3
  %3266 = vperm.xlu0 %3265, %v486
  %v3267 = vpop.permute.xlu0 %3266
  %3269 = vset.pattern.permute.xlu0 3
  %3270 = vperm.xlu0 %3269, %v487
  %v3271 = vpop.permute.xlu0 %3270
  %3273 = vset.pattern.permute.xlu0 3
  %3274 = vperm.xlu0 %3273, %v488
  %v3275 = vpop.permute.xlu0 %3274
  %3277 = vset.pattern.permute.xlu0 3
  %3278 = vperm.xlu0 %3277, %v489
  %v3279 = vpop.permute.xlu0 %3278
  %3281 = vset.pattern.permute.xlu0 3
  %3282 = vperm.xlu0 %3281, %v490
  %v3283 = vpop.permute.xlu0 %3282
  %3285 = vset.pattern.permute.xlu0 3
  %3286 = vperm.xlu0 %3285, %v491
  %v3287 = vpop.permute.xlu0 %3286
  %3289 = vset.pattern.permute.xlu0 3
  %3290 = vperm.xlu0 %3289, %v492
  %v3291 = vpop.permute.xlu0 %3290
  %3293 = vset.pattern.permute.xlu0 3
  %3294 = vperm.xlu0 %3293, %v493
  %v3295 = vpop.permute.xlu0 %3294
  %3297 = vset.pattern.permute.xlu0 3
  %3298 = vperm.xlu0 %3297, %v494
  %v3299 = vpop.permute.xlu0 %3298
  %3301 = vset.pattern.permute.xlu0 3
  %3302 = vperm.xlu0 %3301, %v495
  %v3303 = vpop.permute.xlu0 %3302
  %3305 = vset.pattern.permute.xlu0 3
  %3306 = vperm.xlu0 %3305, %v496
  %v3307 = vpop.permute.xlu0 %3306
  %3309 = vset.pattern.permute.xlu0 3
  %3310 = vperm.xlu0 %3309, %v497
  %v3311 = vpop.permute.xlu0 %3310
  %3313 = vset.pattern.permute.xlu0 3
  %3314 = vperm.xlu0 %3313, %v498
  %v3315 = vpop.permute.xlu0 %3314
  %3317 = vset.pattern.permute.xlu0 3
  %3318 = vperm.xlu0 %3317, %v499
  %v3319 = vpop.permute.xlu0 %3318
  %3321 = vset.pattern.permute.xlu0 3
  %3322 = vperm.xlu0 %3321, %v500
  %v3323 = vpop.permute.xlu0 %3322
  %3325 = vset.pattern.permute.xlu0 3
  %3326 = vperm.xlu0 %3325, %v501
  %v3327 = vpop.permute.xlu0 %3326
  %3329 = vset.pattern.permute.xlu0 3
  %3330 = vperm.xlu0 %3329, %v502
  %v3331 = vpop.permute.xlu0 %3330
  %3333 = vset.pattern.permute.xlu0 3
  %3334 = vperm.xlu0 %3333, %v503
  %v3335 = vpop.permute.xlu0 %3334
  %3337 = vset.pattern.permute.xlu0 3
  %3338 = vperm.xlu0 %3337, %v504
  %v3339 = vpop.permute.xlu0 %3338
  %3341 = vset.pattern.permute.xlu0 3
  %3342 = vperm.xlu0 %3341, %v505
  %v3343 = vpop.permute.xlu0 %3342
  %3345 = vset.pattern.permute.xlu0 3
  %3346 = vperm.xlu0 %3345, %v506
  %v3347 = vpop.permute.xlu0 %3346
  %3349 = vset.pattern.permute.xlu0 3
  %3350 = vperm.xlu0 %3349, %v507
  %v3351 = vpop.permute.xlu0 %3350
  %3353 = vset.pattern.permute.xlu0 3
  %3354 = vperm.xlu0 %3353, %v508
  %v3355 = vpop.permute.xlu0 %3354
  %3357 = vset.pattern.permute.xlu0 3
  %3358 = vperm.xlu0 %3357, %v509
  %v3359 = vpop.permute.xlu0 %3358
  %3361 = vset.pattern.permute.xlu0 3
  %3362 = vperm.xlu0 %3361, %v510
  %v3363 = vpop.permute.xlu0 %3362
  %3365 = vset.pattern.permute.xlu0 3
  %3366 = vperm.xlu0 %3365, %v511
  %v3367 = vpop.permute.xlu0 %3366
  %3369 = vset.pattern.permute.xlu0 3
  %3370 = vperm.xlu0 %3369, %v512
  %v3371 = vpop.permute.xlu0 %3370
  %3373 = vset.pattern.permute.xlu0 3
  %3374 = vperm.xlu0 %3373, %v513
  %v3375 = vpop.permute.xlu0 %3374
  %3377 = vset.pattern.permute.xlu0 3
  %3378 = vperm.xlu0 %3377, %v514
  %v3379 = vpop.permute.xlu0 %3378
  %3381 = vset.pattern.permute.xlu0 3
  %3382 = vperm.xlu0 %3381, %v515
  %v3383 = vpop.permute.xlu0 %3382
  %3385 = vset.pattern.permute.xlu0 3
  %3386 = vperm.xlu0 %3385, %v516
  %v3387 = vpop.permute.xlu0 %3386
  %3389 = vset.pattern.permute.xlu0 3
  %3390 = vperm.xlu0 %3389, %v517
  %v3391 = vpop.permute.xlu0 %3390
  %3393 = vset.pattern.permute.xlu0 3
  %3394 = vperm.xlu0 %3393, %v518
  %v3395 = vpop.permute.xlu0 %3394
  %3397 = vset.pattern.permute.xlu0 3
  %3398 = vperm.xlu0 %3397, %v519
  %v3399 = vpop.permute.xlu0 %3398
  %3401 = vset.pattern.permute.xlu0 3
  %3402 = vperm.xlu0 %3401, %v520
  %v3403 = vpop.permute.xlu0 %3402
  %3405 = vset.pattern.permute.xlu0 3
  %3406 = vperm.xlu0 %3405, %v521
  %v3407 = vpop.permute.xlu0 %3406
  %3409 = vset.pattern.permute.xlu0 3
  %3410 = vperm.xlu0 %3409, %v522
  %v3411 = vpop.permute.xlu0 %3410
  %3413 = vset.pattern.permute.xlu0 3
  %3414 = vperm.xlu0 %3413, %v523
  %v3415 = vpop.permute.xlu0 %3414
  %3417 = vset.pattern.permute.xlu0 3
  %3418 = vperm.xlu0 %3417, %v524
  %v3419 = vpop.permute.xlu0 %3418
  %3421 = vset.pattern.permute.xlu0 3
  %3422 = vperm.xlu0 %3421, %v525
  %v3423 = vpop.permute.xlu0 %3422
  %3425 = vset.pattern.permute.xlu0 3
  %3426 = vperm.xlu0 %3425, %v526
  %v3427 = vpop.permute.xlu0 %3426
  %3429 = vset.pattern.permute.xlu0 3
  %3430 = vperm.xlu0 %3429, %v527
  %v3431 = vpop.permute.xlu0 %3430
  %3433 = vset.pattern.permute.xlu0 3
  %3434 = vperm.xlu0 %3433, %v528
  %v3435 = vpop.permute.xlu0 %3434
  %3437 = vset.pattern.permute.xlu0 3
  %3438 = vperm.xlu0 %3437, %v529
  %v3439 = vpop.permute.xlu0 %3438
  %3441 = vset.pattern.permute.xlu0 3
  %3442 = vperm.xlu0 %3441, %v530
  %v3443 = vpop.permute.xlu0 %3442
  %3445 = vset.pattern.permute.xlu0 3
  %3446 = vperm.xlu0 %3445, %v531
  %v3447 = vpop.permute.xlu0 %3446
  %3449 = vset.pattern.permute.xlu0 3
  %3450 = vperm.xlu0 %3449, %v532
  %v3451 = vpop.permute.xlu0 %3450
  %3453 = vset.pattern.permute.xlu0 3
  %3454 = vperm.xlu0 %3453, %v533
  %v3455 = vpop.permute.xlu0 %3454
  %3457 = vset.pattern.permute.xlu0 3
  %3458 = vperm.xlu0 %3457, %v534
  %v3459 = vpop.permute.xlu0 %3458
  %3461 = vset.pattern.permute.xlu0 3
  %3462 = vperm.xlu0 %3461, %v535
  %v3463 = vpop.permute.xlu0 %3462
  %3465 = vset.pattern.permute.xlu0 3
  %3466 = vperm.xlu0 %3465, %v536
  %v3467 = vpop.permute.xlu0 %3466
  %3469 = vset.pattern.permute.xlu0 3
  %3470 = vperm.xlu0 %3469, %v537
  %v3471 = vpop.permute.xlu0 %3470
  %3473 = vset.pattern.permute.xlu0 3
  %3474 = vperm.xlu0 %3473, %v538
  %v3475 = vpop.permute.xlu0 %3474
  %3477 = vset.pattern.permute.xlu0 3
  %3478 = vperm.xlu0 %3477, %v539
  %v3479 = vpop.permute.xlu0 %3478
  %3481 = vset.pattern.permute.xlu0 3
  %3482 = vperm.xlu0 %3481, %v540
  %v3483 = vpop.permute.xlu0 %3482
  %3485 = vset.pattern.permute.xlu0 3
  %3486 = vperm.xlu0 %3485, %v541
  %v3487 = vpop.permute.xlu0 %3486
  %3489 = vset.pattern.permute.xlu0 3
  %3490 = vperm.xlu0 %3489, %v542
  %v3491 = vpop.permute.xlu0 %3490
  %3493 = vset.pattern.permute.xlu0 3
  %3494 = vperm.xlu0 %3493, %v543
  %v3495 = vpop.permute.xlu0 %3494
  %3497 = vset.pattern.permute.xlu0 3
  %3498 = vperm.xlu0 %3497, %v544
  %v3499 = vpop.permute.xlu0 %3498
  %3501 = vset.pattern.permute.xlu0 3
  %3502 = vperm.xlu0 %3501, %v545
  %v3503 = vpop.permute.xlu0 %3502
  %3505 = vset.pattern.permute.xlu0 3
  %3506 = vperm.xlu0 %3505, %v546
  %v3507 = vpop.permute.xlu0 %3506
  %3509 = vset.pattern.permute.xlu0 3
  %3510 = vperm.xlu0 %3509, %v547
  %v3511 = vpop.permute.xlu0 %3510
  %3513 = vset.pattern.permute.xlu0 3
  %3514 = vperm.xlu0 %3513, %v548
  %v3515 = vpop.permute.xlu0 %3514
  %v3517 = vlaneseq
  %v3518 = vshrl.u32 %v3517, 7
  %v3519 = vsub.s32 0, %v3518
  %v3520 = vrot.slane %v3004, %v3519
  %v3521 = vmul.f32 %v3007, %v3520
  %v3522 = vmul.f32 %v3011, %v3520
  %v3523 = vmul.f32 %v3015, %v3520
  %v3524 = vmul.f32 %v3019, %v3520
  %v3525 = vmul.f32 %v3023, %v3520
  %v3526 = vmul.f32 %v3027, %v3520
  %v3527 = vmul.f32 %v3031, %v3520
  %v3528 = vmul.f32 %v3035, %v3520
  %v3529 = vmul.f32 %v3039, %v3520
  %v3530 = vmul.f32 %v3043, %v3520
  %v3531 = vmul.f32 %v3047, %v3520
  %v3532 = vmul.f32 %v3051, %v3520
  %v3533 = vmul.f32 %v3055, %v3520
  %v3534 = vmul.f32 %v3059, %v3520
  %v3535 = vmul.f32 %v3063, %v3520
  %v3536 = vmul.f32 %v3067, %v3520
  %v3537 = vmul.f32 %v3071, %v3520
  %v3538 = vmul.f32 %v3075, %v3520
  %v3539 = vmul.f32 %v3079, %v3520
  %v3540 = vmul.f32 %v3083, %v3520
  %v3541 = vmul.f32 %v3087, %v3520
  %v3542 = vmul.f32 %v3091, %v3520
  %v3543 = vmul.f32 %v3095, %v3520
  %v3544 = vmul.f32 %v3099, %v3520
  %v3545 = vmul.f32 %v3103, %v3520
  %v3546 = vmul.f32 %v3107, %v3520
  %v3547 = vmul.f32 %v3111, %v3520
  %v3548 = vmul.f32 %v3115, %v3520
  %v3549 = vmul.f32 %v3119, %v3520
  %v3550 = vmul.f32 %v3123, %v3520
  %v3551 = vmul.f32 %v3127, %v3520
  %v3552 = vmul.f32 %v3131, %v3520
  %v3553 = vmul.f32 %v3135, %v3520
  %v3554 = vmul.f32 %v3139, %v3520
  %v3555 = vmul.f32 %v3143, %v3520
  %v3556 = vmul.f32 %v3147, %v3520
  %v3557 = vmul.f32 %v3151, %v3520
  %v3558 = vmul.f32 %v3155, %v3520
  %v3559 = vmul.f32 %v3159, %v3520
  %v3560 = vmul.f32 %v3163, %v3520
  %v3561 = vmul.f32 %v3167, %v3520
  %v3562 = vmul.f32 %v3171, %v3520
  %v3563 = vmul.f32 %v3175, %v3520
  %v3564 = vmul.f32 %v3179, %v3520
  %v3565 = vmul.f32 %v3183, %v3520
  %v3566 = vmul.f32 %v3187, %v3520
  %v3567 = vmul.f32 %v3191, %v3520
  %v3568 = vmul.f32 %v3195, %v3520
  %v3569 = vmul.f32 %v3199, %v3520
  %v3570 = vmul.f32 %v3203, %v3520
  %v3571 = vmul.f32 %v3207, %v3520
  %v3572 = vmul.f32 %v3211, %v3520
  %v3573 = vmul.f32 %v3215, %v3520
  %v3574 = vmul.f32 %v3219, %v3520
  %v3575 = vmul.f32 %v3223, %v3520
  %v3576 = vmul.f32 %v3227, %v3520
  %v3577 = vmul.f32 %v3231, %v3520
  %v3578 = vmul.f32 %v3235, %v3520
  %v3579 = vmul.f32 %v3239, %v3520
  %v3580 = vmul.f32 %v3243, %v3520
  %v3581 = vmul.f32 %v3247, %v3520
  %v3582 = vmul.f32 %v3251, %v3520
  %v3583 = vmul.f32 %v3255, %v3520
  %v3584 = vmul.f32 %v3259, %v3520
  %v3585 = vmul.f32 %v3263, %v3520
  %v3586 = vmul.f32 %v3267, %v3520
  %v3587 = vmul.f32 %v3271, %v3520
  %v3588 = vmul.f32 %v3275, %v3520
  %v3589 = vmul.f32 %v3279, %v3520
  %v3590 = vmul.f32 %v3283, %v3520
  %v3591 = vmul.f32 %v3287, %v3520
  %v3592 = vmul.f32 %v3291, %v3520
  %v3593 = vmul.f32 %v3295, %v3520
  %v3594 = vmul.f32 %v3299, %v3520
  %v3595 = vmul.f32 %v3303, %v3520
  %v3596 = vmul.f32 %v3307, %v3520
  %v3597 = vmul.f32 %v3311, %v3520
  %v3598 = vmul.f32 %v3315, %v3520
  %v3599 = vmul.f32 %v3319, %v3520
  %v3600 = vmul.f32 %v3323, %v3520
  %v3601 = vmul.f32 %v3327, %v3520
  %v3602 = vmul.f32 %v3331, %v3520
  %v3603 = vmul.f32 %v3335, %v3520
  %v3604 = vmul.f32 %v3339, %v3520
  %v3605 = vmul.f32 %v3343, %v3520
  %v3606 = vmul.f32 %v3347, %v3520
  %v3607 = vmul.f32 %v3351, %v3520
  %v3608 = vmul.f32 %v3355, %v3520
  %v3609 = vmul.f32 %v3359, %v3520
  %v3610 = vmul.f32 %v3363, %v3520
  %v3611 = vmul.f32 %v3367, %v3520
  %v3612 = vmul.f32 %v3371, %v3520
  %v3613 = vmul.f32 %v3375, %v3520
  %v3614 = vmul.f32 %v3379, %v3520
  %v3615 = vmul.f32 %v3383, %v3520
  %v3616 = vmul.f32 %v3387, %v3520
  %v3617 = vmul.f32 %v3391, %v3520
  %v3618 = vmul.f32 %v3395, %v3520
  %v3619 = vmul.f32 %v3399, %v3520
  %v3620 = vmul.f32 %v3403, %v3520
  %v3621 = vmul.f32 %v3407, %v3520
  %v3622 = vmul.f32 %v3411, %v3520
  %v3623 = vmul.f32 %v3415, %v3520
  %v3624 = vmul.f32 %v3419, %v3520
  %v3625 = vmul.f32 %v3423, %v3520
  %v3626 = vmul.f32 %v3427, %v3520
  %v3627 = vmul.f32 %v3431, %v3520
  %v3628 = vmul.f32 %v3435, %v3520
  %v3629 = vmul.f32 %v3439, %v3520
  %v3630 = vmul.f32 %v3443, %v3520
  %v3631 = vmul.f32 %v3447, %v3520
  %v3632 = vmul.f32 %v3451, %v3520
  %v3633 = vmul.f32 %v3455, %v3520
  %v3634 = vmul.f32 %v3459, %v3520
  %v3635 = vmul.f32 %v3463, %v3520
  %v3636 = vmul.f32 %v3467, %v3520
  %v3637 = vmul.f32 %v3471, %v3520
  %v3638 = vmul.f32 %v3475, %v3520
  %v3639 = vmul.f32 %v3479, %v3520
  %v3640 = vmul.f32 %v3483, %v3520
  %v3641 = vmul.f32 %v3487, %v3520
  %v3642 = vmul.f32 %v3491, %v3520
  %v3643 = vmul.f32 %v3495, %v3520
  %v3644 = vmul.f32 %v3499, %v3520
  %v3645 = vmul.f32 %v3503, %v3520
  %v3646 = vmul.f32 %v3507, %v3520
  %v3647 = vmul.f32 %v3511, %v3520
  %v3648 = vmul.f32 %v3515, %v3520
  %v3649 = vadd.f32 %v2876, %v3521
  %v3650 = vadd.f32 %v2877, %v3522
  %v3651 = vadd.f32 %v2878, %v3523
  %v3652 = vadd.f32 %v2879, %v3524
  %v3653 = vadd.f32 %v2880, %v3525
  %v3654 = vadd.f32 %v2881, %v3526
  %v3655 = vadd.f32 %v2882, %v3527
  %v3656 = vadd.f32 %v2883, %v3528
  %v3657 = vadd.f32 %v2884, %v3529
  %v3658 = vadd.f32 %v2885, %v3530
  %v3659 = vadd.f32 %v2886, %v3531
  %v3660 = vadd.f32 %v2887, %v3532
  %v3661 = vadd.f32 %v2888, %v3533
  %v3662 = vadd.f32 %v2889, %v3534
  %v3663 = vadd.f32 %v2890, %v3535
  %v3664 = vadd.f32 %v2891, %v3536
  %v3665 = vadd.f32 %v2892, %v3537
  %v3666 = vadd.f32 %v2893, %v3538
  %v3667 = vadd.f32 %v2894, %v3539
  %v3668 = vadd.f32 %v2895, %v3540
  %v3669 = vadd.f32 %v2896, %v3541
  %v3670 = vadd.f32 %v2897, %v3542
  %v3671 = vadd.f32 %v2898, %v3543
  %v3672 = vadd.f32 %v2899, %v3544
  %v3673 = vadd.f32 %v2900, %v3545
  %v3674 = vadd.f32 %v2901, %v3546
  %v3675 = vadd.f32 %v2902, %v3547
  %v3676 = vadd.f32 %v2903, %v3548
  %v3677 = vadd.f32 %v2904, %v3549
  %v3678 = vadd.f32 %v2905, %v3550
  %v3679 = vadd.f32 %v2906, %v3551
  %v3680 = vadd.f32 %v2907, %v3552
  %v3681 = vadd.f32 %v2908, %v3553
  %v3682 = vadd.f32 %v2909, %v3554
  %v3683 = vadd.f32 %v2910, %v3555
  %v3684 = vadd.f32 %v2911, %v3556
  %v3685 = vadd.f32 %v2912, %v3557
  %v3686 = vadd.f32 %v2913, %v3558
  %v3687 = vadd.f32 %v2914, %v3559
  %v3688 = vadd.f32 %v2915, %v3560
  %v3689 = vadd.f32 %v2916, %v3561
  %v3690 = vadd.f32 %v2917, %v3562
  %v3691 = vadd.f32 %v2918, %v3563
  %v3692 = vadd.f32 %v2919, %v3564
  %v3693 = vadd.f32 %v2920, %v3565
  %v3694 = vadd.f32 %v2921, %v3566
  %v3695 = vadd.f32 %v2922, %v3567
  %v3696 = vadd.f32 %v2923, %v3568
  %v3697 = vadd.f32 %v2924, %v3569
  %v3698 = vadd.f32 %v2925, %v3570
  %v3699 = vadd.f32 %v2926, %v3571
  %v3700 = vadd.f32 %v2927, %v3572
  %v3701 = vadd.f32 %v2928, %v3573
  %v3702 = vadd.f32 %v2929, %v3574
  %v3703 = vadd.f32 %v2930, %v3575
  %v3704 = vadd.f32 %v2931, %v3576
  %v3705 = vadd.f32 %v2932, %v3577
  %v3706 = vadd.f32 %v2933, %v3578
  %v3707 = vadd.f32 %v2934, %v3579
  %v3708 = vadd.f32 %v2935, %v3580
  %v3709 = vadd.f32 %v2936, %v3581
  %v3710 = vadd.f32 %v2937, %v3582
  %v3711 = vadd.f32 %v2938, %v3583
  %v3712 = vadd.f32 %v2939, %v3584
  %v3713 = vadd.f32 %v2940, %v3585
  %v3714 = vadd.f32 %v2941, %v3586
  %v3715 = vadd.f32 %v2942, %v3587
  %v3716 = vadd.f32 %v2943, %v3588
  %v3717 = vadd.f32 %v2944, %v3589
  %v3718 = vadd.f32 %v2945, %v3590
  %v3719 = vadd.f32 %v2946, %v3591
  %v3720 = vadd.f32 %v2947, %v3592
  %v3721 = vadd.f32 %v2948, %v3593
  %v3722 = vadd.f32 %v2949, %v3594
  %v3723 = vadd.f32 %v2950, %v3595
  %v3724 = vadd.f32 %v2951, %v3596
  %v3725 = vadd.f32 %v2952, %v3597
  %v3726 = vadd.f32 %v2953, %v3598
  %v3727 = vadd.f32 %v2954, %v3599
  %v3728 = vadd.f32 %v2955, %v3600
  %v3729 = vadd.f32 %v2956, %v3601
  %v3730 = vadd.f32 %v2957, %v3602
  %v3731 = vadd.f32 %v2958, %v3603
  %v3732 = vadd.f32 %v2959, %v3604
  %v3733 = vadd.f32 %v2960, %v3605
  %v3734 = vadd.f32 %v2961, %v3606
  %v3735 = vadd.f32 %v2962, %v3607
  %v3736 = vadd.f32 %v2963, %v3608
  %v3737 = vadd.f32 %v2964, %v3609
  %v3738 = vadd.f32 %v2965, %v3610
  %v3739 = vadd.f32 %v2966, %v3611
  %v3740 = vadd.f32 %v2967, %v3612
  %v3741 = vadd.f32 %v2968, %v3613
  %v3742 = vadd.f32 %v2969, %v3614
  %v3743 = vadd.f32 %v2970, %v3615
  %v3744 = vadd.f32 %v2971, %v3616
  %v3745 = vadd.f32 %v2972, %v3617
  %v3746 = vadd.f32 %v2973, %v3618
  %v3747 = vadd.f32 %v2974, %v3619
  %v3748 = vadd.f32 %v2975, %v3620
  %v3749 = vadd.f32 %v2976, %v3621
  %v3750 = vadd.f32 %v2977, %v3622
  %v3751 = vadd.f32 %v2978, %v3623
  %v3752 = vadd.f32 %v2979, %v3624
  %v3753 = vadd.f32 %v2980, %v3625
  %v3754 = vadd.f32 %v2981, %v3626
  %v3755 = vadd.f32 %v2982, %v3627
  %v3756 = vadd.f32 %v2983, %v3628
  %v3757 = vadd.f32 %v2984, %v3629
  %v3758 = vadd.f32 %v2985, %v3630
  %v3759 = vadd.f32 %v2986, %v3631
  %v3760 = vadd.f32 %v2987, %v3632
  %v3761 = vadd.f32 %v2988, %v3633
  %v3762 = vadd.f32 %v2989, %v3634
  %v3763 = vadd.f32 %v2990, %v3635
  %v3764 = vadd.f32 %v2991, %v3636
  %v3765 = vadd.f32 %v2992, %v3637
  %v3766 = vadd.f32 %v2993, %v3638
  %v3767 = vadd.f32 %v2994, %v3639
  %v3768 = vadd.f32 %v2995, %v3640
  %v3769 = vadd.f32 %v2996, %v3641
  %v3770 = vadd.f32 %v2997, %v3642
  %v3771 = vadd.f32 %v2998, %v3643
  %v3772 = vadd.f32 %v2999, %v3644
  %v3773 = vadd.f32 %v3000, %v3645
  %v3774 = vadd.f32 %v3001, %v3646
  %v3775 = vadd.f32 %v3002, %v3647
  %v3776 = vadd.f32 %v3003, %v3648
  %vm3777 = vcmask 64512
  %3778 = vst.msk [vmem:[%s5] sm:$0xff] %vm3777, %v3649
  %3779 = vst.msk [vmem:[%s5 + $0x8] sm:$0xff] %vm3777, %v3650
  %3780 = vst.msk [vmem:[%s5 + $0x10] sm:$0xff] %vm3777, %v3651
  %3781 = vst.msk [vmem:[%s5 + $0x18] sm:$0xff] %vm3777, %v3652
  %3782 = vst.msk [vmem:[%s5 + $0x20] sm:$0xff] %vm3777, %v3653
  %3783 = vst.msk [vmem:[%s5 + $0x28] sm:$0xff] %vm3777, %v3654
  %3784 = vst.msk [vmem:[%s5 + $0x30] sm:$0xff] %vm3777, %v3655
  %3785 = vst.msk [vmem:[%s5 + $0x38] sm:$0xff] %vm3777, %v3656
  %3786 = vst.msk [vmem:[%s5 + $0x40] sm:$0xff] %vm3777, %v3657
  %3787 = vst.msk [vmem:[%s5 + $0x48] sm:$0xff] %vm3777, %v3658
  %3788 = vst.msk [vmem:[%s5 + $0x50] sm:$0xff] %vm3777, %v3659
  %3789 = vst.msk [vmem:[%s5 + $0x58] sm:$0xff] %vm3777, %v3660
  %3790 = vst.msk [vmem:[%s5 + $0x60] sm:$0xff] %vm3777, %v3661
  %3791 = vst.msk [vmem:[%s5 + $0x68] sm:$0xff] %vm3777, %v3662
  %3792 = vst.msk [vmem:[%s5 + $0x70] sm:$0xff] %vm3777, %v3663
  %3793 = vst.msk [vmem:[%s5 + $0x78] sm:$0xff] %vm3777, %v3664
  %3794 = vst.msk [vmem:[%s5 + $0x80] sm:$0xff] %vm3777, %v3665
  %3795 = vst.msk [vmem:[%s5 + $0x88] sm:$0xff] %vm3777, %v3666
  %3796 = vst.msk [vmem:[%s5 + $0x90] sm:$0xff] %vm3777, %v3667
  %3797 = vst.msk [vmem:[%s5 + $0x98] sm:$0xff] %vm3777, %v3668
  %3798 = vst.msk [vmem:[%s5 + $0xa0] sm:$0xff] %vm3777, %v3669
  %3799 = vst.msk [vmem:[%s5 + $0xa8] sm:$0xff] %vm3777, %v3670
  %3800 = vst.msk [vmem:[%s5 + $0xb0] sm:$0xff] %vm3777, %v3671
  %3801 = vst.msk [vmem:[%s5 + $0xb8] sm:$0xff] %vm3777, %v3672
  %3802 = vst.msk [vmem:[%s5 + $0xc0] sm:$0xff] %vm3777, %v3673
  %3803 = vst.msk [vmem:[%s5 + $0xc8] sm:$0xff] %vm3777, %v3674
  %3804 = vst.msk [vmem:[%s5 + $0xd0] sm:$0xff] %vm3777, %v3675
  %3805 = vst.msk [vmem:[%s5 + $0xd8] sm:$0xff] %vm3777, %v3676
  %3806 = vst.msk [vmem:[%s5 + $0xe0] sm:$0xff] %vm3777, %v3677
  %3807 = vst.msk [vmem:[%s5 + $0xe8] sm:$0xff] %vm3777, %v3678
  %3808 = vst.msk [vmem:[%s5 + $0xf0] sm:$0xff] %vm3777, %v3679
  %3809 = vst.msk [vmem:[%s5 + $0xf8] sm:$0xff] %vm3777, %v3680
  %3810 = vst.msk [vmem:[%s5 + $0x100] sm:$0xff] %vm3777, %v3681
  %3811 = vst.msk [vmem:[%s5 + $0x108] sm:$0xff] %vm3777, %v3682
  %3812 = vst.msk [vmem:[%s5 + $0x110] sm:$0xff] %vm3777, %v3683
  %3813 = vst.msk [vmem:[%s5 + $0x118] sm:$0xff] %vm3777, %v3684
  %3814 = vst.msk [vmem:[%s5 + $0x120] sm:$0xff] %vm3777, %v3685
  %3815 = vst.msk [vmem:[%s5 + $0x128] sm:$0xff] %vm3777, %v3686
  %3816 = vst.msk [vmem:[%s5 + $0x130] sm:$0xff] %vm3777, %v3687
  %3817 = vst.msk [vmem:[%s5 + $0x138] sm:$0xff] %vm3777, %v3688
  %3818 = vst.msk [vmem:[%s5 + $0x140] sm:$0xff] %vm3777, %v3689
  %3819 = vst.msk [vmem:[%s5 + $0x148] sm:$0xff] %vm3777, %v3690
  %3820 = vst.msk [vmem:[%s5 + $0x150] sm:$0xff] %vm3777, %v3691
  %3821 = vst.msk [vmem:[%s5 + $0x158] sm:$0xff] %vm3777, %v3692
  %3822 = vst.msk [vmem:[%s5 + $0x160] sm:$0xff] %vm3777, %v3693
  %3823 = vst.msk [vmem:[%s5 + $0x168] sm:$0xff] %vm3777, %v3694
  %3824 = vst.msk [vmem:[%s5 + $0x170] sm:$0xff] %vm3777, %v3695
  %3825 = vst.msk [vmem:[%s5 + $0x178] sm:$0xff] %vm3777, %v3696
  %3826 = vst.msk [vmem:[%s5 + $0x180] sm:$0xff] %vm3777, %v3697
  %3827 = vst.msk [vmem:[%s5 + $0x188] sm:$0xff] %vm3777, %v3698
  %3828 = vst.msk [vmem:[%s5 + $0x190] sm:$0xff] %vm3777, %v3699
  %3829 = vst.msk [vmem:[%s5 + $0x198] sm:$0xff] %vm3777, %v3700
  %3830 = vst.msk [vmem:[%s5 + $0x1a0] sm:$0xff] %vm3777, %v3701
  %3831 = vst.msk [vmem:[%s5 + $0x1a8] sm:$0xff] %vm3777, %v3702
  %3832 = vst.msk [vmem:[%s5 + $0x1b0] sm:$0xff] %vm3777, %v3703
  %3833 = vst.msk [vmem:[%s5 + $0x1b8] sm:$0xff] %vm3777, %v3704
  %3834 = vst.msk [vmem:[%s5 + $0x1c0] sm:$0xff] %vm3777, %v3705
  %3835 = vst.msk [vmem:[%s5 + $0x1c8] sm:$0xff] %vm3777, %v3706
  %3836 = vst.msk [vmem:[%s5 + $0x1d0] sm:$0xff] %vm3777, %v3707
  %3837 = vst.msk [vmem:[%s5 + $0x1d8] sm:$0xff] %vm3777, %v3708
  %3838 = vst.msk [vmem:[%s5 + $0x1e0] sm:$0xff] %vm3777, %v3709
  %3839 = vst.msk [vmem:[%s5 + $0x1e8] sm:$0xff] %vm3777, %v3710
  %3840 = vst.msk [vmem:[%s5 + $0x1f0] sm:$0xff] %vm3777, %v3711
  %3841 = vst.msk [vmem:[%s5 + $0x1f8] sm:$0xff] %vm3777, %v3712
  %3842 = vst.msk [vmem:[%s5 + $0x200] sm:$0xff] %vm3777, %v3713
  %3843 = vst.msk [vmem:[%s5 + $0x208] sm:$0xff] %vm3777, %v3714
  %3844 = vst.msk [vmem:[%s5 + $0x210] sm:$0xff] %vm3777, %v3715
  %3845 = vst.msk [vmem:[%s5 + $0x218] sm:$0xff] %vm3777, %v3716
  %3846 = vst.msk [vmem:[%s5 + $0x220] sm:$0xff] %vm3777, %v3717
  %3847 = vst.msk [vmem:[%s5 + $0x228] sm:$0xff] %vm3777, %v3718
  %3848 = vst.msk [vmem:[%s5 + $0x230] sm:$0xff] %vm3777, %v3719
  %3849 = vst.msk [vmem:[%s5 + $0x238] sm:$0xff] %vm3777, %v3720
  %3850 = vst.msk [vmem:[%s5 + $0x240] sm:$0xff] %vm3777, %v3721
  %3851 = vst.msk [vmem:[%s5 + $0x248] sm:$0xff] %vm3777, %v3722
  %3852 = vst.msk [vmem:[%s5 + $0x250] sm:$0xff] %vm3777, %v3723
  %3853 = vst.msk [vmem:[%s5 + $0x258] sm:$0xff] %vm3777, %v3724
  %3854 = vst.msk [vmem:[%s5 + $0x260] sm:$0xff] %vm3777, %v3725
  %3855 = vst.msk [vmem:[%s5 + $0x268] sm:$0xff] %vm3777, %v3726
  %3856 = vst.msk [vmem:[%s5 + $0x270] sm:$0xff] %vm3777, %v3727
  %3857 = vst.msk [vmem:[%s5 + $0x278] sm:$0xff] %vm3777, %v3728
  %3858 = vst.msk [vmem:[%s5 + $0x280] sm:$0xff] %vm3777, %v3729
  %3859 = vst.msk [vmem:[%s5 + $0x288] sm:$0xff] %vm3777, %v3730
  %3860 = vst.msk [vmem:[%s5 + $0x290] sm:$0xff] %vm3777, %v3731
  %3861 = vst.msk [vmem:[%s5 + $0x298] sm:$0xff] %vm3777, %v3732
  %3862 = vst.msk [vmem:[%s5 + $0x2a0] sm:$0xff] %vm3777, %v3733
  %3863 = vst.msk [vmem:[%s5 + $0x2a8] sm:$0xff] %vm3777, %v3734
  %3864 = vst.msk [vmem:[%s5 + $0x2b0] sm:$0xff] %vm3777, %v3735
  %3865 = vst.msk [vmem:[%s5 + $0x2b8] sm:$0xff] %vm3777, %v3736
  %3866 = vst.msk [vmem:[%s5 + $0x2c0] sm:$0xff] %vm3777, %v3737
  %3867 = vst.msk [vmem:[%s5 + $0x2c8] sm:$0xff] %vm3777, %v3738
  %3868 = vst.msk [vmem:[%s5 + $0x2d0] sm:$0xff] %vm3777, %v3739
  %3869 = vst.msk [vmem:[%s5 + $0x2d8] sm:$0xff] %vm3777, %v3740
  %3870 = vst.msk [vmem:[%s5 + $0x2e0] sm:$0xff] %vm3777, %v3741
  %3871 = vst.msk [vmem:[%s5 + $0x2e8] sm:$0xff] %vm3777, %v3742
  %3872 = vst.msk [vmem:[%s5 + $0x2f0] sm:$0xff] %vm3777, %v3743
  %3873 = vst.msk [vmem:[%s5 + $0x2f8] sm:$0xff] %vm3777, %v3744
  %3874 = vst.msk [vmem:[%s5 + $0x300] sm:$0xff] %vm3777, %v3745
  %3875 = vst.msk [vmem:[%s5 + $0x308] sm:$0xff] %vm3777, %v3746
  %3876 = vst.msk [vmem:[%s5 + $0x310] sm:$0xff] %vm3777, %v3747
  %3877 = vst.msk [vmem:[%s5 + $0x318] sm:$0xff] %vm3777, %v3748
  %3878 = vst.msk [vmem:[%s5 + $0x320] sm:$0xff] %vm3777, %v3749
  %3879 = vst.msk [vmem:[%s5 + $0x328] sm:$0xff] %vm3777, %v3750
  %3880 = vst.msk [vmem:[%s5 + $0x330] sm:$0xff] %vm3777, %v3751
  %3881 = vst.msk [vmem:[%s5 + $0x338] sm:$0xff] %vm3777, %v3752
  %3882 = vst.msk [vmem:[%s5 + $0x340] sm:$0xff] %vm3777, %v3753
  %3883 = vst.msk [vmem:[%s5 + $0x348] sm:$0xff] %vm3777, %v3754
  %3884 = vst.msk [vmem:[%s5 + $0x350] sm:$0xff] %vm3777, %v3755
  %3885 = vst.msk [vmem:[%s5 + $0x358] sm:$0xff] %vm3777, %v3756
  %3886 = vst.msk [vmem:[%s5 + $0x360] sm:$0xff] %vm3777, %v3757
  %3887 = vst.msk [vmem:[%s5 + $0x368] sm:$0xff] %vm3777, %v3758
  %3888 = vst.msk [vmem:[%s5 + $0x370] sm:$0xff] %vm3777, %v3759
  %3889 = vst.msk [vmem:[%s5 + $0x378] sm:$0xff] %vm3777, %v3760
  %3890 = vst.msk [vmem:[%s5 + $0x380] sm:$0xff] %vm3777, %v3761
  %3891 = vst.msk [vmem:[%s5 + $0x388] sm:$0xff] %vm3777, %v3762
  %3892 = vst.msk [vmem:[%s5 + $0x390] sm:$0xff] %vm3777, %v3763
  %3893 = vst.msk [vmem:[%s5 + $0x398] sm:$0xff] %vm3777, %v3764
  %3894 = vst.msk [vmem:[%s5 + $0x3a0] sm:$0xff] %vm3777, %v3765
  %3895 = vst.msk [vmem:[%s5 + $0x3a8] sm:$0xff] %vm3777, %v3766
  %3896 = vst.msk [vmem:[%s5 + $0x3b0] sm:$0xff] %vm3777, %v3767
  %3897 = vst.msk [vmem:[%s5 + $0x3b8] sm:$0xff] %vm3777, %v3768
  %3898 = vst.msk [vmem:[%s5 + $0x3c0] sm:$0xff] %vm3777, %v3769
  %3899 = vst.msk [vmem:[%s5 + $0x3c8] sm:$0xff] %vm3777, %v3770
  %3900 = vst.msk [vmem:[%s5 + $0x3d0] sm:$0xff] %vm3777, %v3771
  %3901 = vst.msk [vmem:[%s5 + $0x3d8] sm:$0xff] %vm3777, %v3772
  %3902 = vst.msk [vmem:[%s5 + $0x3e0] sm:$0xff] %vm3777, %v3773
  %3903 = vst.msk [vmem:[%s5 + $0x3e8] sm:$0xff] %vm3777, %v3774
  %3904 = vst.msk [vmem:[%s5 + $0x3f0] sm:$0xff] %vm3777, %v3775
  %3905 = vst.msk [vmem:[%s5 + $0x3f8] sm:$0xff] %vm3777, %v3776
  %v3906 = vsel %vm3777, %v3649, 0.0
  %v3907 = vsel %vm3777, %v3650, 0.0
  %v3908 = vadd.f32 %v3906, %v3907
  %v3909 = vsel %vm3777, %v3651, 0.0
  %v3910 = vadd.f32 %v3908, %v3909
  %v3911 = vsel %vm3777, %v3652, 0.0
  %v3912 = vadd.f32 %v3910, %v3911
  %v3913 = vsel %vm3777, %v3653, 0.0
  %v3914 = vadd.f32 %v3912, %v3913
  %v3915 = vsel %vm3777, %v3654, 0.0
  %v3916 = vadd.f32 %v3914, %v3915
  %v3917 = vsel %vm3777, %v3655, 0.0
  %v3918 = vadd.f32 %v3916, %v3917
  %v3919 = vsel %vm3777, %v3656, 0.0
  %v3920 = vadd.f32 %v3918, %v3919
  %v3921 = vsel %vm3777, %v3657, 0.0
  %v3922 = vadd.f32 %v3920, %v3921
  %v3923 = vsel %vm3777, %v3658, 0.0
  %v3924 = vadd.f32 %v3922, %v3923
  %v3925 = vsel %vm3777, %v3659, 0.0
  %v3926 = vadd.f32 %v3924, %v3925
  %v3927 = vsel %vm3777, %v3660, 0.0
  %v3928 = vadd.f32 %v3926, %v3927
  %v3929 = vsel %vm3777, %v3661, 0.0
  %v3930 = vadd.f32 %v3928, %v3929
  %v3931 = vsel %vm3777, %v3662, 0.0
  %v3932 = vadd.f32 %v3930, %v3931
  %v3933 = vsel %vm3777, %v3663, 0.0
  %v3934 = vadd.f32 %v3932, %v3933
  %v3935 = vsel %vm3777, %v3664, 0.0
  %v3936 = vadd.f32 %v3934, %v3935
  %v3937 = vsel %vm3777, %v3665, 0.0
  %v3938 = vadd.f32 %v3936, %v3937
  %v3939 = vsel %vm3777, %v3666, 0.0
  %v3940 = vadd.f32 %v3938, %v3939
  %v3941 = vsel %vm3777, %v3667, 0.0
  %v3942 = vadd.f32 %v3940, %v3941
  %v3943 = vsel %vm3777, %v3668, 0.0
  %v3944 = vadd.f32 %v3942, %v3943
  %v3945 = vsel %vm3777, %v3669, 0.0
  %v3946 = vadd.f32 %v3944, %v3945
  %v3947 = vsel %vm3777, %v3670, 0.0
  %v3948 = vadd.f32 %v3946, %v3947
  %v3949 = vsel %vm3777, %v3671, 0.0
  %v3950 = vadd.f32 %v3948, %v3949
  %v3951 = vsel %vm3777, %v3672, 0.0
  %v3952 = vadd.f32 %v3950, %v3951
  %v3953 = vsel %vm3777, %v3673, 0.0
  %v3954 = vadd.f32 %v3952, %v3953
  %v3955 = vsel %vm3777, %v3674, 0.0
  %v3956 = vadd.f32 %v3954, %v3955
  %v3957 = vsel %vm3777, %v3675, 0.0
  %v3958 = vadd.f32 %v3956, %v3957
  %v3959 = vsel %vm3777, %v3676, 0.0
  %v3960 = vadd.f32 %v3958, %v3959
  %v3961 = vsel %vm3777, %v3677, 0.0
  %v3962 = vadd.f32 %v3960, %v3961
  %v3963 = vsel %vm3777, %v3678, 0.0
  %v3964 = vadd.f32 %v3962, %v3963
  %v3965 = vsel %vm3777, %v3679, 0.0
  %v3966 = vadd.f32 %v3964, %v3965
  %v3967 = vsel %vm3777, %v3680, 0.0
  %v3968 = vadd.f32 %v3966, %v3967
  %v3969 = vsel %vm3777, %v3681, 0.0
  %v3970 = vadd.f32 %v3968, %v3969
  %v3971 = vsel %vm3777, %v3682, 0.0
  %v3972 = vadd.f32 %v3970, %v3971
  %v3973 = vsel %vm3777, %v3683, 0.0
  %v3974 = vadd.f32 %v3972, %v3973
  %v3975 = vsel %vm3777, %v3684, 0.0
  %v3976 = vadd.f32 %v3974, %v3975
  %v3977 = vsel %vm3777, %v3685, 0.0
  %v3978 = vadd.f32 %v3976, %v3977
  %v3979 = vsel %vm3777, %v3686, 0.0
  %v3980 = vadd.f32 %v3978, %v3979
  %v3981 = vsel %vm3777, %v3687, 0.0
  %v3982 = vadd.f32 %v3980, %v3981
  %v3983 = vsel %vm3777, %v3688, 0.0
  %v3984 = vadd.f32 %v3982, %v3983
  %v3985 = vsel %vm3777, %v3689, 0.0
  %v3986 = vadd.f32 %v3984, %v3985
  %v3987 = vsel %vm3777, %v3690, 0.0
  %v3988 = vadd.f32 %v3986, %v3987
  %v3989 = vsel %vm3777, %v3691, 0.0
  %v3990 = vadd.f32 %v3988, %v3989
  %v3991 = vsel %vm3777, %v3692, 0.0
  %v3992 = vadd.f32 %v3990, %v3991
  %v3993 = vsel %vm3777, %v3693, 0.0
  %v3994 = vadd.f32 %v3992, %v3993
  %v3995 = vsel %vm3777, %v3694, 0.0
  %v3996 = vadd.f32 %v3994, %v3995
  %v3997 = vsel %vm3777, %v3695, 0.0
  %v3998 = vadd.f32 %v3996, %v3997
  %v3999 = vsel %vm3777, %v3696, 0.0
  %v4000 = vadd.f32 %v3998, %v3999
  %v4001 = vsel %vm3777, %v3697, 0.0
  %v4002 = vadd.f32 %v4000, %v4001
  %v4003 = vsel %vm3777, %v3698, 0.0
  %v4004 = vadd.f32 %v4002, %v4003
  %v4005 = vsel %vm3777, %v3699, 0.0
  %v4006 = vadd.f32 %v4004, %v4005
  %v4007 = vsel %vm3777, %v3700, 0.0
  %v4008 = vadd.f32 %v4006, %v4007
  %v4009 = vsel %vm3777, %v3701, 0.0
  %v4010 = vadd.f32 %v4008, %v4009
  %v4011 = vsel %vm3777, %v3702, 0.0
  %v4012 = vadd.f32 %v4010, %v4011
  %v4013 = vsel %vm3777, %v3703, 0.0
  %v4014 = vadd.f32 %v4012, %v4013
  %v4015 = vsel %vm3777, %v3704, 0.0
  %v4016 = vadd.f32 %v4014, %v4015
  %v4017 = vsel %vm3777, %v3705, 0.0
  %v4018 = vadd.f32 %v4016, %v4017
  %v4019 = vsel %vm3777, %v3706, 0.0
  %v4020 = vadd.f32 %v4018, %v4019
  %v4021 = vsel %vm3777, %v3707, 0.0
  %v4022 = vadd.f32 %v4020, %v4021
  %v4023 = vsel %vm3777, %v3708, 0.0
  %v4024 = vadd.f32 %v4022, %v4023
  %v4025 = vsel %vm3777, %v3709, 0.0
  %v4026 = vadd.f32 %v4024, %v4025
  %v4027 = vsel %vm3777, %v3710, 0.0
  %v4028 = vadd.f32 %v4026, %v4027
  %v4029 = vsel %vm3777, %v3711, 0.0
  %v4030 = vadd.f32 %v4028, %v4029
  %v4031 = vsel %vm3777, %v3712, 0.0
  %v4032 = vadd.f32 %v4030, %v4031
  %v4033 = vsel %vm3777, %v3713, 0.0
  %v4034 = vadd.f32 %v4032, %v4033
  %v4035 = vsel %vm3777, %v3714, 0.0
  %v4036 = vadd.f32 %v4034, %v4035
  %v4037 = vsel %vm3777, %v3715, 0.0
  %v4038 = vadd.f32 %v4036, %v4037
  %v4039 = vsel %vm3777, %v3716, 0.0
  %v4040 = vadd.f32 %v4038, %v4039
  %v4041 = vsel %vm3777, %v3717, 0.0
  %v4042 = vadd.f32 %v4040, %v4041
  %v4043 = vsel %vm3777, %v3718, 0.0
  %v4044 = vadd.f32 %v4042, %v4043
  %v4045 = vsel %vm3777, %v3719, 0.0
  %v4046 = vadd.f32 %v4044, %v4045
  %v4047 = vsel %vm3777, %v3720, 0.0
  %v4048 = vadd.f32 %v4046, %v4047
  %v4049 = vsel %vm3777, %v3721, 0.0
  %v4050 = vadd.f32 %v4048, %v4049
  %v4051 = vsel %vm3777, %v3722, 0.0
  %v4052 = vadd.f32 %v4050, %v4051
  %v4053 = vsel %vm3777, %v3723, 0.0
  %v4054 = vadd.f32 %v4052, %v4053
  %v4055 = vsel %vm3777, %v3724, 0.0
  %v4056 = vadd.f32 %v4054, %v4055
  %v4057 = vsel %vm3777, %v3725, 0.0
  %v4058 = vadd.f32 %v4056, %v4057
  %v4059 = vsel %vm3777, %v3726, 0.0
  %v4060 = vadd.f32 %v4058, %v4059
  %v4061 = vsel %vm3777, %v3727, 0.0
  %v4062 = vadd.f32 %v4060, %v4061
  %v4063 = vsel %vm3777, %v3728, 0.0
  %v4064 = vadd.f32 %v4062, %v4063
  %v4065 = vsel %vm3777, %v3729, 0.0
  %v4066 = vadd.f32 %v4064, %v4065
  %v4067 = vsel %vm3777, %v3730, 0.0
  %v4068 = vadd.f32 %v4066, %v4067
  %v4069 = vsel %vm3777, %v3731, 0.0
  %v4070 = vadd.f32 %v4068, %v4069
  %v4071 = vsel %vm3777, %v3732, 0.0
  %v4072 = vadd.f32 %v4070, %v4071
  %v4073 = vsel %vm3777, %v3733, 0.0
  %v4074 = vadd.f32 %v4072, %v4073
  %v4075 = vsel %vm3777, %v3734, 0.0
  %v4076 = vadd.f32 %v4074, %v4075
  %v4077 = vsel %vm3777, %v3735, 0.0
  %v4078 = vadd.f32 %v4076, %v4077
  %v4079 = vsel %vm3777, %v3736, 0.0
  %v4080 = vadd.f32 %v4078, %v4079
  %v4081 = vsel %vm3777, %v3737, 0.0
  %v4082 = vadd.f32 %v4080, %v4081
  %v4083 = vsel %vm3777, %v3738, 0.0
  %v4084 = vadd.f32 %v4082, %v4083
  %v4085 = vsel %vm3777, %v3739, 0.0
  %v4086 = vadd.f32 %v4084, %v4085
  %v4087 = vsel %vm3777, %v3740, 0.0
  %v4088 = vadd.f32 %v4086, %v4087
  %v4089 = vsel %vm3777, %v3741, 0.0
  %v4090 = vadd.f32 %v4088, %v4089
  %v4091 = vsel %vm3777, %v3742, 0.0
  %v4092 = vadd.f32 %v4090, %v4091
  %v4093 = vsel %vm3777, %v3743, 0.0
  %v4094 = vadd.f32 %v4092, %v4093
  %v4095 = vsel %vm3777, %v3744, 0.0
  %v4096 = vadd.f32 %v4094, %v4095
  %v4097 = vsel %vm3777, %v3745, 0.0
  %v4098 = vadd.f32 %v4096, %v4097
  %v4099 = vsel %vm3777, %v3746, 0.0
  %v4100 = vadd.f32 %v4098, %v4099
  %v4101 = vsel %vm3777, %v3747, 0.0
  %v4102 = vadd.f32 %v4100, %v4101
  %v4103 = vsel %vm3777, %v3748, 0.0
  %v4104 = vadd.f32 %v4102, %v4103
  %v4105 = vsel %vm3777, %v3749, 0.0
  %v4106 = vadd.f32 %v4104, %v4105
  %v4107 = vsel %vm3777, %v3750, 0.0
  %v4108 = vadd.f32 %v4106, %v4107
  %v4109 = vsel %vm3777, %v3751, 0.0
  %v4110 = vadd.f32 %v4108, %v4109
  %v4111 = vsel %vm3777, %v3752, 0.0
  %v4112 = vadd.f32 %v4110, %v4111
  %v4113 = vsel %vm3777, %v3753, 0.0
  %v4114 = vadd.f32 %v4112, %v4113
  %v4115 = vsel %vm3777, %v3754, 0.0
  %v4116 = vadd.f32 %v4114, %v4115
  %v4117 = vsel %vm3777, %v3755, 0.0
  %v4118 = vadd.f32 %v4116, %v4117
  %v4119 = vsel %vm3777, %v3756, 0.0
  %v4120 = vadd.f32 %v4118, %v4119
  %v4121 = vsel %vm3777, %v3757, 0.0
  %v4122 = vadd.f32 %v4120, %v4121
  %v4123 = vsel %vm3777, %v3758, 0.0
  %v4124 = vadd.f32 %v4122, %v4123
  %v4125 = vsel %vm3777, %v3759, 0.0
  %v4126 = vadd.f32 %v4124, %v4125
  %v4127 = vsel %vm3777, %v3760, 0.0
  %v4128 = vadd.f32 %v4126, %v4127
  %v4129 = vsel %vm3777, %v3761, 0.0
  %v4130 = vadd.f32 %v4128, %v4129
  %v4131 = vsel %vm3777, %v3762, 0.0
  %v4132 = vadd.f32 %v4130, %v4131
  %v4133 = vsel %vm3777, %v3763, 0.0
  %v4134 = vadd.f32 %v4132, %v4133
  %v4135 = vsel %vm3777, %v3764, 0.0
  %v4136 = vadd.f32 %v4134, %v4135
  %v4137 = vsel %vm3777, %v3765, 0.0
  %v4138 = vadd.f32 %v4136, %v4137
  %v4139 = vsel %vm3777, %v3766, 0.0
  %v4140 = vadd.f32 %v4138, %v4139
  %v4141 = vsel %vm3777, %v3767, 0.0
  %v4142 = vadd.f32 %v4140, %v4141
  %v4143 = vsel %vm3777, %v3768, 0.0
  %v4144 = vadd.f32 %v4142, %v4143
  %v4145 = vsel %vm3777, %v3769, 0.0
  %v4146 = vadd.f32 %v4144, %v4145
  %v4147 = vsel %vm3777, %v3770, 0.0
  %v4148 = vadd.f32 %v4146, %v4147
  %v4149 = vsel %vm3777, %v3771, 0.0
  %v4150 = vadd.f32 %v4148, %v4149
  %v4151 = vsel %vm3777, %v3772, 0.0
  %v4152 = vadd.f32 %v4150, %v4151
  %v4153 = vsel %vm3777, %v3773, 0.0
  %v4154 = vadd.f32 %v4152, %v4153
  %v4155 = vsel %vm3777, %v3774, 0.0
  %v4156 = vadd.f32 %v4154, %v4155
  %v4157 = vsel %vm3777, %v3775, 0.0
  %v4158 = vadd.f32 %v4156, %v4157
  %v4159 = vsel %vm3777, %v3776, 0.0
  %v4160 = vadd.f32 %v4158, %v4159
  %v4161 = vrot.slane %v4160, 4
  %v4162 = vadd.f32 %v4160, %v4161
  %v4163 = vrot.slane %v4162, 2
  %v4164 = vadd.f32 %v4162, %v4163
  %v4165 = vrot.slane %v4164, 1
  %v4166 = vadd.f32 %v4164, %v4165
  %vm4167 = vcmask 57344
  %4168 = vst.msk [vmem:[%s6] sm:$0x1] %vm4167, %v4166
  %v4169 = vmul.f32 %v3649, %v3649
  %v4170 = vmul.f32 %v3650, %v3650
  %v4171 = vmul.f32 %v3651, %v3651
  %v4172 = vmul.f32 %v3652, %v3652
  %v4173 = vmul.f32 %v3653, %v3653
  %v4174 = vmul.f32 %v3654, %v3654
  %v4175 = vmul.f32 %v3655, %v3655
  %v4176 = vmul.f32 %v3656, %v3656
  %v4177 = vmul.f32 %v3657, %v3657
  %v4178 = vmul.f32 %v3658, %v3658
  %v4179 = vmul.f32 %v3659, %v3659
  %v4180 = vmul.f32 %v3660, %v3660
  %v4181 = vmul.f32 %v3661, %v3661
  %v4182 = vmul.f32 %v3662, %v3662
  %v4183 = vmul.f32 %v3663, %v3663
  %v4184 = vmul.f32 %v3664, %v3664
  %v4185 = vmul.f32 %v3665, %v3665
  %v4186 = vmul.f32 %v3666, %v3666
  %v4187 = vmul.f32 %v3667, %v3667
  %v4188 = vmul.f32 %v3668, %v3668
  %v4189 = vmul.f32 %v3669, %v3669
  %v4190 = vmul.f32 %v3670, %v3670
  %v4191 = vmul.f32 %v3671, %v3671
  %v4192 = vmul.f32 %v3672, %v3672
  %v4193 = vmul.f32 %v3673, %v3673
  %v4194 = vmul.f32 %v3674, %v3674
  %v4195 = vmul.f32 %v3675, %v3675
  %v4196 = vmul.f32 %v3676, %v3676
  %v4197 = vmul.f32 %v3677, %v3677
  %v4198 = vmul.f32 %v3678, %v3678
  %v4199 = vmul.f32 %v3679, %v3679
  %v4200 = vmul.f32 %v3680, %v3680
  %v4201 = vmul.f32 %v3681, %v3681
  %v4202 = vmul.f32 %v3682, %v3682
  %v4203 = vmul.f32 %v3683, %v3683
  %v4204 = vmul.f32 %v3684, %v3684
  %v4205 = vmul.f32 %v3685, %v3685
  %v4206 = vmul.f32 %v3686, %v3686
  %v4207 = vmul.f32 %v3687, %v3687
  %v4208 = vmul.f32 %v3688, %v3688
  %v4209 = vmul.f32 %v3689, %v3689
  %v4210 = vmul.f32 %v3690, %v3690
  %v4211 = vmul.f32 %v3691, %v3691
  %v4212 = vmul.f32 %v3692, %v3692
  %v4213 = vmul.f32 %v3693, %v3693
  %v4214 = vmul.f32 %v3694, %v3694
  %v4215 = vmul.f32 %v3695, %v3695
  %v4216 = vmul.f32 %v3696, %v3696
  %v4217 = vmul.f32 %v3697, %v3697
  %v4218 = vmul.f32 %v3698, %v3698
  %v4219 = vmul.f32 %v3699, %v3699
  %v4220 = vmul.f32 %v3700, %v3700
  %v4221 = vmul.f32 %v3701, %v3701
  %v4222 = vmul.f32 %v3702, %v3702
  %v4223 = vmul.f32 %v3703, %v3703
  %v4224 = vmul.f32 %v3704, %v3704
  %v4225 = vmul.f32 %v3705, %v3705
  %v4226 = vmul.f32 %v3706, %v3706
  %v4227 = vmul.f32 %v3707, %v3707
  %v4228 = vmul.f32 %v3708, %v3708
  %v4229 = vmul.f32 %v3709, %v3709
  %v4230 = vmul.f32 %v3710, %v3710
  %v4231 = vmul.f32 %v3711, %v3711
  %v4232 = vmul.f32 %v3712, %v3712
  %v4233 = vmul.f32 %v3713, %v3713
  %v4234 = vmul.f32 %v3714, %v3714
  %v4235 = vmul.f32 %v3715, %v3715
  %v4236 = vmul.f32 %v3716, %v3716
  %v4237 = vmul.f32 %v3717, %v3717
  %v4238 = vmul.f32 %v3718, %v3718
  %v4239 = vmul.f32 %v3719, %v3719
  %v4240 = vmul.f32 %v3720, %v3720
  %v4241 = vmul.f32 %v3721, %v3721
  %v4242 = vmul.f32 %v3722, %v3722
  %v4243 = vmul.f32 %v3723, %v3723
  %v4244 = vmul.f32 %v3724, %v3724
  %v4245 = vmul.f32 %v3725, %v3725
  %v4246 = vmul.f32 %v3726, %v3726
  %v4247 = vmul.f32 %v3727, %v3727
  %v4248 = vmul.f32 %v3728, %v3728
  %v4249 = vmul.f32 %v3729, %v3729
  %v4250 = vmul.f32 %v3730, %v3730
  %v4251 = vmul.f32 %v3731, %v3731
  %v4252 = vmul.f32 %v3732, %v3732
  %v4253 = vmul.f32 %v3733, %v3733
  %v4254 = vmul.f32 %v3734, %v3734
  %v4255 = vmul.f32 %v3735, %v3735
  %v4256 = vmul.f32 %v3736, %v3736
  %v4257 = vmul.f32 %v3737, %v3737
  %v4258 = vmul.f32 %v3738, %v3738
  %v4259 = vmul.f32 %v3739, %v3739
  %v4260 = vmul.f32 %v3740, %v3740
  %v4261 = vmul.f32 %v3741, %v3741
  %v4262 = vmul.f32 %v3742, %v3742
  %v4263 = vmul.f32 %v3743, %v3743
  %v4264 = vmul.f32 %v3744, %v3744
  %v4265 = vmul.f32 %v3745, %v3745
  %v4266 = vmul.f32 %v3746, %v3746
  %v4267 = vmul.f32 %v3747, %v3747
  %v4268 = vmul.f32 %v3748, %v3748
  %v4269 = vmul.f32 %v3749, %v3749
  %v4270 = vmul.f32 %v3750, %v3750
  %v4271 = vmul.f32 %v3751, %v3751
  %v4272 = vmul.f32 %v3752, %v3752
  %v4273 = vmul.f32 %v3753, %v3753
  %v4274 = vmul.f32 %v3754, %v3754
  %v4275 = vmul.f32 %v3755, %v3755
  %v4276 = vmul.f32 %v3756, %v3756
  %v4277 = vmul.f32 %v3757, %v3757
  %v4278 = vmul.f32 %v3758, %v3758
  %v4279 = vmul.f32 %v3759, %v3759
  %v4280 = vmul.f32 %v3760, %v3760
  %v4281 = vmul.f32 %v3761, %v3761
  %v4282 = vmul.f32 %v3762, %v3762
  %v4283 = vmul.f32 %v3763, %v3763
  %v4284 = vmul.f32 %v3764, %v3764
  %v4285 = vmul.f32 %v3765, %v3765
  %v4286 = vmul.f32 %v3766, %v3766
  %v4287 = vmul.f32 %v3767, %v3767
  %v4288 = vmul.f32 %v3768, %v3768
  %v4289 = vmul.f32 %v3769, %v3769
  %v4290 = vmul.f32 %v3770, %v3770
  %v4291 = vmul.f32 %v3771, %v3771
  %v4292 = vmul.f32 %v3772, %v3772
  %v4293 = vmul.f32 %v3773, %v3773
  %v4294 = vmul.f32 %v3774, %v3774
  %v4295 = vmul.f32 %v3775, %v3775
  %v4296 = vmul.f32 %v3776, %v3776
  %v4297 = vsel %vm3777, %v4169, 0.0
  %v4298 = vsel %vm3777, %v4170, 0.0
  %v4299 = vadd.f32 %v4297, %v4298
  %v4300 = vsel %vm3777, %v4171, 0.0
  %v4301 = vadd.f32 %v4299, %v4300
  %v4302 = vsel %vm3777, %v4172, 0.0
  %v4303 = vadd.f32 %v4301, %v4302
  %v4304 = vsel %vm3777, %v4173, 0.0
  %v4305 = vadd.f32 %v4303, %v4304
  %v4306 = vsel %vm3777, %v4174, 0.0
  %v4307 = vadd.f32 %v4305, %v4306
  %v4308 = vsel %vm3777, %v4175, 0.0
  %v4309 = vadd.f32 %v4307, %v4308
  %v4310 = vsel %vm3777, %v4176, 0.0
  %v4311 = vadd.f32 %v4309, %v4310
  %v4312 = vsel %vm3777, %v4177, 0.0
  %v4313 = vadd.f32 %v4311, %v4312
  %v4314 = vsel %vm3777, %v4178, 0.0
  %v4315 = vadd.f32 %v4313, %v4314
  %v4316 = vsel %vm3777, %v4179, 0.0
  %v4317 = vadd.f32 %v4315, %v4316
  %v4318 = vsel %vm3777, %v4180, 0.0
  %v4319 = vadd.f32 %v4317, %v4318
  %v4320 = vsel %vm3777, %v4181, 0.0
  %v4321 = vadd.f32 %v4319, %v4320
  %v4322 = vsel %vm3777, %v4182, 0.0
  %v4323 = vadd.f32 %v4321, %v4322
  %v4324 = vsel %vm3777, %v4183, 0.0
  %v4325 = vadd.f32 %v4323, %v4324
  %v4326 = vsel %vm3777, %v4184, 0.0
  %v4327 = vadd.f32 %v4325, %v4326
  %v4328 = vsel %vm3777, %v4185, 0.0
  %v4329 = vadd.f32 %v4327, %v4328
  %v4330 = vsel %vm3777, %v4186, 0.0
  %v4331 = vadd.f32 %v4329, %v4330
  %v4332 = vsel %vm3777, %v4187, 0.0
  %v4333 = vadd.f32 %v4331, %v4332
  %v4334 = vsel %vm3777, %v4188, 0.0
  %v4335 = vadd.f32 %v4333, %v4334
  %v4336 = vsel %vm3777, %v4189, 0.0
  %v4337 = vadd.f32 %v4335, %v4336
  %v4338 = vsel %vm3777, %v4190, 0.0
  %v4339 = vadd.f32 %v4337, %v4338
  %v4340 = vsel %vm3777, %v4191, 0.0
  %v4341 = vadd.f32 %v4339, %v4340
  %v4342 = vsel %vm3777, %v4192, 0.0
  %v4343 = vadd.f32 %v4341, %v4342
  %v4344 = vsel %vm3777, %v4193, 0.0
  %v4345 = vadd.f32 %v4343, %v4344
  %v4346 = vsel %vm3777, %v4194, 0.0
  %v4347 = vadd.f32 %v4345, %v4346
  %v4348 = vsel %vm3777, %v4195, 0.0
  %v4349 = vadd.f32 %v4347, %v4348
  %v4350 = vsel %vm3777, %v4196, 0.0
  %v4351 = vadd.f32 %v4349, %v4350
  %v4352 = vsel %vm3777, %v4197, 0.0
  %v4353 = vadd.f32 %v4351, %v4352
  %v4354 = vsel %vm3777, %v4198, 0.0
  %v4355 = vadd.f32 %v4353, %v4354
  %v4356 = vsel %vm3777, %v4199, 0.0
  %v4357 = vadd.f32 %v4355, %v4356
  %v4358 = vsel %vm3777, %v4200, 0.0
  %v4359 = vadd.f32 %v4357, %v4358
  %v4360 = vsel %vm3777, %v4201, 0.0
  %v4361 = vadd.f32 %v4359, %v4360
  %v4362 = vsel %vm3777, %v4202, 0.0
  %v4363 = vadd.f32 %v4361, %v4362
  %v4364 = vsel %vm3777, %v4203, 0.0
  %v4365 = vadd.f32 %v4363, %v4364
  %v4366 = vsel %vm3777, %v4204, 0.0
  %v4367 = vadd.f32 %v4365, %v4366
  %v4368 = vsel %vm3777, %v4205, 0.0
  %v4369 = vadd.f32 %v4367, %v4368
  %v4370 = vsel %vm3777, %v4206, 0.0
  %v4371 = vadd.f32 %v4369, %v4370
  %v4372 = vsel %vm3777, %v4207, 0.0
  %v4373 = vadd.f32 %v4371, %v4372
  %v4374 = vsel %vm3777, %v4208, 0.0
  %v4375 = vadd.f32 %v4373, %v4374
  %v4376 = vsel %vm3777, %v4209, 0.0
  %v4377 = vadd.f32 %v4375, %v4376
  %v4378 = vsel %vm3777, %v4210, 0.0
  %v4379 = vadd.f32 %v4377, %v4378
  %v4380 = vsel %vm3777, %v4211, 0.0
  %v4381 = vadd.f32 %v4379, %v4380
  %v4382 = vsel %vm3777, %v4212, 0.0
  %v4383 = vadd.f32 %v4381, %v4382
  %v4384 = vsel %vm3777, %v4213, 0.0
  %v4385 = vadd.f32 %v4383, %v4384
  %v4386 = vsel %vm3777, %v4214, 0.0
  %v4387 = vadd.f32 %v4385, %v4386
  %v4388 = vsel %vm3777, %v4215, 0.0
  %v4389 = vadd.f32 %v4387, %v4388
  %v4390 = vsel %vm3777, %v4216, 0.0
  %v4391 = vadd.f32 %v4389, %v4390
  %v4392 = vsel %vm3777, %v4217, 0.0
  %v4393 = vadd.f32 %v4391, %v4392
  %v4394 = vsel %vm3777, %v4218, 0.0
  %v4395 = vadd.f32 %v4393, %v4394
  %v4396 = vsel %vm3777, %v4219, 0.0
  %v4397 = vadd.f32 %v4395, %v4396
  %v4398 = vsel %vm3777, %v4220, 0.0
  %v4399 = vadd.f32 %v4397, %v4398
  %v4400 = vsel %vm3777, %v4221, 0.0
  %v4401 = vadd.f32 %v4399, %v4400
  %v4402 = vsel %vm3777, %v4222, 0.0
  %v4403 = vadd.f32 %v4401, %v4402
  %v4404 = vsel %vm3777, %v4223, 0.0
  %v4405 = vadd.f32 %v4403, %v4404
  %v4406 = vsel %vm3777, %v4224, 0.0
  %v4407 = vadd.f32 %v4405, %v4406
  %v4408 = vsel %vm3777, %v4225, 0.0
  %v4409 = vadd.f32 %v4407, %v4408
  %v4410 = vsel %vm3777, %v4226, 0.0
  %v4411 = vadd.f32 %v4409, %v4410
  %v4412 = vsel %vm3777, %v4227, 0.0
  %v4413 = vadd.f32 %v4411, %v4412
  %v4414 = vsel %vm3777, %v4228, 0.0
  %v4415 = vadd.f32 %v4413, %v4414
  %v4416 = vsel %vm3777, %v4229, 0.0
  %v4417 = vadd.f32 %v4415, %v4416
  %v4418 = vsel %vm3777, %v4230, 0.0
  %v4419 = vadd.f32 %v4417, %v4418
  %v4420 = vsel %vm3777, %v4231, 0.0
  %v4421 = vadd.f32 %v4419, %v4420
  %v4422 = vsel %vm3777, %v4232, 0.0
  %v4423 = vadd.f32 %v4421, %v4422
  %v4424 = vsel %vm3777, %v4233, 0.0
  %v4425 = vadd.f32 %v4423, %v4424
  %v4426 = vsel %vm3777, %v4234, 0.0
  %v4427 = vadd.f32 %v4425, %v4426
  %v4428 = vsel %vm3777, %v4235, 0.0
  %v4429 = vadd.f32 %v4427, %v4428
  %v4430 = vsel %vm3777, %v4236, 0.0
  %v4431 = vadd.f32 %v4429, %v4430
  %v4432 = vsel %vm3777, %v4237, 0.0
  %v4433 = vadd.f32 %v4431, %v4432
  %v4434 = vsel %vm3777, %v4238, 0.0
  %v4435 = vadd.f32 %v4433, %v4434
  %v4436 = vsel %vm3777, %v4239, 0.0
  %v4437 = vadd.f32 %v4435, %v4436
  %v4438 = vsel %vm3777, %v4240, 0.0
  %v4439 = vadd.f32 %v4437, %v4438
  %v4440 = vsel %vm3777, %v4241, 0.0
  %v4441 = vadd.f32 %v4439, %v4440
  %v4442 = vsel %vm3777, %v4242, 0.0
  %v4443 = vadd.f32 %v4441, %v4442
  %v4444 = vsel %vm3777, %v4243, 0.0
  %v4445 = vadd.f32 %v4443, %v4444
  %v4446 = vsel %vm3777, %v4244, 0.0
  %v4447 = vadd.f32 %v4445, %v4446
  %v4448 = vsel %vm3777, %v4245, 0.0
  %v4449 = vadd.f32 %v4447, %v4448
  %v4450 = vsel %vm3777, %v4246, 0.0
  %v4451 = vadd.f32 %v4449, %v4450
  %v4452 = vsel %vm3777, %v4247, 0.0
  %v4453 = vadd.f32 %v4451, %v4452
  %v4454 = vsel %vm3777, %v4248, 0.0
  %v4455 = vadd.f32 %v4453, %v4454
  %v4456 = vsel %vm3777, %v4249, 0.0
  %v4457 = vadd.f32 %v4455, %v4456
  %v4458 = vsel %vm3777, %v4250, 0.0
  %v4459 = vadd.f32 %v4457, %v4458
  %v4460 = vsel %vm3777, %v4251, 0.0
  %v4461 = vadd.f32 %v4459, %v4460
  %v4462 = vsel %vm3777, %v4252, 0.0
  %v4463 = vadd.f32 %v4461, %v4462
  %v4464 = vsel %vm3777, %v4253, 0.0
  %v4465 = vadd.f32 %v4463, %v4464
  %v4466 = vsel %vm3777, %v4254, 0.0
  %v4467 = vadd.f32 %v4465, %v4466
  %v4468 = vsel %vm3777, %v4255, 0.0
  %v4469 = vadd.f32 %v4467, %v4468
  %v4470 = vsel %vm3777, %v4256, 0.0
  %v4471 = vadd.f32 %v4469, %v4470
  %v4472 = vsel %vm3777, %v4257, 0.0
  %v4473 = vadd.f32 %v4471, %v4472
  %v4474 = vsel %vm3777, %v4258, 0.0
  %v4475 = vadd.f32 %v4473, %v4474
  %v4476 = vsel %vm3777, %v4259, 0.0
  %v4477 = vadd.f32 %v4475, %v4476
  %v4478 = vsel %vm3777, %v4260, 0.0
  %v4479 = vadd.f32 %v4477, %v4478
  %v4480 = vsel %vm3777, %v4261, 0.0
  %v4481 = vadd.f32 %v4479, %v4480
  %v4482 = vsel %vm3777, %v4262, 0.0
  %v4483 = vadd.f32 %v4481, %v4482
  %v4484 = vsel %vm3777, %v4263, 0.0
  %v4485 = vadd.f32 %v4483, %v4484
  %v4486 = vsel %vm3777, %v4264, 0.0
  %v4487 = vadd.f32 %v4485, %v4486
  %v4488 = vsel %vm3777, %v4265, 0.0
  %v4489 = vadd.f32 %v4487, %v4488
  %v4490 = vsel %vm3777, %v4266, 0.0
  %v4491 = vadd.f32 %v4489, %v4490
  %v4492 = vsel %vm3777, %v4267, 0.0
  %v4493 = vadd.f32 %v4491, %v4492
  %v4494 = vsel %vm3777, %v4268, 0.0
  %v4495 = vadd.f32 %v4493, %v4494
  %v4496 = vsel %vm3777, %v4269, 0.0
  %v4497 = vadd.f32 %v4495, %v4496
  %v4498 = vsel %vm3777, %v4270, 0.0
  %v4499 = vadd.f32 %v4497, %v4498
  %v4500 = vsel %vm3777, %v4271, 0.0
  %v4501 = vadd.f32 %v4499, %v4500
  %v4502 = vsel %vm3777, %v4272, 0.0
  %v4503 = vadd.f32 %v4501, %v4502
  %v4504 = vsel %vm3777, %v4273, 0.0
  %v4505 = vadd.f32 %v4503, %v4504
  %v4506 = vsel %vm3777, %v4274, 0.0
  %v4507 = vadd.f32 %v4505, %v4506
  %v4508 = vsel %vm3777, %v4275, 0.0
  %v4509 = vadd.f32 %v4507, %v4508
  %v4510 = vsel %vm3777, %v4276, 0.0
  %v4511 = vadd.f32 %v4509, %v4510
  %v4512 = vsel %vm3777, %v4277, 0.0
  %v4513 = vadd.f32 %v4511, %v4512
  %v4514 = vsel %vm3777, %v4278, 0.0
  %v4515 = vadd.f32 %v4513, %v4514
  %v4516 = vsel %vm3777, %v4279, 0.0
  %v4517 = vadd.f32 %v4515, %v4516
  %v4518 = vsel %vm3777, %v4280, 0.0
  %v4519 = vadd.f32 %v4517, %v4518
  %v4520 = vsel %vm3777, %v4281, 0.0
  %v4521 = vadd.f32 %v4519, %v4520
  %v4522 = vsel %vm3777, %v4282, 0.0
  %v4523 = vadd.f32 %v4521, %v4522
  %v4524 = vsel %vm3777, %v4283, 0.0
  %v4525 = vadd.f32 %v4523, %v4524
  %v4526 = vsel %vm3777, %v4284, 0.0
  %v4527 = vadd.f32 %v4525, %v4526
  %v4528 = vsel %vm3777, %v4285, 0.0
  %v4529 = vadd.f32 %v4527, %v4528
  %v4530 = vsel %vm3777, %v4286, 0.0
  %v4531 = vadd.f32 %v4529, %v4530
  %v4532 = vsel %vm3777, %v4287, 0.0
  %v4533 = vadd.f32 %v4531, %v4532
  %v4534 = vsel %vm3777, %v4288, 0.0
  %v4535 = vadd.f32 %v4533, %v4534
  %v4536 = vsel %vm3777, %v4289, 0.0
  %v4537 = vadd.f32 %v4535, %v4536
  %v4538 = vsel %vm3777, %v4290, 0.0
  %v4539 = vadd.f32 %v4537, %v4538
  %v4540 = vsel %vm3777, %v4291, 0.0
  %v4541 = vadd.f32 %v4539, %v4540
  %v4542 = vsel %vm3777, %v4292, 0.0
  %v4543 = vadd.f32 %v4541, %v4542
  %v4544 = vsel %vm3777, %v4293, 0.0
  %v4545 = vadd.f32 %v4543, %v4544
  %v4546 = vsel %vm3777, %v4294, 0.0
  %v4547 = vadd.f32 %v4545, %v4546
  %v4548 = vsel %vm3777, %v4295, 0.0
  %v4549 = vadd.f32 %v4547, %v4548
  %v4550 = vsel %vm3777, %v4296, 0.0
  %v4551 = vadd.f32 %v4549, %v4550
  %v4552 = vrot.slane %v4551, 4
  %v4553 = vadd.f32 %v4551, %v4552
  %v4554 = vrot.slane %v4553, 2
  %v4555 = vadd.f32 %v4553, %v4554
  %v4556 = vrot.slane %v4555, 1
  %v4557 = vadd.f32 %v4555, %v4556
  %4558 = vst.msk [vmem:[%s7] sm:$0x1] %vm4167, %v4557
  // Predicated region
  $region22: #{double_conv3d.2} parent=0 // pred_check
    _
  $region23: #{double_conv3d.2} parent=0 // pred_check_branch
    %4560 = sbr.rel (0) target = $region25
  $region24: #{double_conv3d.2} parent=0 // pred_region
    _
  $region25: #{double_conv3d.2} parent=0 // pred_fallthru
    _
  // Predicated region
  $region26: #{double_conv3d.2} parent=0 // pred_check
    _
  $region27: #{double_conv3d.2} parent=0 // pred_check_branch
    %4562 = sbr.rel (0) target = $region29
  $region28: #{double_conv3d.2} parent=0 // pred_region
    _
  $region29: #{double_conv3d.2} parent=0 // pred_fallthru
    _
  // Predicated region
  $region30: #{double_conv3d.2} parent=0 // pred_check
    _
  $region31: #{double_conv3d.2} parent=0 // pred_check_branch
    %4564 = sbr.rel (0) target = $region33
  $region32: #{double_conv3d.2} parent=0 // pred_region
    _
  $region33: #{double_conv3d.2} parent=0 // pred_fallthru
    _
  // Predicated region
  $region34: #{double_conv3d.2} parent=0 // pred_check
    _
  $region35: #{double_conv3d.2} parent=0 // pred_check_branch
    %4566 = sbr.rel (0) target = $region37
  $region36: #{double_conv3d.2} parent=0 // pred_region
    _
  $region37: #{double_conv3d.2} parent=0 // pred_fallthru
    _
  // Predicated region
  $region38: #{double_conv3d.2} parent=0 // pred_check
    _
  $region39: #{double_conv3d.2} parent=0 // pred_check_branch
    %4568 = sbr.rel (0) target = $region41
  $region40: #{double_conv3d.2} parent=0 // pred_region
    _
  $region41: #{double_conv3d.2} parent=0 // pred_fallthru
    _
  // Predicated region
  $region42: #{double_conv3d.2} parent=0 // pred_check
    _
  $region43: #{double_conv3d.2} parent=0 // pred_check_branch
    %4570 = sbr.rel (0) target = $region45
  $region44: #{double_conv3d.2} parent=0 // pred_region
    _
  $region45: #{double_conv3d.2} parent=0 // pred_fallthru
    _

// kernel: double_conv3d.3
$region0: #{double_conv3d.3}
  #allocation0 [shape = 'u32[]', space=smem, size = 0x4, offset = 0x4, fixed_abs, tag = 'smem constant byte address 0x4 - core index']
  #allocation1 [shape = 'u32[144,128]{1,0:T(1,128)}', space=vmem, size = 0x12000, scoped, tag = 'internal scratch']
  #allocation2 [shape = 'f32[10,10,10,8]{3,2,1,0:T(8,128)}', space=vmem, size = 0xc8000, scoped, tag = 'scratch operand']
  #allocation3 [shape = 'f32[640,72]{1,0:T(8,128)}', space=vmem, size = 0x50000, scoped, tag = 'scratch operand']
  %s0 = inlined_call_operand.vmem [shape: f32[2,8,8,8,8], index: 0, kind: input, shape index: {}]
  %s1 = inlined_call_operand.vmem [shape: f32[1,8], index: 1, kind: input, shape index: {}]
  %s2 = inlined_call_operand.vmem [shape: f32[1,8], index: 2, kind: input, shape index: {}]
  %s3 = inlined_call_operand.vmem [shape: f32[3,72,8], index: 3, kind: input, shape index: {}]
  %s4 = inlined_call_operand.vmem [shape: f32[1,8], index: 4, kind: input, shape index: {}]
  %s5 = inlined_call_operand.vmem [shape: f32[2,8,8,8,8], index: 5, kind: output, shape index: {}]
  %s6 = sld [smem:[#allocation0]]
  $region53: #{double_conv3d.3} parent=0
    _
  %s8 = ssub.s32 1, %s6
  %s9 = scalar_select 0, %s8, %s6
  loop: start=0, step=1, limit=4
  $region2: #{double_conv3d.3} parent=0 // loop_pre_header
    _
  $region3: #{double_conv3d.3} parent=0 // loop_header
    %s11 = sphi 0, %s15
    %p12 = scmp.ge.s32.totalorder %s11, 4
    %s21 = sphi 0, %s23
    %s24 = sphi 0, %s21
    %s25 = sphi 0, %s24
    %s41 = sphi 0, %s25
    %s45 = sphi 0, %s45
    %s47 = sphi 0, %s45
    %s48 = sphi 0, %s47
    %s62 = sphi 0, %s48
    %s66 = sphi 0, %s66
    %s68 = sphi 0, %s66
    %s69 = sphi 0, %s68
    %s83 = sphi 0, %s69
    %s87 = sphi 0, %s87
    %s89 = sphi 0, %s87
    %s90 = sphi 0, %s89
    %s104 = sphi 0, %s90
    %s108 = sphi 0, %s108
    %s110 = sphi 0, %s108
    %s111 = sphi 0, %s110
    %s125 = sphi 0, %s111
    %s131 = sphi 0, %s133
    %s134 = sphi 0, %s131
    %s135 = sphi 0, %s134
    %s151 = sphi 0, %s135
  $region4: #{double_conv3d.3} parent=0 // loop_header_branch
    %14 = sbr.rel (%p12) target = $region8
  $region5: #{double_conv3d.3} parent=0 // loop_body
    %s16 = ssub.s32 %s11, 1
    %s17 = ssub.s32 %s11, 2
    %s18 = sadd.s32 %s11, 1
    %s19 = ssub.s32 %s11, %s18
    %p20 = scmp.eq.s32.totalorder %s19, 0
    %s22 = sadd.s32 %s21, 1
    %s23 = scalar_select %p20, %s21, %s22
    %p26 = pneg %p20
    %p27 = scmp.eq.s32.totalorder %s11, 1
    %p28 = por %p26, %p27
    %p29 = scmp.ne.s32.totalorder %s21, %s24
    %p30 = scmp.eq.s32.totalorder %s11, 0
    %p31 = por %p29, %p30
    %p32 = scmp.ne.s32.totalorder %s21, %s24
    %p33 = scmp.eq.s32.totalorder %s16, 1
    %p34 = por %p32, %p33
    %p35 = scmp.ne.s32.totalorder %s24, %s25
    %p36 = scmp.eq.s32.totalorder %s16, 0
    %p37 = por %p35, %p36
    %p38 = scmp.ne.s32.totalorder %s24, %s25
    %p39 = scmp.eq.s32.totalorder %s17, 1
    %p40 = por %p38, %p39
    %p42 = scmp.ne.s32.totalorder %s25, %s41
    %p43 = scmp.eq.s32.totalorder %s17, 0
    %p44 = por %p42, %p43
    %s46 = sadd.s32 %s45, 1
    %p49 = scmp.eq.s32.totalorder %s11, 1
    %p50 = scmp.ne.s32.totalorder %s45, %s47
    %p51 = scmp.eq.s32.totalorder %s11, 0
    %p52 = por %p50, %p51
    %p53 = scmp.ne.s32.totalorder %s45, %s47
    %p54 = scmp.eq.s32.totalorder %s16, 1
    %p55 = por %p53, %p54
    %p56 = scmp.ne.s32.totalorder %s47, %s48
    %p57 = scmp.eq.s32.totalorder %s16, 0
    %p58 = por %p56, %p57
    %p59 = scmp.ne.s32.totalorder %s47, %s48
    %p60 = scmp.eq.s32.totalorder %s17, 1
    %p61 = por %p59, %p60
    %p63 = scmp.ne.s32.totalorder %s48, %s62
    %p64 = scmp.eq.s32.totalorder %s17, 0
    %p65 = por %p63, %p64
    %s67 = sadd.s32 %s66, 1
    %p70 = scmp.eq.s32.totalorder %s11, 1
    %p71 = scmp.ne.s32.totalorder %s66, %s68
    %p72 = scmp.eq.s32.totalorder %s11, 0
    %p73 = por %p71, %p72
    %p74 = scmp.ne.s32.totalorder %s66, %s68
    %p75 = scmp.eq.s32.totalorder %s16, 1
    %p76 = por %p74, %p75
    %p77 = scmp.ne.s32.totalorder %s68, %s69
    %p78 = scmp.eq.s32.totalorder %s16, 0
    %p79 = por %p77, %p78
    %p80 = scmp.ne.s32.totalorder %s68, %s69
    %p81 = scmp.eq.s32.totalorder %s17, 1
    %p82 = por %p80, %p81
    %p84 = scmp.ne.s32.totalorder %s69, %s83
    %p85 = scmp.eq.s32.totalorder %s17, 0
    %p86 = por %p84, %p85
    %s88 = sadd.s32 %s87, 1
    %p91 = scmp.eq.s32.totalorder %s11, 1
    %p92 = scmp.ne.s32.totalorder %s87, %s89
    %p93 = scmp.eq.s32.totalorder %s11, 0
    %p94 = por %p92, %p93
    %p95 = scmp.ne.s32.totalorder %s87, %s89
    %p96 = scmp.eq.s32.totalorder %s16, 1
    %p97 = por %p95, %p96
    %p98 = scmp.ne.s32.totalorder %s89, %s90
    %p99 = scmp.eq.s32.totalorder %s16, 0
    %p100 = por %p98, %p99
    %p101 = scmp.ne.s32.totalorder %s89, %s90
    %p102 = scmp.eq.s32.totalorder %s17, 1
    %p103 = por %p101, %p102
    %p105 = scmp.ne.s32.totalorder %s90, %s104
    %p106 = scmp.eq.s32.totalorder %s17, 0
    %p107 = por %p105, %p106
    %s109 = sadd.s32 %s108, 1
    %p112 = scmp.eq.s32.totalorder %s11, 1
    %p113 = scmp.ne.s32.totalorder %s108, %s110
    %p114 = scmp.eq.s32.totalorder %s11, 0
    %p115 = por %p113, %p114
    %p116 = scmp.ne.s32.totalorder %s108, %s110
    %p117 = scmp.eq.s32.totalorder %s16, 1
    %p118 = por %p116, %p117
    %p119 = scmp.ne.s32.totalorder %s110, %s111
    %p120 = scmp.eq.s32.totalorder %s16, 0
    %p121 = por %p119, %p120
    %p122 = scmp.ne.s32.totalorder %s110, %s111
    %p123 = scmp.eq.s32.totalorder %s17, 1
    %p124 = por %p122, %p123
    %p126 = scmp.ne.s32.totalorder %s111, %s125
    %p127 = scmp.eq.s32.totalorder %s17, 0
    %p128 = por %p126, %p127
    %s129 = ssub.s32 %s11, %s18
    %p130 = scmp.eq.s32.totalorder %s129, 0
    %s132 = sadd.s32 %s131, 1
    %s133 = scalar_select %p130, %s131, %s132
    %p136 = pneg %p130
    %p137 = scmp.eq.s32.totalorder %s11, 1
    %p138 = por %p136, %p137
    %p139 = scmp.ne.s32.totalorder %s131, %s134
    %p140 = scmp.eq.s32.totalorder %s11, 0
    %p141 = por %p139, %p140
    %p142 = scmp.ne.s32.totalorder %s131, %s134
    %p143 = scmp.eq.s32.totalorder %s16, 1
    %p144 = por %p142, %p143
    %p145 = scmp.ne.s32.totalorder %s134, %s135
    %p146 = scmp.eq.s32.totalorder %s16, 0
    %p147 = por %p145, %p146
    %p148 = scmp.ne.s32.totalorder %s134, %s135
    %p149 = scmp.eq.s32.totalorder %s17, 1
    %p150 = por %p148, %p149
    %p152 = scmp.ne.s32.totalorder %s135, %s151
    %p153 = scmp.eq.s32.totalorder %s17, 0
    %p154 = por %p152, %p153
    %p155 = scmp.le.s32.totalorder 1, %s11
    %p156 = scmp.lt.s32.totalorder %s11, 3
    %p157 = pnand %p155, %p156
    %p158 = pneg %p157
    // Predicated region
    $region9: #{double_conv3d.3} parent=5 // pred_check
      _
    $region10: #{double_conv3d.3} parent=5 // pred_check_branch
      %160 = sbr.rel (%p157) target = $region12
    $region11: #{double_conv3d.3} parent=5 // pred_region
      %s161 = ssub.s32 %s11, 1
      // Predicated region
      $region13: #{double_conv3d.3} parent=11 // pred_check
        %p162 = pneg %p58
      $region14: #{double_conv3d.3} parent=11 // pred_check_branch
        %164 = sbr.rel (%p162) target = $region16
      $region15: #{double_conv3d.3} parent=11 // pred_region
        _
      $region16: #{double_conv3d.3} parent=11 // pred_fallthru
        _
      // Predicated region
      $region17: #{double_conv3d.3} parent=11 // pred_check
        %p165 = pneg %p79
      $region18: #{double_conv3d.3} parent=11 // pred_check_branch
        %167 = sbr.rel (%p165) target = $region20
      $region19: #{double_conv3d.3} parent=11 // pred_region
        _
      $region20: #{double_conv3d.3} parent=11 // pred_fallthru
        _
      // Predicated region
      $region21: #{double_conv3d.3} parent=11 // pred_check
        %p168 = pneg %p100
      $region22: #{double_conv3d.3} parent=11 // pred_check_branch
        %170 = sbr.rel (%p168) target = $region24
      $region23: #{double_conv3d.3} parent=11 // pred_region
        _
      $region24: #{double_conv3d.3} parent=11 // pred_fallthru
        _
      // Predicated region
      $region25: #{double_conv3d.3} parent=11 // pred_check
        %p171 = pneg %p121
      $region26: #{double_conv3d.3} parent=11 // pred_check_branch
        %173 = sbr.rel (%p171) target = $region28
      $region27: #{double_conv3d.3} parent=11 // pred_region
        _
      $region28: #{double_conv3d.3} parent=11 // pred_fallthru
        _
    $region12: #{double_conv3d.3} parent=5 // pred_fallthru
      _
    %p174 = scmp.lt.s32.totalorder %s11, 2
    // Predicated region
    $region29: #{double_conv3d.3} parent=5 // pred_check
      %p175 = pneg %p174
    $region30: #{double_conv3d.3} parent=5 // pred_check_branch
      %177 = sbr.rel (%p175) target = $region32
    $region31: #{double_conv3d.3} parent=5 // pred_region
      // Predicated region
      $region33: #{double_conv3d.3} parent=31 // pred_check
        %p178 = pneg %p31
      $region34: #{double_conv3d.3} parent=31 // pred_check_branch
        %180 = sbr.rel (%p178) target = $region36
      $region35: #{double_conv3d.3} parent=31 // pred_region
        %p181 = scmp.lt.s32.totalorder %s11, 1
        %s182 = scalar_select %p181, %s11, 1
        %s183 = smul.addr %s182, 64
        %s184 = smul.addr %s183, 8
        %s185 = scalar_lea.vmem %s0, %s184
      $region36: #{double_conv3d.3} parent=31 // pred_fallthru
        _
    $region32: #{double_conv3d.3} parent=5 // pred_fallthru
      _
    %p186 = scmp.le.s32.totalorder 1, %s11
    %p187 = scmp.lt.s32.totalorder %s11, 3
    %p188 = pnand %p186, %p187
    %p189 = pneg %p188
    // Predicated region
    $region37: #{double_conv3d.3} parent=5 // pred_check
      _
    $region38: #{double_conv3d.3} parent=5 // pred_check_branch
      %191 = sbr.rel (%p188) target = $region40
    $region39: #{double_conv3d.3} parent=5 // pred_region
      %s192 = ssub.s32 %s11, 1
      %p193 = scmp.lt.s32.totalorder %s16, 1
      %s194 = scalar_select %p193, %s16, 1
      %s195 = smul.addr %s194, 64
      %s196 = smul.addr %s195, 8
      %s197 = scalar_lea.vmem %s0, %s196
      %p198 = pneg %p37
      %p199 = pneg %p34
      %p200 = pneg %p58
      %p201 = pneg %p55
      %p202 = pneg %p79
      %p203 = pneg %p76
      %p204 = pneg %p100
      %p205 = pneg %p97
      %p206 = pneg %p121
      %p207 = pneg %p118
      %p208 = pneg %p147
      %p209 = pneg %p144
      %p210 = scmp.lt.s32.totalorder %s16, 1
      %s211 = scalar_select %p210, %s16, 1
      %s212 = smul.addr %s211, 64
      %s213 = smul.addr %s212, 8
      %s214 = scalar_lea.vmem %s5, %s213
      %p215 = scmp.lt.s32.totalorder %s16, 1
      %s216 = scalar_select %p215, %s16, 1
      %s217 = smul.addr %s216, 64
      %s218 = smul.addr %s217, 8
      %s219 = scalar_lea.vmem %s0, %s218
      %p220 = scmp.lt.s32.totalorder %s16, 1
      %s221 = scalar_select %p220, %s16, 1
      %s222 = smul.addr %s221, 64
      %s223 = smul.addr %s222, 8
      %s224 = scalar_lea.vmem %s5, %s223
      %v225 = vld [vmem:[%s219] sm:$0xff]
      %v226 = vld [vmem:[%s219 + $0x8] sm:$0xff]
      %v227 = vld [vmem:[%s219 + $0x10] sm:$0xff]
      %v228 = vld [vmem:[%s219 + $0x18] sm:$0xff]
      %v229 = vld [vmem:[%s219 + $0x20] sm:$0xff]
      %v230 = vld [vmem:[%s219 + $0x28] sm:$0xff]
      %v231 = vld [vmem:[%s219 + $0x30] sm:$0xff]
      %v232 = vld [vmem:[%s219 + $0x38] sm:$0xff]
      %v233 = vld [vmem:[%s219 + $0x40] sm:$0xff]
      %v234 = vld [vmem:[%s219 + $0x48] sm:$0xff]
      %v235 = vld [vmem:[%s219 + $0x50] sm:$0xff]
      %v236 = vld [vmem:[%s219 + $0x58] sm:$0xff]
      %v237 = vld [vmem:[%s219 + $0x60] sm:$0xff]
      %v238 = vld [vmem:[%s219 + $0x68] sm:$0xff]
      %v239 = vld [vmem:[%s219 + $0x70] sm:$0xff]
      %v240 = vld [vmem:[%s219 + $0x78] sm:$0xff]
      %v241 = vld [vmem:[%s219 + $0x80] sm:$0xff]
      %v242 = vld [vmem:[%s219 + $0x88] sm:$0xff]
      %v243 = vld [vmem:[%s219 + $0x90] sm:$0xff]
      %v244 = vld [vmem:[%s219 + $0x98] sm:$0xff]
      %v245 = vld [vmem:[%s219 + $0xa0] sm:$0xff]
      %v246 = vld [vmem:[%s219 + $0xa8] sm:$0xff]
      %v247 = vld [vmem:[%s219 + $0xb0] sm:$0xff]
      %v248 = vld [vmem:[%s219 + $0xb8] sm:$0xff]
      %v249 = vld [vmem:[%s219 + $0xc0] sm:$0xff]
      %v250 = vld [vmem:[%s219 + $0xc8] sm:$0xff]
      %v251 = vld [vmem:[%s219 + $0xd0] sm:$0xff]
      %v252 = vld [vmem:[%s219 + $0xd8] sm:$0xff]
      %v253 = vld [vmem:[%s219 + $0xe0] sm:$0xff]
      %v254 = vld [vmem:[%s219 + $0xe8] sm:$0xff]
      %v255 = vld [vmem:[%s219 + $0xf0] sm:$0xff]
      %v256 = vld [vmem:[%s219 + $0xf8] sm:$0xff]
      %v257 = vld [vmem:[%s219 + $0x100] sm:$0xff]
      %v258 = vld [vmem:[%s219 + $0x108] sm:$0xff]
      %v259 = vld [vmem:[%s219 + $0x110] sm:$0xff]
      %v260 = vld [vmem:[%s219 + $0x118] sm:$0xff]
      %v261 = vld [vmem:[%s219 + $0x120] sm:$0xff]
      %v262 = vld [vmem:[%s219 + $0x128] sm:$0xff]
      %v263 = vld [vmem:[%s219 + $0x130] sm:$0xff]
      %v264 = vld [vmem:[%s219 + $0x138] sm:$0xff]
      %v265 = vld [vmem:[%s219 + $0x140] sm:$0xff]
      %v266 = vld [vmem:[%s219 + $0x148] sm:$0xff]
      %v267 = vld [vmem:[%s219 + $0x150] sm:$0xff]
      %v268 = vld [vmem:[%s219 + $0x158] sm:$0xff]
      %v269 = vld [vmem:[%s219 + $0x160] sm:$0xff]
      %v270 = vld [vmem:[%s219 + $0x168] sm:$0xff]
      %v271 = vld [vmem:[%s219 + $0x170] sm:$0xff]
      %v272 = vld [vmem:[%s219 + $0x178] sm:$0xff]
      %v273 = vld [vmem:[%s219 + $0x180] sm:$0xff]
      %v274 = vld [vmem:[%s219 + $0x188] sm:$0xff]
      %v275 = vld [vmem:[%s219 + $0x190] sm:$0xff]
      %v276 = vld [vmem:[%s219 + $0x198] sm:$0xff]
      %v277 = vld [vmem:[%s219 + $0x1a0] sm:$0xff]
      %v278 = vld [vmem:[%s219 + $0x1a8] sm:$0xff]
      %v279 = vld [vmem:[%s219 + $0x1b0] sm:$0xff]
      %v280 = vld [vmem:[%s219 + $0x1b8] sm:$0xff]
      %v281 = vld [vmem:[%s219 + $0x1c0] sm:$0xff]
      %v282 = vld [vmem:[%s219 + $0x1c8] sm:$0xff]
      %v283 = vld [vmem:[%s219 + $0x1d0] sm:$0xff]
      %v284 = vld [vmem:[%s219 + $0x1d8] sm:$0xff]
      %v285 = vld [vmem:[%s219 + $0x1e0] sm:$0xff]
      %v286 = vld [vmem:[%s219 + $0x1e8] sm:$0xff]
      %v287 = vld [vmem:[%s219 + $0x1f0] sm:$0xff]
      %v288 = vld [vmem:[%s219 + $0x1f8] sm:$0xff]
      %v289 = vld [vmem:[%s1] sm:$0x1]
      %v291 = vlaneseq
      %v292 = vshrl.u32 %v291, 7
      %v293 = vsub.s32 0, %v292
      %v294 = vrot.slane %v289, %v293
      %v296 = vmul.f32 %v225, %v294
      %v297 = vmul.f32 %v226, %v294
      %v298 = vmul.f32 %v227, %v294
      %v299 = vmul.f32 %v228, %v294
      %v300 = vmul.f32 %v229, %v294
      %v301 = vmul.f32 %v230, %v294
      %v302 = vmul.f32 %v231, %v294
      %v303 = vmul.f32 %v232, %v294
      %v304 = vmul.f32 %v233, %v294
      %v305 = vmul.f32 %v234, %v294
      %v306 = vmul.f32 %v235, %v294
      %v307 = vmul.f32 %v236, %v294
      %v308 = vmul.f32 %v237, %v294
      %v309 = vmul.f32 %v238, %v294
      %v310 = vmul.f32 %v239, %v294
      %v311 = vmul.f32 %v240, %v294
      %v312 = vmul.f32 %v241, %v294
      %v313 = vmul.f32 %v242, %v294
      %v314 = vmul.f32 %v243, %v294
      %v315 = vmul.f32 %v244, %v294
      %v316 = vmul.f32 %v245, %v294
      %v317 = vmul.f32 %v246, %v294
      %v318 = vmul.f32 %v247, %v294
      %v319 = vmul.f32 %v248, %v294
      %v320 = vmul.f32 %v249, %v294
      %v321 = vmul.f32 %v250, %v294
      %v322 = vmul.f32 %v251, %v294
      %v323 = vmul.f32 %v252, %v294
      %v324 = vmul.f32 %v253, %v294
      %v325 = vmul.f32 %v254, %v294
      %v326 = vmul.f32 %v255, %v294
      %v327 = vmul.f32 %v256, %v294
      %v328 = vmul.f32 %v257, %v294
      %v329 = vmul.f32 %v258, %v294
      %v330 = vmul.f32 %v259, %v294
      %v331 = vmul.f32 %v260, %v294
      %v332 = vmul.f32 %v261, %v294
      %v333 = vmul.f32 %v262, %v294
      %v334 = vmul.f32 %v263, %v294
      %v335 = vmul.f32 %v264, %v294
      %v336 = vmul.f32 %v265, %v294
      %v337 = vmul.f32 %v266, %v294
      %v338 = vmul.f32 %v267, %v294
      %v339 = vmul.f32 %v268, %v294
      %v340 = vmul.f32 %v269, %v294
      %v341 = vmul.f32 %v270, %v294
      %v342 = vmul.f32 %v271, %v294
      %v343 = vmul.f32 %v272, %v294
      %v344 = vmul.f32 %v273, %v294
      %v345 = vmul.f32 %v274, %v294
      %v346 = vmul.f32 %v275, %v294
      %v347 = vmul.f32 %v276, %v294
      %v348 = vmul.f32 %v277, %v294
      %v349 = vmul.f32 %v278, %v294
      %v350 = vmul.f32 %v279, %v294
      %v351 = vmul.f32 %v280, %v294
      %v352 = vmul.f32 %v281, %v294
      %v353 = vmul.f32 %v282, %v294
      %v354 = vmul.f32 %v283, %v294
      %v355 = vmul.f32 %v284, %v294
      %v356 = vmul.f32 %v285, %v294
      %v357 = vmul.f32 %v286, %v294
      %v358 = vmul.f32 %v287, %v294
      %v359 = vmul.f32 %v288, %v294
      %v360 = vld [vmem:[%s2] sm:$0x1]
      %v362 = vlaneseq
      %v363 = vshrl.u32 %v362, 7
      %v364 = vsub.s32 0, %v363
      %v365 = vrot.slane %v360, %v364
      %v367 = vadd.f32 %v296, %v365
      %v368 = vadd.f32 %v297, %v365
      %v369 = vadd.f32 %v298, %v365
      %v370 = vadd.f32 %v299, %v365
      %v371 = vadd.f32 %v300, %v365
      %v372 = vadd.f32 %v301, %v365
      %v373 = vadd.f32 %v302, %v365
      %v374 = vadd.f32 %v303, %v365
      %v375 = vadd.f32 %v304, %v365
      %v376 = vadd.f32 %v305, %v365
      %v377 = vadd.f32 %v306, %v365
      %v378 = vadd.f32 %v307, %v365
      %v379 = vadd.f32 %v308, %v365
      %v380 = vadd.f32 %v309, %v365
      %v381 = vadd.f32 %v310, %v365
      %v382 = vadd.f32 %v311, %v365
      %v383 = vadd.f32 %v312, %v365
      %v384 = vadd.f32 %v313, %v365
      %v385 = vadd.f32 %v314, %v365
      %v386 = vadd.f32 %v315, %v365
      %v387 = vadd.f32 %v316, %v365
      %v388 = vadd.f32 %v317, %v365
      %v389 = vadd.f32 %v318, %v365
      %v390 = vadd.f32 %v319, %v365
      %v391 = vadd.f32 %v320, %v365
      %v392 = vadd.f32 %v321, %v365
      %v393 = vadd.f32 %v322, %v365
      %v394 = vadd.f32 %v323, %v365
      %v395 = vadd.f32 %v324, %v365
      %v396 = vadd.f32 %v325, %v365
      %v397 = vadd.f32 %v326, %v365
      %v398 = vadd.f32 %v327, %v365
      %v399 = vadd.f32 %v328, %v365
      %v400 = vadd.f32 %v329, %v365
      %v401 = vadd.f32 %v330, %v365
      %v402 = vadd.f32 %v331, %v365
      %v403 = vadd.f32 %v332, %v365
      %v404 = vadd.f32 %v333, %v365
      %v405 = vadd.f32 %v334, %v365
      %v406 = vadd.f32 %v335, %v365
      %v407 = vadd.f32 %v336, %v365
      %v408 = vadd.f32 %v337, %v365
      %v409 = vadd.f32 %v338, %v365
      %v410 = vadd.f32 %v339, %v365
      %v411 = vadd.f32 %v340, %v365
      %v412 = vadd.f32 %v341, %v365
      %v413 = vadd.f32 %v342, %v365
      %v414 = vadd.f32 %v343, %v365
      %v415 = vadd.f32 %v344, %v365
      %v416 = vadd.f32 %v345, %v365
      %v417 = vadd.f32 %v346, %v365
      %v418 = vadd.f32 %v347, %v365
      %v419 = vadd.f32 %v348, %v365
      %v420 = vadd.f32 %v349, %v365
      %v421 = vadd.f32 %v350, %v365
      %v422 = vadd.f32 %v351, %v365
      %v423 = vadd.f32 %v352, %v365
      %v424 = vadd.f32 %v353, %v365
      %v425 = vadd.f32 %v354, %v365
      %v426 = vadd.f32 %v355, %v365
      %v427 = vadd.f32 %v356, %v365
      %v428 = vadd.f32 %v357, %v365
      %v429 = vadd.f32 %v358, %v365
      %v430 = vadd.f32 %v359, %v365
      %v431 = vmax.f32 %v367, 0.0
      %v432 = vmax.f32 %v368, 0.0
      %v433 = vmax.f32 %v369, 0.0
      %v434 = vmax.f32 %v370, 0.0
      %v435 = vmax.f32 %v371, 0.0
      %v436 = vmax.f32 %v372, 0.0
      %v437 = vmax.f32 %v373, 0.0
      %v438 = vmax.f32 %v374, 0.0
      %v439 = vmax.f32 %v375, 0.0
      %v440 = vmax.f32 %v376, 0.0
      %v441 = vmax.f32 %v377, 0.0
      %v442 = vmax.f32 %v378, 0.0
      %v443 = vmax.f32 %v379, 0.0
      %v444 = vmax.f32 %v380, 0.0
      %v445 = vmax.f32 %v381, 0.0
      %v446 = vmax.f32 %v382, 0.0
      %v447 = vmax.f32 %v383, 0.0
      %v448 = vmax.f32 %v384, 0.0
      %v449 = vmax.f32 %v385, 0.0
      %v450 = vmax.f32 %v386, 0.0
      %v451 = vmax.f32 %v387, 0.0
      %v452 = vmax.f32 %v388, 0.0
      %v453 = vmax.f32 %v389, 0.0
      %v454 = vmax.f32 %v390, 0.0
      %v455 = vmax.f32 %v391, 0.0
      %v456 = vmax.f32 %v392, 0.0
      %v457 = vmax.f32 %v393, 0.0
      %v458 = vmax.f32 %v394, 0.0
      %v459 = vmax.f32 %v395, 0.0
      %v460 = vmax.f32 %v396, 0.0
      %v461 = vmax.f32 %v397, 0.0
      %v462 = vmax.f32 %v398, 0.0
      %v463 = vmax.f32 %v399, 0.0
      %v464 = vmax.f32 %v400, 0.0
      %v465 = vmax.f32 %v401, 0.0
      %v466 = vmax.f32 %v402, 0.0
      %v467 = vmax.f32 %v403, 0.0
      %v468 = vmax.f32 %v404, 0.0
      %v469 = vmax.f32 %v405, 0.0
      %v470 = vmax.f32 %v406, 0.0
      %v471 = vmax.f32 %v407, 0.0
      %v472 = vmax.f32 %v408, 0.0
      %v473 = vmax.f32 %v409, 0.0
      %v474 = vmax.f32 %v410, 0.0
      %v475 = vmax.f32 %v411, 0.0
      %v476 = vmax.f32 %v412, 0.0
      %v477 = vmax.f32 %v413, 0.0
      %v478 = vmax.f32 %v414, 0.0
      %v479 = vmax.f32 %v415, 0.0
      %v480 = vmax.f32 %v416, 0.0
      %v481 = vmax.f32 %v417, 0.0
      %v482 = vmax.f32 %v418, 0.0
      %v483 = vmax.f32 %v419, 0.0
      %v484 = vmax.f32 %v420, 0.0
      %v485 = vmax.f32 %v421, 0.0
      %v486 = vmax.f32 %v422, 0.0
      %v487 = vmax.f32 %v423, 0.0
      %v488 = vmax.f32 %v424, 0.0
      %v489 = vmax.f32 %v425, 0.0
      %v490 = vmax.f32 %v426, 0.0
      %v491 = vmax.f32 %v427, 0.0
      %v492 = vmax.f32 %v428, 0.0
      %v493 = vmax.f32 %v429, 0.0
      %v494 = vmax.f32 %v430, 0.0
      %vm495 = vcmask 64512
      %496 = vst.msk [vmem:[#allocation2] sm:$0xff] %vm495, 0.0
      %vm497 = vcmask 58368
      %498 = vst.msk [vmem:[#allocation2 + $0x8] sm:$0x3] %vm497, 0.0
      %499 = vst.msk [vmem:[#allocation2 + $0x10] sm:$0xff] %vm495, 0.0
      %500 = vst.msk [vmem:[#allocation2 + $0x18] sm:$0x3] %vm497, 0.0
      %501 = vst.msk [vmem:[#allocation2 + $0x20] sm:$0xff] %vm495, 0.0
      %502 = vst.msk [vmem:[#allocation2 + $0x28] sm:$0x3] %vm497, 0.0
      %503 = vst.msk [vmem:[#allocation2 + $0x30] sm:$0xff] %vm495, 0.0
      %504 = vst.msk [vmem:[#allocation2 + $0x38] sm:$0x3] %vm497, 0.0
      %505 = vst.msk [vmem:[#allocation2 + $0x40] sm:$0xff] %vm495, 0.0
      %506 = vst.msk [vmem:[#allocation2 + $0x48] sm:$0x3] %vm497, 0.0
      %507 = vst.msk [vmem:[#allocation2 + $0x50] sm:$0xff] %vm495, 0.0
      %508 = vst.msk [vmem:[#allocation2 + $0x58] sm:$0x3] %vm497, 0.0
      %509 = vst.msk [vmem:[#allocation2 + $0x60] sm:$0xff] %vm495, 0.0
      %510 = vst.msk [vmem:[#allocation2 + $0x68] sm:$0x3] %vm497, 0.0
      %511 = vst.msk [vmem:[#allocation2 + $0x70] sm:$0xff] %vm495, 0.0
      %512 = vst.msk [vmem:[#allocation2 + $0x78] sm:$0x3] %vm497, 0.0
      %513 = vst.msk [vmem:[#allocation2 + $0x80] sm:$0xff] %vm495, 0.0
      %514 = vst.msk [vmem:[#allocation2 + $0x88] sm:$0x3] %vm497, 0.0
      %515 = vst.msk [vmem:[#allocation2 + $0x90] sm:$0xff] %vm495, 0.0
      %516 = vst.msk [vmem:[#allocation2 + $0x98] sm:$0x3] %vm497, 0.0
      %s517 = scalar_lea.vmem [#allocation2], 1440
      %518 = vst.msk [vmem:[%s517] sm:$0xff] %vm495, 0.0
      %519 = vst.msk [vmem:[%s517 + $0x8] sm:$0x3] %vm497, 0.0
      %520 = vst.msk [vmem:[%s517 + $0x10] sm:$0xff] %vm495, 0.0
      %521 = vst.msk [vmem:[%s517 + $0x18] sm:$0x3] %vm497, 0.0
      %522 = vst.msk [vmem:[%s517 + $0x20] sm:$0xff] %vm495, 0.0
      %523 = vst.msk [vmem:[%s517 + $0x28] sm:$0x3] %vm497, 0.0
      %524 = vst.msk [vmem:[%s517 + $0x30] sm:$0xff] %vm495, 0.0
      %525 = vst.msk [vmem:[%s517 + $0x38] sm:$0x3] %vm497, 0.0
      %526 = vst.msk [vmem:[%s517 + $0x40] sm:$0xff] %vm495, 0.0
      %527 = vst.msk [vmem:[%s517 + $0x48] sm:$0x3] %vm497, 0.0
      %528 = vst.msk [vmem:[%s517 + $0x50] sm:$0xff] %vm495, 0.0
      %529 = vst.msk [vmem:[%s517 + $0x58] sm:$0x3] %vm497, 0.0
      %530 = vst.msk [vmem:[%s517 + $0x60] sm:$0xff] %vm495, 0.0
      %531 = vst.msk [vmem:[%s517 + $0x68] sm:$0x3] %vm497, 0.0
      %532 = vst.msk [vmem:[%s517 + $0x70] sm:$0xff] %vm495, 0.0
      %533 = vst.msk [vmem:[%s517 + $0x78] sm:$0x3] %vm497, 0.0
      %534 = vst.msk [vmem:[%s517 + $0x80] sm:$0xff] %vm495, 0.0
      %535 = vst.msk [vmem:[%s517 + $0x88] sm:$0x3] %vm497, 0.0
      %536 = vst.msk [vmem:[%s517 + $0x90] sm:$0xff] %vm495, 0.0
      %537 = vst.msk [vmem:[%s517 + $0x98] sm:$0x3] %vm497, 0.0
      %538 = vst.msk [vmem:[#allocation2] sm:$0xff] %vm495, 0.0
      %539 = vst.msk [vmem:[#allocation2 + $0x8] sm:$0x3] %vm497, 0.0
      %540 = vst.msk [vmem:[#allocation2 + $0xa0] sm:$0xff] %vm495, 0.0
      %541 = vst.msk [vmem:[#allocation2 + $0xa8] sm:$0x3] %vm497, 0.0
      %542 = vst.msk [vmem:[#allocation2 + $0x140] sm:$0xff] %vm495, 0.0
      %543 = vst.msk [vmem:[#allocation2 + $0x148] sm:$0x3] %vm497, 0.0
      %544 = vst.msk [vmem:[#allocation2 + $0x1e0] sm:$0xff] %vm495, 0.0
      %545 = vst.msk [vmem:[#allocation2 + $0x1e8] sm:$0x3] %vm497, 0.0
      %546 = vst.msk [vmem:[#allocation2 + $0x280] sm:$0xff] %vm495, 0.0
      %547 = vst.msk [vmem:[#allocation2 + $0x288] sm:$0x3] %vm497, 0.0
      %548 = vst.msk [vmem:[#allocation2 + $0x320] sm:$0xff] %vm495, 0.0
      %549 = vst.msk [vmem:[#allocation2 + $0x328] sm:$0x3] %vm497, 0.0
      %550 = vst.msk [vmem:[#allocation2 + $0x3c0] sm:$0xff] %vm495, 0.0
      %551 = vst.msk [vmem:[#allocation2 + $0x3c8] sm:$0x3] %vm497, 0.0
      %552 = vst.msk [vmem:[#allocation2 + $0x460] sm:$0xff] %vm495, 0.0
      %553 = vst.msk [vmem:[#allocation2 + $0x468] sm:$0x3] %vm497, 0.0
      %554 = vst.msk [vmem:[#allocation2 + $0x500] sm:$0xff] %vm495, 0.0
      %555 = vst.msk [vmem:[#allocation2 + $0x508] sm:$0x3] %vm497, 0.0
      %556 = vst.msk [vmem:[#allocation2 + $0x5a0] sm:$0xff] %vm495, 0.0
      %557 = vst.msk [vmem:[#allocation2 + $0x5a8] sm:$0x3] %vm497, 0.0
      %s558 = scalar_lea.vmem [#allocation2], 144
      %559 = vst.msk [vmem:[%s558] sm:$0xff] %vm495, 0.0
      %560 = vst.msk [vmem:[%s558 + $0x8] sm:$0x3] %vm497, 0.0
      %561 = vst.msk [vmem:[%s558 + $0xa0] sm:$0xff] %vm495, 0.0
      %562 = vst.msk [vmem:[%s558 + $0xa8] sm:$0x3] %vm497, 0.0
      %563 = vst.msk [vmem:[%s558 + $0x140] sm:$0xff] %vm495, 0.0
      %564 = vst.msk [vmem:[%s558 + $0x148] sm:$0x3] %vm497, 0.0
      %565 = vst.msk [vmem:[%s558 + $0x1e0] sm:$0xff] %vm495, 0.0
      %566 = vst.msk [vmem:[%s558 + $0x1e8] sm:$0x3] %vm497, 0.0
      %567 = vst.msk [vmem:[%s558 + $0x280] sm:$0xff] %vm495, 0.0
      %568 = vst.msk [vmem:[%s558 + $0x288] sm:$0x3] %vm497, 0.0
      %569 = vst.msk [vmem:[%s558 + $0x320] sm:$0xff] %vm495, 0.0
      %570 = vst.msk [vmem:[%s558 + $0x328] sm:$0x3] %vm497, 0.0
      %571 = vst.msk [vmem:[%s558 + $0x3c0] sm:$0xff] %vm495, 0.0
      %572 = vst.msk [vmem:[%s558 + $0x3c8] sm:$0x3] %vm497, 0.0
      %573 = vst.msk [vmem:[%s558 + $0x460] sm:$0xff] %vm495, 0.0
      %574 = vst.msk [vmem:[%s558 + $0x468] sm:$0x3] %vm497, 0.0
      %575 = vst.msk [vmem:[%s558 + $0x500] sm:$0xff] %vm495, 0.0
      %576 = vst.msk [vmem:[%s558 + $0x508] sm:$0x3] %vm497, 0.0
      %577 = vst.msk [vmem:[%s558 + $0x5a0] sm:$0xff] %vm495, 0.0
      %578 = vst.msk [vmem:[%s558 + $0x5a8] sm:$0x3] %vm497, 0.0
      %vm579 = vcmask 57344
      %580 = vst.msk [vmem:[#allocation2] sm:$0x1] %vm579, 0.0
      %581 = vst.msk [vmem:[#allocation2 + $0x10] sm:$0x1] %vm579, 0.0
      %582 = vst.msk [vmem:[#allocation2 + $0x20] sm:$0x1] %vm579, 0.0
      %583 = vst.msk [vmem:[#allocation2 + $0x30] sm:$0x1] %vm579, 0.0
      %584 = vst.msk [vmem:[#allocation2 + $0x40] sm:$0x1] %vm579, 0.0
      %585 = vst.msk [vmem:[#allocation2 + $0x50] sm:$0x1] %vm579, 0.0
      %586 = vst.msk [vmem:[#allocation2 + $0x60] sm:$0x1] %vm579, 0.0
      %587 = vst.msk [vmem:[#allocation2 + $0x70] sm:$0x1] %vm579, 0.0
      %588 = vst.msk [vmem:[#allocation2 + $0x80] sm:$0x1] %vm579, 0.0
      %589 = vst.msk [vmem:[#allocation2 + $0x90] sm:$0x1] %vm579, 0.0
      %590 = vst.msk [vmem:[#allocation2 + $0xa0] sm:$0x1] %vm579, 0.0
      %591 = vst.msk [vmem:[#allocation2 + $0xb0] sm:$0x1] %vm579, 0.0
      %592 = vst.msk [vmem:[#allocation2 + $0xc0] sm:$0x1] %vm579, 0.0
      %593 = vst.msk [vmem:[#allocation2 + $0xd0] sm:$0x1] %vm579, 0.0
      %594 = vst.msk [vmem:[#allocation2 + $0xe0] sm:$0x1] %vm579, 0.0
      %595 = vst.msk [vmem:[#allocation2 + $0xf0] sm:$0x1] %vm579, 0.0
      %596 = vst.msk [vmem:[#allocation2 + $0x100] sm:$0x1] %vm579, 0.0
      %597 = vst.msk [vmem:[#allocation2 + $0x110] sm:$0x1] %vm579, 0.0
      %598 = vst.msk [vmem:[#allocation2 + $0x120] sm:$0x1] %vm579, 0.0
      %599 = vst.msk [vmem:[#allocation2 + $0x130] sm:$0x1] %vm579, 0.0
      %600 = vst.msk [vmem:[#allocation2 + $0x140] sm:$0x1] %vm579, 0.0
      %601 = vst.msk [vmem:[#allocation2 + $0x150] sm:$0x1] %vm579, 0.0
      %602 = vst.msk [vmem:[#allocation2 + $0x160] sm:$0x1] %vm579, 0.0
      %603 = vst.msk [vmem:[#allocation2 + $0x170] sm:$0x1] %vm579, 0.0
      %604 = vst.msk [vmem:[#allocation2 + $0x180] sm:$0x1] %vm579, 0.0
      %605 = vst.msk [vmem:[#allocation2 + $0x190] sm:$0x1] %vm579, 0.0
      %606 = vst.msk [vmem:[#allocation2 + $0x1a0] sm:$0x1] %vm579, 0.0
      %607 = vst.msk [vmem:[#allocation2 + $0x1b0] sm:$0x1] %vm579, 0.0
      %608 = vst.msk [vmem:[#allocation2 + $0x1c0] sm:$0x1] %vm579, 0.0
      %609 = vst.msk [vmem:[#allocation2 + $0x1d0] sm:$0x1] %vm579, 0.0
      %610 = vst.msk [vmem:[#allocation2 + $0x1e0] sm:$0x1] %vm579, 0.0
      %611 = vst.msk [vmem:[#allocation2 + $0x1f0] sm:$0x1] %vm579, 0.0
      %612 = vst.msk [vmem:[#allocation2 + $0x200] sm:$0x1] %vm579, 0.0
      %613 = vst.msk [vmem:[#allocation2 + $0x210] sm:$0x1] %vm579, 0.0
      %614 = vst.msk [vmem:[#allocation2 + $0x220] sm:$0x1] %vm579, 0.0
      %615 = vst.msk [vmem:[#allocation2 + $0x230] sm:$0x1] %vm579, 0.0
      %616 = vst.msk [vmem:[#allocation2 + $0x240] sm:$0x1] %vm579, 0.0
      %617 = vst.msk [vmem:[#allocation2 + $0x250] sm:$0x1] %vm579, 0.0
      %618 = vst.msk [vmem:[#allocation2 + $0x260] sm:$0x1] %vm579, 0.0
      %619 = vst.msk [vmem:[#allocation2 + $0x270] sm:$0x1] %vm579, 0.0
      %620 = vst.msk [vmem:[#allocation2 + $0x280] sm:$0x1] %vm579, 0.0
      %621 = vst.msk [vmem:[#allocation2 + $0x290] sm:$0x1] %vm579, 0.0
      %622 = vst.msk [vmem:[#allocation2 + $0x2a0] sm:$0x1] %vm579, 0.0
      %623 = vst.msk [vmem:[#allocation2 + $0x2b0] sm:$0x1] %vm579, 0.0
      %624 = vst.msk [vmem:[#allocation2 + $0x2c0] sm:$0x1] %vm579, 0.0
      %625 = vst.msk [vmem:[#allocation2 + $0x2d0] sm:$0x1] %vm579, 0.0
      %626 = vst.msk [vmem:[#allocation2 + $0x2e0] sm:$0x1] %vm579, 0.0
      %627 = vst.msk [vmem:[#allocation2 + $0x2f0] sm:$0x1] %vm579, 0.0
      %628 = vst.msk [vmem:[#allocation2 + $0x300] sm:$0x1] %vm579, 0.0
      %629 = vst.msk [vmem:[#allocation2 + $0x310] sm:$0x1] %vm579, 0.0
      %630 = vst.msk [vmem:[#allocation2 + $0x320] sm:$0x1] %vm579, 0.0
      %631 = vst.msk [vmem:[#allocation2 + $0x330] sm:$0x1] %vm579, 0.0
      %632 = vst.msk [vmem:[#allocation2 + $0x340] sm:$0x1] %vm579, 0.0
      %633 = vst.msk [vmem:[#allocation2 + $0x350] sm:$0x1] %vm579, 0.0
      %634 = vst.msk [vmem:[#allocation2 + $0x360] sm:$0x1] %vm579, 0.0
      %635 = vst.msk [vmem:[#allocation2 + $0x370] sm:$0x1] %vm579, 0.0
      %636 = vst.msk [vmem:[#allocation2 + $0x380] sm:$0x1] %vm579, 0.0
      %637 = vst.msk [vmem:[#allocation2 + $0x390] sm:$0x1] %vm579, 0.0
      %638 = vst.msk [vmem:[#allocation2 + $0x3a0] sm:$0x1] %vm579, 0.0
      %639 = vst.msk [vmem:[#allocation2 + $0x3b0] sm:$0x1] %vm579, 0.0
      %640 = vst.msk [vmem:[#allocation2 + $0x3c0] sm:$0x1] %vm579, 0.0
      %641 = vst.msk [vmem:[#allocation2 + $0x3d0] sm:$0x1] %vm579, 0.0
      %642 = vst.msk [vmem:[#allocation2 + $0x3e0] sm:$0x1] %vm579, 0.0
      %643 = vst.msk [vmem:[#allocation2 + $0x3f0] sm:$0x1] %vm579, 0.0
      %644 = vst.msk [vmem:[#allocation2 + $0x400] sm:$0x1] %vm579, 0.0
      %645 = vst.msk [vmem:[#allocation2 + $0x410] sm:$0x1] %vm579, 0.0
      %646 = vst.msk [vmem:[#allocation2 + $0x420] sm:$0x1] %vm579, 0.0
      %647 = vst.msk [vmem:[#allocation2 + $0x430] sm:$0x1] %vm579, 0.0
      %648 = vst.msk [vmem:[#allocation2 + $0x440] sm:$0x1] %vm579, 0.0
      %649 = vst.msk [vmem:[#allocation2 + $0x450] sm:$0x1] %vm579, 0.0
      %650 = vst.msk [vmem:[#allocation2 + $0x460] sm:$0x1] %vm579, 0.0
      %651 = vst.msk [vmem:[#allocation2 + $0x470] sm:$0x1] %vm579, 0.0
      %652 = vst.msk [vmem:[#allocation2 + $0x480] sm:$0x1] %vm579, 0.0
      %653 = vst.msk [vmem:[#allocation2 + $0x490] sm:$0x1] %vm579, 0.0
      %654 = vst.msk [vmem:[#allocation2 + $0x4a0] sm:$0x1] %vm579, 0.0
      %655 = vst.msk [vmem:[#allocation2 + $0x4b0] sm:$0x1] %vm579, 0.0
      %656 = vst.msk [vmem:[#allocation2 + $0x4c0] sm:$0x1] %vm579, 0.0
      %657 = vst.msk [vmem:[#allocation2 + $0x4d0] sm:$0x1] %vm579, 0.0
      %658 = vst.msk [vmem:[#allocation2 + $0x4e0] sm:$0x1] %vm579, 0.0
      %659 = vst.msk [vmem:[#allocation2 + $0x4f0] sm:$0x1] %vm579, 0.0
      %660 = vst.msk [vmem:[#allocation2 + $0x500] sm:$0x1] %vm579, 0.0
      %661 = vst.msk [vmem:[#allocation2 + $0x510] sm:$0x1] %vm579, 0.0
      %662 = vst.msk [vmem:[#allocation2 + $0x520] sm:$0x1] %vm579, 0.0
      %663 = vst.msk [vmem:[#allocation2 + $0x530] sm:$0x1] %vm579, 0.0
      %664 = vst.msk [vmem:[#allocation2 + $0x540] sm:$0x1] %vm579, 0.0
      %665 = vst.msk [vmem:[#allocation2 + $0x550] sm:$0x1] %vm579, 0.0
      %666 = vst.msk [vmem:[#allocation2 + $0x560] sm:$0x1] %vm579, 0.0
      %667 = vst.msk [vmem:[#allocation2 + $0x570] sm:$0x1] %vm579, 0.0
      %668 = vst.msk [vmem:[#allocation2 + $0x580] sm:$0x1] %vm579, 0.0
      %669 = vst.msk [vmem:[#allocation2 + $0x590] sm:$0x1] %vm579, 0.0
      %670 = vst.msk [vmem:[#allocation2 + $0x5a0] sm:$0x1] %vm579, 0.0
      %671 = vst.msk [vmem:[#allocation2 + $0x5b0] sm:$0x1] %vm579, 0.0
      %672 = vst.msk [vmem:[#allocation2 + $0x5c0] sm:$0x1] %vm579, 0.0
      %673 = vst.msk [vmem:[#allocation2 + $0x5d0] sm:$0x1] %vm579, 0.0
      %674 = vst.msk [vmem:[#allocation2 + $0x5e0] sm:$0x1] %vm579, 0.0
      %675 = vst.msk [vmem:[#allocation2 + $0x5f0] sm:$0x1] %vm579, 0.0
      %676 = vst.msk [vmem:[#allocation2 + $0x600] sm:$0x1] %vm579, 0.0
      %677 = vst.msk [vmem:[#allocation2 + $0x610] sm:$0x1] %vm579, 0.0
      %678 = vst.msk [vmem:[#allocation2 + $0x620] sm:$0x1] %vm579, 0.0
      %679 = vst.msk [vmem:[#allocation2 + $0x630] sm:$0x1] %vm579, 0.0
      %680 = vst.msk [vmem:[#allocation2 + $0x9] sm:$0x1] %vm579, 0.0
      %681 = vst.msk [vmem:[#allocation2 + $0x19] sm:$0x1] %vm579, 0.0
      %682 = vst.msk [vmem:[#allocation2 + $0x29] sm:$0x1] %vm579, 0.0
      %683 = vst.msk [vmem:[#allocation2 + $0x39] sm:$0x1] %vm579, 0.0
      %684 = vst.msk [vmem:[#allocation2 + $0x49] sm:$0x1] %vm579, 0.0
      %685 = vst.msk [vmem:[#allocation2 + $0x59] sm:$0x1] %vm579, 0.0
      %686 = vst.msk [vmem:[#allocation2 + $0x69] sm:$0x1] %vm579, 0.0
      %687 = vst.msk [vmem:[#allocation2 + $0x79] sm:$0x1] %vm579, 0.0
      %688 = vst.msk [vmem:[#allocation2 + $0x89] sm:$0x1] %vm579, 0.0
      %689 = vst.msk [vmem:[#allocation2 + $0x99] sm:$0x1] %vm579, 0.0
      %690 = vst.msk [vmem:[#allocation2 + $0xa9] sm:$0x1] %vm579, 0.0
      %691 = vst.msk [vmem:[#allocation2 + $0xb9] sm:$0x1] %vm579, 0.0
      %692 = vst.msk [vmem:[#allocation2 + $0xc9] sm:$0x1] %vm579, 0.0
      %693 = vst.msk [vmem:[#allocation2 + $0xd9] sm:$0x1] %vm579, 0.0
      %694 = vst.msk [vmem:[#allocation2 + $0xe9] sm:$0x1] %vm579, 0.0
      %695 = vst.msk [vmem:[#allocation2 + $0xf9] sm:$0x1] %vm579, 0.0
      %696 = vst.msk [vmem:[#allocation2 + $0x109] sm:$0x1] %vm579, 0.0
      %697 = vst.msk [vmem:[#allocation2 + $0x119] sm:$0x1] %vm579, 0.0
      %698 = vst.msk [vmem:[#allocation2 + $0x129] sm:$0x1] %vm579, 0.0
      %699 = vst.msk [vmem:[#allocation2 + $0x139] sm:$0x1] %vm579, 0.0
      %700 = vst.msk [vmem:[#allocation2 + $0x149] sm:$0x1] %vm579, 0.0
      %701 = vst.msk [vmem:[#allocation2 + $0x159] sm:$0x1] %vm579, 0.0
      %702 = vst.msk [vmem:[#allocation2 + $0x169] sm:$0x1] %vm579, 0.0
      %703 = vst.msk [vmem:[#allocation2 + $0x179] sm:$0x1] %vm579, 0.0
      %704 = vst.msk [vmem:[#allocation2 + $0x189] sm:$0x1] %vm579, 0.0
      %705 = vst.msk [vmem:[#allocation2 + $0x199] sm:$0x1] %vm579, 0.0
      %706 = vst.msk [vmem:[#allocation2 + $0x1a9] sm:$0x1] %vm579, 0.0
      %707 = vst.msk [vmem:[#allocation2 + $0x1b9] sm:$0x1] %vm579, 0.0
      %708 = vst.msk [vmem:[#allocation2 + $0x1c9] sm:$0x1] %vm579, 0.0
      %709 = vst.msk [vmem:[#allocation2 + $0x1d9] sm:$0x1] %vm579, 0.0
      %710 = vst.msk [vmem:[#allocation2 + $0x1e9] sm:$0x1] %vm579, 0.0
      %711 = vst.msk [vmem:[#allocation2 + $0x1f9] sm:$0x1] %vm579, 0.0
      %712 = vst.msk [vmem:[#allocation2 + $0x209] sm:$0x1] %vm579, 0.0
      %713 = vst.msk [vmem:[#allocation2 + $0x219] sm:$0x1] %vm579, 0.0
      %714 = vst.msk [vmem:[#allocation2 + $0x229] sm:$0x1] %vm579, 0.0
      %715 = vst.msk [vmem:[#allocation2 + $0x239] sm:$0x1] %vm579, 0.0
      %716 = vst.msk [vmem:[#allocation2 + $0x249] sm:$0x1] %vm579, 0.0
      %717 = vst.msk [vmem:[#allocation2 + $0x259] sm:$0x1] %vm579, 0.0
      %718 = vst.msk [vmem:[#allocation2 + $0x269] sm:$0x1] %vm579, 0.0
      %719 = vst.msk [vmem:[#allocation2 + $0x279] sm:$0x1] %vm579, 0.0
      %720 = vst.msk [vmem:[#allocation2 + $0x289] sm:$0x1] %vm579, 0.0
      %721 = vst.msk [vmem:[#allocation2 + $0x299] sm:$0x1] %vm579, 0.0
      %722 = vst.msk [vmem:[#allocation2 + $0x2a9] sm:$0x1] %vm579, 0.0
      %723 = vst.msk [vmem:[#allocation2 + $0x2b9] sm:$0x1] %vm579, 0.0
      %724 = vst.msk [vmem:[#allocation2 + $0x2c9] sm:$0x1] %vm579, 0.0
      %725 = vst.msk [vmem:[#allocation2 + $0x2d9] sm:$0x1] %vm579, 0.0
      %726 = vst.msk [vmem:[#allocation2 + $0x2e9] sm:$0x1] %vm579, 0.0
      %727 = vst.msk [vmem:[#allocation2 + $0x2f9] sm:$0x1] %vm579, 0.0
      %728 = vst.msk [vmem:[#allocation2 + $0x309] sm:$0x1] %vm579, 0.0
      %729 = vst.msk [vmem:[#allocation2 + $0x319] sm:$0x1] %vm579, 0.0
      %730 = vst.msk [vmem:[#allocation2 + $0x329] sm:$0x1] %vm579, 0.0
      %731 = vst.msk [vmem:[#allocation2 + $0x339] sm:$0x1] %vm579, 0.0
      %732 = vst.msk [vmem:[#allocation2 + $0x349] sm:$0x1] %vm579, 0.0
      %733 = vst.msk [vmem:[#allocation2 + $0x359] sm:$0x1] %vm579, 0.0
      %734 = vst.msk [vmem:[#allocation2 + $0x369] sm:$0x1] %vm579, 0.0
      %735 = vst.msk [vmem:[#allocation2 + $0x379] sm:$0x1] %vm579, 0.0
      %736 = vst.msk [vmem:[#allocation2 + $0x389] sm:$0x1] %vm579, 0.0
      %737 = vst.msk [vmem:[#allocation2 + $0x399] sm:$0x1] %vm579, 0.0
      %738 = vst.msk [vmem:[#allocation2 + $0x3a9] sm:$0x1] %vm579, 0.0
      %739 = vst.msk [vmem:[#allocation2 + $0x3b9] sm:$0x1] %vm579, 0.0
      %740 = vst.msk [vmem:[#allocation2 + $0x3c9] sm:$0x1] %vm579, 0.0
      %741 = vst.msk [vmem:[#allocation2 + $0x3d9] sm:$0x1] %vm579, 0.0
      %742 = vst.msk [vmem:[#allocation2 + $0x3e9] sm:$0x1] %vm579, 0.0
      %743 = vst.msk [vmem:[#allocation2 + $0x3f9] sm:$0x1] %vm579, 0.0
      %744 = vst.msk [vmem:[#allocation2 + $0x409] sm:$0x1] %vm579, 0.0
      %745 = vst.msk [vmem:[#allocation2 + $0x419] sm:$0x1] %vm579, 0.0
      %746 = vst.msk [vmem:[#allocation2 + $0x429] sm:$0x1] %vm579, 0.0
      %747 = vst.msk [vmem:[#allocation2 + $0x439] sm:$0x1] %vm579, 0.0
      %748 = vst.msk [vmem:[#allocation2 + $0x449] sm:$0x1] %vm579, 0.0
      %749 = vst.msk [vmem:[#allocation2 + $0x459] sm:$0x1] %vm579, 0.0
      %750 = vst.msk [vmem:[#allocation2 + $0x469] sm:$0x1] %vm579, 0.0
      %751 = vst.msk [vmem:[#allocation2 + $0x479] sm:$0x1] %vm579, 0.0
      %752 = vst.msk [vmem:[#allocation2 + $0x489] sm:$0x1] %vm579, 0.0
      %753 = vst.msk [vmem:[#allocation2 + $0x499] sm:$0x1] %vm579, 0.0
      %754 = vst.msk [vmem:[#allocation2 + $0x4a9] sm:$0x1] %vm579, 0.0
      %755 = vst.msk [vmem:[#allocation2 + $0x4b9] sm:$0x1] %vm579, 0.0
      %756 = vst.msk [vmem:[#allocation2 + $0x4c9] sm:$0x1] %vm579, 0.0
      %757 = vst.msk [vmem:[#allocation2 + $0x4d9] sm:$0x1] %vm579, 0.0
      %758 = vst.msk [vmem:[#allocation2 + $0x4e9] sm:$0x1] %vm579, 0.0
      %759 = vst.msk [vmem:[#allocation2 + $0x4f9] sm:$0x1] %vm579, 0.0
      %760 = vst.msk [vmem:[#allocation2 + $0x509] sm:$0x1] %vm579, 0.0
      %761 = vst.msk [vmem:[#allocation2 + $0x519] sm:$0x1] %vm579, 0.0
      %762 = vst.msk [vmem:[#allocation2 + $0x529] sm:$0x1] %vm579, 0.0
      %763 = vst.msk [vmem:[#allocation2 + $0x539] sm:$0x1] %vm579, 0.0
      %764 = vst.msk [vmem:[#allocation2 + $0x549] sm:$0x1] %vm579, 0.0
      %765 = vst.msk [vmem:[#allocation2 + $0x559] sm:$0x1] %vm579, 0.0
      %766 = vst.msk [vmem:[#allocation2 + $0x569] sm:$0x1] %vm579, 0.0
      %767 = vst.msk [vmem:[#allocation2 + $0x579] sm:$0x1] %vm579, 0.0
      %768 = vst.msk [vmem:[#allocation2 + $0x589] sm:$0x1] %vm579, 0.0
      %769 = vst.msk [vmem:[#allocation2 + $0x599] sm:$0x1] %vm579, 0.0
      %770 = vst.msk [vmem:[#allocation2 + $0x5a9] sm:$0x1] %vm579, 0.0
      %771 = vst.msk [vmem:[#allocation2 + $0x5b9] sm:$0x1] %vm579, 0.0
      %772 = vst.msk [vmem:[#allocation2 + $0x5c9] sm:$0x1] %vm579, 0.0
      %773 = vst.msk [vmem:[#allocation2 + $0x5d9] sm:$0x1] %vm579, 0.0
      %774 = vst.msk [vmem:[#allocation2 + $0x5e9] sm:$0x1] %vm579, 0.0
      %775 = vst.msk [vmem:[#allocation2 + $0x5f9] sm:$0x1] %vm579, 0.0
      %776 = vst.msk [vmem:[#allocation2 + $0x609] sm:$0x1] %vm579, 0.0
      %777 = vst.msk [vmem:[#allocation2 + $0x619] sm:$0x1] %vm579, 0.0
      %778 = vst.msk [vmem:[#allocation2 + $0x629] sm:$0x1] %vm579, 0.0
      %779 = vst.msk [vmem:[#allocation2 + $0x639] sm:$0x1] %vm579, 0.0
      %s780 = scalar_lea.vmem [#allocation2], 176
      %781 = vst.msk [vmem:[%s780 + $0x1] sm:$0xff] %vm495, %v431
      %782 = vst.msk [vmem:[%s780 + $0x11] sm:$0xff] %vm495, %v432
      %783 = vst.msk [vmem:[%s780 + $0x21] sm:$0xff] %vm495, %v433
      %784 = vst.msk [vmem:[%s780 + $0x31] sm:$0xff] %vm495, %v434
      %785 = vst.msk [vmem:[%s780 + $0x41] sm:$0xff] %vm495, %v435
      %786 = vst.msk [vmem:[%s780 + $0x51] sm:$0xff] %vm495, %v436
      %787 = vst.msk [vmem:[%s780 + $0x61] sm:$0xff] %vm495, %v437
      %788 = vst.msk [vmem:[%s780 + $0x71] sm:$0xff] %vm495, %v438
      %789 = vst.msk [vmem:[%s780 + $0xa1] sm:$0xff] %vm495, %v439
      %790 = vst.msk [vmem:[%s780 + $0xb1] sm:$0xff] %vm495, %v440
      %791 = vst.msk [vmem:[%s780 + $0xc1] sm:$0xff] %vm495, %v441
      %792 = vst.msk [vmem:[%s780 + $0xd1] sm:$0xff] %vm495, %v442
      %793 = vst.msk [vmem:[%s780 + $0xe1] sm:$0xff] %vm495, %v443
      %794 = vst.msk [vmem:[%s780 + $0xf1] sm:$0xff] %vm495, %v444
      %795 = vst.msk [vmem:[%s780 + $0x101] sm:$0xff] %vm495, %v445
      %796 = vst.msk [vmem:[%s780 + $0x111] sm:$0xff] %vm495, %v446
      %797 = vst.msk [vmem:[%s780 + $0x141] sm:$0xff] %vm495, %v447
      %798 = vst.msk [vmem:[%s780 + $0x151] sm:$0xff] %vm495, %v448
      %799 = vst.msk [vmem:[%s780 + $0x161] sm:$0xff] %vm495, %v449
      %800 = vst.msk [vmem:[%s780 + $0x171] sm:$0xff] %vm495, %v450
      %801 = vst.msk [vmem:[%s780 + $0x181] sm:$0xff] %vm495, %v451
      %802 = vst.msk [vmem:[%s780 + $0x191] sm:$0xff] %vm495, %v452
      %803 = vst.msk [vmem:[%s780 + $0x1a1] sm:$0xff] %vm495, %v453
      %804 = vst.msk [vmem:[%s780 + $0x1b1] sm:$0xff] %vm495, %v454
      %805 = vst.msk [vmem:[%s780 + $0x1e1] sm:$0xff] %vm495, %v455
      %806 = vst.msk [vmem:[%s780 + $0x1f1] sm:$0xff] %vm495, %v456
      %807 = vst.msk [vmem:[%s780 + $0x201] sm:$0xff] %vm495, %v457
      %808 = vst.msk [vmem:[%s780 + $0x211] sm:$0xff] %vm495, %v458
      %809 = vst.msk [vmem:[%s780 + $0x221] sm:$0xff] %vm495, %v459
      %810 = vst.msk [vmem:[%s780 + $0x231] sm:$0xff] %vm495, %v460
      %811 = vst.msk [vmem:[%s780 + $0x241] sm:$0xff] %vm495, %v461
      %812 = vst.msk [vmem:[%s780 + $0x251] sm:$0xff] %vm495, %v462
      %813 = vst.msk [vmem:[%s780 + $0x281] sm:$0xff] %vm495, %v463
      %814 = vst.msk [vmem:[%s780 + $0x291] sm:$0xff] %vm495, %v464
      %815 = vst.msk [vmem:[%s780 + $0x2a1] sm:$0xff] %vm495, %v465
      %816 = vst.msk [vmem:[%s780 + $0x2b1] sm:$0xff] %vm495, %v466
      %817 = vst.msk [vmem:[%s780 + $0x2c1] sm:$0xff] %vm495, %v467
      %818 = vst.msk [vmem:[%s780 + $0x2d1] sm:$0xff] %vm495, %v468
      %819 = vst.msk [vmem:[%s780 + $0x2e1] sm:$0xff] %vm495, %v469
      %820 = vst.msk [vmem:[%s780 + $0x2f1] sm:$0xff] %vm495, %v470
      %821 = vst.msk [vmem:[%s780 + $0x321] sm:$0xff] %vm495, %v471
      %822 = vst.msk [vmem:[%s780 + $0x331] sm:$0xff] %vm495, %v472
      %823 = vst.msk [vmem:[%s780 + $0x341] sm:$0xff] %vm495, %v473
      %824 = vst.msk [vmem:[%s780 + $0x351] sm:$0xff] %vm495, %v474
      %825 = vst.msk [vmem:[%s780 + $0x361] sm:$0xff] %vm495, %v475
      %826 = vst.msk [vmem:[%s780 + $0x371] sm:$0xff] %vm495, %v476
      %827 = vst.msk [vmem:[%s780 + $0x381] sm:$0xff] %vm495, %v477
      %828 = vst.msk [vmem:[%s780 + $0x391] sm:$0xff] %vm495, %v478
      %829 = vst.msk [vmem:[%s780 + $0x3c1] sm:$0xff] %vm495, %v479
      %830 = vst.msk [vmem:[%s780 + $0x3d1] sm:$0xff] %vm495, %v480
      %831 = vst.msk [vmem:[%s780 + $0x3e1] sm:$0xff] %vm495, %v481
      %832 = vst.msk [vmem:[%s780 + $0x3f1] sm:$0xff] %vm495, %v482
      %833 = vst.msk [vmem:[%s780 + $0x401] sm:$0xff] %vm495, %v483
      %834 = vst.msk [vmem:[%s780 + $0x411] sm:$0xff] %vm495, %v484
      %835 = vst.msk [vmem:[%s780 + $0x421] sm:$0xff] %vm495, %v485
      %836 = vst.msk [vmem:[%s780 + $0x431] sm:$0xff] %vm495, %v486
      %837 = vst.msk [vmem:[%s780 + $0x461] sm:$0xff] %vm495, %v487
      %838 = vst.msk [vmem:[%s780 + $0x471] sm:$0xff] %vm495, %v488
      %839 = vst.msk [vmem:[%s780 + $0x481] sm:$0xff] %vm495, %v489
      %840 = vst.msk [vmem:[%s780 + $0x491] sm:$0xff] %vm495, %v490
      %841 = vst.msk [vmem:[%s780 + $0x4a1] sm:$0xff] %vm495, %v491
      %842 = vst.msk [vmem:[%s780 + $0x4b1] sm:$0xff] %vm495, %v492
      %843 = vst.msk [vmem:[%s780 + $0x4c1] sm:$0xff] %vm495, %v493
      %844 = vst.msk [vmem:[%s780 + $0x4d1] sm:$0xff] %vm495, %v494
      %v845 = vld [vmem:[#allocation2] sm:$0xff]
      %v846 = vld [vmem:[#allocation2 + $0x10] sm:$0xff]
      %v847 = vld [vmem:[#allocation2 + $0x20] sm:$0xff]
      %v848 = vld [vmem:[#allocation2 + $0x30] sm:$0xff]
      %v849 = vld [vmem:[#allocation2 + $0x40] sm:$0xff]
      %v850 = vld [vmem:[#allocation2 + $0x50] sm:$0xff]
      %v851 = vld [vmem:[#allocation2 + $0x60] sm:$0xff]
      %v852 = vld [vmem:[#allocation2 + $0x70] sm:$0xff]
      %v853 = vld [vmem:[#allocation2 + $0xa0] sm:$0xff]
      %v854 = vld [vmem:[#allocation2 + $0xb0] sm:$0xff]
      %v855 = vld [vmem:[#allocation2 + $0xc0] sm:$0xff]
      %v856 = vld [vmem:[#allocation2 + $0xd0] sm:$0xff]
      %v857 = vld [vmem:[#allocation2 + $0xe0] sm:$0xff]
      %v858 = vld [vmem:[#allocation2 + $0xf0] sm:$0xff]
      %v859 = vld [vmem:[#allocation2 + $0x100] sm:$0xff]
      %v860 = vld [vmem:[#allocation2 + $0x110] sm:$0xff]
      %v861 = vld [vmem:[#allocation2 + $0x140] sm:$0xff]
      %v862 = vld [vmem:[#allocation2 + $0x150] sm:$0xff]
      %v863 = vld [vmem:[#allocation2 + $0x160] sm:$0xff]
      %v864 = vld [vmem:[#allocation2 + $0x170] sm:$0xff]
      %v865 = vld [vmem:[#allocation2 + $0x180] sm:$0xff]
      %v866 = vld [vmem:[#allocation2 + $0x190] sm:$0xff]
      %v867 = vld [vmem:[#allocation2 + $0x1a0] sm:$0xff]
      %v868 = vld [vmem:[#allocation2 + $0x1b0] sm:$0xff]
      %v869 = vld [vmem:[#allocation2 + $0x1e0] sm:$0xff]
      %v870 = vld [vmem:[#allocation2 + $0x1f0] sm:$0xff]
      %v871 = vld [vmem:[#allocation2 + $0x200] sm:$0xff]
      %v872 = vld [vmem:[#allocation2 + $0x210] sm:$0xff]
      %v873 = vld [vmem:[#allocation2 + $0x220] sm:$0xff]
      %v874 = vld [vmem:[#allocation2 + $0x230] sm:$0xff]
      %v875 = vld [vmem:[#allocation2 + $0x240] sm:$0xff]
      %v876 = vld [vmem:[#allocation2 + $0x250] sm:$0xff]
      %v877 = vld [vmem:[#allocation2 + $0x280] sm:$0xff]
      %v878 = vld [vmem:[#allocation2 + $0x290] sm:$0xff]
      %v879 = vld [vmem:[#allocation2 + $0x2a0] sm:$0xff]
      %v880 = vld [vmem:[#allocation2 + $0x2b0] sm:$0xff]
      %v881 = vld [vmem:[#allocation2 + $0x2c0] sm:$0xff]
      %v882 = vld [vmem:[#allocation2 + $0x2d0] sm:$0xff]
      %v883 = vld [vmem:[#allocation2 + $0x2e0] sm:$0xff]
      %v884 = vld [vmem:[#allocation2 + $0x2f0] sm:$0xff]
      %v885 = vld [vmem:[#allocation2 + $0x320] sm:$0xff]
      %v886 = vld [vmem:[#allocation2 + $0x330] sm:$0xff]
      %v887 = vld [vmem:[#allocation2 + $0x340] sm:$0xff]
      %v888 = vld [vmem:[#allocation2 + $0x350] sm:$0xff]
      %v889 = vld [vmem:[#allocation2 + $0x360] sm:$0xff]
      %v890 = vld [vmem:[#allocation2 + $0x370] sm:$0xff]
      %v891 = vld [vmem:[#allocation2 + $0x380] sm:$0xff]
      %v892 = vld [vmem:[#allocation2 + $0x390] sm:$0xff]
      %v893 = vld [vmem:[#allocation2 + $0x3c0] sm:$0xff]
      %v894 = vld [vmem:[#allocation2 + $0x3d0] sm:$0xff]
      %v895 = vld [vmem:[#allocation2 + $0x3e0] sm:$0xff]
      %v896 = vld [vmem:[#allocation2 + $0x3f0] sm:$0xff]
      %v897 = vld [vmem:[#allocation2 + $0x400] sm:$0xff]
      %v898 = vld [vmem:[#allocation2 + $0x410] sm:$0xff]
      %v899 = vld [vmem:[#allocation2 + $0x420] sm:$0xff]
      %v900 = vld [vmem:[#allocation2 + $0x430] sm:$0xff]
      %v901 = vld [vmem:[#allocation2 + $0x460] sm:$0xff]
      %v902 = vld [vmem:[#allocation2 + $0x470] sm:$0xff]
      %v903 = vld [vmem:[#allocation2 + $0x480] sm:$0xff]
      %v904 = vld [vmem:[#allocation2 + $0x490] sm:$0xff]
      %v905 = vld [vmem:[#allocation2 + $0x4a0] sm:$0xff]
      %v906 = vld [vmem:[#allocation2 + $0x4b0] sm:$0xff]
      %v907 = vld [vmem:[#allocation2 + $0x4c0] sm:$0xff]
      %v908 = vld [vmem:[#allocation2 + $0x4d0] sm:$0xff]
      %v909 = vld [vmem:[#allocation2 + $0x500] sm:$0xff]
      %v910 = vld [vmem:[#allocation2 + $0x510] sm:$0xff]
      %v911 = vld [vmem:[#allocation2 + $0x520] sm:$0xff]
      %v912 = vld [vmem:[#allocation2 + $0x530] sm:$0xff]
      %v913 = vld [vmem:[#allocation2 + $0x540] sm:$0xff]
      %v914 = vld [vmem:[#allocation2 + $0x550] sm:$0xff]
      %v915 = vld [vmem:[#allocation2 + $0x560] sm:$0xff]
      %v916 = vld [vmem:[#allocation2 + $0x570] sm:$0xff]
      %v917 = vld [vmem:[#allocation2 + $0x5a0] sm:$0xff]
      %v918 = vld [vmem:[#allocation2 + $0x5b0] sm:$0xff]
      %v919 = vld [vmem:[#allocation2 + $0x5c0] sm:$0xff]
      %v920 = vld [vmem:[#allocation2 + $0x5d0] sm:$0xff]
      %v921 = vld [vmem:[#allocation2 + $0x5e0] sm:$0xff]
      %v922 = vld [vmem:[#allocation2 + $0x5f0] sm:$0xff]
      %v923 = vld [vmem:[#allocation2 + $0x600] sm:$0xff]
      %v924 = vld [vmem:[#allocation2 + $0x610] sm:$0xff]
      %925 = vst.msk [vmem:[#allocation3] sm:$0xff] %vm495, %v845
      %926 = vst.msk [vmem:[#allocation3 + $0x8] sm:$0xff] %vm495, %v846
      %927 = vst.msk [vmem:[#allocation3 + $0x10] sm:$0xff] %vm495, %v847
      %928 = vst.msk [vmem:[#allocation3 + $0x18] sm:$0xff] %vm495, %v848
      %929 = vst.msk [vmem:[#allocation3 + $0x20] sm:$0xff] %vm495, %v849
      %930 = vst.msk [vmem:[#allocation3 + $0x28] sm:$0xff] %vm495, %v850
      %931 = vst.msk [vmem:[#allocation3 + $0x30] sm:$0xff] %vm495, %v851
      %932 = vst.msk [vmem:[#allocation3 + $0x38] sm:$0xff] %vm495, %v852
      %933 = vst.msk [vmem:[#allocation3 + $0x40] sm:$0xff] %vm495, %v853
      %934 = vst.msk [vmem:[#allocation3 + $0x48] sm:$0xff] %vm495, %v854
      %935 = vst.msk [vmem:[#allocation3 + $0x50] sm:$0xff] %vm495, %v855
      %936 = vst.msk [vmem:[#allocation3 + $0x58] sm:$0xff] %vm495, %v856
      %937 = vst.msk [vmem:[#allocation3 + $0x60] sm:$0xff] %vm495, %v857
      %938 = vst.msk [vmem:[#allocation3 + $0x68] sm:$0xff] %vm495, %v858
      %939 = vst.msk [vmem:[#allocation3 + $0x70] sm:$0xff] %vm495, %v859
      %940 = vst.msk [vmem:[#allocation3 + $0x78] sm:$0xff] %vm495, %v860
      %941 = vst.msk [vmem:[#allocation3 + $0x80] sm:$0xff] %vm495, %v861
      %942 = vst.msk [vmem:[#allocation3 + $0x88] sm:$0xff] %vm495, %v862
      %943 = vst.msk [vmem:[#allocation3 + $0x90] sm:$0xff] %vm495, %v863
      %944 = vst.msk [vmem:[#allocation3 + $0x98] sm:$0xff] %vm495, %v864
      %945 = vst.msk [vmem:[#allocation3 + $0xa0] sm:$0xff] %vm495, %v865
      %946 = vst.msk [vmem:[#allocation3 + $0xa8] sm:$0xff] %vm495, %v866
      %947 = vst.msk [vmem:[#allocation3 + $0xb0] sm:$0xff] %vm495, %v867
      %948 = vst.msk [vmem:[#allocation3 + $0xb8] sm:$0xff] %vm495, %v868
      %949 = vst.msk [vmem:[#allocation3 + $0xc0] sm:$0xff] %vm495, %v869
      %950 = vst.msk [vmem:[#allocation3 + $0xc8] sm:$0xff] %vm495, %v870
      %951 = vst.msk [vmem:[#allocation3 + $0xd0] sm:$0xff] %vm495, %v871
      %952 = vst.msk [vmem:[#allocation3 + $0xd8] sm:$0xff] %vm495, %v872
      %953 = vst.msk [vmem:[#allocation3 + $0xe0] sm:$0xff] %vm495, %v873
      %954 = vst.msk [vmem:[#allocation3 + $0xe8] sm:$0xff] %vm495, %v874
      %955 = vst.msk [vmem:[#allocation3 + $0xf0] sm:$0xff] %vm495, %v875
      %956 = vst.msk [vmem:[#allocation3 + $0xf8] sm:$0xff] %vm495, %v876
      %957 = vst.msk [vmem:[#allocation3 + $0x100] sm:$0xff] %vm495, %v877
      %958 = vst.msk [vmem:[#allocation3 + $0x108] sm:$0xff] %vm495, %v878
      %959 = vst.msk [vmem:[#allocation3 + $0x110] sm:$0xff] %vm495, %v879
      %960 = vst.msk [vmem:[#allocation3 + $0x118] sm:$0xff] %vm495, %v880
      %961 = vst.msk [vmem:[#allocation3 + $0x120] sm:$0xff] %vm495, %v881
      %962 = vst.msk [vmem:[#allocation3 + $0x128] sm:$0xff] %vm495, %v882
      %963 = vst.msk [vmem:[#allocation3 + $0x130] sm:$0xff] %vm495, %v883
      %964 = vst.msk [vmem:[#allocation3 + $0x138] sm:$0xff] %vm495, %v884
      %965 = vst.msk [vmem:[#allocation3 + $0x140] sm:$0xff] %vm495, %v885
      %966 = vst.msk [vmem:[#allocation3 + $0x148] sm:$0xff] %vm495, %v886
      %967 = vst.msk [vmem:[#allocation3 + $0x150] sm:$0xff] %vm495, %v887
      %968 = vst.msk [vmem:[#allocation3 + $0x158] sm:$0xff] %vm495, %v888
      %969 = vst.msk [vmem:[#allocation3 + $0x160] sm:$0xff] %vm495, %v889
      %970 = vst.msk [vmem:[#allocation3 + $0x168] sm:$0xff] %vm495, %v890
      %971 = vst.msk [vmem:[#allocation3 + $0x170] sm:$0xff] %vm495, %v891
      %972 = vst.msk [vmem:[#allocation3 + $0x178] sm:$0xff] %vm495, %v892
      %973 = vst.msk [vmem:[#allocation3 + $0x180] sm:$0xff] %vm495, %v893
      %974 = vst.msk [vmem:[#allocation3 + $0x188] sm:$0xff] %vm495, %v894
      %975 = vst.msk [vmem:[#allocation3 + $0x190] sm:$0xff] %vm495, %v895
      %976 = vst.msk [vmem:[#allocation3 + $0x198] sm:$0xff] %vm495, %v896
      %977 = vst.msk [vmem:[#allocation3 + $0x1a0] sm:$0xff] %vm495, %v897
      %978 = vst.msk [vmem:[#allocation3 + $0x1a8] sm:$0xff] %vm495, %v898
      %979 = vst.msk [vmem:[#allocation3 + $0x1b0] sm:$0xff] %vm495, %v899
      %980 = vst.msk [vmem:[#allocation3 + $0x1b8] sm:$0xff] %vm495, %v900
      %981 = vst.msk [vmem:[#allocation3 + $0x1c0] sm:$0xff] %vm495, %v901
      %982 = vst.msk [vmem:[#allocation3 + $0x1c8] sm:$0xff] %vm495, %v902
      %983 = vst.msk [vmem:[#allocation3 + $0x1d0] sm:$0xff] %vm495, %v903
      %984 = vst.msk [vmem:[#allocation3 + $0x1d8] sm:$0xff] %vm495, %v904
      %985 = vst.msk [vmem:[#allocation3 + $0x1e0] sm:$0xff] %vm495, %v905
      %986 = vst.msk [vmem:[#allocation3 + $0x1e8] sm:$0xff] %vm495, %v906
      %987 = vst.msk [vmem:[#allocation3 + $0x1f0] sm:$0xff] %vm495, %v907
      %988 = vst.msk [vmem:[#allocation3 + $0x1f8] sm:$0xff] %vm495, %v908
      %989 = vst.msk [vmem:[#allocation3 + $0x200] sm:$0xff] %vm495, %v909
      %990 = vst.msk [vmem:[#allocation3 + $0x208] sm:$0xff] %vm495, %v910
      %991 = vst.msk [vmem:[#allocation3 + $0x210] sm:$0xff] %vm495, %v911
      %992 = vst.msk [vmem:[#allocation3 + $0x218] sm:$0xff] %vm495, %v912
      %993 = vst.msk [vmem:[#allocation3 + $0x220] sm:$0xff] %vm495, %v913
      %994 = vst.msk [vmem:[#allocation3 + $0x228] sm:$0xff] %vm495, %v914
      %995 = vst.msk [vmem:[#allocation3 + $0x230] sm:$0xff] %vm495, %v915
      %996 = vst.msk [vmem:[#allocation3 + $0x238] sm:$0xff] %vm495, %v916
      %997 = vst.msk [vmem:[#allocation3 + $0x240] sm:$0xff] %vm495, %v917
      %998 = vst.msk [vmem:[#allocation3 + $0x248] sm:$0xff] %vm495, %v918
      %999 = vst.msk [vmem:[#allocation3 + $0x250] sm:$0xff] %vm495, %v919
      %1000 = vst.msk [vmem:[#allocation3 + $0x258] sm:$0xff] %vm495, %v920
      %1001 = vst.msk [vmem:[#allocation3 + $0x260] sm:$0xff] %vm495, %v921
      %1002 = vst.msk [vmem:[#allocation3 + $0x268] sm:$0xff] %vm495, %v922
      %1003 = vst.msk [vmem:[#allocation3 + $0x270] sm:$0xff] %vm495, %v923
      %1004 = vst.msk [vmem:[#allocation3 + $0x278] sm:$0xff] %vm495, %v924
      %v1005 = vld [vmem:[#allocation2 + $0x1] sm:$0xff]
      %v1006 = vld [vmem:[#allocation2 + $0x11] sm:$0xff]
      %v1007 = vld [vmem:[#allocation2 + $0x21] sm:$0xff]
      %v1008 = vld [vmem:[#allocation2 + $0x31] sm:$0xff]
      %v1009 = vld [vmem:[#allocation2 + $0x41] sm:$0xff]
      %v1010 = vld [vmem:[#allocation2 + $0x51] sm:$0xff]
      %v1011 = vld [vmem:[#allocation2 + $0x61] sm:$0xff]
      %v1012 = vld [vmem:[#allocation2 + $0x71] sm:$0xff]
      %v1013 = vld [vmem:[#allocation2 + $0xa1] sm:$0xff]
      %v1014 = vld [vmem:[#allocation2 + $0xb1] sm:$0xff]
      %v1015 = vld [vmem:[#allocation2 + $0xc1] sm:$0xff]
      %v1016 = vld [vmem:[#allocation2 + $0xd1] sm:$0xff]
      %v1017 = vld [vmem:[#allocation2 + $0xe1] sm:$0xff]
      %v1018 = vld [vmem:[#allocation2 + $0xf1] sm:$0xff]
      %v1019 = vld [vmem:[#allocation2 + $0x101] sm:$0xff]
      %v1020 = vld [vmem:[#allocation2 + $0x111] sm:$0xff]
      %v1021 = vld [vmem:[#allocation2 + $0x141] sm:$0xff]
      %v1022 = vld [vmem:[#allocation2 + $0x151] sm:$0xff]
      %v1023 = vld [vmem:[#allocation2 + $0x161] sm:$0xff]
      %v1024 = vld [vmem:[#allocation2 + $0x171] sm:$0xff]
      %v1025 = vld [vmem:[#allocation2 + $0x181] sm:$0xff]
      %v1026 = vld [vmem:[#allocation2 + $0x191] sm:$0xff]
      %v1027 = vld [vmem:[#allocation2 + $0x1a1] sm:$0xff]
      %v1028 = vld [vmem:[#allocation2 + $0x1b1] sm:$0xff]
      %v1029 = vld [vmem:[#allocation2 + $0x1e1] sm:$0xff]
      %v1030 = vld [vmem:[#allocation2 + $0x1f1] sm:$0xff]
      %v1031 = vld [vmem:[#allocation2 + $0x201] sm:$0xff]
      %v1032 = vld [vmem:[#allocation2 + $0x211] sm:$0xff]
      %v1033 = vld [vmem:[#allocation2 + $0x221] sm:$0xff]
      %v1034 = vld [vmem:[#allocation2 + $0x231] sm:$0xff]
      %v1035 = vld [vmem:[#allocation2 + $0x241] sm:$0xff]
      %v1036 = vld [vmem:[#allocation2 + $0x251] sm:$0xff]
      %v1037 = vld [vmem:[#allocation2 + $0x281] sm:$0xff]
      %v1038 = vld [vmem:[#allocation2 + $0x291] sm:$0xff]
      %v1039 = vld [vmem:[#allocation2 + $0x2a1] sm:$0xff]
      %v1040 = vld [vmem:[#allocation2 + $0x2b1] sm:$0xff]
      %v1041 = vld [vmem:[#allocation2 + $0x2c1] sm:$0xff]
      %v1042 = vld [vmem:[#allocation2 + $0x2d1] sm:$0xff]
      %v1043 = vld [vmem:[#allocation2 + $0x2e1] sm:$0xff]
      %v1044 = vld [vmem:[#allocation2 + $0x2f1] sm:$0xff]
      %v1045 = vld [vmem:[#allocation2 + $0x321] sm:$0xff]
      %v1046 = vld [vmem:[#allocation2 + $0x331] sm:$0xff]
      %v1047 = vld [vmem:[#allocation2 + $0x341] sm:$0xff]
      %v1048 = vld [vmem:[#allocation2 + $0x351] sm:$0xff]
      %v1049 = vld [vmem:[#allocation2 + $0x361] sm:$0xff]
      %v1050 = vld [vmem:[#allocation2 + $0x371] sm:$0xff]
      %v1051 = vld [vmem:[#allocation2 + $0x381] sm:$0xff]
      %v1052 = vld [vmem:[#allocation2 + $0x391] sm:$0xff]
      %v1053 = vld [vmem:[#allocation2 + $0x3c1] sm:$0xff]
      %v1054 = vld [vmem:[#allocation2 + $0x3d1] sm:$0xff]
      %v1055 = vld [vmem:[#allocation2 + $0x3e1] sm:$0xff]
      %v1056 = vld [vmem:[#allocation2 + $0x3f1] sm:$0xff]
      %v1057 = vld [vmem:[#allocation2 + $0x401] sm:$0xff]
      %v1058 = vld [vmem:[#allocation2 + $0x411] sm:$0xff]
      %v1059 = vld [vmem:[#allocation2 + $0x421] sm:$0xff]
      %v1060 = vld [vmem:[#allocation2 + $0x431] sm:$0xff]
      %v1061 = vld [vmem:[#allocation2 + $0x461] sm:$0xff]
      %v1062 = vld [vmem:[#allocation2 + $0x471] sm:$0xff]
      %v1063 = vld [vmem:[#allocation2 + $0x481] sm:$0xff]
      %v1064 = vld [vmem:[#allocation2 + $0x491] sm:$0xff]
      %v1065 = vld [vmem:[#allocation2 + $0x4a1] sm:$0xff]
      %v1066 = vld [vmem:[#allocation2 + $0x4b1] sm:$0xff]
      %v1067 = vld [vmem:[#allocation2 + $0x4c1] sm:$0xff]
      %v1068 = vld [vmem:[#allocation2 + $0x4d1] sm:$0xff]
      %v1069 = vld [vmem:[#allocation2 + $0x501] sm:$0xff]
      %v1070 = vld [vmem:[#allocation2 + $0x511] sm:$0xff]
      %v1071 = vld [vmem:[#allocation2 + $0x521] sm:$0xff]
      %v1072 = vld [vmem:[#allocation2 + $0x531] sm:$0xff]
      %v1073 = vld [vmem:[#allocation2 + $0x541] sm:$0xff]
      %v1074 = vld [vmem:[#allocation2 + $0x551] sm:$0xff]
      %v1075 = vld [vmem:[#allocation2 + $0x561] sm:$0xff]
      %v1076 = vld [vmem:[#allocation2 + $0x571] sm:$0xff]
      %v1077 = vld [vmem:[#allocation2 + $0x5a1] sm:$0xff]
      %v1078 = vld [vmem:[#allocation2 + $0x5b1] sm:$0xff]
      %v1079 = vld [vmem:[#allocation2 + $0x5c1] sm:$0xff]
      %v1080 = vld [vmem:[#allocation2 + $0x5d1] sm:$0xff]
      %v1081 = vld [vmem:[#allocation2 + $0x5e1] sm:$0xff]
      %v1082 = vld [vmem:[#allocation2 + $0x5f1] sm:$0xff]
      %v1083 = vld [vmem:[#allocation2 + $0x601] sm:$0xff]
      %v1084 = vld [vmem:[#allocation2 + $0x611] sm:$0xff]
      %1165 = vrot.lane.b32.xlu0 %v1005, 8
      %v1166 = vpop.permute.xlu0 %1165
      %1167 = vrot.lane.b32.xlu0 %v1006, 8
      %v1168 = vpop.permute.xlu0 %1167
      %1169 = vrot.lane.b32.xlu0 %v1007, 8
      %v1170 = vpop.permute.xlu0 %1169
      %1171 = vrot.lane.b32.xlu0 %v1008, 8
      %v1172 = vpop.permute.xlu0 %1171
      %1173 = vrot.lane.b32.xlu0 %v1009, 8
      %v1174 = vpop.permute.xlu0 %1173
      %1175 = vrot.lane.b32.xlu0 %v1010, 8
      %v1176 = vpop.permute.xlu0 %1175
      %1177 = vrot.lane.b32.xlu0 %v1011, 8
      %v1178 = vpop.permute.xlu0 %1177
      %1179 = vrot.lane.b32.xlu0 %v1012, 8
      %v1180 = vpop.permute.xlu0 %1179
      %1181 = vrot.lane.b32.xlu0 %v1013, 8
      %v1182 = vpop.permute.xlu0 %1181
      %1183 = vrot.lane.b32.xlu0 %v1014, 8
      %v1184 = vpop.permute.xlu0 %1183
      %1185 = vrot.lane.b32.xlu0 %v1015, 8
      %v1186 = vpop.permute.xlu0 %1185
      %1187 = vrot.lane.b32.xlu0 %v1016, 8
      %v1188 = vpop.permute.xlu0 %1187
      %1189 = vrot.lane.b32.xlu0 %v1017, 8
      %v1190 = vpop.permute.xlu0 %1189
      %1191 = vrot.lane.b32.xlu0 %v1018, 8
      %v1192 = vpop.permute.xlu0 %1191
      %1193 = vrot.lane.b32.xlu0 %v1019, 8
      %v1194 = vpop.permute.xlu0 %1193
      %1195 = vrot.lane.b32.xlu0 %v1020, 8
      %v1196 = vpop.permute.xlu0 %1195
      %1197 = vrot.lane.b32.xlu0 %v1021, 8
      %v1198 = vpop.permute.xlu0 %1197
      %1199 = vrot.lane.b32.xlu0 %v1022, 8
      %v1200 = vpop.permute.xlu0 %1199
      %1201 = vrot.lane.b32.xlu0 %v1023, 8
      %v1202 = vpop.permute.xlu0 %1201
      %1203 = vrot.lane.b32.xlu0 %v1024, 8
      %v1204 = vpop.permute.xlu0 %1203
      %1205 = vrot.lane.b32.xlu0 %v1025, 8
      %v1206 = vpop.permute.xlu0 %1205
      %1207 = vrot.lane.b32.xlu0 %v1026, 8
      %v1208 = vpop.permute.xlu0 %1207
      %1209 = vrot.lane.b32.xlu0 %v1027, 8
      %v1210 = vpop.permute.xlu0 %1209
      %1211 = vrot.lane.b32.xlu0 %v1028, 8
      %v1212 = vpop.permute.xlu0 %1211
      %1213 = vrot.lane.b32.xlu0 %v1029, 8
      %v1214 = vpop.permute.xlu0 %1213
      %1215 = vrot.lane.b32.xlu0 %v1030, 8
      %v1216 = vpop.permute.xlu0 %1215
      %1217 = vrot.lane.b32.xlu0 %v1031, 8
      %v1218 = vpop.permute.xlu0 %1217
      %1219 = vrot.lane.b32.xlu0 %v1032, 8
      %v1220 = vpop.permute.xlu0 %1219
      %1221 = vrot.lane.b32.xlu0 %v1033, 8
      %v1222 = vpop.permute.xlu0 %1221
      %1223 = vrot.lane.b32.xlu0 %v1034, 8
      %v1224 = vpop.permute.xlu0 %1223
      %1225 = vrot.lane.b32.xlu0 %v1035, 8
      %v1226 = vpop.permute.xlu0 %1225
      %1227 = vrot.lane.b32.xlu0 %v1036, 8
      %v1228 = vpop.permute.xlu0 %1227
      %1229 = vrot.lane.b32.xlu0 %v1037, 8
      %v1230 = vpop.permute.xlu0 %1229
      %1231 = vrot.lane.b32.xlu0 %v1038, 8
      %v1232 = vpop.permute.xlu0 %1231
      %1233 = vrot.lane.b32.xlu0 %v1039, 8
      %v1234 = vpop.permute.xlu0 %1233
      %1235 = vrot.lane.b32.xlu0 %v1040, 8
      %v1236 = vpop.permute.xlu0 %1235
      %1237 = vrot.lane.b32.xlu0 %v1041, 8
      %v1238 = vpop.permute.xlu0 %1237
      %1239 = vrot.lane.b32.xlu0 %v1042, 8
      %v1240 = vpop.permute.xlu0 %1239
      %1241 = vrot.lane.b32.xlu0 %v1043, 8
      %v1242 = vpop.permute.xlu0 %1241
      %1243 = vrot.lane.b32.xlu0 %v1044, 8
      %v1244 = vpop.permute.xlu0 %1243
      %1245 = vrot.lane.b32.xlu0 %v1045, 8
      %v1246 = vpop.permute.xlu0 %1245
      %1247 = vrot.lane.b32.xlu0 %v1046, 8
      %v1248 = vpop.permute.xlu0 %1247
      %1249 = vrot.lane.b32.xlu0 %v1047, 8
      %v1250 = vpop.permute.xlu0 %1249
      %1251 = vrot.lane.b32.xlu0 %v1048, 8
      %v1252 = vpop.permute.xlu0 %1251
      %1253 = vrot.lane.b32.xlu0 %v1049, 8
      %v1254 = vpop.permute.xlu0 %1253
      %1255 = vrot.lane.b32.xlu0 %v1050, 8
      %v1256 = vpop.permute.xlu0 %1255
      %1257 = vrot.lane.b32.xlu0 %v1051, 8
      %v1258 = vpop.permute.xlu0 %1257
      %1259 = vrot.lane.b32.xlu0 %v1052, 8
      %v1260 = vpop.permute.xlu0 %1259
      %1261 = vrot.lane.b32.xlu0 %v1053, 8
      %v1262 = vpop.permute.xlu0 %1261
      %1263 = vrot.lane.b32.xlu0 %v1054, 8
      %v1264 = vpop.permute.xlu0 %1263
      %1265 = vrot.lane.b32.xlu0 %v1055, 8
      %v1266 = vpop.permute.xlu0 %1265
      %1267 = vrot.lane.b32.xlu0 %v1056, 8
      %v1268 = vpop.permute.xlu0 %1267
      %1269 = vrot.lane.b32.xlu0 %v1057, 8
      %v1270 = vpop.permute.xlu0 %1269
      %1271 = vrot.lane.b32.xlu0 %v1058, 8
      %v1272 = vpop.permute.xlu0 %1271
      %1273 = vrot.lane.b32.xlu0 %v1059, 8
      %v1274 = vpop.permute.xlu0 %1273
      %1275 = vrot.lane.b32.xlu0 %v1060, 8
      %v1276 = vpop.permute.xlu0 %1275
      %1277 = vrot.lane.b32.xlu0 %v1061, 8
      %v1278 = vpop.permute.xlu0 %1277
      %1279 = vrot.lane.b32.xlu0 %v1062, 8
      %v1280 = vpop.permute.xlu0 %1279
      %1281 = vrot.lane.b32.xlu0 %v1063, 8
      %v1282 = vpop.permute.xlu0 %1281
      %1283 = vrot.lane.b32.xlu0 %v1064, 8
      %v1284 = vpop.permute.xlu0 %1283
      %1285 = vrot.lane.b32.xlu0 %v1065, 8
      %v1286 = vpop.permute.xlu0 %1285
      %1287 = vrot.lane.b32.xlu0 %v1066, 8
      %v1288 = vpop.permute.xlu0 %1287
      %1289 = vrot.lane.b32.xlu0 %v1067, 8
      %v1290 = vpop.permute.xlu0 %1289
      %1291 = vrot.lane.b32.xlu0 %v1068, 8
      %v1292 = vpop.permute.xlu0 %1291
      %1293 = vrot.lane.b32.xlu0 %v1069, 8
      %v1294 = vpop.permute.xlu0 %1293
      %1295 = vrot.lane.b32.xlu0 %v1070, 8
      %v1296 = vpop.permute.xlu0 %1295
      %1297 = vrot.lane.b32.xlu0 %v1071, 8
      %v1298 = vpop.permute.xlu0 %1297
      %1299 = vrot.lane.b32.xlu0 %v1072, 8
      %v1300 = vpop.permute.xlu0 %1299
      %1301 = vrot.lane.b32.xlu0 %v1073, 8
      %v1302 = vpop.permute.xlu0 %1301
      %1303 = vrot.lane.b32.xlu0 %v1074, 8
      %v1304 = vpop.permute.xlu0 %1303
      %1305 = vrot.lane.b32.xlu0 %v1075, 8
      %v1306 = vpop.permute.xlu0 %1305
      %1307 = vrot.lane.b32.xlu0 %v1076, 8
      %v1308 = vpop.permute.xlu0 %1307
      %1309 = vrot.lane.b32.xlu0 %v1077, 8
      %v1310 = vpop.permute.xlu0 %1309
      %1311 = vrot.lane.b32.xlu0 %v1078, 8
      %v1312 = vpop.permute.xlu0 %1311
      %1313 = vrot.lane.b32.xlu0 %v1079, 8
      %v1314 = vpop.permute.xlu0 %1313
      %1315 = vrot.lane.b32.xlu0 %v1080, 8
      %v1316 = vpop.permute.xlu0 %1315
      %1317 = vrot.lane.b32.xlu0 %v1081, 8
      %v1318 = vpop.permute.xlu0 %1317
      %1319 = vrot.lane.b32.xlu0 %v1082, 8
      %v1320 = vpop.permute.xlu0 %1319
      %1321 = vrot.lane.b32.xlu0 %v1083, 8
      %v1322 = vpop.permute.xlu0 %1321
      %1323 = vrot.lane.b32.xlu0 %v1084, 8
      %v1324 = vpop.permute.xlu0 %1323
      %vm1405 = vcmask 130112
      %1406 = vst.msk [vmem:[#allocation3] sm:$0xff] %vm1405, %v1166
      %1407 = vst.msk [vmem:[#allocation3 + $0x8] sm:$0xff] %vm1405, %v1168
      %1408 = vst.msk [vmem:[#allocation3 + $0x10] sm:$0xff] %vm1405, %v1170
      %1409 = vst.msk [vmem:[#allocation3 + $0x18] sm:$0xff] %vm1405, %v1172
      %1410 = vst.msk [vmem:[#allocation3 + $0x20] sm:$0xff] %vm1405, %v1174
      %1411 = vst.msk [vmem:[#allocation3 + $0x28] sm:$0xff] %vm1405, %v1176
      %1412 = vst.msk [vmem:[#allocation3 + $0x30] sm:$0xff] %vm1405, %v1178
      %1413 = vst.msk [vmem:[#allocation3 + $0x38] sm:$0xff] %vm1405, %v1180
      %1414 = vst.msk [vmem:[#allocation3 + $0x40] sm:$0xff] %vm1405, %v1182
      %1415 = vst.msk [vmem:[#allocation3 + $0x48] sm:$0xff] %vm1405, %v1184
      %1416 = vst.msk [vmem:[#allocation3 + $0x50] sm:$0xff] %vm1405, %v1186
      %1417 = vst.msk [vmem:[#allocation3 + $0x58] sm:$0xff] %vm1405, %v1188
      %1418 = vst.msk [vmem:[#allocation3 + $0x60] sm:$0xff] %vm1405, %v1190
      %1419 = vst.msk [vmem:[#allocation3 + $0x68] sm:$0xff] %vm1405, %v1192
      %1420 = vst.msk [vmem:[#allocation3 + $0x70] sm:$0xff] %vm1405, %v1194
      %1421 = vst.msk [vmem:[#allocation3 + $0x78] sm:$0xff] %vm1405, %v1196
      %1422 = vst.msk [vmem:[#allocation3 + $0x80] sm:$0xff] %vm1405, %v1198
      %1423 = vst.msk [vmem:[#allocation3 + $0x88] sm:$0xff] %vm1405, %v1200
      %1424 = vst.msk [vmem:[#allocation3 + $0x90] sm:$0xff] %vm1405, %v1202
      %1425 = vst.msk [vmem:[#allocation3 + $0x98] sm:$0xff] %vm1405, %v1204
      %1426 = vst.msk [vmem:[#allocation3 + $0xa0] sm:$0xff] %vm1405, %v1206
      %1427 = vst.msk [vmem:[#allocation3 + $0xa8] sm:$0xff] %vm1405, %v1208
      %1428 = vst.msk [vmem:[#allocation3 + $0xb0] sm:$0xff] %vm1405, %v1210
      %1429 = vst.msk [vmem:[#allocation3 + $0xb8] sm:$0xff] %vm1405, %v1212
      %1430 = vst.msk [vmem:[#allocation3 + $0xc0] sm:$0xff] %vm1405, %v1214
      %1431 = vst.msk [vmem:[#allocation3 + $0xc8] sm:$0xff] %vm1405, %v1216
      %1432 = vst.msk [vmem:[#allocation3 + $0xd0] sm:$0xff] %vm1405, %v1218
      %1433 = vst.msk [vmem:[#allocation3 + $0xd8] sm:$0xff] %vm1405, %v1220
      %1434 = vst.msk [vmem:[#allocation3 + $0xe0] sm:$0xff] %vm1405, %v1222
      %1435 = vst.msk [vmem:[#allocation3 + $0xe8] sm:$0xff] %vm1405, %v1224
      %1436 = vst.msk [vmem:[#allocation3 + $0xf0] sm:$0xff] %vm1405, %v1226
      %1437 = vst.msk [vmem:[#allocation3 + $0xf8] sm:$0xff] %vm1405, %v1228
      %1438 = vst.msk [vmem:[#allocation3 + $0x100] sm:$0xff] %vm1405, %v1230
      %1439 = vst.msk [vmem:[#allocation3 + $0x108] sm:$0xff] %vm1405, %v1232
      %1440 = vst.msk [vmem:[#allocation3 + $0x110] sm:$0xff] %vm1405, %v1234
      %1441 = vst.msk [vmem:[#allocation3 + $0x118] sm:$0xff] %vm1405, %v1236
      %1442 = vst.msk [vmem:[#allocation3 + $0x120] sm:$0xff] %vm1405, %v1238
      %1443 = vst.msk [vmem:[#allocation3 + $0x128] sm:$0xff] %vm1405, %v1240
      %1444 = vst.msk [vmem:[#allocation3 + $0x130] sm:$0xff] %vm1405, %v1242
      %1445 = vst.msk [vmem:[#allocation3 + $0x138] sm:$0xff] %vm1405, %v1244
      %1446 = vst.msk [vmem:[#allocation3 + $0x140] sm:$0xff] %vm1405, %v1246
      %1447 = vst.msk [vmem:[#allocation3 + $0x148] sm:$0xff] %vm1405, %v1248
      %1448 = vst.msk [vmem:[#allocation3 + $0x150] sm:$0xff] %vm1405, %v1250
      %1449 = vst.msk [vmem:[#allocation3 + $0x158] sm:$0xff] %vm1405, %v1252
      %1450 = vst.msk [vmem:[#allocation3 + $0x160] sm:$0xff] %vm1405, %v1254
      %1451 = vst.msk [vmem:[#allocation3 + $0x168] sm:$0xff] %vm1405, %v1256
      %1452 = vst.msk [vmem:[#allocation3 + $0x170] sm:$0xff] %vm1405, %v1258
      %1453 = vst.msk [vmem:[#allocation3 + $0x178] sm:$0xff] %vm1405, %v1260
      %1454 = vst.msk [vmem:[#allocation3 + $0x180] sm:$0xff] %vm1405, %v1262
      %1455 = vst.msk [vmem:[#allocation3 + $0x188] sm:$0xff] %vm1405, %v1264
      %1456 = vst.msk [vmem:[#allocation3 + $0x190] sm:$0xff] %vm1405, %v1266
      %1457 = vst.msk [vmem:[#allocation3 + $0x198] sm:$0xff] %vm1405, %v1268
      %1458 = vst.msk [vmem:[#allocation3 + $0x1a0] sm:$0xff] %vm1405, %v1270
      %1459 = vst.msk [vmem:[#allocation3 + $0x1a8] sm:$0xff] %vm1405, %v1272
      %1460 = vst.msk [vmem:[#allocation3 + $0x1b0] sm:$0xff] %vm1405, %v1274
      %1461 = vst.msk [vmem:[#allocation3 + $0x1b8] sm:$0xff] %vm1405, %v1276
      %1462 = vst.msk [vmem:[#allocation3 + $0x1c0] sm:$0xff] %vm1405, %v1278
      %1463 = vst.msk [vmem:[#allocation3 + $0x1c8] sm:$0xff] %vm1405, %v1280
      %1464 = vst.msk [vmem:[#allocation3 + $0x1d0] sm:$0xff] %vm1405, %v1282
      %1465 = vst.msk [vmem:[#allocation3 + $0x1d8] sm:$0xff] %vm1405, %v1284
      %1466 = vst.msk [vmem:[#allocation3 + $0x1e0] sm:$0xff] %vm1405, %v1286
      %1467 = vst.msk [vmem:[#allocation3 + $0x1e8] sm:$0xff] %vm1405, %v1288
      %1468 = vst.msk [vmem:[#allocation3 + $0x1f0] sm:$0xff] %vm1405, %v1290
      %1469 = vst.msk [vmem:[#allocation3 + $0x1f8] sm:$0xff] %vm1405, %v1292
      %1470 = vst.msk [vmem:[#allocation3 + $0x200] sm:$0xff] %vm1405, %v1294
      %1471 = vst.msk [vmem:[#allocation3 + $0x208] sm:$0xff] %vm1405, %v1296
      %1472 = vst.msk [vmem:[#allocation3 + $0x210] sm:$0xff] %vm1405, %v1298
      %1473 = vst.msk [vmem:[#allocation3 + $0x218] sm:$0xff] %vm1405, %v1300
      %1474 = vst.msk [vmem:[#allocation3 + $0x220] sm:$0xff] %vm1405, %v1302
      %1475 = vst.msk [vmem:[#allocation3 + $0x228] sm:$0xff] %vm1405, %v1304
      %1476 = vst.msk [vmem:[#allocation3 + $0x230] sm:$0xff] %vm1405, %v1306
      %1477 = vst.msk [vmem:[#allocation3 + $0x238] sm:$0xff] %vm1405, %v1308
      %1478 = vst.msk [vmem:[#allocation3 + $0x240] sm:$0xff] %vm1405, %v1310
      %1479 = vst.msk [vmem:[#allocation3 + $0x248] sm:$0xff] %vm1405, %v1312
      %1480 = vst.msk [vmem:[#allocation3 + $0x250] sm:$0xff] %vm1405, %v1314
      %1481 = vst.msk [vmem:[#allocation3 + $0x258] sm:$0xff] %vm1405, %v1316
      %1482 = vst.msk [vmem:[#allocation3 + $0x260] sm:$0xff] %vm1405, %v1318
      %1483 = vst.msk [vmem:[#allocation3 + $0x268] sm:$0xff] %vm1405, %v1320
      %1484 = vst.msk [vmem:[#allocation3 + $0x270] sm:$0xff] %vm1405, %v1322
      %1485 = vst.msk [vmem:[#allocation3 + $0x278] sm:$0xff] %vm1405, %v1324
      %v1486 = vld [vmem:[#allocation2 + $0x2] sm:$0xff]
      %v1487 = vld [vmem:[#allocation2 + $0x12] sm:$0xff]
      %v1488 = vld [vmem:[#allocation2 + $0x22] sm:$0xff]
      %v1489 = vld [vmem:[#allocation2 + $0x32] sm:$0xff]
      %v1490 = vld [vmem:[#allocation2 + $0x42] sm:$0xff]
      %v1491 = vld [vmem:[#allocation2 + $0x52] sm:$0xff]
      %v1492 = vld [vmem:[#allocation2 + $0x62] sm:$0xff]
      %v1493 = vld [vmem:[#allocation2 + $0x72] sm:$0xff]
      %v1494 = vld [vmem:[#allocation2 + $0xa2] sm:$0xff]
      %v1495 = vld [vmem:[#allocation2 + $0xb2] sm:$0xff]
      %v1496 = vld [vmem:[#allocation2 + $0xc2] sm:$0xff]
      %v1497 = vld [vmem:[#allocation2 + $0xd2] sm:$0xff]
      %v1498 = vld [vmem:[#allocation2 + $0xe2] sm:$0xff]
      %v1499 = vld [vmem:[#allocation2 + $0xf2] sm:$0xff]
      %v1500 = vld [vmem:[#allocation2 + $0x102] sm:$0xff]
      %v1501 = vld [vmem:[#allocation2 + $0x112] sm:$0xff]
      %v1502 = vld [vmem:[#allocation2 + $0x142] sm:$0xff]
      %v1503 = vld [vmem:[#allocation2 + $0x152] sm:$0xff]
      %v1504 = vld [vmem:[#allocation2 + $0x162] sm:$0xff]
      %v1505 = vld [vmem:[#allocation2 + $0x172] sm:$0xff]
      %v1506 = vld [vmem:[#allocation2 + $0x182] sm:$0xff]
      %v1507 = vld [vmem:[#allocation2 + $0x192] sm:$0xff]
      %v1508 = vld [vmem:[#allocation2 + $0x1a2] sm:$0xff]
      %v1509 = vld [vmem:[#allocation2 + $0x1b2] sm:$0xff]
      %v1510 = vld [vmem:[#allocation2 + $0x1e2] sm:$0xff]
      %v1511 = vld [vmem:[#allocation2 + $0x1f2] sm:$0xff]
      %v1512 = vld [vmem:[#allocation2 + $0x202] sm:$0xff]
      %v1513 = vld [vmem:[#allocation2 + $0x212] sm:$0xff]
      %v1514 = vld [vmem:[#allocation2 + $0x222] sm:$0xff]
      %v1515 = vld [vmem:[#allocation2 + $0x232] sm:$0xff]
      %v1516 = vld [vmem:[#allocation2 + $0x242] sm:$0xff]
      %v1517 = vld [vmem:[#allocation2 + $0x252] sm:$0xff]
      %v1518 = vld [vmem:[#allocation2 + $0x282] sm:$0xff]
      %v1519 = vld [vmem:[#allocation2 + $0x292] sm:$0xff]
      %v1520 = vld [vmem:[#allocation2 + $0x2a2] sm:$0xff]
      %v1521 = vld [vmem:[#allocation2 + $0x2b2] sm:$0xff]
      %v1522 = vld [vmem:[#allocation2 + $0x2c2] sm:$0xff]
      %v1523 = vld [vmem:[#allocation2 + $0x2d2] sm:$0xff]
      %v1524 = vld [vmem:[#allocation2 + $0x2e2] sm:$0xff]
      %v1525 = vld [vmem:[#allocation2 + $0x2f2] sm:$0xff]
      %v1526 = vld [vmem:[#allocation2 + $0x322] sm:$0xff]
      %v1527 = vld [vmem:[#allocation2 + $0x332] sm:$0xff]
      %v1528 = vld [vmem:[#allocation2 + $0x342] sm:$0xff]
      %v1529 = vld [vmem:[#allocation2 + $0x352] sm:$0xff]
      %v1530 = vld [vmem:[#allocation2 + $0x362] sm:$0xff]
      %v1531 = vld [vmem:[#allocation2 + $0x372] sm:$0xff]
      %v1532 = vld [vmem:[#allocation2 + $0x382] sm:$0xff]
      %v1533 = vld [vmem:[#allocation2 + $0x392] sm:$0xff]
      %v1534 = vld [vmem:[#allocation2 + $0x3c2] sm:$0xff]
      %v1535 = vld [vmem:[#allocation2 + $0x3d2] sm:$0xff]
      %v1536 = vld [vmem:[#allocation2 + $0x3e2] sm:$0xff]
      %v1537 = vld [vmem:[#allocation2 + $0x3f2] sm:$0xff]
      %v1538 = vld [vmem:[#allocation2 + $0x402] sm:$0xff]
      %v1539 = vld [vmem:[#allocation2 + $0x412] sm:$0xff]
      %v1540 = vld [vmem:[#allocation2 + $0x422] sm:$0xff]
      %v1541 = vld [vmem:[#allocation2 + $0x432] sm:$0xff]
      %v1542 = vld [vmem:[#allocation2 + $0x462] sm:$0xff]
      %v1543 = vld [vmem:[#allocation2 + $0x472] sm:$0xff]
      %v1544 = vld [vmem:[#allocation2 + $0x482] sm:$0xff]
      %v1545 = vld [vmem:[#allocation2 + $0x492] sm:$0xff]
      %v1546 = vld [vmem:[#allocation2 + $0x4a2] sm:$0xff]
      %v1547 = vld [vmem:[#allocation2 + $0x4b2] sm:$0xff]
      %v1548 = vld [vmem:[#allocation2 + $0x4c2] sm:$0xff]
      %v1549 = vld [vmem:[#allocation2 + $0x4d2] sm:$0xff]
      %v1550 = vld [vmem:[#allocation2 + $0x502] sm:$0xff]
      %v1551 = vld [vmem:[#allocation2 + $0x512] sm:$0xff]
      %v1552 = vld [vmem:[#allocation2 + $0x522] sm:$0xff]
      %v1553 = vld [vmem:[#allocation2 + $0x532] sm:$0xff]
      %v1554 = vld [vmem:[#allocation2 + $0x542] sm:$0xff]
      %v1555 = vld [vmem:[#allocation2 + $0x552] sm:$0xff]
      %v1556 = vld [vmem:[#allocation2 + $0x562] sm:$0xff]
      %v1557 = vld [vmem:[#allocation2 + $0x572] sm:$0xff]
      %v1558 = vld [vmem:[#allocation2 + $0x5a2] sm:$0xff]
      %v1559 = vld [vmem:[#allocation2 + $0x5b2] sm:$0xff]
      %v1560 = vld [vmem:[#allocation2 + $0x5c2] sm:$0xff]
      %v1561 = vld [vmem:[#allocation2 + $0x5d2] sm:$0xff]
      %v1562 = vld [vmem:[#allocation2 + $0x5e2] sm:$0xff]
      %v1563 = vld [vmem:[#allocation2 + $0x5f2] sm:$0xff]
      %v1564 = vld [vmem:[#allocation2 + $0x602] sm:$0xff]
      %v1565 = vld [vmem:[#allocation2 + $0x612] sm:$0xff]
      %1646 = vrot.lane.b32.xlu0 %v1486, 16
      %v1647 = vpop.permute.xlu0 %1646
      %1648 = vrot.lane.b32.xlu0 %v1487, 16
      %v1649 = vpop.permute.xlu0 %1648
      %1650 = vrot.lane.b32.xlu0 %v1488, 16
      %v1651 = vpop.permute.xlu0 %1650
      %1652 = vrot.lane.b32.xlu0 %v1489, 16
      %v1653 = vpop.permute.xlu0 %1652
      %1654 = vrot.lane.b32.xlu0 %v1490, 16
      %v1655 = vpop.permute.xlu0 %1654
      %1656 = vrot.lane.b32.xlu0 %v1491, 16
      %v1657 = vpop.permute.xlu0 %1656
      %1658 = vrot.lane.b32.xlu0 %v1492, 16
      %v1659 = vpop.permute.xlu0 %1658
      %1660 = vrot.lane.b32.xlu0 %v1493, 16
      %v1661 = vpop.permute.xlu0 %1660
      %1662 = vrot.lane.b32.xlu0 %v1494, 16
      %v1663 = vpop.permute.xlu0 %1662
      %1664 = vrot.lane.b32.xlu0 %v1495, 16
      %v1665 = vpop.permute.xlu0 %1664
      %1666 = vrot.lane.b32.xlu0 %v1496, 16
      %v1667 = vpop.permute.xlu0 %1666
      %1668 = vrot.lane.b32.xlu0 %v1497, 16
      %v1669 = vpop.permute.xlu0 %1668
      %1670 = vrot.lane.b32.xlu0 %v1498, 16
      %v1671 = vpop.permute.xlu0 %1670
      %1672 = vrot.lane.b32.xlu0 %v1499, 16
      %v1673 = vpop.permute.xlu0 %1672
      %1674 = vrot.lane.b32.xlu0 %v1500, 16
      %v1675 = vpop.permute.xlu0 %1674
      %1676 = vrot.lane.b32.xlu0 %v1501, 16
      %v1677 = vpop.permute.xlu0 %1676
      %1678 = vrot.lane.b32.xlu0 %v1502, 16
      %v1679 = vpop.permute.xlu0 %1678
      %1680 = vrot.lane.b32.xlu0 %v1503, 16
      %v1681 = vpop.permute.xlu0 %1680
      %1682 = vrot.lane.b32.xlu0 %v1504, 16
      %v1683 = vpop.permute.xlu0 %1682
      %1684 = vrot.lane.b32.xlu0 %v1505, 16
      %v1685 = vpop.permute.xlu0 %1684
      %1686 = vrot.lane.b32.xlu0 %v1506, 16
      %v1687 = vpop.permute.xlu0 %1686
      %1688 = vrot.lane.b32.xlu0 %v1507, 16
      %v1689 = vpop.permute.xlu0 %1688
      %1690 = vrot.lane.b32.xlu0 %v1508, 16
      %v1691 = vpop.permute.xlu0 %1690
      %1692 = vrot.lane.b32.xlu0 %v1509, 16
      %v1693 = vpop.permute.xlu0 %1692
      %1694 = vrot.lane.b32.xlu0 %v1510, 16
      %v1695 = vpop.permute.xlu0 %1694
      %1696 = vrot.lane.b32.xlu0 %v1511, 16
      %v1697 = vpop.permute.xlu0 %1696
      %1698 = vrot.lane.b32.xlu0 %v1512, 16
      %v1699 = vpop.permute.xlu0 %1698
      %1700 = vrot.lane.b32.xlu0 %v1513, 16
      %v1701 = vpop.permute.xlu0 %1700
      %1702 = vrot.lane.b32.xlu0 %v1514, 16
      %v1703 = vpop.permute.xlu0 %1702
      %1704 = vrot.lane.b32.xlu0 %v1515, 16
      %v1705 = vpop.permute.xlu0 %1704
      %1706 = vrot.lane.b32.xlu0 %v1516, 16
      %v1707 = vpop.permute.xlu0 %1706
      %1708 = vrot.lane.b32.xlu0 %v1517, 16
      %v1709 = vpop.permute.xlu0 %1708
      %1710 = vrot.lane.b32.xlu0 %v1518, 16
      %v1711 = vpop.permute.xlu0 %1710
      %1712 = vrot.lane.b32.xlu0 %v1519, 16
      %v1713 = vpop.permute.xlu0 %1712
      %1714 = vrot.lane.b32.xlu0 %v1520, 16
      %v1715 = vpop.permute.xlu0 %1714
      %1716 = vrot.lane.b32.xlu0 %v1521, 16
      %v1717 = vpop.permute.xlu0 %1716
      %1718 = vrot.lane.b32.xlu0 %v1522, 16
      %v1719 = vpop.permute.xlu0 %1718
      %1720 = vrot.lane.b32.xlu0 %v1523, 16
      %v1721 = vpop.permute.xlu0 %1720
      %1722 = vrot.lane.b32.xlu0 %v1524, 16
      %v1723 = vpop.permute.xlu0 %1722
      %1724 = vrot.lane.b32.xlu0 %v1525, 16
      %v1725 = vpop.permute.xlu0 %1724
      %1726 = vrot.lane.b32.xlu0 %v1526, 16
      %v1727 = vpop.permute.xlu0 %1726
      %1728 = vrot.lane.b32.xlu0 %v1527, 16
      %v1729 = vpop.permute.xlu0 %1728
      %1730 = vrot.lane.b32.xlu0 %v1528, 16
      %v1731 = vpop.permute.xlu0 %1730
      %1732 = vrot.lane.b32.xlu0 %v1529, 16
      %v1733 = vpop.permute.xlu0 %1732
      %1734 = vrot.lane.b32.xlu0 %v1530, 16
      %v1735 = vpop.permute.xlu0 %1734
      %1736 = vrot.lane.b32.xlu0 %v1531, 16
      %v1737 = vpop.permute.xlu0 %1736
      %1738 = vrot.lane.b32.xlu0 %v1532, 16
      %v1739 = vpop.permute.xlu0 %1738
      %1740 = vrot.lane.b32.xlu0 %v1533, 16
      %v1741 = vpop.permute.xlu0 %1740
      %1742 = vrot.lane.b32.xlu0 %v1534, 16
      %v1743 = vpop.permute.xlu0 %1742
      %1744 = vrot.lane.b32.xlu0 %v1535, 16
      %v1745 = vpop.permute.xlu0 %1744
      %1746 = vrot.lane.b32.xlu0 %v1536, 16
      %v1747 = vpop.permute.xlu0 %1746
      %1748 = vrot.lane.b32.xlu0 %v1537, 16
      %v1749 = vpop.permute.xlu0 %1748
      %1750 = vrot.lane.b32.xlu0 %v1538, 16
      %v1751 = vpop.permute.xlu0 %1750
      %1752 = vrot.lane.b32.xlu0 %v1539, 16
      %v1753 = vpop.permute.xlu0 %1752
      %1754 = vrot.lane.b32.xlu0 %v1540, 16
      %v1755 = vpop.permute.xlu0 %1754
      %1756 = vrot.lane.b32.xlu0 %v1541, 16
      %v1757 = vpop.permute.xlu0 %1756
      %1758 = vrot.lane.b32.xlu0 %v1542, 16
      %v1759 = vpop.permute.xlu0 %1758
      %1760 = vrot.lane.b32.xlu0 %v1543, 16
      %v1761 = vpop.permute.xlu0 %1760
      %1762 = vrot.lane.b32.xlu0 %v1544, 16
      %v1763 = vpop.permute.xlu0 %1762
      %1764 = vrot.lane.b32.xlu0 %v1545, 16
      %v1765 = vpop.permute.xlu0 %1764
      %1766 = vrot.lane.b32.xlu0 %v1546, 16
      %v1767 = vpop.permute.xlu0 %1766
      %1768 = vrot.lane.b32.xlu0 %v1547, 16
      %v1769 = vpop.permute.xlu0 %1768
      %1770 = vrot.lane.b32.xlu0 %v1548, 16
      %v1771 = vpop.permute.xlu0 %1770
      %1772 = vrot.lane.b32.xlu0 %v1549, 16
      %v1773 = vpop.permute.xlu0 %1772
      %1774 = vrot.lane.b32.xlu0 %v1550, 16
      %v1775 = vpop.permute.xlu0 %1774
      %1776 = vrot.lane.b32.xlu0 %v1551, 16
      %v1777 = vpop.permute.xlu0 %1776
      %1778 = vrot.lane.b32.xlu0 %v1552, 16
      %v1779 = vpop.permute.xlu0 %1778
      %1780 = vrot.lane.b32.xlu0 %v1553, 16
      %v1781 = vpop.permute.xlu0 %1780
      %1782 = vrot.lane.b32.xlu0 %v1554, 16
      %v1783 = vpop.permute.xlu0 %1782
      %1784 = vrot.lane.b32.xlu0 %v1555, 16
      %v1785 = vpop.permute.xlu0 %1784
      %1786 = vrot.lane.b32.xlu0 %v1556, 16
      %v1787 = vpop.permute.xlu0 %1786
      %1788 = vrot.lane.b32.xlu0 %v1557, 16
      %v1789 = vpop.permute.xlu0 %1788
      %1790 = vrot.lane.b32.xlu0 %v1558, 16
      %v1791 = vpop.permute.xlu0 %1790
      %1792 = vrot.lane.b32.xlu0 %v1559, 16
      %v1793 = vpop.permute.xlu0 %1792
      %1794 = vrot.lane.b32.xlu0 %v1560, 16
      %v1795 = vpop.permute.xlu0 %1794
      %1796 = vrot.lane.b32.xlu0 %v1561, 16
      %v1797 = vpop.permute.xlu0 %1796
      %1798 = vrot.lane.b32.xlu0 %v1562, 16
      %v1799 = vpop.permute.xlu0 %1798
      %1800 = vrot.lane.b32.xlu0 %v1563, 16
      %v1801 = vpop.permute.xlu0 %1800
      %1802 = vrot.lane.b32.xlu0 %v1564, 16
      %v1803 = vpop.permute.xlu0 %1802
      %1804 = vrot.lane.b32.xlu0 %v1565, 16
      %v1805 = vpop.permute.xlu0 %1804
      %vm1886 = vcmask 195712
      %1887 = vst.msk [vmem:[#allocation3] sm:$0xff] %vm1886, %v1647
      %1888 = vst.msk [vmem:[#allocation3 + $0x8] sm:$0xff] %vm1886, %v1649
      %1889 = vst.msk [vmem:[#allocation3 + $0x10] sm:$0xff] %vm1886, %v1651
      %1890 = vst.msk [vmem:[#allocation3 + $0x18] sm:$0xff] %vm1886, %v1653
      %1891 = vst.msk [vmem:[#allocation3 + $0x20] sm:$0xff] %vm1886, %v1655
      %1892 = vst.msk [vmem:[#allocation3 + $0x28] sm:$0xff] %vm1886, %v1657
      %1893 = vst.msk [vmem:[#allocation3 + $0x30] sm:$0xff] %vm1886, %v1659
      %1894 = vst.msk [vmem:[#allocation3 + $0x38] sm:$0xff] %vm1886, %v1661
      %1895 = vst.msk [vmem:[#allocation3 + $0x40] sm:$0xff] %vm1886, %v1663
      %1896 = vst.msk [vmem:[#allocation3 + $0x48] sm:$0xff] %vm1886, %v1665
      %1897 = vst.msk [vmem:[#allocation3 + $0x50] sm:$0xff] %vm1886, %v1667
      %1898 = vst.msk [vmem:[#allocation3 + $0x58] sm:$0xff] %vm1886, %v1669
      %1899 = vst.msk [vmem:[#allocation3 + $0x60] sm:$0xff] %vm1886, %v1671
      %1900 = vst.msk [vmem:[#allocation3 + $0x68] sm:$0xff] %vm1886, %v1673
      %1901 = vst.msk [vmem:[#allocation3 + $0x70] sm:$0xff] %vm1886, %v1675
      %1902 = vst.msk [vmem:[#allocation3 + $0x78] sm:$0xff] %vm1886, %v1677
      %1903 = vst.msk [vmem:[#allocation3 + $0x80] sm:$0xff] %vm1886, %v1679
      %1904 = vst.msk [vmem:[#allocation3 + $0x88] sm:$0xff] %vm1886, %v1681
      %1905 = vst.msk [vmem:[#allocation3 + $0x90] sm:$0xff] %vm1886, %v1683
      %1906 = vst.msk [vmem:[#allocation3 + $0x98] sm:$0xff] %vm1886, %v1685
      %1907 = vst.msk [vmem:[#allocation3 + $0xa0] sm:$0xff] %vm1886, %v1687
      %1908 = vst.msk [vmem:[#allocation3 + $0xa8] sm:$0xff] %vm1886, %v1689
      %1909 = vst.msk [vmem:[#allocation3 + $0xb0] sm:$0xff] %vm1886, %v1691
      %1910 = vst.msk [vmem:[#allocation3 + $0xb8] sm:$0xff] %vm1886, %v1693
      %1911 = vst.msk [vmem:[#allocation3 + $0xc0] sm:$0xff] %vm1886, %v1695
      %1912 = vst.msk [vmem:[#allocation3 + $0xc8] sm:$0xff] %vm1886, %v1697
      %1913 = vst.msk [vmem:[#allocation3 + $0xd0] sm:$0xff] %vm1886, %v1699
      %1914 = vst.msk [vmem:[#allocation3 + $0xd8] sm:$0xff] %vm1886, %v1701
      %1915 = vst.msk [vmem:[#allocation3 + $0xe0] sm:$0xff] %vm1886, %v1703
      %1916 = vst.msk [vmem:[#allocation3 + $0xe8] sm:$0xff] %vm1886, %v1705
      %1917 = vst.msk [vmem:[#allocation3 + $0xf0] sm:$0xff] %vm1886, %v1707
      %1918 = vst.msk [vmem:[#allocation3 + $0xf8] sm:$0xff] %vm1886, %v1709
      %1919 = vst.msk [vmem:[#allocation3 + $0x100] sm:$0xff] %vm1886, %v1711
      %1920 = vst.msk [vmem:[#allocation3 + $0x108] sm:$0xff] %vm1886, %v1713
      %1921 = vst.msk [vmem:[#allocation3 + $0x110] sm:$0xff] %vm1886, %v1715
      %1922 = vst.msk [vmem:[#allocation3 + $0x118] sm:$0xff] %vm1886, %v1717
      %1923 = vst.msk [vmem:[#allocation3 + $0x120] sm:$0xff] %vm1886, %v1719
      %1924 = vst.msk [vmem:[#allocation3 + $0x128] sm:$0xff] %vm1886, %v1721
      %1925 = vst.msk [vmem:[#allocation3 + $0x130] sm:$0xff] %vm1886, %v1723
      %1926 = vst.msk [vmem:[#allocation3 + $0x138] sm:$0xff] %vm1886, %v1725
      %1927 = vst.msk [vmem:[#allocation3 + $0x140] sm:$0xff] %vm1886, %v1727
      %1928 = vst.msk [vmem:[#allocation3 + $0x148] sm:$0xff] %vm1886, %v1729
      %1929 = vst.msk [vmem:[#allocation3 + $0x150] sm:$0xff] %vm1886, %v1731
      %1930 = vst.msk [vmem:[#allocation3 + $0x158] sm:$0xff] %vm1886, %v1733
      %1931 = vst.msk [vmem:[#allocation3 + $0x160] sm:$0xff] %vm1886, %v1735
      %1932 = vst.msk [vmem:[#allocation3 + $0x168] sm:$0xff] %vm1886, %v1737
      %1933 = vst.msk [vmem:[#allocation3 + $0x170] sm:$0xff] %vm1886, %v1739
      %1934 = vst.msk [vmem:[#allocation3 + $0x178] sm:$0xff] %vm1886, %v1741
      %1935 = vst.msk [vmem:[#allocation3 + $0x180] sm:$0xff] %vm1886, %v1743
      %1936 = vst.msk [vmem:[#allocation3 + $0x188] sm:$0xff] %vm1886, %v1745
      %1937 = vst.msk [vmem:[#allocation3 + $0x190] sm:$0xff] %vm1886, %v1747
      %1938 = vst.msk [vmem:[#allocation3 + $0x198] sm:$0xff] %vm1886, %v1749
      %1939 = vst.msk [vmem:[#allocation3 + $0x1a0] sm:$0xff] %vm1886, %v1751
      %1940 = vst.msk [vmem:[#allocation3 + $0x1a8] sm:$0xff] %vm1886, %v1753
      %1941 = vst.msk [vmem:[#allocation3 + $0x1b0] sm:$0xff] %vm1886, %v1755
      %1942 = vst.msk [vmem:[#allocation3 + $0x1b8] sm:$0xff] %vm1886, %v1757
      %1943 = vst.msk [vmem:[#allocation3 + $0x1c0] sm:$0xff] %vm1886, %v1759
      %1944 = vst.msk [vmem:[#allocation3 + $0x1c8] sm:$0xff] %vm1886, %v1761
      %1945 = vst.msk [vmem:[#allocation3 + $0x1d0] sm:$0xff] %vm1886, %v1763
      %1946 = vst.msk [vmem:[#allocation3 + $0x1d8] sm:$0xff] %vm1886, %v1765
      %1947 = vst.msk [vmem:[#allocation3 + $0x1e0] sm:$0xff] %vm1886, %v1767
      %1948 = vst.msk [vmem:[#allocation3 + $0x1e8] sm:$0xff] %vm1886, %v1769
      %1949 = vst.msk [vmem:[#allocation3 + $0x1f0] sm:$0xff] %vm1886, %v1771
      %1950 = vst.msk [vmem:[#allocation3 + $0x1f8] sm:$0xff] %vm1886, %v1773
      %1951 = vst.msk [vmem:[#allocation3 + $0x200] sm:$0xff] %vm1886, %v1775
      %1952 = vst.msk [vmem:[#allocation3 + $0x208] sm:$0xff] %vm1886, %v1777
      %1953 = vst.msk [vmem:[#allocation3 + $0x210] sm:$0xff] %vm1886, %v1779
      %1954 = vst.msk [vmem:[#allocation3 + $0x218] sm:$0xff] %vm1886, %v1781
      %1955 = vst.msk [vmem:[#allocation3 + $0x220] sm:$0xff] %vm1886, %v1783
      %1956 = vst.msk [vmem:[#allocation3 + $0x228] sm:$0xff] %vm1886, %v1785
      %1957 = vst.msk [vmem:[#allocation3 + $0x230] sm:$0xff] %vm1886, %v1787
      %1958 = vst.msk [vmem:[#allocation3 + $0x238] sm:$0xff] %vm1886, %v1789
      %1959 = vst.msk [vmem:[#allocation3 + $0x240] sm:$0xff] %vm1886, %v1791
      %1960 = vst.msk [vmem:[#allocation3 + $0x248] sm:$0xff] %vm1886, %v1793
      %1961 = vst.msk [vmem:[#allocation3 + $0x250] sm:$0xff] %vm1886, %v1795
      %1962 = vst.msk [vmem:[#allocation3 + $0x258] sm:$0xff] %vm1886, %v1797
      %1963 = vst.msk [vmem:[#allocation3 + $0x260] sm:$0xff] %vm1886, %v1799
      %1964 = vst.msk [vmem:[#allocation3 + $0x268] sm:$0xff] %vm1886, %v1801
      %1965 = vst.msk [vmem:[#allocation3 + $0x270] sm:$0xff] %vm1886, %v1803
      %1966 = vst.msk [vmem:[#allocation3 + $0x278] sm:$0xff] %vm1886, %v1805
      %s1967 = scalar_lea.vmem [#allocation2], 16
      %v1968 = vld [vmem:[%s1967] sm:$0xff]
      %v1969 = vld [vmem:[%s1967 + $0x10] sm:$0xff]
      %v1970 = vld [vmem:[%s1967 + $0x20] sm:$0xff]
      %v1971 = vld [vmem:[%s1967 + $0x30] sm:$0xff]
      %v1972 = vld [vmem:[%s1967 + $0x40] sm:$0xff]
      %v1973 = vld [vmem:[%s1967 + $0x50] sm:$0xff]
      %v1974 = vld [vmem:[%s1967 + $0x60] sm:$0xff]
      %v1975 = vld [vmem:[%s1967 + $0x70] sm:$0xff]
      %v1976 = vld [vmem:[%s1967 + $0xa0] sm:$0xff]
      %v1977 = vld [vmem:[%s1967 + $0xb0] sm:$0xff]
      %v1978 = vld [vmem:[%s1967 + $0xc0] sm:$0xff]
      %v1979 = vld [vmem:[%s1967 + $0xd0] sm:$0xff]
      %v1980 = vld [vmem:[%s1967 + $0xe0] sm:$0xff]
      %v1981 = vld [vmem:[%s1967 + $0xf0] sm:$0xff]
      %v1982 = vld [vmem:[%s1967 + $0x100] sm:$0xff]
      %v1983 = vld [vmem:[%s1967 + $0x110] sm:$0xff]
      %v1984 = vld [vmem:[%s1967 + $0x140] sm:$0xff]
      %v1985 = vld [vmem:[%s1967 + $0x150] sm:$0xff]
      %v1986 = vld [vmem:[%s1967 + $0x160] sm:$0xff]
      %v1987 = vld [vmem:[%s1967 + $0x170] sm:$0xff]
      %v1988 = vld [vmem:[%s1967 + $0x180] sm:$0xff]
      %v1989 = vld [vmem:[%s1967 + $0x190] sm:$0xff]
      %v1990 = vld [vmem:[%s1967 + $0x1a0] sm:$0xff]
      %v1991 = vld [vmem:[%s1967 + $0x1b0] sm:$0xff]
      %v1992 = vld [vmem:[%s1967 + $0x1e0] sm:$0xff]
      %v1993 = vld [vmem:[%s1967 + $0x1f0] sm:$0xff]
      %v1994 = vld [vmem:[%s1967 + $0x200] sm:$0xff]
      %v1995 = vld [vmem:[%s1967 + $0x210] sm:$0xff]
      %v1996 = vld [vmem:[%s1967 + $0x220] sm:$0xff]
      %v1997 = vld [vmem:[%s1967 + $0x230] sm:$0xff]
      %v1998 = vld [vmem:[%s1967 + $0x240] sm:$0xff]
      %v1999 = vld [vmem:[%s1967 + $0x250] sm:$0xff]
      %v2000 = vld [vmem:[%s1967 + $0x280] sm:$0xff]
      %v2001 = vld [vmem:[%s1967 + $0x290] sm:$0xff]
      %v2002 = vld [vmem:[%s1967 + $0x2a0] sm:$0xff]
      %v2003 = vld [vmem:[%s1967 + $0x2b0] sm:$0xff]
      %v2004 = vld [vmem:[%s1967 + $0x2c0] sm:$0xff]
      %v2005 = vld [vmem:[%s1967 + $0x2d0] sm:$0xff]
      %v2006 = vld [vmem:[%s1967 + $0x2e0] sm:$0xff]
      %v2007 = vld [vmem:[%s1967 + $0x2f0] sm:$0xff]
      %v2008 = vld [vmem:[%s1967 + $0x320] sm:$0xff]
      %v2009 = vld [vmem:[%s1967 + $0x330] sm:$0xff]
      %v2010 = vld [vmem:[%s1967 + $0x340] sm:$0xff]
      %v2011 = vld [vmem:[%s1967 + $0x350] sm:$0xff]
      %v2012 = vld [vmem:[%s1967 + $0x360] sm:$0xff]
      %v2013 = vld [vmem:[%s1967 + $0x370] sm:$0xff]
      %v2014 = vld [vmem:[%s1967 + $0x380] sm:$0xff]
      %v2015 = vld [vmem:[%s1967 + $0x390] sm:$0xff]
      %v2016 = vld [vmem:[%s1967 + $0x3c0] sm:$0xff]
      %v2017 = vld [vmem:[%s1967 + $0x3d0] sm:$0xff]
      %v2018 = vld [vmem:[%s1967 + $0x3e0] sm:$0xff]
      %v2019 = vld [vmem:[%s1967 + $0x3f0] sm:$0xff]
      %v2020 = vld [vmem:[%s1967 + $0x400] sm:$0xff]
      %v2021 = vld [vmem:[%s1967 + $0x410] sm:$0xff]
      %v2022 = vld [vmem:[%s1967 + $0x420] sm:$0xff]
      %v2023 = vld [vmem:[%s1967 + $0x430] sm:$0xff]
      %v2024 = vld [vmem:[%s1967 + $0x460] sm:$0xff]
      %v2025 = vld [vmem:[%s1967 + $0x470] sm:$0xff]
      %v2026 = vld [vmem:[%s1967 + $0x480] sm:$0xff]
      %v2027 = vld [vmem:[%s1967 + $0x490] sm:$0xff]
      %v2028 = vld [vmem:[%s1967 + $0x4a0] sm:$0xff]
      %v2029 = vld [vmem:[%s1967 + $0x4b0] sm:$0xff]
      %v2030 = vld [vmem:[%s1967 + $0x4c0] sm:$0xff]
      %v2031 = vld [vmem:[%s1967 + $0x4d0] sm:$0xff]
      %v2032 = vld [vmem:[%s1967 + $0x500] sm:$0xff]
      %v2033 = vld [vmem:[%s1967 + $0x510] sm:$0xff]
      %v2034 = vld [vmem:[%s1967 + $0x520] sm:$0xff]
      %v2035 = vld [vmem:[%s1967 + $0x530] sm:$0xff]
      %v2036 = vld [vmem:[%s1967 + $0x540] sm:$0xff]
      %v2037 = vld [vmem:[%s1967 + $0x550] sm:$0xff]
      %v2038 = vld [vmem:[%s1967 + $0x560] sm:$0xff]
      %v2039 = vld [vmem:[%s1967 + $0x570] sm:$0xff]
      %v2040 = vld [vmem:[%s1967 + $0x5a0] sm:$0xff]
      %v2041 = vld [vmem:[%s1967 + $0x5b0] sm:$0xff]
      %v2042 = vld [vmem:[%s1967 + $0x5c0] sm:$0xff]
      %v2043 = vld [vmem:[%s1967 + $0x5d0] sm:$0xff]
      %v2044 = vld [vmem:[%s1967 + $0x5e0] sm:$0xff]
      %v2045 = vld [vmem:[%s1967 + $0x5f0] sm:$0xff]
      %v2046 = vld [vmem:[%s1967 + $0x600] sm:$0xff]
      %v2047 = vld [vmem:[%s1967 + $0x610] sm:$0xff]
      %2128 = vrot.lane.b32.xlu0 %v1968, 24
      %v2129 = vpop.permute.xlu0 %2128
      %2130 = vrot.lane.b32.xlu0 %v1969, 24
      %v2131 = vpop.permute.xlu0 %2130
      %2132 = vrot.lane.b32.xlu0 %v1970, 24
      %v2133 = vpop.permute.xlu0 %2132
      %2134 = vrot.lane.b32.xlu0 %v1971, 24
      %v2135 = vpop.permute.xlu0 %2134
      %2136 = vrot.lane.b32.xlu0 %v1972, 24
      %v2137 = vpop.permute.xlu0 %2136
      %2138 = vrot.lane.b32.xlu0 %v1973, 24
      %v2139 = vpop.permute.xlu0 %2138
      %2140 = vrot.lane.b32.xlu0 %v1974, 24
      %v2141 = vpop.permute.xlu0 %2140
      %2142 = vrot.lane.b32.xlu0 %v1975, 24
      %v2143 = vpop.permute.xlu0 %2142
      %2144 = vrot.lane.b32.xlu0 %v1976, 24
      %v2145 = vpop.permute.xlu0 %2144
      %2146 = vrot.lane.b32.xlu0 %v1977, 24
      %v2147 = vpop.permute.xlu0 %2146
      %2148 = vrot.lane.b32.xlu0 %v1978, 24
      %v2149 = vpop.permute.xlu0 %2148
      %2150 = vrot.lane.b32.xlu0 %v1979, 24
      %v2151 = vpop.permute.xlu0 %2150
      %2152 = vrot.lane.b32.xlu0 %v1980, 24
      %v2153 = vpop.permute.xlu0 %2152
      %2154 = vrot.lane.b32.xlu0 %v1981, 24
      %v2155 = vpop.permute.xlu0 %2154
      %2156 = vrot.lane.b32.xlu0 %v1982, 24
      %v2157 = vpop.permute.xlu0 %2156
      %2158 = vrot.lane.b32.xlu0 %v1983, 24
      %v2159 = vpop.permute.xlu0 %2158
      %2160 = vrot.lane.b32.xlu0 %v1984, 24
      %v2161 = vpop.permute.xlu0 %2160
      %2162 = vrot.lane.b32.xlu0 %v1985, 24
      %v2163 = vpop.permute.xlu0 %2162
      %2164 = vrot.lane.b32.xlu0 %v1986, 24
      %v2165 = vpop.permute.xlu0 %2164
      %2166 = vrot.lane.b32.xlu0 %v1987, 24
      %v2167 = vpop.permute.xlu0 %2166
      %2168 = vrot.lane.b32.xlu0 %v1988, 24
      %v2169 = vpop.permute.xlu0 %2168
      %2170 = vrot.lane.b32.xlu0 %v1989, 24
      %v2171 = vpop.permute.xlu0 %2170
      %2172 = vrot.lane.b32.xlu0 %v1990, 24
      %v2173 = vpop.permute.xlu0 %2172
      %2174 = vrot.lane.b32.xlu0 %v1991, 24
      %v2175 = vpop.permute.xlu0 %2174
      %2176 = vrot.lane.b32.xlu0 %v1992, 24
      %v2177 = vpop.permute.xlu0 %2176
      %2178 = vrot.lane.b32.xlu0 %v1993, 24
      %v2179 = vpop.permute.xlu0 %2178
      %2180 = vrot.lane.b32.xlu0 %v1994, 24
      %v2181 = vpop.permute.xlu0 %2180
      %2182 = vrot.lane.b32.xlu0 %v1995, 24
      %v2183 = vpop.permute.xlu0 %2182
      %2184 = vrot.lane.b32.xlu0 %v1996, 24
      %v2185 = vpop.permute.xlu0 %2184
      %2186 = vrot.lane.b32.xlu0 %v1997, 24
      %v2187 = vpop.permute.xlu0 %2186
      %2188 = vrot.lane.b32.xlu0 %v1998, 24
      %v2189 = vpop.permute.xlu0 %2188
      %2190 = vrot.lane.b32.xlu0 %v1999, 24
      %v2191 = vpop.permute.xlu0 %2190
      %2192 = vrot.lane.b32.xlu0 %v2000, 24
      %v2193 = vpop.permute.xlu0 %2192
      %2194 = vrot.lane.b32.xlu0 %v2001, 24
      %v2195 = vpop.permute.xlu0 %2194
      %2196 = vrot.lane.b32.xlu0 %v2002, 24
      %v2197 = vpop.permute.xlu0 %2196
      %2198 = vrot.lane.b32.xlu0 %v2003, 24
      %v2199 = vpop.permute.xlu0 %2198
      %2200 = vrot.lane.b32.xlu0 %v2004, 24
      %v2201 = vpop.permute.xlu0 %2200
      %2202 = vrot.lane.b32.xlu0 %v2005, 24
      %v2203 = vpop.permute.xlu0 %2202
      %2204 = vrot.lane.b32.xlu0 %v2006, 24
      %v2205 = vpop.permute.xlu0 %2204
      %2206 = vrot.lane.b32.xlu0 %v2007, 24
      %v2207 = vpop.permute.xlu0 %2206
      %2208 = vrot.lane.b32.xlu0 %v2008, 24
      %v2209 = vpop.permute.xlu0 %2208
      %2210 = vrot.lane.b32.xlu0 %v2009, 24
      %v2211 = vpop.permute.xlu0 %2210
      %2212 = vrot.lane.b32.xlu0 %v2010, 24
      %v2213 = vpop.permute.xlu0 %2212
      %2214 = vrot.lane.b32.xlu0 %v2011, 24
      %v2215 = vpop.permute.xlu0 %2214
      %2216 = vrot.lane.b32.xlu0 %v2012, 24
      %v2217 = vpop.permute.xlu0 %2216
      %2218 = vrot.lane.b32.xlu0 %v2013, 24
      %v2219 = vpop.permute.xlu0 %2218
      %2220 = vrot.lane.b32.xlu0 %v2014, 24
      %v2221 = vpop.permute.xlu0 %2220
      %2222 = vrot.lane.b32.xlu0 %v2015, 24
      %v2223 = vpop.permute.xlu0 %2222
      %2224 = vrot.lane.b32.xlu0 %v2016, 24
      %v2225 = vpop.permute.xlu0 %2224
      %2226 = vrot.lane.b32.xlu0 %v2017, 24
      %v2227 = vpop.permute.xlu0 %2226
      %2228 = vrot.lane.b32.xlu0 %v2018, 24
      %v2229 = vpop.permute.xlu0 %2228
      %2230 = vrot.lane.b32.xlu0 %v2019, 24
      %v2231 = vpop.permute.xlu0 %2230
      %2232 = vrot.lane.b32.xlu0 %v2020, 24
      %v2233 = vpop.permute.xlu0 %2232
      %2234 = vrot.lane.b32.xlu0 %v2021, 24
      %v2235 = vpop.permute.xlu0 %2234
      %2236 = vrot.lane.b32.xlu0 %v2022, 24
      %v2237 = vpop.permute.xlu0 %2236
      %2238 = vrot.lane.b32.xlu0 %v2023, 24
      %v2239 = vpop.permute.xlu0 %2238
      %2240 = vrot.lane.b32.xlu0 %v2024, 24
      %v2241 = vpop.permute.xlu0 %2240
      %2242 = vrot.lane.b32.xlu0 %v2025, 24
      %v2243 = vpop.permute.xlu0 %2242
      %2244 = vrot.lane.b32.xlu0 %v2026, 24
      %v2245 = vpop.permute.xlu0 %2244
      %2246 = vrot.lane.b32.xlu0 %v2027, 24
      %v2247 = vpop.permute.xlu0 %2246
      %2248 = vrot.lane.b32.xlu0 %v2028, 24
      %v2249 = vpop.permute.xlu0 %2248
      %2250 = vrot.lane.b32.xlu0 %v2029, 24
      %v2251 = vpop.permute.xlu0 %2250
      %2252 = vrot.lane.b32.xlu0 %v2030, 24
      %v2253 = vpop.permute.xlu0 %2252
      %2254 = vrot.lane.b32.xlu0 %v2031, 24
      %v2255 = vpop.permute.xlu0 %2254
      %2256 = vrot.lane.b32.xlu0 %v2032, 24
      %v2257 = vpop.permute.xlu0 %2256
      %2258 = vrot.lane.b32.xlu0 %v2033, 24
      %v2259 = vpop.permute.xlu0 %2258
      %2260 = vrot.lane.b32.xlu0 %v2034, 24
      %v2261 = vpop.permute.xlu0 %2260
      %2262 = vrot.lane.b32.xlu0 %v2035, 24
      %v2263 = vpop.permute.xlu0 %2262
      %2264 = vrot.lane.b32.xlu0 %v2036, 24
      %v2265 = vpop.permute.xlu0 %2264
      %2266 = vrot.lane.b32.xlu0 %v2037, 24
      %v2267 = vpop.permute.xlu0 %2266
      %2268 = vrot.lane.b32.xlu0 %v2038, 24
      %v2269 = vpop.permute.xlu0 %2268
      %2270 = vrot.lane.b32.xlu0 %v2039, 24
      %v2271 = vpop.permute.xlu0 %2270
      %2272 = vrot.lane.b32.xlu0 %v2040, 24
      %v2273 = vpop.permute.xlu0 %2272
      %2274 = vrot.lane.b32.xlu0 %v2041, 24
      %v2275 = vpop.permute.xlu0 %2274
      %2276 = vrot.lane.b32.xlu0 %v2042, 24
      %v2277 = vpop.permute.xlu0 %2276
      %2278 = vrot.lane.b32.xlu0 %v2043, 24
      %v2279 = vpop.permute.xlu0 %2278
      %2280 = vrot.lane.b32.xlu0 %v2044, 24
      %v2281 = vpop.permute.xlu0 %2280
      %2282 = vrot.lane.b32.xlu0 %v2045, 24
      %v2283 = vpop.permute.xlu0 %2282
      %2284 = vrot.lane.b32.xlu0 %v2046, 24
      %v2285 = vpop.permute.xlu0 %2284
      %2286 = vrot.lane.b32.xlu0 %v2047, 24
      %v2287 = vpop.permute.xlu0 %2286
      %vm2368 = vcmask 261312
      %2369 = vst.msk [vmem:[#allocation3] sm:$0xff] %vm2368, %v2129
      %2370 = vst.msk [vmem:[#allocation3 + $0x8] sm:$0xff] %vm2368, %v2131
      %2371 = vst.msk [vmem:[#allocation3 + $0x10] sm:$0xff] %vm2368, %v2133
      %2372 = vst.msk [vmem:[#allocation3 + $0x18] sm:$0xff] %vm2368, %v2135
      %2373 = vst.msk [vmem:[#allocation3 + $0x20] sm:$0xff] %vm2368, %v2137
      %2374 = vst.msk [vmem:[#allocation3 + $0x28] sm:$0xff] %vm2368, %v2139
      %2375 = vst.msk [vmem:[#allocation3 + $0x30] sm:$0xff] %vm2368, %v2141
      %2376 = vst.msk [vmem:[#allocation3 + $0x38] sm:$0xff] %vm2368, %v2143
      %2377 = vst.msk [vmem:[#allocation3 + $0x40] sm:$0xff] %vm2368, %v2145
      %2378 = vst.msk [vmem:[#allocation3 + $0x48] sm:$0xff] %vm2368, %v2147
      %2379 = vst.msk [vmem:[#allocation3 + $0x50] sm:$0xff] %vm2368, %v2149
      %2380 = vst.msk [vmem:[#allocation3 + $0x58] sm:$0xff] %vm2368, %v2151
      %2381 = vst.msk [vmem:[#allocation3 + $0x60] sm:$0xff] %vm2368, %v2153
      %2382 = vst.msk [vmem:[#allocation3 + $0x68] sm:$0xff] %vm2368, %v2155
      %2383 = vst.msk [vmem:[#allocation3 + $0x70] sm:$0xff] %vm2368, %v2157
      %2384 = vst.msk [vmem:[#allocation3 + $0x78] sm:$0xff] %vm2368, %v2159
      %2385 = vst.msk [vmem:[#allocation3 + $0x80] sm:$0xff] %vm2368, %v2161
      %2386 = vst.msk [vmem:[#allocation3 + $0x88] sm:$0xff] %vm2368, %v2163
      %2387 = vst.msk [vmem:[#allocation3 + $0x90] sm:$0xff] %vm2368, %v2165
      %2388 = vst.msk [vmem:[#allocation3 + $0x98] sm:$0xff] %vm2368, %v2167
      %2389 = vst.msk [vmem:[#allocation3 + $0xa0] sm:$0xff] %vm2368, %v2169
      %2390 = vst.msk [vmem:[#allocation3 + $0xa8] sm:$0xff] %vm2368, %v2171
      %2391 = vst.msk [vmem:[#allocation3 + $0xb0] sm:$0xff] %vm2368, %v2173
      %2392 = vst.msk [vmem:[#allocation3 + $0xb8] sm:$0xff] %vm2368, %v2175
      %2393 = vst.msk [vmem:[#allocation3 + $0xc0] sm:$0xff] %vm2368, %v2177
      %2394 = vst.msk [vmem:[#allocation3 + $0xc8] sm:$0xff] %vm2368, %v2179
      %2395 = vst.msk [vmem:[#allocation3 + $0xd0] sm:$0xff] %vm2368, %v2181
      %2396 = vst.msk [vmem:[#allocation3 + $0xd8] sm:$0xff] %vm2368, %v2183
      %2397 = vst.msk [vmem:[#allocation3 + $0xe0] sm:$0xff] %vm2368, %v2185
      %2398 = vst.msk [vmem:[#allocation3 + $0xe8] sm:$0xff] %vm2368, %v2187
      %2399 = vst.msk [vmem:[#allocation3 + $0xf0] sm:$0xff] %vm2368, %v2189
      %2400 = vst.msk [vmem:[#allocation3 + $0xf8] sm:$0xff] %vm2368, %v2191
      %2401 = vst.msk [vmem:[#allocation3 + $0x100] sm:$0xff] %vm2368, %v2193
      %2402 = vst.msk [vmem:[#allocation3 + $0x108] sm:$0xff] %vm2368, %v2195
      %2403 = vst.msk [vmem:[#allocation3 + $0x110] sm:$0xff] %vm2368, %v2197
      %2404 = vst.msk [vmem:[#allocation3 + $0x118] sm:$0xff] %vm2368, %v2199
      %2405 = vst.msk [vmem:[#allocation3 + $0x120] sm:$0xff] %vm2368, %v2201
      %2406 = vst.msk [vmem:[#allocation3 + $0x128] sm:$0xff] %vm2368, %v2203
      %2407 = vst.msk [vmem:[#allocation3 + $0x130] sm:$0xff] %vm2368, %v2205
      %2408 = vst.msk [vmem:[#allocation3 + $0x138] sm:$0xff] %vm2368, %v2207
      %2409 = vst.msk [vmem:[#allocation3 + $0x140] sm:$0xff] %vm2368, %v2209
      %2410 = vst.msk [vmem:[#allocation3 + $0x148] sm:$0xff] %vm2368, %v2211
      %2411 = vst.msk [vmem:[#allocation3 + $0x150] sm:$0xff] %vm2368, %v2213
      %2412 = vst.msk [vmem:[#allocation3 + $0x158] sm:$0xff] %vm2368, %v2215
      %2413 = vst.msk [vmem:[#allocation3 + $0x160] sm:$0xff] %vm2368, %v2217
      %2414 = vst.msk [vmem:[#allocation3 + $0x168] sm:$0xff] %vm2368, %v2219
      %2415 = vst.msk [vmem:[#allocation3 + $0x170] sm:$0xff] %vm2368, %v2221
      %2416 = vst.msk [vmem:[#allocation3 + $0x178] sm:$0xff] %vm2368, %v2223
      %2417 = vst.msk [vmem:[#allocation3 + $0x180] sm:$0xff] %vm2368, %v2225
      %2418 = vst.msk [vmem:[#allocation3 + $0x188] sm:$0xff] %vm2368, %v2227
      %2419 = vst.msk [vmem:[#allocation3 + $0x190] sm:$0xff] %vm2368, %v2229
      %2420 = vst.msk [vmem:[#allocation3 + $0x198] sm:$0xff] %vm2368, %v2231
      %2421 = vst.msk [vmem:[#allocation3 + $0x1a0] sm:$0xff] %vm2368, %v2233
      %2422 = vst.msk [vmem:[#allocation3 + $0x1a8] sm:$0xff] %vm2368, %v2235
      %2423 = vst.msk [vmem:[#allocation3 + $0x1b0] sm:$0xff] %vm2368, %v2237
      %2424 = vst.msk [vmem:[#allocation3 + $0x1b8] sm:$0xff] %vm2368, %v2239
      %2425 = vst.msk [vmem:[#allocation3 + $0x1c0] sm:$0xff] %vm2368, %v2241
      %2426 = vst.msk [vmem:[#allocation3 + $0x1c8] sm:$0xff] %vm2368, %v2243
      %2427 = vst.msk [vmem:[#allocation3 + $0x1d0] sm:$0xff] %vm2368, %v2245
      %2428 = vst.msk [vmem:[#allocation3 + $0x1d8] sm:$0xff] %vm2368, %v2247
      %2429 = vst.msk [vmem:[#allocation3 + $0x1e0] sm:$0xff] %vm2368, %v2249
      %2430 = vst.msk [vmem:[#allocation3 + $0x1e8] sm:$0xff] %vm2368, %v2251
      %2431 = vst.msk [vmem:[#allocation3 + $0x1f0] sm:$0xff] %vm2368, %v2253
      %2432 = vst.msk [vmem:[#allocation3 + $0x1f8] sm:$0xff] %vm2368, %v2255
      %2433 = vst.msk [vmem:[#allocation3 + $0x200] sm:$0xff] %vm2368, %v2257
      %2434 = vst.msk [vmem:[#allocation3 + $0x208] sm:$0xff] %vm2368, %v2259
      %2435 = vst.msk [vmem:[#allocation3 + $0x210] sm:$0xff] %vm2368, %v2261
      %2436 = vst.msk [vmem:[#allocation3 + $0x218] sm:$0xff] %vm2368, %v2263
      %2437 = vst.msk [vmem:[#allocation3 + $0x220] sm:$0xff] %vm2368, %v2265
      %2438 = vst.msk [vmem:[#allocation3 + $0x228] sm:$0xff] %vm2368, %v2267
      %2439 = vst.msk [vmem:[#allocation3 + $0x230] sm:$0xff] %vm2368, %v2269
      %2440 = vst.msk [vmem:[#allocation3 + $0x238] sm:$0xff] %vm2368, %v2271
      %2441 = vst.msk [vmem:[#allocation3 + $0x240] sm:$0xff] %vm2368, %v2273
      %2442 = vst.msk [vmem:[#allocation3 + $0x248] sm:$0xff] %vm2368, %v2275
      %2443 = vst.msk [vmem:[#allocation3 + $0x250] sm:$0xff] %vm2368, %v2277
      %2444 = vst.msk [vmem:[#allocation3 + $0x258] sm:$0xff] %vm2368, %v2279
      %2445 = vst.msk [vmem:[#allocation3 + $0x260] sm:$0xff] %vm2368, %v2281
      %2446 = vst.msk [vmem:[#allocation3 + $0x268] sm:$0xff] %vm2368, %v2283
      %2447 = vst.msk [vmem:[#allocation3 + $0x270] sm:$0xff] %vm2368, %v2285
      %2448 = vst.msk [vmem:[#allocation3 + $0x278] sm:$0xff] %vm2368, %v2287
      %v2449 = vld [vmem:[%s1967 + $0x1] sm:$0xff]
      %v2450 = vld [vmem:[%s1967 + $0x11] sm:$0xff]
      %v2451 = vld [vmem:[%s1967 + $0x21] sm:$0xff]
      %v2452 = vld [vmem:[%s1967 + $0x31] sm:$0xff]
      %v2453 = vld [vmem:[%s1967 + $0x41] sm:$0xff]
      %v2454 = vld [vmem:[%s1967 + $0x51] sm:$0xff]
      %v2455 = vld [vmem:[%s1967 + $0x61] sm:$0xff]
      %v2456 = vld [vmem:[%s1967 + $0x71] sm:$0xff]
      %v2457 = vld [vmem:[%s1967 + $0xa1] sm:$0xff]
      %v2458 = vld [vmem:[%s1967 + $0xb1] sm:$0xff]
      %v2459 = vld [vmem:[%s1967 + $0xc1] sm:$0xff]
      %v2460 = vld [vmem:[%s1967 + $0xd1] sm:$0xff]
      %v2461 = vld [vmem:[%s1967 + $0xe1] sm:$0xff]
      %v2462 = vld [vmem:[%s1967 + $0xf1] sm:$0xff]
      %v2463 = vld [vmem:[%s1967 + $0x101] sm:$0xff]
      %v2464 = vld [vmem:[%s1967 + $0x111] sm:$0xff]
      %v2465 = vld [vmem:[%s1967 + $0x141] sm:$0xff]
      %v2466 = vld [vmem:[%s1967 + $0x151] sm:$0xff]
      %v2467 = vld [vmem:[%s1967 + $0x161] sm:$0xff]
      %v2468 = vld [vmem:[%s1967 + $0x171] sm:$0xff]
      %v2469 = vld [vmem:[%s1967 + $0x181] sm:$0xff]
      %v2470 = vld [vmem:[%s1967 + $0x191] sm:$0xff]
      %v2471 = vld [vmem:[%s1967 + $0x1a1] sm:$0xff]
      %v2472 = vld [vmem:[%s1967 + $0x1b1] sm:$0xff]
      %v2473 = vld [vmem:[%s1967 + $0x1e1] sm:$0xff]
      %v2474 = vld [vmem:[%s1967 + $0x1f1] sm:$0xff]
      %v2475 = vld [vmem:[%s1967 + $0x201] sm:$0xff]
      %v2476 = vld [vmem:[%s1967 + $0x211] sm:$0xff]
      %v2477 = vld [vmem:[%s1967 + $0x221] sm:$0xff]
      %v2478 = vld [vmem:[%s1967 + $0x231] sm:$0xff]
      %v2479 = vld [vmem:[%s1967 + $0x241] sm:$0xff]
      %v2480 = vld [vmem:[%s1967 + $0x251] sm:$0xff]
      %v2481 = vld [vmem:[%s1967 + $0x281] sm:$0xff]
      %v2482 = vld [vmem:[%s1967 + $0x291] sm:$0xff]
      %v2483 = vld [vmem:[%s1967 + $0x2a1] sm:$0xff]
      %v2484 = vld [vmem:[%s1967 + $0x2b1] sm:$0xff]
      %v2485 = vld [vmem:[%s1967 + $0x2c1] sm:$0xff]
      %v2486 = vld [vmem:[%s1967 + $0x2d1] sm:$0xff]
      %v2487 = vld [vmem:[%s1967 + $0x2e1] sm:$0xff]
      %v2488 = vld [vmem:[%s1967 + $0x2f1] sm:$0xff]
      %v2489 = vld [vmem:[%s1967 + $0x321] sm:$0xff]
      %v2490 = vld [vmem:[%s1967 + $0x331] sm:$0xff]
      %v2491 = vld [vmem:[%s1967 + $0x341] sm:$0xff]
      %v2492 = vld [vmem:[%s1967 + $0x351] sm:$0xff]
      %v2493 = vld [vmem:[%s1967 + $0x361] sm:$0xff]
      %v2494 = vld [vmem:[%s1967 + $0x371] sm:$0xff]
      %v2495 = vld [vmem:[%s1967 + $0x381] sm:$0xff]
      %v2496 = vld [vmem:[%s1967 + $0x391] sm:$0xff]
      %v2497 = vld [vmem:[%s1967 + $0x3c1] sm:$0xff]
      %v2498 = vld [vmem:[%s1967 + $0x3d1] sm:$0xff]
      %v2499 = vld [vmem:[%s1967 + $0x3e1] sm:$0xff]
      %v2500 = vld [vmem:[%s1967 + $0x3f1] sm:$0xff]
      %v2501 = vld [vmem:[%s1967 + $0x401] sm:$0xff]
      %v2502 = vld [vmem:[%s1967 + $0x411] sm:$0xff]
      %v2503 = vld [vmem:[%s1967 + $0x421] sm:$0xff]
      %v2504 = vld [vmem:[%s1967 + $0x431] sm:$0xff]
      %v2505 = vld [vmem:[%s1967 + $0x461] sm:$0xff]
      %v2506 = vld [vmem:[%s1967 + $0x471] sm:$0xff]
      %v2507 = vld [vmem:[%s1967 + $0x481] sm:$0xff]
      %v2508 = vld [vmem:[%s1967 + $0x491] sm:$0xff]
      %v2509 = vld [vmem:[%s1967 + $0x4a1] sm:$0xff]
      %v2510 = vld [vmem:[%s1967 + $0x4b1] sm:$0xff]
      %v2511 = vld [vmem:[%s1967 + $0x4c1] sm:$0xff]
      %v2512 = vld [vmem:[%s1967 + $0x4d1] sm:$0xff]
      %v2513 = vld [vmem:[%s1967 + $0x501] sm:$0xff]
      %v2514 = vld [vmem:[%s1967 + $0x511] sm:$0xff]
      %v2515 = vld [vmem:[%s1967 + $0x521] sm:$0xff]
      %v2516 = vld [vmem:[%s1967 + $0x531] sm:$0xff]
      %v2517 = vld [vmem:[%s1967 + $0x541] sm:$0xff]
      %v2518 = vld [vmem:[%s1967 + $0x551] sm:$0xff]
      %v2519 = vld [vmem:[%s1967 + $0x561] sm:$0xff]
      %v2520 = vld [vmem:[%s1967 + $0x571] sm:$0xff]
      %v2521 = vld [vmem:[%s1967 + $0x5a1] sm:$0xff]
      %v2522 = vld [vmem:[%s1967 + $0x5b1] sm:$0xff]
      %v2523 = vld [vmem:[%s1967 + $0x5c1] sm:$0xff]
      %v2524 = vld [vmem:[%s1967 + $0x5d1] sm:$0xff]
      %v2525 = vld [vmem:[%s1967 + $0x5e1] sm:$0xff]
      %v2526 = vld [vmem:[%s1967 + $0x5f1] sm:$0xff]
      %v2527 = vld [vmem:[%s1967 + $0x601] sm:$0xff]
      %v2528 = vld [vmem:[%s1967 + $0x611] sm:$0xff]
      %2609 = vrot.lane.b32.xlu0 %v2449, 32
      %v2610 = vpop.permute.xlu0 %2609
      %2611 = vrot.lane.b32.xlu0 %v2450, 32
      %v2612 = vpop.permute.xlu0 %2611
      %2613 = vrot.lane.b32.xlu0 %v2451, 32
      %v2614 = vpop.permute.xlu0 %2613
      %2615 = vrot.lane.b32.xlu0 %v2452, 32
      %v2616 = vpop.permute.xlu0 %2615
      %2617 = vrot.lane.b32.xlu0 %v2453, 32
      %v2618 = vpop.permute.xlu0 %2617
      %2619 = vrot.lane.b32.xlu0 %v2454, 32
      %v2620 = vpop.permute.xlu0 %2619
      %2621 = vrot.lane.b32.xlu0 %v2455, 32
      %v2622 = vpop.permute.xlu0 %2621
      %2623 = vrot.lane.b32.xlu0 %v2456, 32
      %v2624 = vpop.permute.xlu0 %2623
      %2625 = vrot.lane.b32.xlu0 %v2457, 32
      %v2626 = vpop.permute.xlu0 %2625
      %2627 = vrot.lane.b32.xlu0 %v2458, 32
      %v2628 = vpop.permute.xlu0 %2627
      %2629 = vrot.lane.b32.xlu0 %v2459, 32
      %v2630 = vpop.permute.xlu0 %2629
      %2631 = vrot.lane.b32.xlu0 %v2460, 32
      %v2632 = vpop.permute.xlu0 %2631
      %2633 = vrot.lane.b32.xlu0 %v2461, 32
      %v2634 = vpop.permute.xlu0 %2633
      %2635 = vrot.lane.b32.xlu0 %v2462, 32
      %v2636 = vpop.permute.xlu0 %2635
      %2637 = vrot.lane.b32.xlu0 %v2463, 32
      %v2638 = vpop.permute.xlu0 %2637
      %2639 = vrot.lane.b32.xlu0 %v2464, 32
      %v2640 = vpop.permute.xlu0 %2639
      %2641 = vrot.lane.b32.xlu0 %v2465, 32
      %v2642 = vpop.permute.xlu0 %2641
      %2643 = vrot.lane.b32.xlu0 %v2466, 32
      %v2644 = vpop.permute.xlu0 %2643
      %2645 = vrot.lane.b32.xlu0 %v2467, 32
      %v2646 = vpop.permute.xlu0 %2645
      %2647 = vrot.lane.b32.xlu0 %v2468, 32
      %v2648 = vpop.permute.xlu0 %2647
      %2649 = vrot.lane.b32.xlu0 %v2469, 32
      %v2650 = vpop.permute.xlu0 %2649
      %2651 = vrot.lane.b32.xlu0 %v2470, 32
      %v2652 = vpop.permute.xlu0 %2651
      %2653 = vrot.lane.b32.xlu0 %v2471, 32
      %v2654 = vpop.permute.xlu0 %2653
      %2655 = vrot.lane.b32.xlu0 %v2472, 32
      %v2656 = vpop.permute.xlu0 %2655
      %2657 = vrot.lane.b32.xlu0 %v2473, 32
      %v2658 = vpop.permute.xlu0 %2657
      %2659 = vrot.lane.b32.xlu0 %v2474, 32
      %v2660 = vpop.permute.xlu0 %2659
      %2661 = vrot.lane.b32.xlu0 %v2475, 32
      %v2662 = vpop.permute.xlu0 %2661
      %2663 = vrot.lane.b32.xlu0 %v2476, 32
      %v2664 = vpop.permute.xlu0 %2663
      %2665 = vrot.lane.b32.xlu0 %v2477, 32
      %v2666 = vpop.permute.xlu0 %2665
      %2667 = vrot.lane.b32.xlu0 %v2478, 32
      %v2668 = vpop.permute.xlu0 %2667
      %2669 = vrot.lane.b32.xlu0 %v2479, 32
      %v2670 = vpop.permute.xlu0 %2669
      %2671 = vrot.lane.b32.xlu0 %v2480, 32
      %v2672 = vpop.permute.xlu0 %2671
      %2673 = vrot.lane.b32.xlu0 %v2481, 32
      %v2674 = vpop.permute.xlu0 %2673
      %2675 = vrot.lane.b32.xlu0 %v2482, 32
      %v2676 = vpop.permute.xlu0 %2675
      %2677 = vrot.lane.b32.xlu0 %v2483, 32
      %v2678 = vpop.permute.xlu0 %2677
      %2679 = vrot.lane.b32.xlu0 %v2484, 32
      %v2680 = vpop.permute.xlu0 %2679
      %2681 = vrot.lane.b32.xlu0 %v2485, 32
      %v2682 = vpop.permute.xlu0 %2681
      %2683 = vrot.lane.b32.xlu0 %v2486, 32
      %v2684 = vpop.permute.xlu0 %2683
      %2685 = vrot.lane.b32.xlu0 %v2487, 32
      %v2686 = vpop.permute.xlu0 %2685
      %2687 = vrot.lane.b32.xlu0 %v2488, 32
      %v2688 = vpop.permute.xlu0 %2687
      %2689 = vrot.lane.b32.xlu0 %v2489, 32
      %v2690 = vpop.permute.xlu0 %2689
      %2691 = vrot.lane.b32.xlu0 %v2490, 32
      %v2692 = vpop.permute.xlu0 %2691
      %2693 = vrot.lane.b32.xlu0 %v2491, 32
      %v2694 = vpop.permute.xlu0 %2693
      %2695 = vrot.lane.b32.xlu0 %v2492, 32
      %v2696 = vpop.permute.xlu0 %2695
      %2697 = vrot.lane.b32.xlu0 %v2493, 32
      %v2698 = vpop.permute.xlu0 %2697
      %2699 = vrot.lane.b32.xlu0 %v2494, 32
      %v2700 = vpop.permute.xlu0 %2699
      %2701 = vrot.lane.b32.xlu0 %v2495, 32
      %v2702 = vpop.permute.xlu0 %2701
      %2703 = vrot.lane.b32.xlu0 %v2496, 32
      %v2704 = vpop.permute.xlu0 %2703
      %2705 = vrot.lane.b32.xlu0 %v2497, 32
      %v2706 = vpop.permute.xlu0 %2705
      %2707 = vrot.lane.b32.xlu0 %v2498, 32
      %v2708 = vpop.permute.xlu0 %2707
      %2709 = vrot.lane.b32.xlu0 %v2499, 32
      %v2710 = vpop.permute.xlu0 %2709
      %2711 = vrot.lane.b32.xlu0 %v2500, 32
      %v2712 = vpop.permute.xlu0 %2711
      %2713 = vrot.lane.b32.xlu0 %v2501, 32
      %v2714 = vpop.permute.xlu0 %2713
      %2715 = vrot.lane.b32.xlu0 %v2502, 32
      %v2716 = vpop.permute.xlu0 %2715
      %2717 = vrot.lane.b32.xlu0 %v2503, 32
      %v2718 = vpop.permute.xlu0 %2717
      %2719 = vrot.lane.b32.xlu0 %v2504, 32
      %v2720 = vpop.permute.xlu0 %2719
      %2721 = vrot.lane.b32.xlu0 %v2505, 32
      %v2722 = vpop.permute.xlu0 %2721
      %2723 = vrot.lane.b32.xlu0 %v2506, 32
      %v2724 = vpop.permute.xlu0 %2723
      %2725 = vrot.lane.b32.xlu0 %v2507, 32
      %v2726 = vpop.permute.xlu0 %2725
      %2727 = vrot.lane.b32.xlu0 %v2508, 32
      %v2728 = vpop.permute.xlu0 %2727
      %2729 = vrot.lane.b32.xlu0 %v2509, 32
      %v2730 = vpop.permute.xlu0 %2729
      %2731 = vrot.lane.b32.xlu0 %v2510, 32
      %v2732 = vpop.permute.xlu0 %2731
      %2733 = vrot.lane.b32.xlu0 %v2511, 32
      %v2734 = vpop.permute.xlu0 %2733
      %2735 = vrot.lane.b32.xlu0 %v2512, 32
      %v2736 = vpop.permute.xlu0 %2735
      %2737 = vrot.lane.b32.xlu0 %v2513, 32
      %v2738 = vpop.permute.xlu0 %2737
      %2739 = vrot.lane.b32.xlu0 %v2514, 32
      %v2740 = vpop.permute.xlu0 %2739
      %2741 = vrot.lane.b32.xlu0 %v2515, 32
      %v2742 = vpop.permute.xlu0 %2741
      %2743 = vrot.lane.b32.xlu0 %v2516, 32
      %v2744 = vpop.permute.xlu0 %2743
      %2745 = vrot.lane.b32.xlu0 %v2517, 32
      %v2746 = vpop.permute.xlu0 %2745
      %2747 = vrot.lane.b32.xlu0 %v2518, 32
      %v2748 = vpop.permute.xlu0 %2747
      %2749 = vrot.lane.b32.xlu0 %v2519, 32
      %v2750 = vpop.permute.xlu0 %2749
      %2751 = vrot.lane.b32.xlu0 %v2520, 32
      %v2752 = vpop.permute.xlu0 %2751
      %2753 = vrot.lane.b32.xlu0 %v2521, 32
      %v2754 = vpop.permute.xlu0 %2753
      %2755 = vrot.lane.b32.xlu0 %v2522, 32
      %v2756 = vpop.permute.xlu0 %2755
      %2757 = vrot.lane.b32.xlu0 %v2523, 32
      %v2758 = vpop.permute.xlu0 %2757
      %2759 = vrot.lane.b32.xlu0 %v2524, 32
      %v2760 = vpop.permute.xlu0 %2759
      %2761 = vrot.lane.b32.xlu0 %v2525, 32
      %v2762 = vpop.permute.xlu0 %2761
      %2763 = vrot.lane.b32.xlu0 %v2526, 32
      %v2764 = vpop.permute.xlu0 %2763
      %2765 = vrot.lane.b32.xlu0 %v2527, 32
      %v2766 = vpop.permute.xlu0 %2765
      %2767 = vrot.lane.b32.xlu0 %v2528, 32
      %v2768 = vpop.permute.xlu0 %2767
      %vm2849 = vcmask 326912
      %2850 = vst.msk [vmem:[#allocation3] sm:$0xff] %vm2849, %v2610
      %2851 = vst.msk [vmem:[#allocation3 + $0x8] sm:$0xff] %vm2849, %v2612
      %2852 = vst.msk [vmem:[#allocation3 + $0x10] sm:$0xff] %vm2849, %v2614
      %2853 = vst.msk [vmem:[#allocation3 + $0x18] sm:$0xff] %vm2849, %v2616
      %2854 = vst.msk [vmem:[#allocation3 + $0x20] sm:$0xff] %vm2849, %v2618
      %2855 = vst.msk [vmem:[#allocation3 + $0x28] sm:$0xff] %vm2849, %v2620
      %2856 = vst.msk [vmem:[#allocation3 + $0x30] sm:$0xff] %vm2849, %v2622
      %2857 = vst.msk [vmem:[#allocation3 + $0x38] sm:$0xff] %vm2849, %v2624
      %2858 = vst.msk [vmem:[#allocation3 + $0x40] sm:$0xff] %vm2849, %v2626
      %2859 = vst.msk [vmem:[#allocation3 + $0x48] sm:$0xff] %vm2849, %v2628
      %2860 = vst.msk [vmem:[#allocation3 + $0x50] sm:$0xff] %vm2849, %v2630
      %2861 = vst.msk [vmem:[#allocation3 + $0x58] sm:$0xff] %vm2849, %v2632
      %2862 = vst.msk [vmem:[#allocation3 + $0x60] sm:$0xff] %vm2849, %v2634
      %2863 = vst.msk [vmem:[#allocation3 + $0x68] sm:$0xff] %vm2849, %v2636
      %2864 = vst.msk [vmem:[#allocation3 + $0x70] sm:$0xff] %vm2849, %v2638
      %2865 = vst.msk [vmem:[#allocation3 + $0x78] sm:$0xff] %vm2849, %v2640
      %2866 = vst.msk [vmem:[#allocation3 + $0x80] sm:$0xff] %vm2849, %v2642
      %2867 = vst.msk [vmem:[#allocation3 + $0x88] sm:$0xff] %vm2849, %v2644
      %2868 = vst.msk [vmem:[#allocation3 + $0x90] sm:$0xff] %vm2849, %v2646
      %2869 = vst.msk [vmem:[#allocation3 + $0x98] sm:$0xff] %vm2849, %v2648
      %2870 = vst.msk [vmem:[#allocation3 + $0xa0] sm:$0xff] %vm2849, %v2650
      %2871 = vst.msk [vmem:[#allocation3 + $0xa8] sm:$0xff] %vm2849, %v2652
      %2872 = vst.msk [vmem:[#allocation3 + $0xb0] sm:$0xff] %vm2849, %v2654
      %2873 = vst.msk [vmem:[#allocation3 + $0xb8] sm:$0xff] %vm2849, %v2656
      %2874 = vst.msk [vmem:[#allocation3 + $0xc0] sm:$0xff] %vm2849, %v2658
      %2875 = vst.msk [vmem:[#allocation3 + $0xc8] sm:$0xff] %vm2849, %v2660
      %2876 = vst.msk [vmem:[#allocation3 + $0xd0] sm:$0xff] %vm2849, %v2662
      %2877 = vst.msk [vmem:[#allocation3 + $0xd8] sm:$0xff] %vm2849, %v2664
      %2878 = vst.msk [vmem:[#allocation3 + $0xe0] sm:$0xff] %vm2849, %v2666
      %2879 = vst.msk [vmem:[#allocation3 + $0xe8] sm:$0xff] %vm2849, %v2668
      %2880 = vst.msk [vmem:[#allocation3 + $0xf0] sm:$0xff] %vm2849, %v2670
      %2881 = vst.msk [vmem:[#allocation3 + $0xf8] sm:$0xff] %vm2849, %v2672
      %2882 = vst.msk [vmem:[#allocation3 + $0x100] sm:$0xff] %vm2849, %v2674
      %2883 = vst.msk [vmem:[#allocation3 + $0x108] sm:$0xff] %vm2849, %v2676
      %2884 = vst.msk [vmem:[#allocation3 + $0x110] sm:$0xff] %vm2849, %v2678
      %2885 = vst.msk [vmem:[#allocation3 + $0x118] sm:$0xff] %vm2849, %v2680
      %2886 = vst.msk [vmem:[#allocation3 + $0x120] sm:$0xff] %vm2849, %v2682
      %2887 = vst.msk [vmem:[#allocation3 + $0x128] sm:$0xff] %vm2849, %v2684
      %2888 = vst.msk [vmem:[#allocation3 + $0x130] sm:$0xff] %vm2849, %v2686
      %2889 = vst.msk [vmem:[#allocation3 + $0x138] sm:$0xff] %vm2849, %v2688
      %2890 = vst.msk [vmem:[#allocation3 + $0x140] sm:$0xff] %vm2849, %v2690
      %2891 = vst.msk [vmem:[#allocation3 + $0x148] sm:$0xff] %vm2849, %v2692
      %2892 = vst.msk [vmem:[#allocation3 + $0x150] sm:$0xff] %vm2849, %v2694
      %2893 = vst.msk [vmem:[#allocation3 + $0x158] sm:$0xff] %vm2849, %v2696
      %2894 = vst.msk [vmem:[#allocation3 + $0x160] sm:$0xff] %vm2849, %v2698
      %2895 = vst.msk [vmem:[#allocation3 + $0x168] sm:$0xff] %vm2849, %v2700
      %2896 = vst.msk [vmem:[#allocation3 + $0x170] sm:$0xff] %vm2849, %v2702
      %2897 = vst.msk [vmem:[#allocation3 + $0x178] sm:$0xff] %vm2849, %v2704
      %2898 = vst.msk [vmem:[#allocation3 + $0x180] sm:$0xff] %vm2849, %v2706
      %2899 = vst.msk [vmem:[#allocation3 + $0x188] sm:$0xff] %vm2849, %v2708
      %2900 = vst.msk [vmem:[#allocation3 + $0x190] sm:$0xff] %vm2849, %v2710
      %2901 = vst.msk [vmem:[#allocation3 + $0x198] sm:$0xff] %vm2849, %v2712
      %2902 = vst.msk [vmem:[#allocation3 + $0x1a0] sm:$0xff] %vm2849, %v2714
      %2903 = vst.msk [vmem:[#allocation3 + $0x1a8] sm:$0xff] %vm2849, %v2716
      %2904 = vst.msk [vmem:[#allocation3 + $0x1b0] sm:$0xff] %vm2849, %v2718
      %2905 = vst.msk [vmem:[#allocation3 + $0x1b8] sm:$0xff] %vm2849, %v2720
      %2906 = vst.msk [vmem:[#allocation3 + $0x1c0] sm:$0xff] %vm2849, %v2722
      %2907 = vst.msk [vmem:[#allocation3 + $0x1c8] sm:$0xff] %vm2849, %v2724
      %2908 = vst.msk [vmem:[#allocation3 + $0x1d0] sm:$0xff] %vm2849, %v2726
      %2909 = vst.msk [vmem:[#allocation3 + $0x1d8] sm:$0xff] %vm2849, %v2728
      %2910 = vst.msk [vmem:[#allocation3 + $0x1e0] sm:$0xff] %vm2849, %v2730
      %2911 = vst.msk [vmem:[#allocation3 + $0x1e8] sm:$0xff] %vm2849, %v2732
      %2912 = vst.msk [vmem:[#allocation3 + $0x1f0] sm:$0xff] %vm2849, %v2734
      %2913 = vst.msk [vmem:[#allocation3 + $0x1f8] sm:$0xff] %vm2849, %v2736
      %2914 = vst.msk [vmem:[#allocation3 + $0x200] sm:$0xff] %vm2849, %v2738
      %2915 = vst.msk [vmem:[#allocation3 + $0x208] sm:$0xff] %vm2849, %v2740
      %2916 = vst.msk [vmem:[#allocation3 + $0x210] sm:$0xff] %vm2849, %v2742
      %2917 = vst.msk [vmem:[#allocation3 + $0x218] sm:$0xff] %vm2849, %v2744
      %2918 = vst.msk [vmem:[#allocation3 + $0x220] sm:$0xff] %vm2849, %v2746
      %2919 = vst.msk [vmem:[#allocation3 + $0x228] sm:$0xff] %vm2849, %v2748
      %2920 = vst.msk [vmem:[#allocation3 + $0x230] sm:$0xff] %vm2849, %v2750
      %2921 = vst.msk [vmem:[#allocation3 + $0x238] sm:$0xff] %vm2849, %v2752
      %2922 = vst.msk [vmem:[#allocation3 + $0x240] sm:$0xff] %vm2849, %v2754
      %2923 = vst.msk [vmem:[#allocation3 + $0x248] sm:$0xff] %vm2849, %v2756
      %2924 = vst.msk [vmem:[#allocation3 + $0x250] sm:$0xff] %vm2849, %v2758
      %2925 = vst.msk [vmem:[#allocation3 + $0x258] sm:$0xff] %vm2849, %v2760
      %2926 = vst.msk [vmem:[#allocation3 + $0x260] sm:$0xff] %vm2849, %v2762
      %2927 = vst.msk [vmem:[#allocation3 + $0x268] sm:$0xff] %vm2849, %v2764
      %2928 = vst.msk [vmem:[#allocation3 + $0x270] sm:$0xff] %vm2849, %v2766
      %2929 = vst.msk [vmem:[#allocation3 + $0x278] sm:$0xff] %vm2849, %v2768
      %v2930 = vld [vmem:[%s1967 + $0x2] sm:$0xff]
      %v2931 = vld [vmem:[%s1967 + $0x12] sm:$0xff]
      %v2932 = vld [vmem:[%s1967 + $0x22] sm:$0xff]
      %v2933 = vld [vmem:[%s1967 + $0x32] sm:$0xff]
      %v2934 = vld [vmem:[%s1967 + $0x42] sm:$0xff]
      %v2935 = vld [vmem:[%s1967 + $0x52] sm:$0xff]
      %v2936 = vld [vmem:[%s1967 + $0x62] sm:$0xff]
      %v2937 = vld [vmem:[%s1967 + $0x72] sm:$0xff]
      %v2938 = vld [vmem:[%s1967 + $0xa2] sm:$0xff]
      %v2939 = vld [vmem:[%s1967 + $0xb2] sm:$0xff]
      %v2940 = vld [vmem:[%s1967 + $0xc2] sm:$0xff]
      %v2941 = vld [vmem:[%s1967 + $0xd2] sm:$0xff]
      %v2942 = vld [vmem:[%s1967 + $0xe2] sm:$0xff]
      %v2943 = vld [vmem:[%s1967 + $0xf2] sm:$0xff]
      %v2944 = vld [vmem:[%s1967 + $0x102] sm:$0xff]
      %v2945 = vld [vmem:[%s1967 + $0x112] sm:$0xff]
      %v2946 = vld [vmem:[%s1967 + $0x142] sm:$0xff]
      %v2947 = vld [vmem:[%s1967 + $0x152] sm:$0xff]
      %v2948 = vld [vmem:[%s1967 + $0x162] sm:$0xff]
      %v2949 = vld [vmem:[%s1967 + $0x172] sm:$0xff]
      %v2950 = vld [vmem:[%s1967 + $0x182] sm:$0xff]
      %v2951 = vld [vmem:[%s1967 + $0x192] sm:$0xff]
      %v2952 = vld [vmem:[%s1967 + $0x1a2] sm:$0xff]
      %v2953 = vld [vmem:[%s1967 + $0x1b2] sm:$0xff]
      %v2954 = vld [vmem:[%s1967 + $0x1e2] sm:$0xff]
      %v2955 = vld [vmem:[%s1967 + $0x1f2] sm:$0xff]
      %v2956 = vld [vmem:[%s1967 + $0x202] sm:$0xff]
      %v2957 = vld [vmem:[%s1967 + $0x212] sm:$0xff]
      %v2958 = vld [vmem:[%s1967 + $0x222] sm:$0xff]
      %v2959 = vld [vmem:[%s1967 + $0x232] sm:$0xff]
      %v2960 = vld [vmem:[%s1967 + $0x242] sm:$0xff]
      %v2961 = vld [vmem:[%s1967 + $0x252] sm:$0xff]
      %v2962 = vld [vmem:[%s1967 + $0x282] sm:$0xff]
      %v2963 = vld [vmem:[%s1967 + $0x292] sm:$0xff]
      %v2964 = vld [vmem:[%s1967 + $0x2a2] sm:$0xff]
      %v2965 = vld [vmem:[%s1967 + $0x2b2] sm:$0xff]
      %v2966 = vld [vmem:[%s1967 + $0x2c2] sm:$0xff]
      %v2967 = vld [vmem:[%s1967 + $0x2d2] sm:$0xff]
      %v2968 = vld [vmem:[%s1967 + $0x2e2] sm:$0xff]
      %v2969 = vld [vmem:[%s1967 + $0x2f2] sm:$0xff]
      %v2970 = vld [vmem:[%s1967 + $0x322] sm:$0xff]
      %v2971 = vld [vmem:[%s1967 + $0x332] sm:$0xff]
      %v2972 = vld [vmem:[%s1967 + $0x342] sm:$0xff]
      %v2973 = vld [vmem:[%s1967 + $0x352] sm:$0xff]
      %v2974 = vld [vmem:[%s1967 + $0x362] sm:$0xff]
      %v2975 = vld [vmem:[%s1967 + $0x372] sm:$0xff]
      %v2976 = vld [vmem:[%s1967 + $0x382] sm:$0xff]
      %v2977 = vld [vmem:[%s1967 + $0x392] sm:$0xff]
      %v2978 = vld [vmem:[%s1967 + $0x3c2] sm:$0xff]
      %v2979 = vld [vmem:[%s1967 + $0x3d2] sm:$0xff]
      %v2980 = vld [vmem:[%s1967 + $0x3e2] sm:$0xff]
      %v2981 = vld [vmem:[%s1967 + $0x3f2] sm:$0xff]
      %v2982 = vld [vmem:[%s1967 + $0x402] sm:$0xff]
      %v2983 = vld [vmem:[%s1967 + $0x412] sm:$0xff]
      %v2984 = vld [vmem:[%s1967 + $0x422] sm:$0xff]
      %v2985 = vld [vmem:[%s1967 + $0x432] sm:$0xff]
      %v2986 = vld [vmem:[%s1967 + $0x462] sm:$0xff]
      %v2987 = vld [vmem:[%s1967 + $0x472] sm:$0xff]
      %v2988 = vld [vmem:[%s1967 + $0x482] sm:$0xff]
      %v2989 = vld [vmem:[%s1967 + $0x492] sm:$0xff]
      %v2990 = vld [vmem:[%s1967 + $0x4a2] sm:$0xff]
      %v2991 = vld [vmem:[%s1967 + $0x4b2] sm:$0xff]
      %v2992 = vld [vmem:[%s1967 + $0x4c2] sm:$0xff]
      %v2993 = vld [vmem:[%s1967 + $0x4d2] sm:$0xff]
      %v2994 = vld [vmem:[%s1967 + $0x502] sm:$0xff]
      %v2995 = vld [vmem:[%s1967 + $0x512] sm:$0xff]
      %v2996 = vld [vmem:[%s1967 + $0x522] sm:$0xff]
      %v2997 = vld [vmem:[%s1967 + $0x532] sm:$0xff]
      %v2998 = vld [vmem:[%s1967 + $0x542] sm:$0xff]
      %v2999 = vld [vmem:[%s1967 + $0x552] sm:$0xff]
      %v3000 = vld [vmem:[%s1967 + $0x562] sm:$0xff]
      %v3001 = vld [vmem:[%s1967 + $0x572] sm:$0xff]
      %v3002 = vld [vmem:[%s1967 + $0x5a2] sm:$0xff]
      %v3003 = vld [vmem:[%s1967 + $0x5b2] sm:$0xff]
      %v3004 = vld [vmem:[%s1967 + $0x5c2] sm:$0xff]
      %v3005 = vld [vmem:[%s1967 + $0x5d2] sm:$0xff]
      %v3006 = vld [vmem:[%s1967 + $0x5e2] sm:$0xff]
      %v3007 = vld [vmem:[%s1967 + $0x5f2] sm:$0xff]
      %v3008 = vld [vmem:[%s1967 + $0x602] sm:$0xff]
      %v3009 = vld [vmem:[%s1967 + $0x612] sm:$0xff]
      %3090 = vrot.lane.b32.xlu0 %v2930, 40
      %v3091 = vpop.permute.xlu0 %3090
      %3092 = vrot.lane.b32.xlu0 %v2931, 40
      %v3093 = vpop.permute.xlu0 %3092
      %3094 = vrot.lane.b32.xlu0 %v2932, 40
      %v3095 = vpop.permute.xlu0 %3094
      %3096 = vrot.lane.b32.xlu0 %v2933, 40
      %v3097 = vpop.permute.xlu0 %3096
      %3098 = vrot.lane.b32.xlu0 %v2934, 40
      %v3099 = vpop.permute.xlu0 %3098
      %3100 = vrot.lane.b32.xlu0 %v2935, 40
      %v3101 = vpop.permute.xlu0 %3100
      %3102 = vrot.lane.b32.xlu0 %v2936, 40
      %v3103 = vpop.permute.xlu0 %3102
      %3104 = vrot.lane.b32.xlu0 %v2937, 40
      %v3105 = vpop.permute.xlu0 %3104
      %3106 = vrot.lane.b32.xlu0 %v2938, 40
      %v3107 = vpop.permute.xlu0 %3106
      %3108 = vrot.lane.b32.xlu0 %v2939, 40
      %v3109 = vpop.permute.xlu0 %3108
      %3110 = vrot.lane.b32.xlu0 %v2940, 40
      %v3111 = vpop.permute.xlu0 %3110
      %3112 = vrot.lane.b32.xlu0 %v2941, 40
      %v3113 = vpop.permute.xlu0 %3112
      %3114 = vrot.lane.b32.xlu0 %v2942, 40
      %v3115 = vpop.permute.xlu0 %3114
      %3116 = vrot.lane.b32.xlu0 %v2943, 40
      %v3117 = vpop.permute.xlu0 %3116
      %3118 = vrot.lane.b32.xlu0 %v2944, 40
      %v3119 = vpop.permute.xlu0 %3118
      %3120 = vrot.lane.b32.xlu0 %v2945, 40
      %v3121 = vpop.permute.xlu0 %3120
      %3122 = vrot.lane.b32.xlu0 %v2946, 40
      %v3123 = vpop.permute.xlu0 %3122
      %3124 = vrot.lane.b32.xlu0 %v2947, 40
      %v3125 = vpop.permute.xlu0 %3124
      %3126 = vrot.lane.b32.xlu0 %v2948, 40
      %v3127 = vpop.permute.xlu0 %3126
      %3128 = vrot.lane.b32.xlu0 %v2949, 40
      %v3129 = vpop.permute.xlu0 %3128
      %3130 = vrot.lane.b32.xlu0 %v2950, 40
      %v3131 = vpop.permute.xlu0 %3130
      %3132 = vrot.lane.b32.xlu0 %v2951, 40
      %v3133 = vpop.permute.xlu0 %3132
      %3134 = vrot.lane.b32.xlu0 %v2952, 40
      %v3135 = vpop.permute.xlu0 %3134
      %3136 = vrot.lane.b32.xlu0 %v2953, 40
      %v3137 = vpop.permute.xlu0 %3136
      %3138 = vrot.lane.b32.xlu0 %v2954, 40
      %v3139 = vpop.permute.xlu0 %3138
      %3140 = vrot.lane.b32.xlu0 %v2955, 40
      %v3141 = vpop.permute.xlu0 %3140
      %3142 = vrot.lane.b32.xlu0 %v2956, 40
      %v3143 = vpop.permute.xlu0 %3142
      %3144 = vrot.lane.b32.xlu0 %v2957, 40
      %v3145 = vpop.permute.xlu0 %3144
      %3146 = vrot.lane.b32.xlu0 %v2958, 40
      %v3147 = vpop.permute.xlu0 %3146
      %3148 = vrot.lane.b32.xlu0 %v2959, 40
      %v3149 = vpop.permute.xlu0 %3148
      %3150 = vrot.lane.b32.xlu0 %v2960, 40
      %v3151 = vpop.permute.xlu0 %3150
      %3152 = vrot.lane.b32.xlu0 %v2961, 40
      %v3153 = vpop.permute.xlu0 %3152
      %3154 = vrot.lane.b32.xlu0 %v2962, 40
      %v3155 = vpop.permute.xlu0 %3154
      %3156 = vrot.lane.b32.xlu0 %v2963, 40
      %v3157 = vpop.permute.xlu0 %3156
      %3158 = vrot.lane.b32.xlu0 %v2964, 40
      %v3159 = vpop.permute.xlu0 %3158
      %3160 = vrot.lane.b32.xlu0 %v2965, 40
      %v3161 = vpop.permute.xlu0 %3160
      %3162 = vrot.lane.b32.xlu0 %v2966, 40
      %v3163 = vpop.permute.xlu0 %3162
      %3164 = vrot.lane.b32.xlu0 %v2967, 40
      %v3165 = vpop.permute.xlu0 %3164
      %3166 = vrot.lane.b32.xlu0 %v2968, 40
      %v3167 = vpop.permute.xlu0 %3166
      %3168 = vrot.lane.b32.xlu0 %v2969, 40
      %v3169 = vpop.permute.xlu0 %3168
      %3170 = vrot.lane.b32.xlu0 %v2970, 40
      %v3171 = vpop.permute.xlu0 %3170
      %3172 = vrot.lane.b32.xlu0 %v2971, 40
      %v3173 = vpop.permute.xlu0 %3172
      %3174 = vrot.lane.b32.xlu0 %v2972, 40
      %v3175 = vpop.permute.xlu0 %3174
      %3176 = vrot.lane.b32.xlu0 %v2973, 40
      %v3177 = vpop.permute.xlu0 %3176
      %3178 = vrot.lane.b32.xlu0 %v2974, 40
      %v3179 = vpop.permute.xlu0 %3178
      %3180 = vrot.lane.b32.xlu0 %v2975, 40
      %v3181 = vpop.permute.xlu0 %3180
      %3182 = vrot.lane.b32.xlu0 %v2976, 40
      %v3183 = vpop.permute.xlu0 %3182
      %3184 = vrot.lane.b32.xlu0 %v2977, 40
      %v3185 = vpop.permute.xlu0 %3184
      %3186 = vrot.lane.b32.xlu0 %v2978, 40
      %v3187 = vpop.permute.xlu0 %3186
      %3188 = vrot.lane.b32.xlu0 %v2979, 40
      %v3189 = vpop.permute.xlu0 %3188
      %3190 = vrot.lane.b32.xlu0 %v2980, 40
      %v3191 = vpop.permute.xlu0 %3190
      %3192 = vrot.lane.b32.xlu0 %v2981, 40
      %v3193 = vpop.permute.xlu0 %3192
      %3194 = vrot.lane.b32.xlu0 %v2982, 40
      %v3195 = vpop.permute.xlu0 %3194
      %3196 = vrot.lane.b32.xlu0 %v2983, 40
      %v3197 = vpop.permute.xlu0 %3196
      %3198 = vrot.lane.b32.xlu0 %v2984, 40
      %v3199 = vpop.permute.xlu0 %3198
      %3200 = vrot.lane.b32.xlu0 %v2985, 40
      %v3201 = vpop.permute.xlu0 %3200
      %3202 = vrot.lane.b32.xlu0 %v2986, 40
      %v3203 = vpop.permute.xlu0 %3202
      %3204 = vrot.lane.b32.xlu0 %v2987, 40
      %v3205 = vpop.permute.xlu0 %3204
      %3206 = vrot.lane.b32.xlu0 %v2988, 40
      %v3207 = vpop.permute.xlu0 %3206
      %3208 = vrot.lane.b32.xlu0 %v2989, 40
      %v3209 = vpop.permute.xlu0 %3208
      %3210 = vrot.lane.b32.xlu0 %v2990, 40
      %v3211 = vpop.permute.xlu0 %3210
      %3212 = vrot.lane.b32.xlu0 %v2991, 40
      %v3213 = vpop.permute.xlu0 %3212
      %3214 = vrot.lane.b32.xlu0 %v2992, 40
      %v3215 = vpop.permute.xlu0 %3214
      %3216 = vrot.lane.b32.xlu0 %v2993, 40
      %v3217 = vpop.permute.xlu0 %3216
      %3218 = vrot.lane.b32.xlu0 %v2994, 40
      %v3219 = vpop.permute.xlu0 %3218
      %3220 = vrot.lane.b32.xlu0 %v2995, 40
      %v3221 = vpop.permute.xlu0 %3220
      %3222 = vrot.lane.b32.xlu0 %v2996, 40
      %v3223 = vpop.permute.xlu0 %3222
      %3224 = vrot.lane.b32.xlu0 %v2997, 40
      %v3225 = vpop.permute.xlu0 %3224
      %3226 = vrot.lane.b32.xlu0 %v2998, 40
      %v3227 = vpop.permute.xlu0 %3226
      %3228 = vrot.lane.b32.xlu0 %v2999, 40
      %v3229 = vpop.permute.xlu0 %3228
      %3230 = vrot.lane.b32.xlu0 %v3000, 40
      %v3231 = vpop.permute.xlu0 %3230
      %3232 = vrot.lane.b32.xlu0 %v3001, 40
      %v3233 = vpop.permute.xlu0 %3232
      %3234 = vrot.lane.b32.xlu0 %v3002, 40
      %v3235 = vpop.permute.xlu0 %3234
      %3236 = vrot.lane.b32.xlu0 %v3003, 40
      %v3237 = vpop.permute.xlu0 %3236
      %3238 = vrot.lane.b32.xlu0 %v3004, 40
      %v3239 = vpop.permute.xlu0 %3238
      %3240 = vrot.lane.b32.xlu0 %v3005, 40
      %v3241 = vpop.permute.xlu0 %3240
      %3242 = vrot.lane.b32.xlu0 %v3006, 40
      %v3243 = vpop.permute.xlu0 %3242
      %3244 = vrot.lane.b32.xlu0 %v3007, 40
      %v3245 = vpop.permute.xlu0 %3244
      %3246 = vrot.lane.b32.xlu0 %v3008, 40
      %v3247 = vpop.permute.xlu0 %3246
      %3248 = vrot.lane.b32.xlu0 %v3009, 40
      %v3249 = vpop.permute.xlu0 %3248
      %vm3330 = vcmask 392512
      %3331 = vst.msk [vmem:[#allocation3] sm:$0xff] %vm3330, %v3091
      %3332 = vst.msk [vmem:[#allocation3 + $0x8] sm:$0xff] %vm3330, %v3093
      %3333 = vst.msk [vmem:[#allocation3 + $0x10] sm:$0xff] %vm3330, %v3095
      %3334 = vst.msk [vmem:[#allocation3 + $0x18] sm:$0xff] %vm3330, %v3097
      %3335 = vst.msk [vmem:[#allocation3 + $0x20] sm:$0xff] %vm3330, %v3099
      %3336 = vst.msk [vmem:[#allocation3 + $0x28] sm:$0xff] %vm3330, %v3101
      %3337 = vst.msk [vmem:[#allocation3 + $0x30] sm:$0xff] %vm3330, %v3103
      %3338 = vst.msk [vmem:[#allocation3 + $0x38] sm:$0xff] %vm3330, %v3105
      %3339 = vst.msk [vmem:[#allocation3 + $0x40] sm:$0xff] %vm3330, %v3107
      %3340 = vst.msk [vmem:[#allocation3 + $0x48] sm:$0xff] %vm3330, %v3109
      %3341 = vst.msk [vmem:[#allocation3 + $0x50] sm:$0xff] %vm3330, %v3111
      %3342 = vst.msk [vmem:[#allocation3 + $0x58] sm:$0xff] %vm3330, %v3113
      %3343 = vst.msk [vmem:[#allocation3 + $0x60] sm:$0xff] %vm3330, %v3115
      %3344 = vst.msk [vmem:[#allocation3 + $0x68] sm:$0xff] %vm3330, %v3117
      %3345 = vst.msk [vmem:[#allocation3 + $0x70] sm:$0xff] %vm3330, %v3119
      %3346 = vst.msk [vmem:[#allocation3 + $0x78] sm:$0xff] %vm3330, %v3121
      %3347 = vst.msk [vmem:[#allocation3 + $0x80] sm:$0xff] %vm3330, %v3123
      %3348 = vst.msk [vmem:[#allocation3 + $0x88] sm:$0xff] %vm3330, %v3125
      %3349 = vst.msk [vmem:[#allocation3 + $0x90] sm:$0xff] %vm3330, %v3127
      %3350 = vst.msk [vmem:[#allocation3 + $0x98] sm:$0xff] %vm3330, %v3129
      %3351 = vst.msk [vmem:[#allocation3 + $0xa0] sm:$0xff] %vm3330, %v3131
      %3352 = vst.msk [vmem:[#allocation3 + $0xa8] sm:$0xff] %vm3330, %v3133
      %3353 = vst.msk [vmem:[#allocation3 + $0xb0] sm:$0xff] %vm3330, %v3135
      %3354 = vst.msk [vmem:[#allocation3 + $0xb8] sm:$0xff] %vm3330, %v3137
      %3355 = vst.msk [vmem:[#allocation3 + $0xc0] sm:$0xff] %vm3330, %v3139
      %3356 = vst.msk [vmem:[#allocation3 + $0xc8] sm:$0xff] %vm3330, %v3141
      %3357 = vst.msk [vmem:[#allocation3 + $0xd0] sm:$0xff] %vm3330, %v3143
      %3358 = vst.msk [vmem:[#allocation3 + $0xd8] sm:$0xff] %vm3330, %v3145
      %3359 = vst.msk [vmem:[#allocation3 + $0xe0] sm:$0xff] %vm3330, %v3147
      %3360 = vst.msk [vmem:[#allocation3 + $0xe8] sm:$0xff] %vm3330, %v3149
      %3361 = vst.msk [vmem:[#allocation3 + $0xf0] sm:$0xff] %vm3330, %v3151
      %3362 = vst.msk [vmem:[#allocation3 + $0xf8] sm:$0xff] %vm3330, %v3153
      %3363 = vst.msk [vmem:[#allocation3 + $0x100] sm:$0xff] %vm3330, %v3155
      %3364 = vst.msk [vmem:[#allocation3 + $0x108] sm:$0xff] %vm3330, %v3157
      %3365 = vst.msk [vmem:[#allocation3 + $0x110] sm:$0xff] %vm3330, %v3159
      %3366 = vst.msk [vmem:[#allocation3 + $0x118] sm:$0xff] %vm3330, %v3161
      %3367 = vst.msk [vmem:[#allocation3 + $0x120] sm:$0xff] %vm3330, %v3163
      %3368 = vst.msk [vmem:[#allocation3 + $0x128] sm:$0xff] %vm3330, %v3165
      %3369 = vst.msk [vmem:[#allocation3 + $0x130] sm:$0xff] %vm3330, %v3167
      %3370 = vst.msk [vmem:[#allocation3 + $0x138] sm:$0xff] %vm3330, %v3169
      %3371 = vst.msk [vmem:[#allocation3 + $0x140] sm:$0xff] %vm3330, %v3171
      %3372 = vst.msk [vmem:[#allocation3 + $0x148] sm:$0xff] %vm3330, %v3173
      %3373 = vst.msk [vmem:[#allocation3 + $0x150] sm:$0xff] %vm3330, %v3175
      %3374 = vst.msk [vmem:[#allocation3 + $0x158] sm:$0xff] %vm3330, %v3177
      %3375 = vst.msk [vmem:[#allocation3 + $0x160] sm:$0xff] %vm3330, %v3179
      %3376 = vst.msk [vmem:[#allocation3 + $0x168] sm:$0xff] %vm3330, %v3181
      %3377 = vst.msk [vmem:[#allocation3 + $0x170] sm:$0xff] %vm3330, %v3183
      %3378 = vst.msk [vmem:[#allocation3 + $0x178] sm:$0xff] %vm3330, %v3185
      %3379 = vst.msk [vmem:[#allocation3 + $0x180] sm:$0xff] %vm3330, %v3187
      %3380 = vst.msk [vmem:[#allocation3 + $0x188] sm:$0xff] %vm3330, %v3189
      %3381 = vst.msk [vmem:[#allocation3 + $0x190] sm:$0xff] %vm3330, %v3191
      %3382 = vst.msk [vmem:[#allocation3 + $0x198] sm:$0xff] %vm3330, %v3193
      %3383 = vst.msk [vmem:[#allocation3 + $0x1a0] sm:$0xff] %vm3330, %v3195
      %3384 = vst.msk [vmem:[#allocation3 + $0x1a8] sm:$0xff] %vm3330, %v3197
      %3385 = vst.msk [vmem:[#allocation3 + $0x1b0] sm:$0xff] %vm3330, %v3199
      %3386 = vst.msk [vmem:[#allocation3 + $0x1b8] sm:$0xff] %vm3330, %v3201
      %3387 = vst.msk [vmem:[#allocation3 + $0x1c0] sm:$0xff] %vm3330, %v3203
      %3388 = vst.msk [vmem:[#allocation3 + $0x1c8] sm:$0xff] %vm3330, %v3205
      %3389 = vst.msk [vmem:[#allocation3 + $0x1d0] sm:$0xff] %vm3330, %v3207
      %3390 = vst.msk [vmem:[#allocation3 + $0x1d8] sm:$0xff] %vm3330, %v3209
      %3391 = vst.msk [vmem:[#allocation3 + $0x1e0] sm:$0xff] %vm3330, %v3211
      %3392 = vst.msk [vmem:[#allocation3 + $0x1e8] sm:$0xff] %vm3330, %v3213
      %3393 = vst.msk [vmem:[#allocation3 + $0x1f0] sm:$0xff] %vm3330, %v3215
      %3394 = vst.msk [vmem:[#allocation3 + $0x1f8] sm:$0xff] %vm3330, %v3217
      %3395 = vst.msk [vmem:[#allocation3 + $0x200] sm:$0xff] %vm3330, %v3219
      %3396 = vst.msk [vmem:[#allocation3 + $0x208] sm:$0xff] %vm3330, %v3221
      %3397 = vst.msk [vmem:[#allocation3 + $0x210] sm:$0xff] %vm3330, %v3223
      %3398 = vst.msk [vmem:[#allocation3 + $0x218] sm:$0xff] %vm3330, %v3225
      %3399 = vst.msk [vmem:[#allocation3 + $0x220] sm:$0xff] %vm3330, %v3227
      %3400 = vst.msk [vmem:[#allocation3 + $0x228] sm:$0xff] %vm3330, %v3229
      %3401 = vst.msk [vmem:[#allocation3 + $0x230] sm:$0xff] %vm3330, %v3231
      %3402 = vst.msk [vmem:[#allocation3 + $0x238] sm:$0xff] %vm3330, %v3233
      %3403 = vst.msk [vmem:[#allocation3 + $0x240] sm:$0xff] %vm3330, %v3235
      %3404 = vst.msk [vmem:[#allocation3 + $0x248] sm:$0xff] %vm3330, %v3237
      %3405 = vst.msk [vmem:[#allocation3 + $0x250] sm:$0xff] %vm3330, %v3239
      %3406 = vst.msk [vmem:[#allocation3 + $0x258] sm:$0xff] %vm3330, %v3241
      %3407 = vst.msk [vmem:[#allocation3 + $0x260] sm:$0xff] %vm3330, %v3243
      %3408 = vst.msk [vmem:[#allocation3 + $0x268] sm:$0xff] %vm3330, %v3245
      %3409 = vst.msk [vmem:[#allocation3 + $0x270] sm:$0xff] %vm3330, %v3247
      %3410 = vst.msk [vmem:[#allocation3 + $0x278] sm:$0xff] %vm3330, %v3249
      %s3411 = scalar_lea.vmem [#allocation2], 32
      %v3412 = vld [vmem:[%s3411] sm:$0xff]
      %v3413 = vld [vmem:[%s3411 + $0x10] sm:$0xff]
      %v3414 = vld [vmem:[%s3411 + $0x20] sm:$0xff]
      %v3415 = vld [vmem:[%s3411 + $0x30] sm:$0xff]
      %v3416 = vld [vmem:[%s3411 + $0x40] sm:$0xff]
      %v3417 = vld [vmem:[%s3411 + $0x50] sm:$0xff]
      %v3418 = vld [vmem:[%s3411 + $0x60] sm:$0xff]
      %v3419 = vld [vmem:[%s3411 + $0x70] sm:$0xff]
      %v3420 = vld [vmem:[%s3411 + $0xa0] sm:$0xff]
      %v3421 = vld [vmem:[%s3411 + $0xb0] sm:$0xff]
      %v3422 = vld [vmem:[%s3411 + $0xc0] sm:$0xff]
      %v3423 = vld [vmem:[%s3411 + $0xd0] sm:$0xff]
      %v3424 = vld [vmem:[%s3411 + $0xe0] sm:$0xff]
      %v3425 = vld [vmem:[%s3411 + $0xf0] sm:$0xff]
      %v3426 = vld [vmem:[%s3411 + $0x100] sm:$0xff]
      %v3427 = vld [vmem:[%s3411 + $0x110] sm:$0xff]
      %v3428 = vld [vmem:[%s3411 + $0x140] sm:$0xff]
      %v3429 = vld [vmem:[%s3411 + $0x150] sm:$0xff]
      %v3430 = vld [vmem:[%s3411 + $0x160] sm:$0xff]
      %v3431 = vld [vmem:[%s3411 + $0x170] sm:$0xff]
      %v3432 = vld [vmem:[%s3411 + $0x180] sm:$0xff]
      %v3433 = vld [vmem:[%s3411 + $0x190] sm:$0xff]
      %v3434 = vld [vmem:[%s3411 + $0x1a0] sm:$0xff]
      %v3435 = vld [vmem:[%s3411 + $0x1b0] sm:$0xff]
      %v3436 = vld [vmem:[%s3411 + $0x1e0] sm:$0xff]
      %v3437 = vld [vmem:[%s3411 + $0x1f0] sm:$0xff]
      %v3438 = vld [vmem:[%s3411 + $0x200] sm:$0xff]
      %v3439 = vld [vmem:[%s3411 + $0x210] sm:$0xff]
      %v3440 = vld [vmem:[%s3411 + $0x220] sm:$0xff]
      %v3441 = vld [vmem:[%s3411 + $0x230] sm:$0xff]
      %v3442 = vld [vmem:[%s3411 + $0x240] sm:$0xff]
      %v3443 = vld [vmem:[%s3411 + $0x250] sm:$0xff]
      %v3444 = vld [vmem:[%s3411 + $0x280] sm:$0xff]
      %v3445 = vld [vmem:[%s3411 + $0x290] sm:$0xff]
      %v3446 = vld [vmem:[%s3411 + $0x2a0] sm:$0xff]
      %v3447 = vld [vmem:[%s3411 + $0x2b0] sm:$0xff]
      %v3448 = vld [vmem:[%s3411 + $0x2c0] sm:$0xff]
      %v3449 = vld [vmem:[%s3411 + $0x2d0] sm:$0xff]
      %v3450 = vld [vmem:[%s3411 + $0x2e0] sm:$0xff]
      %v3451 = vld [vmem:[%s3411 + $0x2f0] sm:$0xff]
      %v3452 = vld [vmem:[%s3411 + $0x320] sm:$0xff]
      %v3453 = vld [vmem:[%s3411 + $0x330] sm:$0xff]
      %v3454 = vld [vmem:[%s3411 + $0x340] sm:$0xff]
      %v3455 = vld [vmem:[%s3411 + $0x350] sm:$0xff]
      %v3456 = vld [vmem:[%s3411 + $0x360] sm:$0xff]
      %v3457 = vld [vmem:[%s3411 + $0x370] sm:$0xff]
      %v3458 = vld [vmem:[%s3411 + $0x380] sm:$0xff]
      %v3459 = vld [vmem:[%s3411 + $0x390] sm:$0xff]
      %v3460 = vld [vmem:[%s3411 + $0x3c0] sm:$0xff]
      %v3461 = vld [vmem:[%s3411 + $0x3d0] sm:$0xff]
      %v3462 = vld [vmem:[%s3411 + $0x3e0] sm:$0xff]
      %v3463 = vld [vmem:[%s3411 + $0x3f0] sm:$0xff]
      %v3464 = vld [vmem:[%s3411 + $0x400] sm:$0xff]
      %v3465 = vld [vmem:[%s3411 + $0x410] sm:$0xff]
      %v3466 = vld [vmem:[%s3411 + $0x420] sm:$0xff]
      %v3467 = vld [vmem:[%s3411 + $0x430] sm:$0xff]
      %v3468 = vld [vmem:[%s3411 + $0x460] sm:$0xff]
      %v3469 = vld [vmem:[%s3411 + $0x470] sm:$0xff]
      %v3470 = vld [vmem:[%s3411 + $0x480] sm:$0xff]
      %v3471 = vld [vmem:[%s3411 + $0x490] sm:$0xff]
      %v3472 = vld [vmem:[%s3411 + $0x4a0] sm:$0xff]
      %v3473 = vld [vmem:[%s3411 + $0x4b0] sm:$0xff]
      %v3474 = vld [vmem:[%s3411 + $0x4c0] sm:$0xff]
      %v3475 = vld [vmem:[%s3411 + $0x4d0] sm:$0xff]
      %v3476 = vld [vmem:[%s3411 + $0x500] sm:$0xff]
      %v3477 = vld [vmem:[%s3411 + $0x510] sm:$0xff]
      %v3478 = vld [vmem:[%s3411 + $0x520] sm:$0xff]
      %v3479 = vld [vmem:[%s3411 + $0x530] sm:$0xff]
      %v3480 = vld [vmem:[%s3411 + $0x540] sm:$0xff]
      %v3481 = vld [vmem:[%s3411 + $0x550] sm:$0xff]
      %v3482 = vld [vmem:[%s3411 + $0x560] sm:$0xff]
      %v3483 = vld [vmem:[%s3411 + $0x570] sm:$0xff]
      %v3484 = vld [vmem:[%s3411 + $0x5a0] sm:$0xff]
      %v3485 = vld [vmem:[%s3411 + $0x5b0] sm:$0xff]
      %v3486 = vld [vmem:[%s3411 + $0x5c0] sm:$0xff]
      %v3487 = vld [vmem:[%s3411 + $0x5d0] sm:$0xff]
      %v3488 = vld [vmem:[%s3411 + $0x5e0] sm:$0xff]
      %v3489 = vld [vmem:[%s3411 + $0x5f0] sm:$0xff]
      %v3490 = vld [vmem:[%s3411 + $0x600] sm:$0xff]
      %v3491 = vld [vmem:[%s3411 + $0x610] sm:$0xff]
      %3572 = vrot.lane.b32.xlu0 %v3412, 48
      %v3573 = vpop.permute.xlu0 %3572
      %3574 = vrot.lane.b32.xlu0 %v3413, 48
      %v3575 = vpop.permute.xlu0 %3574
      %3576 = vrot.lane.b32.xlu0 %v3414, 48
      %v3577 = vpop.permute.xlu0 %3576
      %3578 = vrot.lane.b32.xlu0 %v3415, 48
      %v3579 = vpop.permute.xlu0 %3578
      %3580 = vrot.lane.b32.xlu0 %v3416, 48
      %v3581 = vpop.permute.xlu0 %3580
      %3582 = vrot.lane.b32.xlu0 %v3417, 48
      %v3583 = vpop.permute.xlu0 %3582
      %3584 = vrot.lane.b32.xlu0 %v3418, 48
      %v3585 = vpop.permute.xlu0 %3584
      %3586 = vrot.lane.b32.xlu0 %v3419, 48
      %v3587 = vpop.permute.xlu0 %3586
      %3588 = vrot.lane.b32.xlu0 %v3420, 48
      %v3589 = vpop.permute.xlu0 %3588
      %3590 = vrot.lane.b32.xlu0 %v3421, 48
      %v3591 = vpop.permute.xlu0 %3590
      %3592 = vrot.lane.b32.xlu0 %v3422, 48
      %v3593 = vpop.permute.xlu0 %3592
      %3594 = vrot.lane.b32.xlu0 %v3423, 48
      %v3595 = vpop.permute.xlu0 %3594
      %3596 = vrot.lane.b32.xlu0 %v3424, 48
      %v3597 = vpop.permute.xlu0 %3596
      %3598 = vrot.lane.b32.xlu0 %v3425, 48
      %v3599 = vpop.permute.xlu0 %3598
      %3600 = vrot.lane.b32.xlu0 %v3426, 48
      %v3601 = vpop.permute.xlu0 %3600
      %3602 = vrot.lane.b32.xlu0 %v3427, 48
      %v3603 = vpop.permute.xlu0 %3602
      %3604 = vrot.lane.b32.xlu0 %v3428, 48
      %v3605 = vpop.permute.xlu0 %3604
      %3606 = vrot.lane.b32.xlu0 %v3429, 48
      %v3607 = vpop.permute.xlu0 %3606
      %3608 = vrot.lane.b32.xlu0 %v3430, 48
      %v3609 = vpop.permute.xlu0 %3608
      %3610 = vrot.lane.b32.xlu0 %v3431, 48
      %v3611 = vpop.permute.xlu0 %3610
      %3612 = vrot.lane.b32.xlu0 %v3432, 48
      %v3613 = vpop.permute.xlu0 %3612
      %3614 = vrot.lane.b32.xlu0 %v3433, 48
      %v3615 = vpop.permute.xlu0 %3614
      %3616 = vrot.lane.b32.xlu0 %v3434, 48
      %v3617 = vpop.permute.xlu0 %3616
      %3618 = vrot.lane.b32.xlu0 %v3435, 48
      %v3619 = vpop.permute.xlu0 %3618
      %3620 = vrot.lane.b32.xlu0 %v3436, 48
      %v3621 = vpop.permute.xlu0 %3620
      %3622 = vrot.lane.b32.xlu0 %v3437, 48
      %v3623 = vpop.permute.xlu0 %3622
      %3624 = vrot.lane.b32.xlu0 %v3438, 48
      %v3625 = vpop.permute.xlu0 %3624
      %3626 = vrot.lane.b32.xlu0 %v3439, 48
      %v3627 = vpop.permute.xlu0 %3626
      %3628 = vrot.lane.b32.xlu0 %v3440, 48
      %v3629 = vpop.permute.xlu0 %3628
      %3630 = vrot.lane.b32.xlu0 %v3441, 48
      %v3631 = vpop.permute.xlu0 %3630
      %3632 = vrot.lane.b32.xlu0 %v3442, 48
      %v3633 = vpop.permute.xlu0 %3632
      %3634 = vrot.lane.b32.xlu0 %v3443, 48
      %v3635 = vpop.permute.xlu0 %3634
      %3636 = vrot.lane.b32.xlu0 %v3444, 48
      %v3637 = vpop.permute.xlu0 %3636
      %3638 = vrot.lane.b32.xlu0 %v3445, 48
      %v3639 = vpop.permute.xlu0 %3638
      %3640 = vrot.lane.b32.xlu0 %v3446, 48
      %v3641 = vpop.permute.xlu0 %3640
      %3642 = vrot.lane.b32.xlu0 %v3447, 48
      %v3643 = vpop.permute.xlu0 %3642
      %3644 = vrot.lane.b32.xlu0 %v3448, 48
      %v3645 = vpop.permute.xlu0 %3644
      %3646 = vrot.lane.b32.xlu0 %v3449, 48
      %v3647 = vpop.permute.xlu0 %3646
      %3648 = vrot.lane.b32.xlu0 %v3450, 48
      %v3649 = vpop.permute.xlu0 %3648
      %3650 = vrot.lane.b32.xlu0 %v3451, 48
      %v3651 = vpop.permute.xlu0 %3650
      %3652 = vrot.lane.b32.xlu0 %v3452, 48
      %v3653 = vpop.permute.xlu0 %3652
      %3654 = vrot.lane.b32.xlu0 %v3453, 48
      %v3655 = vpop.permute.xlu0 %3654
      %3656 = vrot.lane.b32.xlu0 %v3454, 48
      %v3657 = vpop.permute.xlu0 %3656
      %3658 = vrot.lane.b32.xlu0 %v3455, 48
      %v3659 = vpop.permute.xlu0 %3658
      %3660 = vrot.lane.b32.xlu0 %v3456, 48
      %v3661 = vpop.permute.xlu0 %3660
      %3662 = vrot.lane.b32.xlu0 %v3457, 48
      %v3663 = vpop.permute.xlu0 %3662
      %3664 = vrot.lane.b32.xlu0 %v3458, 48
      %v3665 = vpop.permute.xlu0 %3664
      %3666 = vrot.lane.b32.xlu0 %v3459, 48
      %v3667 = vpop.permute.xlu0 %3666
      %3668 = vrot.lane.b32.xlu0 %v3460, 48
      %v3669 = vpop.permute.xlu0 %3668
      %3670 = vrot.lane.b32.xlu0 %v3461, 48
      %v3671 = vpop.permute.xlu0 %3670
      %3672 = vrot.lane.b32.xlu0 %v3462, 48
      %v3673 = vpop.permute.xlu0 %3672
      %3674 = vrot.lane.b32.xlu0 %v3463, 48
      %v3675 = vpop.permute.xlu0 %3674
      %3676 = vrot.lane.b32.xlu0 %v3464, 48
      %v3677 = vpop.permute.xlu0 %3676
      %3678 = vrot.lane.b32.xlu0 %v3465, 48
      %v3679 = vpop.permute.xlu0 %3678
      %3680 = vrot.lane.b32.xlu0 %v3466, 48
      %v3681 = vpop.permute.xlu0 %3680
      %3682 = vrot.lane.b32.xlu0 %v3467, 48
      %v3683 = vpop.permute.xlu0 %3682
      %3684 = vrot.lane.b32.xlu0 %v3468, 48
      %v3685 = vpop.permute.xlu0 %3684
      %3686 = vrot.lane.b32.xlu0 %v3469, 48
      %v3687 = vpop.permute.xlu0 %3686
      %3688 = vrot.lane.b32.xlu0 %v3470, 48
      %v3689 = vpop.permute.xlu0 %3688
      %3690 = vrot.lane.b32.xlu0 %v3471, 48
      %v3691 = vpop.permute.xlu0 %3690
      %3692 = vrot.lane.b32.xlu0 %v3472, 48
      %v3693 = vpop.permute.xlu0 %3692
      %3694 = vrot.lane.b32.xlu0 %v3473, 48
      %v3695 = vpop.permute.xlu0 %3694
      %3696 = vrot.lane.b32.xlu0 %v3474, 48
      %v3697 = vpop.permute.xlu0 %3696
      %3698 = vrot.lane.b32.xlu0 %v3475, 48
      %v3699 = vpop.permute.xlu0 %3698
      %3700 = vrot.lane.b32.xlu0 %v3476, 48
      %v3701 = vpop.permute.xlu0 %3700
      %3702 = vrot.lane.b32.xlu0 %v3477, 48
      %v3703 = vpop.permute.xlu0 %3702
      %3704 = vrot.lane.b32.xlu0 %v3478, 48
      %v3705 = vpop.permute.xlu0 %3704
      %3706 = vrot.lane.b32.xlu0 %v3479, 48
      %v3707 = vpop.permute.xlu0 %3706
      %3708 = vrot.lane.b32.xlu0 %v3480, 48
      %v3709 = vpop.permute.xlu0 %3708
      %3710 = vrot.lane.b32.xlu0 %v3481, 48
      %v3711 = vpop.permute.xlu0 %3710
      %3712 = vrot.lane.b32.xlu0 %v3482, 48
      %v3713 = vpop.permute.xlu0 %3712
      %3714 = vrot.lane.b32.xlu0 %v3483, 48
      %v3715 = vpop.permute.xlu0 %3714
      %3716 = vrot.lane.b32.xlu0 %v3484, 48
      %v3717 = vpop.permute.xlu0 %3716
      %3718 = vrot.lane.b32.xlu0 %v3485, 48
      %v3719 = vpop.permute.xlu0 %3718
      %3720 = vrot.lane.b32.xlu0 %v3486, 48
      %v3721 = vpop.permute.xlu0 %3720
      %3722 = vrot.lane.b32.xlu0 %v3487, 48
      %v3723 = vpop.permute.xlu0 %3722
      %3724 = vrot.lane.b32.xlu0 %v3488, 48
      %v3725 = vpop.permute.xlu0 %3724
      %3726 = vrot.lane.b32.xlu0 %v3489, 48
      %v3727 = vpop.permute.xlu0 %3726
      %3728 = vrot.lane.b32.xlu0 %v3490, 48
      %v3729 = vpop.permute.xlu0 %3728
      %3730 = vrot.lane.b32.xlu0 %v3491, 48
      %v3731 = vpop.permute.xlu0 %3730
      %vm3812 = vcmask 458112
      %3813 = vst.msk [vmem:[#allocation3] sm:$0xff] %vm3812, %v3573
      %3814 = vst.msk [vmem:[#allocation3 + $0x8] sm:$0xff] %vm3812, %v3575
      %3815 = vst.msk [vmem:[#allocation3 + $0x10] sm:$0xff] %vm3812, %v3577
      %3816 = vst.msk [vmem:[#allocation3 + $0x18] sm:$0xff] %vm3812, %v3579
      %3817 = vst.msk [vmem:[#allocation3 + $0x20] sm:$0xff] %vm3812, %v3581
      %3818 = vst.msk [vmem:[#allocation3 + $0x28] sm:$0xff] %vm3812, %v3583
      %3819 = vst.msk [vmem:[#allocation3 + $0x30] sm:$0xff] %vm3812, %v3585
      %3820 = vst.msk [vmem:[#allocation3 + $0x38] sm:$0xff] %vm3812, %v3587
      %3821 = vst.msk [vmem:[#allocation3 + $0x40] sm:$0xff] %vm3812, %v3589
      %3822 = vst.msk [vmem:[#allocation3 + $0x48] sm:$0xff] %vm3812, %v3591
      %3823 = vst.msk [vmem:[#allocation3 + $0x50] sm:$0xff] %vm3812, %v3593
      %3824 = vst.msk [vmem:[#allocation3 + $0x58] sm:$0xff] %vm3812, %v3595
      %3825 = vst.msk [vmem:[#allocation3 + $0x60] sm:$0xff] %vm3812, %v3597
      %3826 = vst.msk [vmem:[#allocation3 + $0x68] sm:$0xff] %vm3812, %v3599
      %3827 = vst.msk [vmem:[#allocation3 + $0x70] sm:$0xff] %vm3812, %v3601
      %3828 = vst.msk [vmem:[#allocation3 + $0x78] sm:$0xff] %vm3812, %v3603
      %3829 = vst.msk [vmem:[#allocation3 + $0x80] sm:$0xff] %vm3812, %v3605
      %3830 = vst.msk [vmem:[#allocation3 + $0x88] sm:$0xff] %vm3812, %v3607
      %3831 = vst.msk [vmem:[#allocation3 + $0x90] sm:$0xff] %vm3812, %v3609
      %3832 = vst.msk [vmem:[#allocation3 + $0x98] sm:$0xff] %vm3812, %v3611
      %3833 = vst.msk [vmem:[#allocation3 + $0xa0] sm:$0xff] %vm3812, %v3613
      %3834 = vst.msk [vmem:[#allocation3 + $0xa8] sm:$0xff] %vm3812, %v3615
      %3835 = vst.msk [vmem:[#allocation3 + $0xb0] sm:$0xff] %vm3812, %v3617
      %3836 = vst.msk [vmem:[#allocation3 + $0xb8] sm:$0xff] %vm3812, %v3619
      %3837 = vst.msk [vmem:[#allocation3 + $0xc0] sm:$0xff] %vm3812, %v3621
      %3838 = vst.msk [vmem:[#allocation3 + $0xc8] sm:$0xff] %vm3812, %v3623
      %3839 = vst.msk [vmem:[#allocation3 + $0xd0] sm:$0xff] %vm3812, %v3625
      %3840 = vst.msk [vmem:[#allocation3 + $0xd8] sm:$0xff] %vm3812, %v3627
      %3841 = vst.msk [vmem:[#allocation3 + $0xe0] sm:$0xff] %vm3812, %v3629
      %3842 = vst.msk [vmem:[#allocation3 + $0xe8] sm:$0xff] %vm3812, %v3631
      %3843 = vst.msk [vmem:[#allocation3 + $0xf0] sm:$0xff] %vm3812, %v3633
      %3844 = vst.msk [vmem:[#allocation3 + $0xf8] sm:$0xff] %vm3812, %v3635
      %3845 = vst.msk [vmem:[#allocation3 + $0x100] sm:$0xff] %vm3812, %v3637
      %3846 = vst.msk [vmem:[#allocation3 + $0x108] sm:$0xff] %vm3812, %v3639
      %3847 = vst.msk [vmem:[#allocation3 + $0x110] sm:$0xff] %vm3812, %v3641
      %3848 = vst.msk [vmem:[#allocation3 + $0x118] sm:$0xff] %vm3812, %v3643
      %3849 = vst.msk [vmem:[#allocation3 + $0x120] sm:$0xff] %vm3812, %v3645
      %3850 = vst.msk [vmem:[#allocation3 + $0x128] sm:$0xff] %vm3812, %v3647
      %3851 = vst.msk [vmem:[#allocation3 + $0x130] sm:$0xff] %vm3812, %v3649
      %3852 = vst.msk [vmem:[#allocation3 + $0x138] sm:$0xff] %vm3812, %v3651
      %3853 = vst.msk [vmem:[#allocation3 + $0x140] sm:$0xff] %vm3812, %v3653
      %3854 = vst.msk [vmem:[#allocation3 + $0x148] sm:$0xff] %vm3812, %v3655
      %3855 = vst.msk [vmem:[#allocation3 + $0x150] sm:$0xff] %vm3812, %v3657
      %3856 = vst.msk [vmem:[#allocation3 + $0x158] sm:$0xff] %vm3812, %v3659
      %3857 = vst.msk [vmem:[#allocation3 + $0x160] sm:$0xff] %vm3812, %v3661
      %3858 = vst.msk [vmem:[#allocation3 + $0x168] sm:$0xff] %vm3812, %v3663
      %3859 = vst.msk [vmem:[#allocation3 + $0x170] sm:$0xff] %vm3812, %v3665
      %3860 = vst.msk [vmem:[#allocation3 + $0x178] sm:$0xff] %vm3812, %v3667
      %3861 = vst.msk [vmem:[#allocation3 + $0x180] sm:$0xff] %vm3812, %v3669
      %3862 = vst.msk [vmem:[#allocation3 + $0x188] sm:$0xff] %vm3812, %v3671
      %3863 = vst.msk [vmem:[#allocation3 + $0x190] sm:$0xff] %vm3812, %v3673
      %3864 = vst.msk [vmem:[#allocation3 + $0x198] sm:$0xff] %vm3812, %v3675
      %3865 = vst.msk [vmem:[#allocation3 + $0x1a0] sm:$0xff] %vm3812, %v3677
      %3866 = vst.msk [vmem:[#allocation3 + $0x1a8] sm:$0xff] %vm3812, %v3679
      %3867 = vst.msk [vmem:[#allocation3 + $0x1b0] sm:$0xff] %vm3812, %v3681
      %3868 = vst.msk [vmem:[#allocation3 + $0x1b8] sm:$0xff] %vm3812, %v3683
      %3869 = vst.msk [vmem:[#allocation3 + $0x1c0] sm:$0xff] %vm3812, %v3685
      %3870 = vst.msk [vmem:[#allocation3 + $0x1c8] sm:$0xff] %vm3812, %v3687
      %3871 = vst.msk [vmem:[#allocation3 + $0x1d0] sm:$0xff] %vm3812, %v3689
      %3872 = vst.msk [vmem:[#allocation3 + $0x1d8] sm:$0xff] %vm3812, %v3691
      %3873 = vst.msk [vmem:[#allocation3 + $0x1e0] sm:$0xff] %vm3812, %v3693
      %3874 = vst.msk [vmem:[#allocation3 + $0x1e8] sm:$0xff] %vm3812, %v3695
      %3875 = vst.msk [vmem:[#allocation3 + $0x1f0] sm:$0xff] %vm3812, %v3697
      %3876 = vst.msk [vmem:[#allocation3 + $0x1f8] sm:$0xff] %vm3812, %v3699
      %3877 = vst.msk [vmem:[#allocation3 + $0x200] sm:$0xff] %vm3812, %v3701
      %3878 = vst.msk [vmem:[#allocation3 + $0x208] sm:$0xff] %vm3812, %v3703
      %3879 = vst.msk [vmem:[#allocation3 + $0x210] sm:$0xff] %vm3812, %v3705
      %3880 = vst.msk [vmem:[#allocation3 + $0x218] sm:$0xff] %vm3812, %v3707
      %3881 = vst.msk [vmem:[#allocation3 + $0x220] sm:$0xff] %vm3812, %v3709
      %3882 = vst.msk [vmem:[#allocation3 + $0x228] sm:$0xff] %vm3812, %v3711
      %3883 = vst.msk [vmem:[#allocation3 + $0x230] sm:$0xff] %vm3812, %v3713
      %3884 = vst.msk [vmem:[#allocation3 + $0x238] sm:$0xff] %vm3812, %v3715
      %3885 = vst.msk [vmem:[#allocation3 + $0x240] sm:$0xff] %vm3812, %v3717
      %3886 = vst.msk [vmem:[#allocation3 + $0x248] sm:$0xff] %vm3812, %v3719
      %3887 = vst.msk [vmem:[#allocation3 + $0x250] sm:$0xff] %vm3812, %v3721
      %3888 = vst.msk [vmem:[#allocation3 + $0x258] sm:$0xff] %vm3812, %v3723
      %3889 = vst.msk [vmem:[#allocation3 + $0x260] sm:$0xff] %vm3812, %v3725
      %3890 = vst.msk [vmem:[#allocation3 + $0x268] sm:$0xff] %vm3812, %v3727
      %3891 = vst.msk [vmem:[#allocation3 + $0x270] sm:$0xff] %vm3812, %v3729
      %3892 = vst.msk [vmem:[#allocation3 + $0x278] sm:$0xff] %vm3812, %v3731
      %v3893 = vld [vmem:[%s3411 + $0x1] sm:$0xff]
      %v3894 = vld [vmem:[%s3411 + $0x11] sm:$0xff]
      %v3895 = vld [vmem:[%s3411 + $0x21] sm:$0xff]
      %v3896 = vld [vmem:[%s3411 + $0x31] sm:$0xff]
      %v3897 = vld [vmem:[%s3411 + $0x41] sm:$0xff]
      %v3898 = vld [vmem:[%s3411 + $0x51] sm:$0xff]
      %v3899 = vld [vmem:[%s3411 + $0x61] sm:$0xff]
      %v3900 = vld [vmem:[%s3411 + $0x71] sm:$0xff]
      %v3901 = vld [vmem:[%s3411 + $0xa1] sm:$0xff]
      %v3902 = vld [vmem:[%s3411 + $0xb1] sm:$0xff]
      %v3903 = vld [vmem:[%s3411 + $0xc1] sm:$0xff]
      %v3904 = vld [vmem:[%s3411 + $0xd1] sm:$0xff]
      %v3905 = vld [vmem:[%s3411 + $0xe1] sm:$0xff]
      %v3906 = vld [vmem:[%s3411 + $0xf1] sm:$0xff]
      %v3907 = vld [vmem:[%s3411 + $0x101] sm:$0xff]
      %v3908 = vld [vmem:[%s3411 + $0x111] sm:$0xff]
      %v3909 = vld [vmem:[%s3411 + $0x141] sm:$0xff]
      %v3910 = vld [vmem:[%s3411 + $0x151] sm:$0xff]
      %v3911 = vld [vmem:[%s3411 + $0x161] sm:$0xff]
      %v3912 = vld [vmem:[%s3411 + $0x171] sm:$0xff]
      %v3913 = vld [vmem:[%s3411 + $0x181] sm:$0xff]
      %v3914 = vld [vmem:[%s3411 + $0x191] sm:$0xff]
      %v3915 = vld [vmem:[%s3411 + $0x1a1] sm:$0xff]
      %v3916 = vld [vmem:[%s3411 + $0x1b1] sm:$0xff]
      %v3917 = vld [vmem:[%s3411 + $0x1e1] sm:$0xff]
      %v3918 = vld [vmem:[%s3411 + $0x1f1] sm:$0xff]
      %v3919 = vld [vmem:[%s3411 + $0x201] sm:$0xff]
      %v3920 = vld [vmem:[%s3411 + $0x211] sm:$0xff]
      %v3921 = vld [vmem:[%s3411 + $0x221] sm:$0xff]
      %v3922 = vld [vmem:[%s3411 + $0x231] sm:$0xff]
      %v3923 = vld [vmem:[%s3411 + $0x241] sm:$0xff]
      %v3924 = vld [vmem:[%s3411 + $0x251] sm:$0xff]
      %v3925 = vld [vmem:[%s3411 + $0x281] sm:$0xff]
      %v3926 = vld [vmem:[%s3411 + $0x291] sm:$0xff]
      %v3927 = vld [vmem:[%s3411 + $0x2a1] sm:$0xff]
      %v3928 = vld [vmem:[%s3411 + $0x2b1] sm:$0xff]
      %v3929 = vld [vmem:[%s3411 + $0x2c1] sm:$0xff]
      %v3930 = vld [vmem:[%s3411 + $0x2d1] sm:$0xff]
      %v3931 = vld [vmem:[%s3411 + $0x2e1] sm:$0xff]
      %v3932 = vld [vmem:[%s3411 + $0x2f1] sm:$0xff]
      %v3933 = vld [vmem:[%s3411 + $0x321] sm:$0xff]
      %v3934 = vld [vmem:[%s3411 + $0x331] sm:$0xff]
      %v3935 = vld [vmem:[%s3411 + $0x341] sm:$0xff]
      %v3936 = vld [vmem:[%s3411 + $0x351] sm:$0xff]
      %v3937 = vld [vmem:[%s3411 + $0x361] sm:$0xff]
      %v3938 = vld [vmem:[%s3411 + $0x371] sm:$0xff]
      %v3939 = vld [vmem:[%s3411 + $0x381] sm:$0xff]
      %v3940 = vld [vmem:[%s3411 + $0x391] sm:$0xff]
      %v3941 = vld [vmem:[%s3411 + $0x3c1] sm:$0xff]
      %v3942 = vld [vmem:[%s3411 + $0x3d1] sm:$0xff]
      %v3943 = vld [vmem:[%s3411 + $0x3e1] sm:$0xff]
      %v3944 = vld [vmem:[%s3411 + $0x3f1] sm:$0xff]
      %v3945 = vld [vmem:[%s3411 + $0x401] sm:$0xff]
      %v3946 = vld [vmem:[%s3411 + $0x411] sm:$0xff]
      %v3947 = vld [vmem:[%s3411 + $0x421] sm:$0xff]
      %v3948 = vld [vmem:[%s3411 + $0x431] sm:$0xff]
      %v3949 = vld [vmem:[%s3411 + $0x461] sm:$0xff]
      %v3950 = vld [vmem:[%s3411 + $0x471] sm:$0xff]
      %v3951 = vld [vmem:[%s3411 + $0x481] sm:$0xff]
      %v3952 = vld [vmem:[%s3411 + $0x491] sm:$0xff]
      %v3953 = vld [vmem:[%s3411 + $0x4a1] sm:$0xff]
      %v3954 = vld [vmem:[%s3411 + $0x4b1] sm:$0xff]
      %v3955 = vld [vmem:[%s3411 + $0x4c1] sm:$0xff]
      %v3956 = vld [vmem:[%s3411 + $0x4d1] sm:$0xff]
      %v3957 = vld [vmem:[%s3411 + $0x501] sm:$0xff]
      %v3958 = vld [vmem:[%s3411 + $0x511] sm:$0xff]
      %v3959 = vld [vmem:[%s3411 + $0x521] sm:$0xff]
      %v3960 = vld [vmem:[%s3411 + $0x531] sm:$0xff]
      %v3961 = vld [vmem:[%s3411 + $0x541] sm:$0xff]
      %v3962 = vld [vmem:[%s3411 + $0x551] sm:$0xff]
      %v3963 = vld [vmem:[%s3411 + $0x561] sm:$0xff]
      %v3964 = vld [vmem:[%s3411 + $0x571] sm:$0xff]
      %v3965 = vld [vmem:[%s3411 + $0x5a1] sm:$0xff]
      %v3966 = vld [vmem:[%s3411 + $0x5b1] sm:$0xff]
      %v3967 = vld [vmem:[%s3411 + $0x5c1] sm:$0xff]
      %v3968 = vld [vmem:[%s3411 + $0x5d1] sm:$0xff]
      %v3969 = vld [vmem:[%s3411 + $0x5e1] sm:$0xff]
      %v3970 = vld [vmem:[%s3411 + $0x5f1] sm:$0xff]
      %v3971 = vld [vmem:[%s3411 + $0x601] sm:$0xff]
      %v3972 = vld [vmem:[%s3411 + $0x611] sm:$0xff]
      %4053 = vrot.lane.b32.xlu0 %v3893, 56
      %v4054 = vpop.permute.xlu0 %4053
      %4055 = vrot.lane.b32.xlu0 %v3894, 56
      %v4056 = vpop.permute.xlu0 %4055
      %4057 = vrot.lane.b32.xlu0 %v3895, 56
      %v4058 = vpop.permute.xlu0 %4057
      %4059 = vrot.lane.b32.xlu0 %v3896, 56
      %v4060 = vpop.permute.xlu0 %4059
      %4061 = vrot.lane.b32.xlu0 %v3897, 56
      %v4062 = vpop.permute.xlu0 %4061
      %4063 = vrot.lane.b32.xlu0 %v3898, 56
      %v4064 = vpop.permute.xlu0 %4063
      %4065 = vrot.lane.b32.xlu0 %v3899, 56
      %v4066 = vpop.permute.xlu0 %4065
      %4067 = vrot.lane.b32.xlu0 %v3900, 56
      %v4068 = vpop.permute.xlu0 %4067
      %4069 = vrot.lane.b32.xlu0 %v3901, 56
      %v4070 = vpop.permute.xlu0 %4069
      %4071 = vrot.lane.b32.xlu0 %v3902, 56
      %v4072 = vpop.permute.xlu0 %4071
      %4073 = vrot.lane.b32.xlu0 %v3903, 56
      %v4074 = vpop.permute.xlu0 %4073
      %4075 = vrot.lane.b32.xlu0 %v3904, 56
      %v4076 = vpop.permute.xlu0 %4075
      %4077 = vrot.lane.b32.xlu0 %v3905, 56
      %v4078 = vpop.permute.xlu0 %4077
      %4079 = vrot.lane.b32.xlu0 %v3906, 56
      %v4080 = vpop.permute.xlu0 %4079
      %4081 = vrot.lane.b32.xlu0 %v3907, 56
      %v4082 = vpop.permute.xlu0 %4081
      %4083 = vrot.lane.b32.xlu0 %v3908, 56
      %v4084 = vpop.permute.xlu0 %4083
      %4085 = vrot.lane.b32.xlu0 %v3909, 56
      %v4086 = vpop.permute.xlu0 %4085
      %4087 = vrot.lane.b32.xlu0 %v3910, 56
      %v4088 = vpop.permute.xlu0 %4087
      %4089 = vrot.lane.b32.xlu0 %v3911, 56
      %v4090 = vpop.permute.xlu0 %4089
      %4091 = vrot.lane.b32.xlu0 %v3912, 56
      %v4092 = vpop.permute.xlu0 %4091
      %4093 = vrot.lane.b32.xlu0 %v3913, 56
      %v4094 = vpop.permute.xlu0 %4093
      %4095 = vrot.lane.b32.xlu0 %v3914, 56
      %v4096 = vpop.permute.xlu0 %4095
      %4097 = vrot.lane.b32.xlu0 %v3915, 56
      %v4098 = vpop.permute.xlu0 %4097
      %4099 = vrot.lane.b32.xlu0 %v3916, 56
      %v4100 = vpop.permute.xlu0 %4099
      %4101 = vrot.lane.b32.xlu0 %v3917, 56
      %v4102 = vpop.permute.xlu0 %4101
      %4103 = vrot.lane.b32.xlu0 %v3918, 56
      %v4104 = vpop.permute.xlu0 %4103
      %4105 = vrot.lane.b32.xlu0 %v3919, 56
      %v4106 = vpop.permute.xlu0 %4105
      %4107 = vrot.lane.b32.xlu0 %v3920, 56
      %v4108 = vpop.permute.xlu0 %4107
      %4109 = vrot.lane.b32.xlu0 %v3921, 56
      %v4110 = vpop.permute.xlu0 %4109
      %4111 = vrot.lane.b32.xlu0 %v3922, 56
      %v4112 = vpop.permute.xlu0 %4111
      %4113 = vrot.lane.b32.xlu0 %v3923, 56
      %v4114 = vpop.permute.xlu0 %4113
      %4115 = vrot.lane.b32.xlu0 %v3924, 56
      %v4116 = vpop.permute.xlu0 %4115
      %4117 = vrot.lane.b32.xlu0 %v3925, 56
      %v4118 = vpop.permute.xlu0 %4117
      %4119 = vrot.lane.b32.xlu0 %v3926, 56
      %v4120 = vpop.permute.xlu0 %4119
      %4121 = vrot.lane.b32.xlu0 %v3927, 56
      %v4122 = vpop.permute.xlu0 %4121
      %4123 = vrot.lane.b32.xlu0 %v3928, 56
      %v4124 = vpop.permute.xlu0 %4123
      %4125 = vrot.lane.b32.xlu0 %v3929, 56
      %v4126 = vpop.permute.xlu0 %4125
      %4127 = vrot.lane.b32.xlu0 %v3930, 56
      %v4128 = vpop.permute.xlu0 %4127
      %4129 = vrot.lane.b32.xlu0 %v3931, 56
      %v4130 = vpop.permute.xlu0 %4129
      %4131 = vrot.lane.b32.xlu0 %v3932, 56
      %v4132 = vpop.permute.xlu0 %4131
      %4133 = vrot.lane.b32.xlu0 %v3933, 56
      %v4134 = vpop.permute.xlu0 %4133
      %4135 = vrot.lane.b32.xlu0 %v3934, 56
      %v4136 = vpop.permute.xlu0 %4135
      %4137 = vrot.lane.b32.xlu0 %v3935, 56
      %v4138 = vpop.permute.xlu0 %4137
      %4139 = vrot.lane.b32.xlu0 %v3936, 56
      %v4140 = vpop.permute.xlu0 %4139
      %4141 = vrot.lane.b32.xlu0 %v3937, 56
      %v4142 = vpop.permute.xlu0 %4141
      %4143 = vrot.lane.b32.xlu0 %v3938, 56
      %v4144 = vpop.permute.xlu0 %4143
      %4145 = vrot.lane.b32.xlu0 %v3939, 56
      %v4146 = vpop.permute.xlu0 %4145
      %4147 = vrot.lane.b32.xlu0 %v3940, 56
      %v4148 = vpop.permute.xlu0 %4147
      %4149 = vrot.lane.b32.xlu0 %v3941, 56
      %v4150 = vpop.permute.xlu0 %4149
      %4151 = vrot.lane.b32.xlu0 %v3942, 56
      %v4152 = vpop.permute.xlu0 %4151
      %4153 = vrot.lane.b32.xlu0 %v3943, 56
      %v4154 = vpop.permute.xlu0 %4153
      %4155 = vrot.lane.b32.xlu0 %v3944, 56
      %v4156 = vpop.permute.xlu0 %4155
      %4157 = vrot.lane.b32.xlu0 %v3945, 56
      %v4158 = vpop.permute.xlu0 %4157
      %4159 = vrot.lane.b32.xlu0 %v3946, 56
      %v4160 = vpop.permute.xlu0 %4159
      %4161 = vrot.lane.b32.xlu0 %v3947, 56
      %v4162 = vpop.permute.xlu0 %4161
      %4163 = vrot.lane.b32.xlu0 %v3948, 56
      %v4164 = vpop.permute.xlu0 %4163
      %4165 = vrot.lane.b32.xlu0 %v3949, 56
      %v4166 = vpop.permute.xlu0 %4165
      %4167 = vrot.lane.b32.xlu0 %v3950, 56
      %v4168 = vpop.permute.xlu0 %4167
      %4169 = vrot.lane.b32.xlu0 %v3951, 56
      %v4170 = vpop.permute.xlu0 %4169
      %4171 = vrot.lane.b32.xlu0 %v3952, 56
      %v4172 = vpop.permute.xlu0 %4171
      %4173 = vrot.lane.b32.xlu0 %v3953, 56
      %v4174 = vpop.permute.xlu0 %4173
      %4175 = vrot.lane.b32.xlu0 %v3954, 56
      %v4176 = vpop.permute.xlu0 %4175
      %4177 = vrot.lane.b32.xlu0 %v3955, 56
      %v4178 = vpop.permute.xlu0 %4177
      %4179 = vrot.lane.b32.xlu0 %v3956, 56
      %v4180 = vpop.permute.xlu0 %4179
      %4181 = vrot.lane.b32.xlu0 %v3957, 56
      %v4182 = vpop.permute.xlu0 %4181
      %4183 = vrot.lane.b32.xlu0 %v3958, 56
      %v4184 = vpop.permute.xlu0 %4183
      %4185 = vrot.lane.b32.xlu0 %v3959, 56
      %v4186 = vpop.permute.xlu0 %4185
      %4187 = vrot.lane.b32.xlu0 %v3960, 56
      %v4188 = vpop.permute.xlu0 %4187
      %4189 = vrot.lane.b32.xlu0 %v3961, 56
      %v4190 = vpop.permute.xlu0 %4189
      %4191 = vrot.lane.b32.xlu0 %v3962, 56
      %v4192 = vpop.permute.xlu0 %4191
      %4193 = vrot.lane.b32.xlu0 %v3963, 56
      %v4194 = vpop.permute.xlu0 %4193
      %4195 = vrot.lane.b32.xlu0 %v3964, 56
      %v4196 = vpop.permute.xlu0 %4195
      %4197 = vrot.lane.b32.xlu0 %v3965, 56
      %v4198 = vpop.permute.xlu0 %4197
      %4199 = vrot.lane.b32.xlu0 %v3966, 56
      %v4200 = vpop.permute.xlu0 %4199
      %4201 = vrot.lane.b32.xlu0 %v3967, 56
      %v4202 = vpop.permute.xlu0 %4201
      %4203 = vrot.lane.b32.xlu0 %v3968, 56
      %v4204 = vpop.permute.xlu0 %4203
      %4205 = vrot.lane.b32.xlu0 %v3969, 56
      %v4206 = vpop.permute.xlu0 %4205
      %4207 = vrot.lane.b32.xlu0 %v3970, 56
      %v4208 = vpop.permute.xlu0 %4207
      %4209 = vrot.lane.b32.xlu0 %v3971, 56
      %v4210 = vpop.permute.xlu0 %4209
      %4211 = vrot.lane.b32.xlu0 %v3972, 56
      %v4212 = vpop.permute.xlu0 %4211
      %vm4293 = vcmask 523712
      %4294 = vst.msk [vmem:[#allocation3] sm:$0xff] %vm4293, %v4054
      %4295 = vst.msk [vmem:[#allocation3 + $0x8] sm:$0xff] %vm4293, %v4056
      %4296 = vst.msk [vmem:[#allocation3 + $0x10] sm:$0xff] %vm4293, %v4058
      %4297 = vst.msk [vmem:[#allocation3 + $0x18] sm:$0xff] %vm4293, %v4060
      %4298 = vst.msk [vmem:[#allocation3 + $0x20] sm:$0xff] %vm4293, %v4062
      %4299 = vst.msk [vmem:[#allocation3 + $0x28] sm:$0xff] %vm4293, %v4064
      %4300 = vst.msk [vmem:[#allocation3 + $0x30] sm:$0xff] %vm4293, %v4066
      %4301 = vst.msk [vmem:[#allocation3 + $0x38] sm:$0xff] %vm4293, %v4068
      %4302 = vst.msk [vmem:[#allocation3 + $0x40] sm:$0xff] %vm4293, %v4070
      %4303 = vst.msk [vmem:[#allocation3 + $0x48] sm:$0xff] %vm4293, %v4072
      %4304 = vst.msk [vmem:[#allocation3 + $0x50] sm:$0xff] %vm4293, %v4074
      %4305 = vst.msk [vmem:[#allocation3 + $0x58] sm:$0xff] %vm4293, %v4076
      %4306 = vst.msk [vmem:[#allocation3 + $0x60] sm:$0xff] %vm4293, %v4078
      %4307 = vst.msk [vmem:[#allocation3 + $0x68] sm:$0xff] %vm4293, %v4080
      %4308 = vst.msk [vmem:[#allocation3 + $0x70] sm:$0xff] %vm4293, %v4082
      %4309 = vst.msk [vmem:[#allocation3 + $0x78] sm:$0xff] %vm4293, %v4084
      %4310 = vst.msk [vmem:[#allocation3 + $0x80] sm:$0xff] %vm4293, %v4086
      %4311 = vst.msk [vmem:[#allocation3 + $0x88] sm:$0xff] %vm4293, %v4088
      %4312 = vst.msk [vmem:[#allocation3 + $0x90] sm:$0xff] %vm4293, %v4090
      %4313 = vst.msk [vmem:[#allocation3 + $0x98] sm:$0xff] %vm4293, %v4092
      %4314 = vst.msk [vmem:[#allocation3 + $0xa0] sm:$0xff] %vm4293, %v4094
      %4315 = vst.msk [vmem:[#allocation3 + $0xa8] sm:$0xff] %vm4293, %v4096
      %4316 = vst.msk [vmem:[#allocation3 + $0xb0] sm:$0xff] %vm4293, %v4098
      %4317 = vst.msk [vmem:[#allocation3 + $0xb8] sm:$0xff] %vm4293, %v4100
      %4318 = vst.msk [vmem:[#allocation3 + $0xc0] sm:$0xff] %vm4293, %v4102
      %4319 = vst.msk [vmem:[#allocation3 + $0xc8] sm:$0xff] %vm4293, %v4104
      %4320 = vst.msk [vmem:[#allocation3 + $0xd0] sm:$0xff] %vm4293, %v4106
      %4321 = vst.msk [vmem:[#allocation3 + $0xd8] sm:$0xff] %vm4293, %v4108
      %4322 = vst.msk [vmem:[#allocation3 + $0xe0] sm:$0xff] %vm4293, %v4110
      %4323 = vst.msk [vmem:[#allocation3 + $0xe8] sm:$0xff] %vm4293, %v4112
      %4324 = vst.msk [vmem:[#allocation3 + $0xf0] sm:$0xff] %vm4293, %v4114
      %4325 = vst.msk [vmem:[#allocation3 + $0xf8] sm:$0xff] %vm4293, %v4116
      %4326 = vst.msk [vmem:[#allocation3 + $0x100] sm:$0xff] %vm4293, %v4118
      %4327 = vst.msk [vmem:[#allocation3 + $0x108] sm:$0xff] %vm4293, %v4120
      %4328 = vst.msk [vmem:[#allocation3 + $0x110] sm:$0xff] %vm4293, %v4122
      %4329 = vst.msk [vmem:[#allocation3 + $0x118] sm:$0xff] %vm4293, %v4124
      %4330 = vst.msk [vmem:[#allocation3 + $0x120] sm:$0xff] %vm4293, %v4126
      %4331 = vst.msk [vmem:[#allocation3 + $0x128] sm:$0xff] %vm4293, %v4128
      %4332 = vst.msk [vmem:[#allocation3 + $0x130] sm:$0xff] %vm4293, %v4130
      %4333 = vst.msk [vmem:[#allocation3 + $0x138] sm:$0xff] %vm4293, %v4132
      %4334 = vst.msk [vmem:[#allocation3 + $0x140] sm:$0xff] %vm4293, %v4134
      %4335 = vst.msk [vmem:[#allocation3 + $0x148] sm:$0xff] %vm4293, %v4136
      %4336 = vst.msk [vmem:[#allocation3 + $0x150] sm:$0xff] %vm4293, %v4138
      %4337 = vst.msk [vmem:[#allocation3 + $0x158] sm:$0xff] %vm4293, %v4140
      %4338 = vst.msk [vmem:[#allocation3 + $0x160] sm:$0xff] %vm4293, %v4142
      %4339 = vst.msk [vmem:[#allocation3 + $0x168] sm:$0xff] %vm4293, %v4144
      %4340 = vst.msk [vmem:[#allocation3 + $0x170] sm:$0xff] %vm4293, %v4146
      %4341 = vst.msk [vmem:[#allocation3 + $0x178] sm:$0xff] %vm4293, %v4148
      %4342 = vst.msk [vmem:[#allocation3 + $0x180] sm:$0xff] %vm4293, %v4150
      %4343 = vst.msk [vmem:[#allocation3 + $0x188] sm:$0xff] %vm4293, %v4152
      %4344 = vst.msk [vmem:[#allocation3 + $0x190] sm:$0xff] %vm4293, %v4154
      %4345 = vst.msk [vmem:[#allocation3 + $0x198] sm:$0xff] %vm4293, %v4156
      %4346 = vst.msk [vmem:[#allocation3 + $0x1a0] sm:$0xff] %vm4293, %v4158
      %4347 = vst.msk [vmem:[#allocation3 + $0x1a8] sm:$0xff] %vm4293, %v4160
      %4348 = vst.msk [vmem:[#allocation3 + $0x1b0] sm:$0xff] %vm4293, %v4162
      %4349 = vst.msk [vmem:[#allocation3 + $0x1b8] sm:$0xff] %vm4293, %v4164
      %4350 = vst.msk [vmem:[#allocation3 + $0x1c0] sm:$0xff] %vm4293, %v4166
      %4351 = vst.msk [vmem:[#allocation3 + $0x1c8] sm:$0xff] %vm4293, %v4168
      %4352 = vst.msk [vmem:[#allocation3 + $0x1d0] sm:$0xff] %vm4293, %v4170
      %4353 = vst.msk [vmem:[#allocation3 + $0x1d8] sm:$0xff] %vm4293, %v4172
      %4354 = vst.msk [vmem:[#allocation3 + $0x1e0] sm:$0xff] %vm4293, %v4174
      %4355 = vst.msk [vmem:[#allocation3 + $0x1e8] sm:$0xff] %vm4293, %v4176
      %4356 = vst.msk [vmem:[#allocation3 + $0x1f0] sm:$0xff] %vm4293, %v4178
      %4357 = vst.msk [vmem:[#allocation3 + $0x1f8] sm:$0xff] %vm4293, %v4180
      %4358 = vst.msk [vmem:[#allocation3 + $0x200] sm:$0xff] %vm4293, %v4182
      %4359 = vst.msk [vmem:[#allocation3 + $0x208] sm:$0xff] %vm4293, %v4184
      %4360 = vst.msk [vmem:[#allocation3 + $0x210] sm:$0xff] %vm4293, %v4186
      %4361 = vst.msk [vmem:[#allocation3 + $0x218] sm:$0xff] %vm4293, %v4188
      %4362 = vst.msk [vmem:[#allocation3 + $0x220] sm:$0xff] %vm4293, %v4190
      %4363 = vst.msk [vmem:[#allocation3 + $0x228] sm:$0xff] %vm4293, %v4192
      %4364 = vst.msk [vmem:[#allocation3 + $0x230] sm:$0xff] %vm4293, %v4194
      %4365 = vst.msk [vmem:[#allocation3 + $0x238] sm:$0xff] %vm4293, %v4196
      %4366 = vst.msk [vmem:[#allocation3 + $0x240] sm:$0xff] %vm4293, %v4198
      %4367 = vst.msk [vmem:[#allocation3 + $0x248] sm:$0xff] %vm4293, %v4200
      %4368 = vst.msk [vmem:[#allocation3 + $0x250] sm:$0xff] %vm4293, %v4202
      %4369 = vst.msk [vmem:[#allocation3 + $0x258] sm:$0xff] %vm4293, %v4204
      %4370 = vst.msk [vmem:[#allocation3 + $0x260] sm:$0xff] %vm4293, %v4206
      %4371 = vst.msk [vmem:[#allocation3 + $0x268] sm:$0xff] %vm4293, %v4208
      %4372 = vst.msk [vmem:[#allocation3 + $0x270] sm:$0xff] %vm4293, %v4210
      %4373 = vst.msk [vmem:[#allocation3 + $0x278] sm:$0xff] %vm4293, %v4212
      %v4374 = vld [vmem:[%s3411 + $0x2] sm:$0xff]
      %v4375 = vld [vmem:[%s3411 + $0x12] sm:$0xff]
      %v4376 = vld [vmem:[%s3411 + $0x22] sm:$0xff]
      %v4377 = vld [vmem:[%s3411 + $0x32] sm:$0xff]
      %v4378 = vld [vmem:[%s3411 + $0x42] sm:$0xff]
      %v4379 = vld [vmem:[%s3411 + $0x52] sm:$0xff]
      %v4380 = vld [vmem:[%s3411 + $0x62] sm:$0xff]
      %v4381 = vld [vmem:[%s3411 + $0x72] sm:$0xff]
      %v4382 = vld [vmem:[%s3411 + $0xa2] sm:$0xff]
      %v4383 = vld [vmem:[%s3411 + $0xb2] sm:$0xff]
      %v4384 = vld [vmem:[%s3411 + $0xc2] sm:$0xff]
      %v4385 = vld [vmem:[%s3411 + $0xd2] sm:$0xff]
      %v4386 = vld [vmem:[%s3411 + $0xe2] sm:$0xff]
      %v4387 = vld [vmem:[%s3411 + $0xf2] sm:$0xff]
      %v4388 = vld [vmem:[%s3411 + $0x102] sm:$0xff]
      %v4389 = vld [vmem:[%s3411 + $0x112] sm:$0xff]
      %v4390 = vld [vmem:[%s3411 + $0x142] sm:$0xff]
      %v4391 = vld [vmem:[%s3411 + $0x152] sm:$0xff]
      %v4392 = vld [vmem:[%s3411 + $0x162] sm:$0xff]
      %v4393 = vld [vmem:[%s3411 + $0x172] sm:$0xff]
      %v4394 = vld [vmem:[%s3411 + $0x182] sm:$0xff]
      %v4395 = vld [vmem:[%s3411 + $0x192] sm:$0xff]
      %v4396 = vld [vmem:[%s3411 + $0x1a2] sm:$0xff]
      %v4397 = vld [vmem:[%s3411 + $0x1b2] sm:$0xff]
      %v4398 = vld [vmem:[%s3411 + $0x1e2] sm:$0xff]
      %v4399 = vld [vmem:[%s3411 + $0x1f2] sm:$0xff]
      %v4400 = vld [vmem:[%s3411 + $0x202] sm:$0xff]
      %v4401 = vld [vmem:[%s3411 + $0x212] sm:$0xff]
      %v4402 = vld [vmem:[%s3411 + $0x222] sm:$0xff]
      %v4403 = vld [vmem:[%s3411 + $0x232] sm:$0xff]
      %v4404 = vld [vmem:[%s3411 + $0x242] sm:$0xff]
      %v4405 = vld [vmem:[%s3411 + $0x252] sm:$0xff]
      %v4406 = vld [vmem:[%s3411 + $0x282] sm:$0xff]
      %v4407 = vld [vmem:[%s3411 + $0x292] sm:$0xff]
      %v4408 = vld [vmem:[%s3411 + $0x2a2] sm:$0xff]
      %v4409 = vld [vmem:[%s3411 + $0x2b2] sm:$0xff]
      %v4410 = vld [vmem:[%s3411 + $0x2c2] sm:$0xff]
      %v4411 = vld [vmem:[%s3411 + $0x2d2] sm:$0xff]
      %v4412 = vld [vmem:[%s3411 + $0x2e2] sm:$0xff]
      %v4413 = vld [vmem:[%s3411 + $0x2f2] sm:$0xff]
      %v4414 = vld [vmem:[%s3411 + $0x322] sm:$0xff]
      %v4415 = vld [vmem:[%s3411 + $0x332] sm:$0xff]
      %v4416 = vld [vmem:[%s3411 + $0x342] sm:$0xff]
      %v4417 = vld [vmem:[%s3411 + $0x352] sm:$0xff]
      %v4418 = vld [vmem:[%s3411 + $0x362] sm:$0xff]
      %v4419 = vld [vmem:[%s3411 + $0x372] sm:$0xff]
      %v4420 = vld [vmem:[%s3411 + $0x382] sm:$0xff]
      %v4421 = vld [vmem:[%s3411 + $0x392] sm:$0xff]
      %v4422 = vld [vmem:[%s3411 + $0x3c2] sm:$0xff]
      %v4423 = vld [vmem:[%s3411 + $0x3d2] sm:$0xff]
      %v4424 = vld [vmem:[%s3411 + $0x3e2] sm:$0xff]
      %v4425 = vld [vmem:[%s3411 + $0x3f2] sm:$0xff]
      %v4426 = vld [vmem:[%s3411 + $0x402] sm:$0xff]
      %v4427 = vld [vmem:[%s3411 + $0x412] sm:$0xff]
      %v4428 = vld [vmem:[%s3411 + $0x422] sm:$0xff]
      %v4429 = vld [vmem:[%s3411 + $0x432] sm:$0xff]
      %v4430 = vld [vmem:[%s3411 + $0x462] sm:$0xff]
      %v4431 = vld [vmem:[%s3411 + $0x472] sm:$0xff]
      %v4432 = vld [vmem:[%s3411 + $0x482] sm:$0xff]
      %v4433 = vld [vmem:[%s3411 + $0x492] sm:$0xff]
      %v4434 = vld [vmem:[%s3411 + $0x4a2] sm:$0xff]
      %v4435 = vld [vmem:[%s3411 + $0x4b2] sm:$0xff]
      %v4436 = vld [vmem:[%s3411 + $0x4c2] sm:$0xff]
      %v4437 = vld [vmem:[%s3411 + $0x4d2] sm:$0xff]
      %v4438 = vld [vmem:[%s3411 + $0x502] sm:$0xff]
      %v4439 = vld [vmem:[%s3411 + $0x512] sm:$0xff]
      %v4440 = vld [vmem:[%s3411 + $0x522] sm:$0xff]
      %v4441 = vld [vmem:[%s3411 + $0x532] sm:$0xff]
      %v4442 = vld [vmem:[%s3411 + $0x542] sm:$0xff]
      %v4443 = vld [vmem:[%s3411 + $0x552] sm:$0xff]
      %v4444 = vld [vmem:[%s3411 + $0x562] sm:$0xff]
      %v4445 = vld [vmem:[%s3411 + $0x572] sm:$0xff]
      %v4446 = vld [vmem:[%s3411 + $0x5a2] sm:$0xff]
      %v4447 = vld [vmem:[%s3411 + $0x5b2] sm:$0xff]
      %v4448 = vld [vmem:[%s3411 + $0x5c2] sm:$0xff]
      %v4449 = vld [vmem:[%s3411 + $0x5d2] sm:$0xff]
      %v4450 = vld [vmem:[%s3411 + $0x5e2] sm:$0xff]
      %v4451 = vld [vmem:[%s3411 + $0x5f2] sm:$0xff]
      %v4452 = vld [vmem:[%s3411 + $0x602] sm:$0xff]
      %v4453 = vld [vmem:[%s3411 + $0x612] sm:$0xff]
      %4534 = vrot.lane.b32.xlu0 %v4374, 64
      %v4535 = vpop.permute.xlu0 %4534
      %4536 = vrot.lane.b32.xlu0 %v4375, 64
      %v4537 = vpop.permute.xlu0 %4536
      %4538 = vrot.lane.b32.xlu0 %v4376, 64
      %v4539 = vpop.permute.xlu0 %4538
      %4540 = vrot.lane.b32.xlu0 %v4377, 64
      %v4541 = vpop.permute.xlu0 %4540
      %4542 = vrot.lane.b32.xlu0 %v4378, 64
      %v4543 = vpop.permute.xlu0 %4542
      %4544 = vrot.lane.b32.xlu0 %v4379, 64
      %v4545 = vpop.permute.xlu0 %4544
      %4546 = vrot.lane.b32.xlu0 %v4380, 64
      %v4547 = vpop.permute.xlu0 %4546
      %4548 = vrot.lane.b32.xlu0 %v4381, 64
      %v4549 = vpop.permute.xlu0 %4548
      %4550 = vrot.lane.b32.xlu0 %v4382, 64
      %v4551 = vpop.permute.xlu0 %4550
      %4552 = vrot.lane.b32.xlu0 %v4383, 64
      %v4553 = vpop.permute.xlu0 %4552
      %4554 = vrot.lane.b32.xlu0 %v4384, 64
      %v4555 = vpop.permute.xlu0 %4554
      %4556 = vrot.lane.b32.xlu0 %v4385, 64
      %v4557 = vpop.permute.xlu0 %4556
      %4558 = vrot.lane.b32.xlu0 %v4386, 64
      %v4559 = vpop.permute.xlu0 %4558
      %4560 = vrot.lane.b32.xlu0 %v4387, 64
      %v4561 = vpop.permute.xlu0 %4560
      %4562 = vrot.lane.b32.xlu0 %v4388, 64
      %v4563 = vpop.permute.xlu0 %4562
      %4564 = vrot.lane.b32.xlu0 %v4389, 64
      %v4565 = vpop.permute.xlu0 %4564
      %4566 = vrot.lane.b32.xlu0 %v4390, 64
      %v4567 = vpop.permute.xlu0 %4566
      %4568 = vrot.lane.b32.xlu0 %v4391, 64
      %v4569 = vpop.permute.xlu0 %4568
      %4570 = vrot.lane.b32.xlu0 %v4392, 64
      %v4571 = vpop.permute.xlu0 %4570
      %4572 = vrot.lane.b32.xlu0 %v4393, 64
      %v4573 = vpop.permute.xlu0 %4572
      %4574 = vrot.lane.b32.xlu0 %v4394, 64
      %v4575 = vpop.permute.xlu0 %4574
      %4576 = vrot.lane.b32.xlu0 %v4395, 64
      %v4577 = vpop.permute.xlu0 %4576
      %4578 = vrot.lane.b32.xlu0 %v4396, 64
      %v4579 = vpop.permute.xlu0 %4578
      %4580 = vrot.lane.b32.xlu0 %v4397, 64
      %v4581 = vpop.permute.xlu0 %4580
      %4582 = vrot.lane.b32.xlu0 %v4398, 64
      %v4583 = vpop.permute.xlu0 %4582
      %4584 = vrot.lane.b32.xlu0 %v4399, 64
      %v4585 = vpop.permute.xlu0 %4584
      %4586 = vrot.lane.b32.xlu0 %v4400, 64
      %v4587 = vpop.permute.xlu0 %4586
      %4588 = vrot.lane.b32.xlu0 %v4401, 64
      %v4589 = vpop.permute.xlu0 %4588
      %4590 = vrot.lane.b32.xlu0 %v4402, 64
      %v4591 = vpop.permute.xlu0 %4590
      %4592 = vrot.lane.b32.xlu0 %v4403, 64
      %v4593 = vpop.permute.xlu0 %4592
      %4594 = vrot.lane.b32.xlu0 %v4404, 64
      %v4595 = vpop.permute.xlu0 %4594
      %4596 = vrot.lane.b32.xlu0 %v4405, 64
      %v4597 = vpop.permute.xlu0 %4596
      %4598 = vrot.lane.b32.xlu0 %v4406, 64
      %v4599 = vpop.permute.xlu0 %4598
      %4600 = vrot.lane.b32.xlu0 %v4407, 64
      %v4601 = vpop.permute.xlu0 %4600
      %4602 = vrot.lane.b32.xlu0 %v4408, 64
      %v4603 = vpop.permute.xlu0 %4602
      %4604 = vrot.lane.b32.xlu0 %v4409, 64
      %v4605 = vpop.permute.xlu0 %4604
      %4606 = vrot.lane.b32.xlu0 %v4410, 64
      %v4607 = vpop.permute.xlu0 %4606
      %4608 = vrot.lane.b32.xlu0 %v4411, 64
      %v4609 = vpop.permute.xlu0 %4608
      %4610 = vrot.lane.b32.xlu0 %v4412, 64
      %v4611 = vpop.permute.xlu0 %4610
      %4612 = vrot.lane.b32.xlu0 %v4413, 64
      %v4613 = vpop.permute.xlu0 %4612
      %4614 = vrot.lane.b32.xlu0 %v4414, 64
      %v4615 = vpop.permute.xlu0 %4614
      %4616 = vrot.lane.b32.xlu0 %v4415, 64
      %v4617 = vpop.permute.xlu0 %4616
      %4618 = vrot.lane.b32.xlu0 %v4416, 64
      %v4619 = vpop.permute.xlu0 %4618
      %4620 = vrot.lane.b32.xlu0 %v4417, 64
      %v4621 = vpop.permute.xlu0 %4620
      %4622 = vrot.lane.b32.xlu0 %v4418, 64
      %v4623 = vpop.permute.xlu0 %4622
      %4624 = vrot.lane.b32.xlu0 %v4419, 64
      %v4625 = vpop.permute.xlu0 %4624
      %4626 = vrot.lane.b32.xlu0 %v4420, 64
      %v4627 = vpop.permute.xlu0 %4626
      %4628 = vrot.lane.b32.xlu0 %v4421, 64
      %v4629 = vpop.permute.xlu0 %4628
      %4630 = vrot.lane.b32.xlu0 %v4422, 64
      %v4631 = vpop.permute.xlu0 %4630
      %4632 = vrot.lane.b32.xlu0 %v4423, 64
      %v4633 = vpop.permute.xlu0 %4632
      %4634 = vrot.lane.b32.xlu0 %v4424, 64
      %v4635 = vpop.permute.xlu0 %4634
      %4636 = vrot.lane.b32.xlu0 %v4425, 64
      %v4637 = vpop.permute.xlu0 %4636
      %4638 = vrot.lane.b32.xlu0 %v4426, 64
      %v4639 = vpop.permute.xlu0 %4638
      %4640 = vrot.lane.b32.xlu0 %v4427, 64
      %v4641 = vpop.permute.xlu0 %4640
      %4642 = vrot.lane.b32.xlu0 %v4428, 64
      %v4643 = vpop.permute.xlu0 %4642
      %4644 = vrot.lane.b32.xlu0 %v4429, 64
      %v4645 = vpop.permute.xlu0 %4644
      %4646 = vrot.lane.b32.xlu0 %v4430, 64
      %v4647 = vpop.permute.xlu0 %4646
      %4648 = vrot.lane.b32.xlu0 %v4431, 64
      %v4649 = vpop.permute.xlu0 %4648
      %4650 = vrot.lane.b32.xlu0 %v4432, 64
      %v4651 = vpop.permute.xlu0 %4650
      %4652 = vrot.lane.b32.xlu0 %v4433, 64
      %v4653 = vpop.permute.xlu0 %4652
      %4654 = vrot.lane.b32.xlu0 %v4434, 64
      %v4655 = vpop.permute.xlu0 %4654
      %4656 = vrot.lane.b32.xlu0 %v4435, 64
      %v4657 = vpop.permute.xlu0 %4656
      %4658 = vrot.lane.b32.xlu0 %v4436, 64
      %v4659 = vpop.permute.xlu0 %4658
      %4660 = vrot.lane.b32.xlu0 %v4437, 64
      %v4661 = vpop.permute.xlu0 %4660
      %4662 = vrot.lane.b32.xlu0 %v4438, 64
      %v4663 = vpop.permute.xlu0 %4662
      %4664 = vrot.lane.b32.xlu0 %v4439, 64
      %v4665 = vpop.permute.xlu0 %4664
      %4666 = vrot.lane.b32.xlu0 %v4440, 64
      %v4667 = vpop.permute.xlu0 %4666
      %4668 = vrot.lane.b32.xlu0 %v4441, 64
      %v4669 = vpop.permute.xlu0 %4668
      %4670 = vrot.lane.b32.xlu0 %v4442, 64
      %v4671 = vpop.permute.xlu0 %4670
      %4672 = vrot.lane.b32.xlu0 %v4443, 64
      %v4673 = vpop.permute.xlu0 %4672
      %4674 = vrot.lane.b32.xlu0 %v4444, 64
      %v4675 = vpop.permute.xlu0 %4674
      %4676 = vrot.lane.b32.xlu0 %v4445, 64
      %v4677 = vpop.permute.xlu0 %4676
      %4678 = vrot.lane.b32.xlu0 %v4446, 64
      %v4679 = vpop.permute.xlu0 %4678
      %4680 = vrot.lane.b32.xlu0 %v4447, 64
      %v4681 = vpop.permute.xlu0 %4680
      %4682 = vrot.lane.b32.xlu0 %v4448, 64
      %v4683 = vpop.permute.xlu0 %4682
      %4684 = vrot.lane.b32.xlu0 %v4449, 64
      %v4685 = vpop.permute.xlu0 %4684
      %4686 = vrot.lane.b32.xlu0 %v4450, 64
      %v4687 = vpop.permute.xlu0 %4686
      %4688 = vrot.lane.b32.xlu0 %v4451, 64
      %v4689 = vpop.permute.xlu0 %4688
      %4690 = vrot.lane.b32.xlu0 %v4452, 64
      %v4691 = vpop.permute.xlu0 %4690
      %4692 = vrot.lane.b32.xlu0 %v4453, 64
      %v4693 = vpop.permute.xlu0 %4692
      %vm4774 = vcmask 589312
      %4775 = vst.msk [vmem:[#allocation3] sm:$0xff] %vm4774, %v4535
      %4776 = vst.msk [vmem:[#allocation3 + $0x8] sm:$0xff] %vm4774, %v4537
      %4777 = vst.msk [vmem:[#allocation3 + $0x10] sm:$0xff] %vm4774, %v4539
      %4778 = vst.msk [vmem:[#allocation3 + $0x18] sm:$0xff] %vm4774, %v4541
      %4779 = vst.msk [vmem:[#allocation3 + $0x20] sm:$0xff] %vm4774, %v4543
      %4780 = vst.msk [vmem:[#allocation3 + $0x28] sm:$0xff] %vm4774, %v4545
      %4781 = vst.msk [vmem:[#allocation3 + $0x30] sm:$0xff] %vm4774, %v4547
      %4782 = vst.msk [vmem:[#allocation3 + $0x38] sm:$0xff] %vm4774, %v4549
      %4783 = vst.msk [vmem:[#allocation3 + $0x40] sm:$0xff] %vm4774, %v4551
      %4784 = vst.msk [vmem:[#allocation3 + $0x48] sm:$0xff] %vm4774, %v4553
      %4785 = vst.msk [vmem:[#allocation3 + $0x50] sm:$0xff] %vm4774, %v4555
      %4786 = vst.msk [vmem:[#allocation3 + $0x58] sm:$0xff] %vm4774, %v4557
      %4787 = vst.msk [vmem:[#allocation3 + $0x60] sm:$0xff] %vm4774, %v4559
      %4788 = vst.msk [vmem:[#allocation3 + $0x68] sm:$0xff] %vm4774, %v4561
      %4789 = vst.msk [vmem:[#allocation3 + $0x70] sm:$0xff] %vm4774, %v4563
      %4790 = vst.msk [vmem:[#allocation3 + $0x78] sm:$0xff] %vm4774, %v4565
      %4791 = vst.msk [vmem:[#allocation3 + $0x80] sm:$0xff] %vm4774, %v4567
      %4792 = vst.msk [vmem:[#allocation3 + $0x88] sm:$0xff] %vm4774, %v4569
      %4793 = vst.msk [vmem:[#allocation3 + $0x90] sm:$0xff] %vm4774, %v4571
      %4794 = vst.msk [vmem:[#allocation3 + $0x98] sm:$0xff] %vm4774, %v4573
      %4795 = vst.msk [vmem:[#allocation3 + $0xa0] sm:$0xff] %vm4774, %v4575
      %4796 = vst.msk [vmem:[#allocation3 + $0xa8] sm:$0xff] %vm4774, %v4577
      %4797 = vst.msk [vmem:[#allocation3 + $0xb0] sm:$0xff] %vm4774, %v4579
      %4798 = vst.msk [vmem:[#allocation3 + $0xb8] sm:$0xff] %vm4774, %v4581
      %4799 = vst.msk [vmem:[#allocation3 + $0xc0] sm:$0xff] %vm4774, %v4583
      %4800 = vst.msk [vmem:[#allocation3 + $0xc8] sm:$0xff] %vm4774, %v4585
      %4801 = vst.msk [vmem:[#allocation3 + $0xd0] sm:$0xff] %vm4774, %v4587
      %4802 = vst.msk [vmem:[#allocation3 + $0xd8] sm:$0xff] %vm4774, %v4589
      %4803 = vst.msk [vmem:[#allocation3 + $0xe0] sm:$0xff] %vm4774, %v4591
      %4804 = vst.msk [vmem:[#allocation3 + $0xe8] sm:$0xff] %vm4774, %v4593
      %4805 = vst.msk [vmem:[#allocation3 + $0xf0] sm:$0xff] %vm4774, %v4595
      %4806 = vst.msk [vmem:[#allocation3 + $0xf8] sm:$0xff] %vm4774, %v4597
      %4807 = vst.msk [vmem:[#allocation3 + $0x100] sm:$0xff] %vm4774, %v4599
      %4808 = vst.msk [vmem:[#allocation3 + $0x108] sm:$0xff] %vm4774, %v4601
      %4809 = vst.msk [vmem:[#allocation3 + $0x110] sm:$0xff] %vm4774, %v4603
      %4810 = vst.msk [vmem:[#allocation3 + $0x118] sm:$0xff] %vm4774, %v4605
      %4811 = vst.msk [vmem:[#allocation3 + $0x120] sm:$0xff] %vm4774, %v4607
      %4812 = vst.msk [vmem:[#allocation3 + $0x128] sm:$0xff] %vm4774, %v4609
      %4813 = vst.msk [vmem:[#allocation3 + $0x130] sm:$0xff] %vm4774, %v4611
      %4814 = vst.msk [vmem:[#allocation3 + $0x138] sm:$0xff] %vm4774, %v4613
      %4815 = vst.msk [vmem:[#allocation3 + $0x140] sm:$0xff] %vm4774, %v4615
      %4816 = vst.msk [vmem:[#allocation3 + $0x148] sm:$0xff] %vm4774, %v4617
      %4817 = vst.msk [vmem:[#allocation3 + $0x150] sm:$0xff] %vm4774, %v4619
      %4818 = vst.msk [vmem:[#allocation3 + $0x158] sm:$0xff] %vm4774, %v4621
      %4819 = vst.msk [vmem:[#allocation3 + $0x160] sm:$0xff] %vm4774, %v4623
      %4820 = vst.msk [vmem:[#allocation3 + $0x168] sm:$0xff] %vm4774, %v4625
      %4821 = vst.msk [vmem:[#allocation3 + $0x170] sm:$0xff] %vm4774, %v4627
      %4822 = vst.msk [vmem:[#allocation3 + $0x178] sm:$0xff] %vm4774, %v4629
      %4823 = vst.msk [vmem:[#allocation3 + $0x180] sm:$0xff] %vm4774, %v4631
      %4824 = vst.msk [vmem:[#allocation3 + $0x188] sm:$0xff] %vm4774, %v4633
      %4825 = vst.msk [vmem:[#allocation3 + $0x190] sm:$0xff] %vm4774, %v4635
      %4826 = vst.msk [vmem:[#allocation3 + $0x198] sm:$0xff] %vm4774, %v4637
      %4827 = vst.msk [vmem:[#allocation3 + $0x1a0] sm:$0xff] %vm4774, %v4639
      %4828 = vst.msk [vmem:[#allocation3 + $0x1a8] sm:$0xff] %vm4774, %v4641
      %4829 = vst.msk [vmem:[#allocation3 + $0x1b0] sm:$0xff] %vm4774, %v4643
      %4830 = vst.msk [vmem:[#allocation3 + $0x1b8] sm:$0xff] %vm4774, %v4645
      %4831 = vst.msk [vmem:[#allocation3 + $0x1c0] sm:$0xff] %vm4774, %v4647
      %4832 = vst.msk [vmem:[#allocation3 + $0x1c8] sm:$0xff] %vm4774, %v4649
      %4833 = vst.msk [vmem:[#allocation3 + $0x1d0] sm:$0xff] %vm4774, %v4651
      %4834 = vst.msk [vmem:[#allocation3 + $0x1d8] sm:$0xff] %vm4774, %v4653
      %4835 = vst.msk [vmem:[#allocation3 + $0x1e0] sm:$0xff] %vm4774, %v4655
      %4836 = vst.msk [vmem:[#allocation3 + $0x1e8] sm:$0xff] %vm4774, %v4657
      %4837 = vst.msk [vmem:[#allocation3 + $0x1f0] sm:$0xff] %vm4774, %v4659
      %4838 = vst.msk [vmem:[#allocation3 + $0x1f8] sm:$0xff] %vm4774, %v4661
      %4839 = vst.msk [vmem:[#allocation3 + $0x200] sm:$0xff] %vm4774, %v4663
      %4840 = vst.msk [vmem:[#allocation3 + $0x208] sm:$0xff] %vm4774, %v4665
      %4841 = vst.msk [vmem:[#allocation3 + $0x210] sm:$0xff] %vm4774, %v4667
      %4842 = vst.msk [vmem:[#allocation3 + $0x218] sm:$0xff] %vm4774, %v4669
      %4843 = vst.msk [vmem:[#allocation3 + $0x220] sm:$0xff] %vm4774, %v4671
      %4844 = vst.msk [vmem:[#allocation3 + $0x228] sm:$0xff] %vm4774, %v4673
      %4845 = vst.msk [vmem:[#allocation3 + $0x230] sm:$0xff] %vm4774, %v4675
      %4846 = vst.msk [vmem:[#allocation3 + $0x238] sm:$0xff] %vm4774, %v4677
      %4847 = vst.msk [vmem:[#allocation3 + $0x240] sm:$0xff] %vm4774, %v4679
      %4848 = vst.msk [vmem:[#allocation3 + $0x248] sm:$0xff] %vm4774, %v4681
      %4849 = vst.msk [vmem:[#allocation3 + $0x250] sm:$0xff] %vm4774, %v4683
      %4850 = vst.msk [vmem:[#allocation3 + $0x258] sm:$0xff] %vm4774, %v4685
      %4851 = vst.msk [vmem:[#allocation3 + $0x260] sm:$0xff] %vm4774, %v4687
      %4852 = vst.msk [vmem:[#allocation3 + $0x268] sm:$0xff] %vm4774, %v4689
      %4853 = vst.msk [vmem:[#allocation3 + $0x270] sm:$0xff] %vm4774, %v4691
      %4854 = vst.msk [vmem:[#allocation3 + $0x278] sm:$0xff] %vm4774, %v4693
      %v4855 = vld [vmem:[%s4] sm:$0x1]
      %v4857 = vlaneseq
      %v4858 = vshrl.u32 %v4857, 7
      %v4859 = vsub.s32 0, %v4858
      %v4860 = vrot.slane %v4855, %v4859
      %v4862 = vadd.f32 %v4860, 0.0
      %v4863 = vld [vmem:[#allocation3] sm:$0xff]
      %v4864 = vld [vmem:[#allocation3 + $0x8] sm:$0xff]
      %v4865 = vld [vmem:[#allocation3 + $0x10] sm:$0xff]
      %v4866 = vld [vmem:[#allocation3 + $0x18] sm:$0xff]
      %v4867 = vld [vmem:[#allocation3 + $0x20] sm:$0xff]
      %v4868 = vld [vmem:[#allocation3 + $0x28] sm:$0xff]
      %v4869 = vld [vmem:[#allocation3 + $0x30] sm:$0xff]
      %v4870 = vld [vmem:[#allocation3 + $0x38] sm:$0xff]
      %v4871 = vld [vmem:[#allocation3 + $0x40] sm:$0xff]
      %v4872 = vld [vmem:[#allocation3 + $0x48] sm:$0xff]
      %v4873 = vld [vmem:[#allocation3 + $0x50] sm:$0xff]
      %v4874 = vld [vmem:[#allocation3 + $0x58] sm:$0xff]
      %v4875 = vld [vmem:[#allocation3 + $0x60] sm:$0xff]
      %v4876 = vld [vmem:[#allocation3 + $0x68] sm:$0xff]
      %v4877 = vld [vmem:[#allocation3 + $0x70] sm:$0xff]
      %v4878 = vld [vmem:[#allocation3 + $0x78] sm:$0xff]
      %v4879 = vld [vmem:[#allocation3 + $0x80] sm:$0xff]
      %v4880 = vld [vmem:[#allocation3 + $0x88] sm:$0xff]
      %v4881 = vld [vmem:[#allocation3 + $0x90] sm:$0xff]
      %v4882 = vld [vmem:[#allocation3 + $0x98] sm:$0xff]
      %v4883 = vld [vmem:[#allocation3 + $0xa0] sm:$0xff]
      %v4884 = vld [vmem:[#allocation3 + $0xa8] sm:$0xff]
      %v4885 = vld [vmem:[#allocation3 + $0xb0] sm:$0xff]
      %v4886 = vld [vmem:[#allocation3 + $0xb8] sm:$0xff]
      %v4887 = vld [vmem:[#allocation3 + $0xc0] sm:$0xff]
      %v4888 = vld [vmem:[#allocation3 + $0xc8] sm:$0xff]
      %v4889 = vld [vmem:[#allocation3 + $0xd0] sm:$0xff]
      %v4890 = vld [vmem:[#allocation3 + $0xd8] sm:$0xff]
      %v4891 = vld [vmem:[#allocation3 + $0xe0] sm:$0xff]
      %v4892 = vld [vmem:[#allocation3 + $0xe8] sm:$0xff]
      %v4893 = vld [vmem:[#allocation3 + $0xf0] sm:$0xff]
      %v4894 = vld [vmem:[#allocation3 + $0xf8] sm:$0xff]
      %v4895 = vld [vmem:[#allocation3 + $0x100] sm:$0xff]
      %v4896 = vld [vmem:[#allocation3 + $0x108] sm:$0xff]
      %v4897 = vld [vmem:[#allocation3 + $0x110] sm:$0xff]
      %v4898 = vld [vmem:[#allocation3 + $0x118] sm:$0xff]
      %v4899 = vld [vmem:[#allocation3 + $0x120] sm:$0xff]
      %v4900 = vld [vmem:[#allocation3 + $0x128] sm:$0xff]
      %v4901 = vld [vmem:[#allocation3 + $0x130] sm:$0xff]
      %v4902 = vld [vmem:[#allocation3 + $0x138] sm:$0xff]
      %v4903 = vld [vmem:[#allocation3 + $0x140] sm:$0xff]
      %v4904 = vld [vmem:[#allocation3 + $0x148] sm:$0xff]
      %v4905 = vld [vmem:[#allocation3 + $0x150] sm:$0xff]
      %v4906 = vld [vmem:[#allocation3 + $0x158] sm:$0xff]
      %v4907 = vld [vmem:[#allocation3 + $0x160] sm:$0xff]
      %v4908 = vld [vmem:[#allocation3 + $0x168] sm:$0xff]
      %v4909 = vld [vmem:[#allocation3 + $0x170] sm:$0xff]
      %v4910 = vld [vmem:[#allocation3 + $0x178] sm:$0xff]
      %v4911 = vld [vmem:[#allocation3 + $0x180] sm:$0xff]
      %v4912 = vld [vmem:[#allocation3 + $0x188] sm:$0xff]
      %v4913 = vld [vmem:[#allocation3 + $0x190] sm:$0xff]
      %v4914 = vld [vmem:[#allocation3 + $0x198] sm:$0xff]
      %v4915 = vld [vmem:[#allocation3 + $0x1a0] sm:$0xff]
      %v4916 = vld [vmem:[#allocation3 + $0x1a8] sm:$0xff]
      %v4917 = vld [vmem:[#allocation3 + $0x1b0] sm:$0xff]
      %v4918 = vld [vmem:[#allocation3 + $0x1b8] sm:$0xff]
      %v4919 = vld [vmem:[#allocation3 + $0x1c0] sm:$0xff]
      %v4920 = vld [vmem:[#allocation3 + $0x1c8] sm:$0xff]
      %v4921 = vld [vmem:[#allocation3 + $0x1d0] sm:$0xff]
      %v4922 = vld [vmem:[#allocation3 + $0x1d8] sm:$0xff]
      %v4923 = vld [vmem:[#allocation3 + $0x1e0] sm:$0xff]
      %v4924 = vld [vmem:[#allocation3 + $0x1e8] sm:$0xff]
      %v4925 = vld [vmem:[#allocation3 + $0x1f0] sm:$0xff]
      %v4926 = vld [vmem:[#allocation3 + $0x1f8] sm:$0xff]
      %v4927 = vld [vmem:[%s3] sm:$0xff]
      %v4928 = vld [vmem:[%s3 + $0x8] sm:$0xff]
      %v4929 = vld [vmem:[%s3 + $0x10] sm:$0xff]
      %v4930 = vld [vmem:[%s3 + $0x18] sm:$0xff]
      %v4931 = vld [vmem:[%s3 + $0x20] sm:$0xff]
      %v4932 = vld [vmem:[%s3 + $0x28] sm:$0xff]
      %v4933 = vld [vmem:[%s3 + $0x30] sm:$0xff]
      %v4934 = vld [vmem:[%s3 + $0x38] sm:$0xff]
      %v4935 = vld [vmem:[%s3 + $0x40] sm:$0xff]
      %vm4936 = vcmask 588800
      %v4938 = vsel %vm4936, %v4863, 0
      %v4941 = vsel %vm4936, %v4864, 0
      %v4944 = vsel %vm4936, %v4865, 0
      %v4947 = vsel %vm4936, %v4866, 0
      %v4950 = vsel %vm4936, %v4867, 0
      %v4953 = vsel %vm4936, %v4868, 0
      %v4956 = vsel %vm4936, %v4869, 0
      %v4959 = vsel %vm4936, %v4870, 0
      %v4962 = vsel %vm4936, %v4871, 0
      %v4965 = vsel %vm4936, %v4872, 0
      %v4968 = vsel %vm4936, %v4873, 0
      %v4971 = vsel %vm4936, %v4874, 0
      %v4974 = vsel %vm4936, %v4875, 0
      %v4977 = vsel %vm4936, %v4876, 0
      %v4980 = vsel %vm4936, %v4877, 0
      %v4983 = vsel %vm4936, %v4878, 0
      %v4986 = vsel %vm4936, %v4879, 0
      %v4989 = vsel %vm4936, %v4880, 0
      %v4992 = vsel %vm4936, %v4881, 0
      %v4995 = vsel %vm4936, %v4882, 0
      %v4998 = vsel %vm4936, %v4883, 0
      %v5001 = vsel %vm4936, %v4884, 0
      %v5004 = vsel %vm4936, %v4885, 0
      %v5007 = vsel %vm4936, %v4886, 0
      %v5010 = vsel %vm4936, %v4887, 0
      %v5013 = vsel %vm4936, %v4888, 0
      %v5016 = vsel %vm4936, %v4889, 0
      %v5019 = vsel %vm4936, %v4890, 0
      %v5022 = vsel %vm4936, %v4891, 0
      %v5025 = vsel %vm4936, %v4892, 0
      %v5028 = vsel %vm4936, %v4893, 0
      %v5031 = vsel %vm4936, %v4894, 0
      %v5034 = vsel %vm4936, %v4895, 0
      %v5037 = vsel %vm4936, %v4896, 0
      %v5040 = vsel %vm4936, %v4897, 0
      %v5043 = vsel %vm4936, %v4898, 0
      %v5046 = vsel %vm4936, %v4899, 0
      %v5049 = vsel %vm4936, %v4900, 0
      %v5052 = vsel %vm4936, %v4901, 0
      %v5055 = vsel %vm4936, %v4902, 0
      %v5058 = vsel %vm4936, %v4903, 0
      %v5061 = vsel %vm4936, %v4904, 0
      %v5064 = vsel %vm4936, %v4905, 0
      %v5067 = vsel %vm4936, %v4906, 0
      %v5070 = vsel %vm4936, %v4907, 0
      %v5073 = vsel %vm4936, %v4908, 0
      %v5076 = vsel %vm4936, %v4909, 0
      %v5079 = vsel %vm4936, %v4910, 0
      %v5082 = vsel %vm4936, %v4911, 0
      %v5085 = vsel %vm4936, %v4912, 0
      %v5088 = vsel %vm4936, %v4913, 0
      %v5091 = vsel %vm4936, %v4914, 0
      %v5094 = vsel %vm4936, %v4915, 0
      %v5097 = vsel %vm4936, %v4916, 0
      %v5100 = vsel %vm4936, %v4917, 0
      %v5103 = vsel %vm4936, %v4918, 0
      %v5106 = vsel %vm4936, %v4919, 0
      %v5109 = vsel %vm4936, %v4920, 0
      %v5112 = vsel %vm4936, %v4921, 0
      %v5115 = vsel %vm4936, %v4922, 0
      %v5118 = vsel %vm4936, %v4923, 0
      %v5121 = vsel %vm4936, %v4924, 0
      %v5124 = vsel %vm4936, %v4925, 0
      %v5127 = vsel %vm4936, %v4926, 0
      %5129 = vmatprep.subr.mxu0 0.0
      %5130 = vmatpush1.msra.mxu0 %v4927
      %5131 = vmatprep.subr.mxu0 0.0
      %5132 = vmatpush1.msra.mxu0 %v4928
      %5133 = vmatprep.subr.mxu0 0.0
      %5134 = vmatpush1.msra.mxu0 %v4929
      %5135 = vmatprep.subr.mxu0 0.0
      %5136 = vmatpush1.msra.mxu0 %v4930
      %5137 = vmatprep.subr.mxu0 0.0
      %5138 = vmatpush1.msra.mxu0 %v4931
      %5139 = vmatprep.subr.mxu0 0.0
      %5140 = vmatpush1.msra.mxu0 %v4932
      %5141 = vmatprep.subr.mxu0 0.0
      %5142 = vmatpush1.msra.mxu0 %v4933
      %5143 = vmatprep.subr.mxu0 0.0
      %5144 = vmatpush1.msra.mxu0 %v4934
      %5145 = vmatprep.subr.mxu0 0.0
      %5146 = vmatpush1.msra.mxu0 %v4935
      %5147 = vmatprep.subr.mxu0 0.0
      %5148 = vmatpush1.msra.mxu0 0.0
      %5149 = vmatprep.subr.mxu0 0.0
      %5150 = vmatpush1.msra.mxu0 0.0
      %5151 = vmatprep.subr.mxu0 0.0
      %5152 = vmatpush1.msra.mxu0 0.0
      %5153 = vmatprep.subr.mxu0 0.0
      %5154 = vmatpush1.msra.mxu0 0.0
      %5155 = vmatprep.subr.mxu0 0.0
      %5156 = vmatpush1.msra.mxu0 0.0
      %5157 = vmatprep.subr.mxu0 0.0
      %5158 = vmatpush1.msra.mxu0 0.0
      %5159 = vmatprep.subr.mxu0 0.0
      %5160 = vmatpush1.msra.mxu0 0.0
      %5161 = vmatprep.subr.mxu0 0.0
      %5162 = vmatpush1.msra.mxu0 0.0
      %5163 = vmatprep.subr.mxu0 0.0
      %5164 = vmatpush1.msra.mxu0 0.0
      %5165 = vmatprep.subr.mxu0 0.0
      %5166 = vmatpush1.msra.mxu0 0.0
      %5167 = vmatprep.subr.mxu0 0.0
      %5168 = vmatpush1.msra.mxu0 0.0
      %5169 = vmatprep.subr.mxu0 0.0
      %5170 = vmatpush1.msra.mxu0 0.0
      %5171 = vmatprep.subr.mxu0 0.0
      %5172 = vmatpush1.msra.mxu0 0.0
      %5173 = vmatprep.subr.mxu0 0.0
      %5174 = vmatpush1.msra.mxu0 0.0
      %5175 = vmatprep.subr.mxu0 0.0
      %5176 = vmatpush1.msra.mxu0 0.0
      %5177 = vmatprep.subr.mxu0 0.0
      %5178 = vmatpush1.msra.mxu0 0.0
      %5179 = vmatprep.subr.mxu0 0.0
      %5180 = vmatpush1.msra.mxu0 0.0
      %5181 = vmatprep.subr.mxu0 0.0
      %5182 = vmatpush1.msra.mxu0 0.0
      %5183 = vmatprep.subr.mxu0 0.0
      %5184 = vmatpush1.msra.mxu0 0.0
      %5185 = vmatprep.subr.mxu0 0.0
      %5186 = vmatpush1.msra.mxu0 0.0
      %5187 = vmatprep.subr.mxu0 0.0
      %5188 = vmatpush1.msra.mxu0 0.0
      %5189 = vmatprep.subr.mxu0 0.0
      %5190 = vmatpush1.msra.mxu0 0.0
      %5191 = vmatprep.subr.mxu0 0.0
      %5192 = vmatpush1.msra.mxu0 0.0
      %5193 = vmatprep.mubr.f32.mxu0 0.0
      %5194 = vmatmul.mubr.f32.gmra.mrb[0].mxu0 %v4938
      %v5195 = vpop.f32.mrb[0].mxu0
      %v5196 = vadd.f32 0.0, %v5195
      %v5197 = vpop.f32.mrb[0].mxu0
      %5198 = vmatprep.mubr.f32.mxu0 0.0
      %5199 = vmatmul.mubr.f32.gmra.mrb[0].mxu0 %v4941
      %v5200 = vpop.f32.mrb[0].mxu0
      %v5201 = vadd.f32 0.0, %v5200
      %v5202 = vpop.f32.mrb[0].mxu0
      %5203 = vmatprep.mubr.f32.mxu0 0.0
      %5204 = vmatmul.mubr.f32.gmra.mrb[0].mxu0 %v4944
      %v5205 = vpop.f32.mrb[0].mxu0
      %v5206 = vadd.f32 0.0, %v5205
      %v5207 = vpop.f32.mrb[0].mxu0
      %5208 = vmatprep.mubr.f32.mxu0 0.0
      %5209 = vmatmul.mubr.f32.gmra.mrb[0].mxu0 %v4947
      %v5210 = vpop.f32.mrb[0].mxu0
      %v5211 = vadd.f32 0.0, %v5210
      %v5212 = vpop.f32.mrb[0].mxu0
      %5213 = vmatprep.mubr.f32.mxu0 0.0
      %5214 = vmatmul.mubr.f32.gmra.mrb[0].mxu0 %v4950
      %v5215 = vpop.f32.mrb[0].mxu0
      %v5216 = vadd.f32 0.0, %v5215
      %v5217 = vpop.f32.mrb[0].mxu0
      %5218 = vmatprep.mubr.f32.mxu0 0.0
      %5219 = vmatmul.mubr.f32.gmra.mrb[0].mxu0 %v4953
      %v5220 = vpop.f32.mrb[0].mxu0
      %v5221 = vadd.f32 0.0, %v5220
      %v5222 = vpop.f32.mrb[0].mxu0
      %5223 = vmatprep.mubr.f32.mxu0 0.0
      %5224 = vmatmul.mubr.f32.gmra.mrb[0].mxu0 %v4956
      %v5225 = vpop.f32.mrb[0].mxu0
      %v5226 = vadd.f32 0.0, %v5225
      %v5227 = vpop.f32.mrb[0].mxu0
      %5228 = vmatprep.mubr.f32.mxu0 0.0
      %5229 = vmatmul.mubr.f32.gmra.mrb[0].mxu0 %v4959
      %v5230 = vpop.f32.mrb[0].mxu0
      %v5231 = vadd.f32 0.0, %v5230
      %v5232 = vpop.f32.mrb[0].mxu0
      %5233 = vmatprep.mubr.f32.mxu0 0.0
      %5234 = vmatmul.mubr.f32.gmra.mrb[0].mxu0 %v4962
      %v5235 = vpop.f32.mrb[0].mxu0
      %v5236 = vadd.f32 0.0, %v5235
      %v5237 = vpop.f32.mrb[0].mxu0
      %5238 = vmatprep.mubr.f32.mxu0 0.0
      %5239 = vmatmul.mubr.f32.gmra.mrb[0].mxu0 %v4965
      %v5240 = vpop.f32.mrb[0].mxu0
      %v5241 = vadd.f32 0.0, %v5240
      %v5242 = vpop.f32.mrb[0].mxu0
      %5243 = vmatprep.mubr.f32.mxu0 0.0
      %5244 = vmatmul.mubr.f32.gmra.mrb[0].mxu0 %v4968
      %v5245 = vpop.f32.mrb[0].mxu0
      %v5246 = vadd.f32 0.0, %v5245
      %v5247 = vpop.f32.mrb[0].mxu0
      %5248 = vmatprep.mubr.f32.mxu0 0.0
      %5249 = vmatmul.mubr.f32.gmra.mrb[0].mxu0 %v4971
      %v5250 = vpop.f32.mrb[0].mxu0
      %v5251 = vadd.f32 0.0, %v5250
      %v5252 = vpop.f32.mrb[0].mxu0
      %5253 = vmatprep.mubr.f32.mxu0 0.0
      %5254 = vmatmul.mubr.f32.gmra.mrb[0].mxu0 %v4974
      %v5255 = vpop.f32.mrb[0].mxu0
      %v5256 = vadd.f32 0.0, %v5255
      %v5257 = vpop.f32.mrb[0].mxu0
      %5258 = vmatprep.mubr.f32.mxu0 0.0
      %5259 = vmatmul.mubr.f32.gmra.mrb[0].mxu0 %v4977
      %v5260 = vpop.f32.mrb[0].mxu0
      %v5261 = vadd.f32 0.0, %v5260
      %v5262 = vpop.f32.mrb[0].mxu0
      %5263 = vmatprep.mubr.f32.mxu0 0.0
      %5264 = vmatmul.mubr.f32.gmra.mrb[0].mxu0 %v4980
      %v5265 = vpop.f32.mrb[0].mxu0
      %v5266 = vadd.f32 0.0, %v5265
      %v5267 = vpop.f32.mrb[0].mxu0
      %5268 = vmatprep.mubr.f32.mxu0 0.0
      %5269 = vmatmul.mubr.f32.gmra.mrb[0].mxu0 %v4983
      %v5270 = vpop.f32.mrb[0].mxu0
      %v5271 = vadd.f32 0.0, %v5270
      %v5272 = vpop.f32.mrb[0].mxu0
      %5273 = vmatprep.mubr.f32.mxu0 0.0
      %5274 = vmatmul.mubr.f32.gmra.mrb[0].mxu0 %v4986
      %v5275 = vpop.f32.mrb[0].mxu0
      %v5276 = vadd.f32 0.0, %v5275
      %v5277 = vpop.f32.mrb[0].mxu0
      %5278 = vmatprep.mubr.f32.mxu0 0.0
      %5279 = vmatmul.mubr.f32.gmra.mrb[0].mxu0 %v4989
      %v5280 = vpop.f32.mrb[0].mxu0
      %v5281 = vadd.f32 0.0, %v5280
      %v5282 = vpop.f32.mrb[0].mxu0
      %5283 = vmatprep.mubr.f32.mxu0 0.0
      %5284 = vmatmul.mubr.f32.gmra.mrb[0].mxu0 %v4992
      %v5285 = vpop.f32.mrb[0].mxu0
      %v5286 = vadd.f32 0.0, %v5285
      %v5287 = vpop.f32.mrb[0].mxu0
      %5288 = vmatprep.mubr.f32.mxu0 0.0
      %5289 = vmatmul.mubr.f32.gmra.mrb[0].mxu0 %v4995
      %v5290 = vpop.f32.mrb[0].mxu0
      %v5291 = vadd.f32 0.0, %v5290
      %v5292 = vpop.f32.mrb[0].mxu0
      %5293 = vmatprep.mubr.f32.mxu0 0.0
      %5294 = vmatmul.mubr.f32.gmra.mrb[0].mxu0 %v4998
      %v5295 = vpop.f32.mrb[0].mxu0
      %v5296 = vadd.f32 0.0, %v5295
      %v5297 = vpop.f32.mrb[0].mxu0
      %5298 = vmatprep.mubr.f32.mxu0 0.0
      %5299 = vmatmul.mubr.f32.gmra.mrb[0].mxu0 %v5001
      %v5300 = vpop.f32.mrb[0].mxu0
      %v5301 = vadd.f32 0.0, %v5300
      %v5302 = vpop.f32.mrb[0].mxu0
      %5303 = vmatprep.mubr.f32.mxu0 0.0
      %5304 = vmatmul.mubr.f32.gmra.mrb[0].mxu0 %v5004
      %v5305 = vpop.f32.mrb[0].mxu0
      %v5306 = vadd.f32 0.0, %v5305
      %v5307 = vpop.f32.mrb[0].mxu0
      %5308 = vmatprep.mubr.f32.mxu0 0.0
      %5309 = vmatmul.mubr.f32.gmra.mrb[0].mxu0 %v5007
      %v5310 = vpop.f32.mrb[0].mxu0
      %v5311 = vadd.f32 0.0, %v5310
      %v5312 = vpop.f32.mrb[0].mxu0
      %5313 = vmatprep.mubr.f32.mxu0 0.0
      %5314 = vmatmul.mubr.f32.gmra.mrb[0].mxu0 %v5010
      %v5315 = vpop.f32.mrb[0].mxu0
      %v5316 = vadd.f32 0.0, %v5315
      %v5317 = vpop.f32.mrb[0].mxu0
      %5318 = vmatprep.mubr.f32.mxu0 0.0
      %5319 = vmatmul.mubr.f32.gmra.mrb[0].mxu0 %v5013
      %v5320 = vpop.f32.mrb[0].mxu0
      %v5321 = vadd.f32 0.0, %v5320
      %v5322 = vpop.f32.mrb[0].mxu0
      %5323 = vmatprep.mubr.f32.mxu0 0.0
      %5324 = vmatmul.mubr.f32.gmra.mrb[0].mxu0 %v5016
      %v5325 = vpop.f32.mrb[0].mxu0
      %v5326 = vadd.f32 0.0, %v5325
      %v5327 = vpop.f32.mrb[0].mxu0
      %5328 = vmatprep.mubr.f32.mxu0 0.0
      %5329 = vmatmul.mubr.f32.gmra.mrb[0].mxu0 %v5019
      %v5330 = vpop.f32.mrb[0].mxu0
      %v5331 = vadd.f32 0.0, %v5330
      %v5332 = vpop.f32.mrb[0].mxu0
      %5333 = vmatprep.mubr.f32.mxu0 0.0
      %5334 = vmatmul.mubr.f32.gmra.mrb[0].mxu0 %v5022
      %v5335 = vpop.f32.mrb[0].mxu0
      %v5336 = vadd.f32 0.0, %v5335
      %v5337 = vpop.f32.mrb[0].mxu0
      %5338 = vmatprep.mubr.f32.mxu0 0.0
      %5339 = vmatmul.mubr.f32.gmra.mrb[0].mxu0 %v5025
      %v5340 = vpop.f32.mrb[0].mxu0
      %v5341 = vadd.f32 0.0, %v5340
      %v5342 = vpop.f32.mrb[0].mxu0
      %5343 = vmatprep.mubr.f32.mxu0 0.0
      %5344 = vmatmul.mubr.f32.gmra.mrb[0].mxu0 %v5028
      %v5345 = vpop.f32.mrb[0].mxu0
      %v5346 = vadd.f32 0.0, %v5345
      %v5347 = vpop.f32.mrb[0].mxu0
      %5348 = vmatprep.mubr.f32.mxu0 0.0
      %5349 = vmatmul.mubr.f32.gmra.mrb[0].mxu0 %v5031
      %v5350 = vpop.f32.mrb[0].mxu0
      %v5351 = vadd.f32 0.0, %v5350
      %v5352 = vpop.f32.mrb[0].mxu0
      %5353 = vmatprep.mubr.f32.mxu0 0.0
      %5354 = vmatmul.mubr.f32.gmra.mrb[0].mxu0 %v5034
      %v5355 = vpop.f32.mrb[0].mxu0
      %v5356 = vadd.f32 0.0, %v5355
      %v5357 = vpop.f32.mrb[0].mxu0
      %5358 = vmatprep.mubr.f32.mxu0 0.0
      %5359 = vmatmul.mubr.f32.gmra.mrb[0].mxu0 %v5037
      %v5360 = vpop.f32.mrb[0].mxu0
      %v5361 = vadd.f32 0.0, %v5360
      %v5362 = vpop.f32.mrb[0].mxu0
      %5363 = vmatprep.mubr.f32.mxu0 0.0
      %5364 = vmatmul.mubr.f32.gmra.mrb[0].mxu0 %v5040
      %v5365 = vpop.f32.mrb[0].mxu0
      %v5366 = vadd.f32 0.0, %v5365
      %v5367 = vpop.f32.mrb[0].mxu0
      %5368 = vmatprep.mubr.f32.mxu0 0.0
      %5369 = vmatmul.mubr.f32.gmra.mrb[0].mxu0 %v5043
      %v5370 = vpop.f32.mrb[0].mxu0
      %v5371 = vadd.f32 0.0, %v5370
      %v5372 = vpop.f32.mrb[0].mxu0
      %5373 = vmatprep.mubr.f32.mxu0 0.0
      %5374 = vmatmul.mubr.f32.gmra.mrb[0].mxu0 %v5046
      %v5375 = vpop.f32.mrb[0].mxu0
      %v5376 = vadd.f32 0.0, %v5375
      %v5377 = vpop.f32.mrb[0].mxu0
      %5378 = vmatprep.mubr.f32.mxu0 0.0
      %5379 = vmatmul.mubr.f32.gmra.mrb[0].mxu0 %v5049
      %v5380 = vpop.f32.mrb[0].mxu0
      %v5381 = vadd.f32 0.0, %v5380
      %v5382 = vpop.f32.mrb[0].mxu0
      %5383 = vmatprep.mubr.f32.mxu0 0.0
      %5384 = vmatmul.mubr.f32.gmra.mrb[0].mxu0 %v5052
      %v5385 = vpop.f32.mrb[0].mxu0
      %v5386 = vadd.f32 0.0, %v5385
      %v5387 = vpop.f32.mrb[0].mxu0
      %5388 = vmatprep.mubr.f32.mxu0 0.0
      %5389 = vmatmul.mubr.f32.gmra.mrb[0].mxu0 %v5055
      %v5390 = vpop.f32.mrb[0].mxu0
      %v5391 = vadd.f32 0.0, %v5390
      %v5392 = vpop.f32.mrb[0].mxu0
      %5393 = vmatprep.mubr.f32.mxu0 0.0
      %5394 = vmatmul.mubr.f32.gmra.mrb[0].mxu0 %v5058
      %v5395 = vpop.f32.mrb[0].mxu0
      %v5396 = vadd.f32 0.0, %v5395
      %v5397 = vpop.f32.mrb[0].mxu0
      %5398 = vmatprep.mubr.f32.mxu0 0.0
      %5399 = vmatmul.mubr.f32.gmra.mrb[0].mxu0 %v5061
      %v5400 = vpop.f32.mrb[0].mxu0
      %v5401 = vadd.f32 0.0, %v5400
      %v5402 = vpop.f32.mrb[0].mxu0
      %5403 = vmatprep.mubr.f32.mxu0 0.0
      %5404 = vmatmul.mubr.f32.gmra.mrb[0].mxu0 %v5064
      %v5405 = vpop.f32.mrb[0].mxu0
      %v5406 = vadd.f32 0.0, %v5405
      %v5407 = vpop.f32.mrb[0].mxu0
      %5408 = vmatprep.mubr.f32.mxu0 0.0
      %5409 = vmatmul.mubr.f32.gmra.mrb[0].mxu0 %v5067
      %v5410 = vpop.f32.mrb[0].mxu0
      %v5411 = vadd.f32 0.0, %v5410
      %v5412 = vpop.f32.mrb[0].mxu0
      %5413 = vmatprep.mubr.f32.mxu0 0.0
      %5414 = vmatmul.mubr.f32.gmra.mrb[0].mxu0 %v5070
      %v5415 = vpop.f32.mrb[0].mxu0
      %v5416 = vadd.f32 0.0, %v5415
      %v5417 = vpop.f32.mrb[0].mxu0
      %5418 = vmatprep.mubr.f32.mxu0 0.0
      %5419 = vmatmul.mubr.f32.gmra.mrb[0].mxu0 %v5073
      %v5420 = vpop.f32.mrb[0].mxu0
      %v5421 = vadd.f32 0.0, %v5420
      %v5422 = vpop.f32.mrb[0].mxu0
      %5423 = vmatprep.mubr.f32.mxu0 0.0
      %5424 = vmatmul.mubr.f32.gmra.mrb[0].mxu0 %v5076
      %v5425 = vpop.f32.mrb[0].mxu0
      %v5426 = vadd.f32 0.0, %v5425
      %v5427 = vpop.f32.mrb[0].mxu0
      %5428 = vmatprep.mubr.f32.mxu0 0.0
      %5429 = vmatmul.mubr.f32.gmra.mrb[0].mxu0 %v5079
      %v5430 = vpop.f32.mrb[0].mxu0
      %v5431 = vadd.f32 0.0, %v5430
      %v5432 = vpop.f32.mrb[0].mxu0
      %5433 = vmatprep.mubr.f32.mxu0 0.0
      %5434 = vmatmul.mubr.f32.gmra.mrb[0].mxu0 %v5082
      %v5435 = vpop.f32.mrb[0].mxu0
      %v5436 = vadd.f32 0.0, %v5435
      %v5437 = vpop.f32.mrb[0].mxu0
      %5438 = vmatprep.mubr.f32.mxu0 0.0
      %5439 = vmatmul.mubr.f32.gmra.mrb[0].mxu0 %v5085
      %v5440 = vpop.f32.mrb[0].mxu0
      %v5441 = vadd.f32 0.0, %v5440
      %v5442 = vpop.f32.mrb[0].mxu0
      %5443 = vmatprep.mubr.f32.mxu0 0.0
      %5444 = vmatmul.mubr.f32.gmra.mrb[0].mxu0 %v5088
      %v5445 = vpop.f32.mrb[0].mxu0
      %v5446 = vadd.f32 0.0, %v5445
      %v5447 = vpop.f32.mrb[0].mxu0
      %5448 = vmatprep.mubr.f32.mxu0 0.0
      %5449 = vmatmul.mubr.f32.gmra.mrb[0].mxu0 %v5091
      %v5450 = vpop.f32.mrb[0].mxu0
      %v5451 = vadd.f32 0.0, %v5450
      %v5452 = vpop.f32.mrb[0].mxu0
      %5453 = vmatprep.mubr.f32.mxu0 0.0
      %5454 = vmatmul.mubr.f32.gmra.mrb[0].mxu0 %v5094
      %v5455 = vpop.f32.mrb[0].mxu0
      %v5456 = vadd.f32 0.0, %v5455
      %v5457 = vpop.f32.mrb[0].mxu0
      %5458 = vmatprep.mubr.f32.mxu0 0.0
      %5459 = vmatmul.mubr.f32.gmra.mrb[0].mxu0 %v5097
      %v5460 = vpop.f32.mrb[0].mxu0
      %v5461 = vadd.f32 0.0, %v5460
      %v5462 = vpop.f32.mrb[0].mxu0
      %5463 = vmatprep.mubr.f32.mxu0 0.0
      %5464 = vmatmul.mubr.f32.gmra.mrb[0].mxu0 %v5100
      %v5465 = vpop.f32.mrb[0].mxu0
      %v5466 = vadd.f32 0.0, %v5465
      %v5467 = vpop.f32.mrb[0].mxu0
      %5468 = vmatprep.mubr.f32.mxu0 0.0
      %5469 = vmatmul.mubr.f32.gmra.mrb[0].mxu0 %v5103
      %v5470 = vpop.f32.mrb[0].mxu0
      %v5471 = vadd.f32 0.0, %v5470
      %v5472 = vpop.f32.mrb[0].mxu0
      %5473 = vmatprep.mubr.f32.mxu0 0.0
      %5474 = vmatmul.mubr.f32.gmra.mrb[0].mxu0 %v5106
      %v5475 = vpop.f32.mrb[0].mxu0
      %v5476 = vadd.f32 0.0, %v5475
      %v5477 = vpop.f32.mrb[0].mxu0
      %5478 = vmatprep.mubr.f32.mxu0 0.0
      %5479 = vmatmul.mubr.f32.gmra.mrb[0].mxu0 %v5109
      %v5480 = vpop.f32.mrb[0].mxu0
      %v5481 = vadd.f32 0.0, %v5480
      %v5482 = vpop.f32.mrb[0].mxu0
      %5483 = vmatprep.mubr.f32.mxu0 0.0
      %5484 = vmatmul.mubr.f32.gmra.mrb[0].mxu0 %v5112
      %v5485 = vpop.f32.mrb[0].mxu0
      %v5486 = vadd.f32 0.0, %v5485
      %v5487 = vpop.f32.mrb[0].mxu0
      %5488 = vmatprep.mubr.f32.mxu0 0.0
      %5489 = vmatmul.mubr.f32.gmra.mrb[0].mxu0 %v5115
      %v5490 = vpop.f32.mrb[0].mxu0
      %v5491 = vadd.f32 0.0, %v5490
      %v5492 = vpop.f32.mrb[0].mxu0
      %5493 = vmatprep.mubr.f32.mxu0 0.0
      %5494 = vmatmul.mubr.f32.gmra.mrb[0].mxu0 %v5118
      %v5495 = vpop.f32.mrb[0].mxu0
      %v5496 = vadd.f32 0.0, %v5495
      %v5497 = vpop.f32.mrb[0].mxu0
      %5498 = vmatprep.mubr.f32.mxu0 0.0
      %5499 = vmatmul.mubr.f32.gmra.mrb[0].mxu0 %v5121
      %v5500 = vpop.f32.mrb[0].mxu0
      %v5501 = vadd.f32 0.0, %v5500
      %v5502 = vpop.f32.mrb[0].mxu0
      %5503 = vmatprep.mubr.f32.mxu0 0.0
      %5504 = vmatmul.mubr.f32.gmra.mrb[0].mxu0 %v5124
      %v5505 = vpop.f32.mrb[0].mxu0
      %v5506 = vadd.f32 0.0, %v5505
      %v5507 = vpop.f32.mrb[0].mxu0
      %5508 = vmatprep.mubr.f32.mxu0 0.0
      %5509 = vmatmul.mubr.f32.gmra.mrb[0].mxu0 %v5127
      %v5510 = vpop.f32.mrb[0].mxu0
      %v5511 = vadd.f32 0.0, %v5510
      %v5512 = vpop.f32.mrb[0].mxu0
      %5513 = vdwg.mxu0
      %v5514 = vadd.f32 %v4862, %v5196
      %v5515 = vadd.f32 %v4862, %v5201
      %v5516 = vadd.f32 %v4862, %v5206
      %v5517 = vadd.f32 %v4862, %v5211
      %v5518 = vadd.f32 %v4862, %v5216
      %v5519 = vadd.f32 %v4862, %v5221
      %v5520 = vadd.f32 %v4862, %v5226
      %v5521 = vadd.f32 %v4862, %v5231
      %v5522 = vadd.f32 %v4862, %v5236
      %v5523 = vadd.f32 %v4862, %v5241
      %v5524 = vadd.f32 %v4862, %v5246
      %v5525 = vadd.f32 %v4862, %v5251
      %v5526 = vadd.f32 %v4862, %v5256
      %v5527 = vadd.f32 %v4862, %v5261
      %v5528 = vadd.f32 %v4862, %v5266
      %v5529 = vadd.f32 %v4862, %v5271
      %v5530 = vadd.f32 %v4862, %v5276
      %v5531 = vadd.f32 %v4862, %v5281
      %v5532 = vadd.f32 %v4862, %v5286
      %v5533 = vadd.f32 %v4862, %v5291
      %v5534 = vadd.f32 %v4862, %v5296
      %v5535 = vadd.f32 %v4862, %v5301
      %v5536 = vadd.f32 %v4862, %v5306
      %v5537 = vadd.f32 %v4862, %v5311
      %v5538 = vadd.f32 %v4862, %v5316
      %v5539 = vadd.f32 %v4862, %v5321
      %v5540 = vadd.f32 %v4862, %v5326
      %v5541 = vadd.f32 %v4862, %v5331
      %v5542 = vadd.f32 %v4862, %v5336
      %v5543 = vadd.f32 %v4862, %v5341
      %v5544 = vadd.f32 %v4862, %v5346
      %v5545 = vadd.f32 %v4862, %v5351
      %v5546 = vadd.f32 %v4862, %v5356
      %v5547 = vadd.f32 %v4862, %v5361
      %v5548 = vadd.f32 %v4862, %v5366
      %v5549 = vadd.f32 %v4862, %v5371
      %v5550 = vadd.f32 %v4862, %v5376
      %v5551 = vadd.f32 %v4862, %v5381
      %v5552 = vadd.f32 %v4862, %v5386
      %v5553 = vadd.f32 %v4862, %v5391
      %v5554 = vadd.f32 %v4862, %v5396
      %v5555 = vadd.f32 %v4862, %v5401
      %v5556 = vadd.f32 %v4862, %v5406
      %v5557 = vadd.f32 %v4862, %v5411
      %v5558 = vadd.f32 %v4862, %v5416
      %v5559 = vadd.f32 %v4862, %v5421
      %v5560 = vadd.f32 %v4862, %v5426
      %v5561 = vadd.f32 %v4862, %v5431
      %v5562 = vadd.f32 %v4862, %v5436
      %v5563 = vadd.f32 %v4862, %v5441
      %v5564 = vadd.f32 %v4862, %v5446
      %v5565 = vadd.f32 %v4862, %v5451
      %v5566 = vadd.f32 %v4862, %v5456
      %v5567 = vadd.f32 %v4862, %v5461
      %v5568 = vadd.f32 %v4862, %v5466
      %v5569 = vadd.f32 %v4862, %v5471
      %v5570 = vadd.f32 %v4862, %v5476
      %v5571 = vadd.f32 %v4862, %v5481
      %v5572 = vadd.f32 %v4862, %v5486
      %v5573 = vadd.f32 %v4862, %v5491
      %v5574 = vadd.f32 %v4862, %v5496
      %v5575 = vadd.f32 %v4862, %v5501
      %v5576 = vadd.f32 %v4862, %v5506
      %v5577 = vadd.f32 %v4862, %v5511
      %v5578 = vld [vmem:[#allocation3 + $0x40] sm:$0xff]
      %v5579 = vld [vmem:[#allocation3 + $0x48] sm:$0xff]
      %v5580 = vld [vmem:[#allocation3 + $0x50] sm:$0xff]
      %v5581 = vld [vmem:[#allocation3 + $0x58] sm:$0xff]
      %v5582 = vld [vmem:[#allocation3 + $0x60] sm:$0xff]
      %v5583 = vld [vmem:[#allocation3 + $0x68] sm:$0xff]
      %v5584 = vld [vmem:[#allocation3 + $0x70] sm:$0xff]
      %v5585 = vld [vmem:[#allocation3 + $0x78] sm:$0xff]
      %v5586 = vld [vmem:[#allocation3 + $0x80] sm:$0xff]
      %v5587 = vld [vmem:[#allocation3 + $0x88] sm:$0xff]
      %v5588 = vld [vmem:[#allocation3 + $0x90] sm:$0xff]
      %v5589 = vld [vmem:[#allocation3 + $0x98] sm:$0xff]
      %v5590 = vld [vmem:[#allocation3 + $0xa0] sm:$0xff]
      %v5591 = vld [vmem:[#allocation3 + $0xa8] sm:$0xff]
      %v5592 = vld [vmem:[#allocation3 + $0xb0] sm:$0xff]
      %v5593 = vld [vmem:[#allocation3 + $0xb8] sm:$0xff]
      %v5594 = vld [vmem:[#allocation3 + $0xc0] sm:$0xff]
      %v5595 = vld [vmem:[#allocation3 + $0xc8] sm:$0xff]
      %v5596 = vld [vmem:[#allocation3 + $0xd0] sm:$0xff]
      %v5597 = vld [vmem:[#allocation3 + $0xd8] sm:$0xff]
      %v5598 = vld [vmem:[#allocation3 + $0xe0] sm:$0xff]
      %v5599 = vld [vmem:[#allocation3 + $0xe8] sm:$0xff]
      %v5600 = vld [vmem:[#allocation3 + $0xf0] sm:$0xff]
      %v5601 = vld [vmem:[#allocation3 + $0xf8] sm:$0xff]
      %v5602 = vld [vmem:[#allocation3 + $0x100] sm:$0xff]
      %v5603 = vld [vmem:[#allocation3 + $0x108] sm:$0xff]
      %v5604 = vld [vmem:[#allocation3 + $0x110] sm:$0xff]
      %v5605 = vld [vmem:[#allocation3 + $0x118] sm:$0xff]
      %v5606 = vld [vmem:[#allocation3 + $0x120] sm:$0xff]
      %v5607 = vld [vmem:[#allocation3 + $0x128] sm:$0xff]
      %v5608 = vld [vmem:[#allocation3 + $0x130] sm:$0xff]
      %v5609 = vld [vmem:[#allocation3 + $0x138] sm:$0xff]
      %v5610 = vld [vmem:[#allocation3 + $0x140] sm:$0xff]
      %v5611 = vld [vmem:[#allocation3 + $0x148] sm:$0xff]
      %v5612 = vld [vmem:[#allocation3 + $0x150] sm:$0xff]
      %v5613 = vld [vmem:[#allocation3 + $0x158] sm:$0xff]
      %v5614 = vld [vmem:[#allocation3 + $0x160] sm:$0xff]
      %v5615 = vld [vmem:[#allocation3 + $0x168] sm:$0xff]
      %v5616 = vld [vmem:[#allocation3 + $0x170] sm:$0xff]
      %v5617 = vld [vmem:[#allocation3 + $0x178] sm:$0xff]
      %v5618 = vld [vmem:[#allocation3 + $0x180] sm:$0xff]
      %v5619 = vld [vmem:[#allocation3 + $0x188] sm:$0xff]
      %v5620 = vld [vmem:[#allocation3 + $0x190] sm:$0xff]
      %v5621 = vld [vmem:[#allocation3 + $0x198] sm:$0xff]
      %v5622 = vld [vmem:[#allocation3 + $0x1a0] sm:$0xff]
      %v5623 = vld [vmem:[#allocation3 + $0x1a8] sm:$0xff]
      %v5624 = vld [vmem:[#allocation3 + $0x1b0] sm:$0xff]
      %v5625 = vld [vmem:[#allocation3 + $0x1b8] sm:$0xff]
      %v5626 = vld [vmem:[#allocation3 + $0x1c0] sm:$0xff]
      %v5627 = vld [vmem:[#allocation3 + $0x1c8] sm:$0xff]
      %v5628 = vld [vmem:[#allocation3 + $0x1d0] sm:$0xff]
      %v5629 = vld [vmem:[#allocation3 + $0x1d8] sm:$0xff]
      %v5630 = vld [vmem:[#allocation3 + $0x1e0] sm:$0xff]
      %v5631 = vld [vmem:[#allocation3 + $0x1e8] sm:$0xff]
      %v5632 = vld [vmem:[#allocation3 + $0x1f0] sm:$0xff]
      %v5633 = vld [vmem:[#allocation3 + $0x1f8] sm:$0xff]
      %v5634 = vld [vmem:[#allocation3 + $0x200] sm:$0xff]
      %v5635 = vld [vmem:[#allocation3 + $0x208] sm:$0xff]
      %v5636 = vld [vmem:[#allocation3 + $0x210] sm:$0xff]
      %v5637 = vld [vmem:[#allocation3 + $0x218] sm:$0xff]
      %v5638 = vld [vmem:[#allocation3 + $0x220] sm:$0xff]
      %v5639 = vld [vmem:[#allocation3 + $0x228] sm:$0xff]
      %v5640 = vld [vmem:[#allocation3 + $0x230] sm:$0xff]
      %v5641 = vld [vmem:[#allocation3 + $0x238] sm:$0xff]
      %s5642 = scalar_lea.vmem %s3, 72
      %v5643 = vld [vmem:[%s5642] sm:$0xff]
      %v5644 = vld [vmem:[%s5642 + $0x8] sm:$0xff]
      %v5645 = vld [vmem:[%s5642 + $0x10] sm:$0xff]
      %v5646 = vld [vmem:[%s5642 + $0x18] sm:$0xff]
      %v5647 = vld [vmem:[%s5642 + $0x20] sm:$0xff]
      %v5648 = vld [vmem:[%s5642 + $0x28] sm:$0xff]
      %v5649 = vld [vmem:[%s5642 + $0x30] sm:$0xff]
      %v5650 = vld [vmem:[%s5642 + $0x38] sm:$0xff]
      %v5651 = vld [vmem:[%s5642 + $0x40] sm:$0xff]
      %v5653 = vsel %vm4936, %v5578, 0
      %v5656 = vsel %vm4936, %v5579, 0
      %v5659 = vsel %vm4936, %v5580, 0
      %v5662 = vsel %vm4936, %v5581, 0
      %v5665 = vsel %vm4936, %v5582, 0
      %v5668 = vsel %vm4936, %v5583, 0
      %v5671 = vsel %vm4936, %v5584, 0
      %v5674 = vsel %vm4936, %v5585, 0
      %v5677 = vsel %vm4936, %v5586, 0
      %v5680 = vsel %vm4936, %v5587, 0
      %v5683 = vsel %vm4936, %v5588, 0
      %v5686 = vsel %vm4936, %v5589, 0
      %v5689 = vsel %vm4936, %v5590, 0
      %v5692 = vsel %vm4936, %v5591, 0
      %v5695 = vsel %vm4936, %v5592, 0
      %v5698 = vsel %vm4936, %v5593, 0
      %v5701 = vsel %vm4936, %v5594, 0
      %v5704 = vsel %vm4936, %v5595, 0
      %v5707 = vsel %vm4936, %v5596, 0
      %v5710 = vsel %vm4936, %v5597, 0
      %v5713 = vsel %vm4936, %v5598, 0
      %v5716 = vsel %vm4936, %v5599, 0
      %v5719 = vsel %vm4936, %v5600, 0
      %v5722 = vsel %vm4936, %v5601, 0
      %v5725 = vsel %vm4936, %v5602, 0
      %v5728 = vsel %vm4936, %v5603, 0
      %v5731 = vsel %vm4936, %v5604, 0
      %v5734 = vsel %vm4936, %v5605, 0
      %v5737 = vsel %vm4936, %v5606, 0
      %v5740 = vsel %vm4936, %v5607, 0
      %v5743 = vsel %vm4936, %v5608, 0
      %v5746 = vsel %vm4936, %v5609, 0
      %v5749 = vsel %vm4936, %v5610, 0
      %v5752 = vsel %vm4936, %v5611, 0
      %v5755 = vsel %vm4936, %v5612, 0
      %v5758 = vsel %vm4936, %v5613, 0
      %v5761 = vsel %vm4936, %v5614, 0
      %v5764 = vsel %vm4936, %v5615, 0
      %v5767 = vsel %vm4936, %v5616, 0
      %v5770 = vsel %vm4936, %v5617, 0
      %v5773 = vsel %vm4936, %v5618, 0
      %v5776 = vsel %vm4936, %v5619, 0
      %v5779 = vsel %vm4936, %v5620, 0
      %v5782 = vsel %vm4936, %v5621, 0
      %v5785 = vsel %vm4936, %v5622, 0
      %v5788 = vsel %vm4936, %v5623, 0
      %v5791 = vsel %vm4936, %v5624, 0
      %v5794 = vsel %vm4936, %v5625, 0
      %v5797 = vsel %vm4936, %v5626, 0
      %v5800 = vsel %vm4936, %v5627, 0
      %v5803 = vsel %vm4936, %v5628, 0
      %v5806 = vsel %vm4936, %v5629, 0
      %v5809 = vsel %vm4936, %v5630, 0
      %v5812 = vsel %vm4936, %v5631, 0
      %v5815 = vsel %vm4936, %v5632, 0
      %v5818 = vsel %vm4936, %v5633, 0
      %v5821 = vsel %vm4936, %v5634, 0
      %v5824 = vsel %vm4936, %v5635, 0
      %v5827 = vsel %vm4936, %v5636, 0
      %v5830 = vsel %vm4936, %v5637, 0
      %v5833 = vsel %vm4936, %v5638, 0
      %v5836 = vsel %vm4936, %v5639, 0
      %v5839 = vsel %vm4936, %v5640, 0
      %v5842 = vsel %vm4936, %v5641, 0
      %5844 = vmatprep.subr.mxu0 0.0
      %5845 = vmatpush1.msra.mxu0 %v5643
      %5846 = vmatprep.subr.mxu0 0.0
      %5847 = vmatpush1.msra.mxu0 %v5644
      %5848 = vmatprep.subr.mxu0 0.0
      %5849 = vmatpush1.msra.mxu0 %v5645
      %5850 = vmatprep.subr.mxu0 0.0
      %5851 = vmatpush1.msra.mxu0 %v5646
      %5852 = vmatprep.subr.mxu0 0.0
      %5853 = vmatpush1.msra.mxu0 %v5647
      %5854 = vmatprep.subr.mxu0 0.0
      %5855 = vmatpush1.msra.mxu0 %v5648
      %5856 = vmatprep.subr.mxu0 0.0
      %5857 = vmatpush1.msra.mxu0 %v5649
      %5858 = vmatprep.subr.mxu0 0.0
      %5859 = vmatpush1.msra.mxu0 %v5650
      %5860 = vmatprep.subr.mxu0 0.0
      %5861 = vmatpush1.msra.mxu0 %v5651
      %5862 = vmatprep.subr.mxu0 0.0
      %5863 = vmatpush1.msra.mxu0 0.0
      %5864 = vmatprep.subr.mxu0 0.0
      %5865 = vmatpush1.msra.mxu0 0.0
      %5866 = vmatprep.subr.mxu0 0.0
      %5867 = vmatpush1.msra.mxu0 0.0
      %5868 = vmatprep.subr.mxu0 0.0
      %5869 = vmatpush1.msra.mxu0 0.0
      %5870 = vmatprep.subr.mxu0 0.0
      %5871 = vmatpush1.msra.mxu0 0.0
      %5872 = vmatprep.subr.mxu0 0.0
      %5873 = vmatpush1.msra.mxu0 0.0
      %5874 = vmatprep.subr.mxu0 0.0
      %5875 = vmatpush1.msra.mxu0 0.0
      %5876 = vmatprep.subr.mxu0 0.0
      %5877 = vmatpush1.msra.mxu0 0.0
      %5878 = vmatprep.subr.mxu0 0.0
      %5879 = vmatpush1.msra.mxu0 0.0
      %5880 = vmatprep.subr.mxu0 0.0
      %5881 = vmatpush1.msra.mxu0 0.0
      %5882 = vmatprep.subr.mxu0 0.0
      %5883 = vmatpush1.msra.mxu0 0.0
      %5884 = vmatprep.subr.mxu0 0.0
      %5885 = vmatpush1.msra.mxu0 0.0
      %5886 = vmatprep.subr.mxu0 0.0
      %5887 = vmatpush1.msra.mxu0 0.0
      %5888 = vmatprep.subr.mxu0 0.0
      %5889 = vmatpush1.msra.mxu0 0.0
      %5890 = vmatprep.subr.mxu0 0.0
      %5891 = vmatpush1.msra.mxu0 0.0
      %5892 = vmatprep.subr.mxu0 0.0
      %5893 = vmatpush1.msra.mxu0 0.0
      %5894 = vmatprep.subr.mxu0 0.0
      %5895 = vmatpush1.msra.mxu0 0.0
      %5896 = vmatprep.subr.mxu0 0.0
      %5897 = vmatpush1.msra.mxu0 0.0
      %5898 = vmatprep.subr.mxu0 0.0
      %5899 = vmatpush1.msra.mxu0 0.0
      %5900 = vmatprep.subr.mxu0 0.0
      %5901 = vmatpush1.msra.mxu0 0.0
      %5902 = vmatprep.subr.mxu0 0.0
      %5903 = vmatpush1.msra.mxu0 0.0
      %5904 = vmatprep.subr.mxu0 0.0
      %5905 = vmatpush1.msra.mxu0 0.0
      %5906 = vmatprep.subr.mxu0 0.0
      %5907 = vmatpush1.msra.mxu0 0.0
      %5908 = vmatprep.mubr.f32.mxu0 0.0
      %5909 = vmatmul.mubr.f32.gmra.mrb[0].mxu0 %v5653
      %v5910 = vpop.f32.mrb[0].mxu0
      %v5911 = vadd.f32 0.0, %v5910
      %v5912 = vpop.f32.mrb[0].mxu0
      %5913 = vmatprep.mubr.f32.mxu0 0.0
      %5914 = vmatmul.mubr.f32.gmra.mrb[0].mxu0 %v5656
      %v5915 = vpop.f32.mrb[0].mxu0
      %v5916 = vadd.f32 0.0, %v5915
      %v5917 = vpop.f32.mrb[0].mxu0
      %5918 = vmatprep.mubr.f32.mxu0 0.0
      %5919 = vmatmul.mubr.f32.gmra.mrb[0].mxu0 %v5659
      %v5920 = vpop.f32.mrb[0].mxu0
      %v5921 = vadd.f32 0.0, %v5920
      %v5922 = vpop.f32.mrb[0].mxu0
      %5923 = vmatprep.mubr.f32.mxu0 0.0
      %5924 = vmatmul.mubr.f32.gmra.mrb[0].mxu0 %v5662
      %v5925 = vpop.f32.mrb[0].mxu0
      %v5926 = vadd.f32 0.0, %v5925
      %v5927 = vpop.f32.mrb[0].mxu0
      %5928 = vmatprep.mubr.f32.mxu0 0.0
      %5929 = vmatmul.mubr.f32.gmra.mrb[0].mxu0 %v5665
      %v5930 = vpop.f32.mrb[0].mxu0
      %v5931 = vadd.f32 0.0, %v5930
      %v5932 = vpop.f32.mrb[0].mxu0
      %5933 = vmatprep.mubr.f32.mxu0 0.0
      %5934 = vmatmul.mubr.f32.gmra.mrb[0].mxu0 %v5668
      %v5935 = vpop.f32.mrb[0].mxu0
      %v5936 = vadd.f32 0.0, %v5935
      %v5937 = vpop.f32.mrb[0].mxu0
      %5938 = vmatprep.mubr.f32.mxu0 0.0
      %5939 = vmatmul.mubr.f32.gmra.mrb[0].mxu0 %v5671
      %v5940 = vpop.f32.mrb[0].mxu0
      %v5941 = vadd.f32 0.0, %v5940
      %v5942 = vpop.f32.mrb[0].mxu0
      %5943 = vmatprep.mubr.f32.mxu0 0.0
      %5944 = vmatmul.mubr.f32.gmra.mrb[0].mxu0 %v5674
      %v5945 = vpop.f32.mrb[0].mxu0
      %v5946 = vadd.f32 0.0, %v5945
      %v5947 = vpop.f32.mrb[0].mxu0
      %5948 = vmatprep.mubr.f32.mxu0 0.0
      %5949 = vmatmul.mubr.f32.gmra.mrb[0].mxu0 %v5677
      %v5950 = vpop.f32.mrb[0].mxu0
      %v5951 = vadd.f32 0.0, %v5950
      %v5952 = vpop.f32.mrb[0].mxu0
      %5953 = vmatprep.mubr.f32.mxu0 0.0
      %5954 = vmatmul.mubr.f32.gmra.mrb[0].mxu0 %v5680
      %v5955 = vpop.f32.mrb[0].mxu0
      %v5956 = vadd.f32 0.0, %v5955
      %v5957 = vpop.f32.mrb[0].mxu0
      %5958 = vmatprep.mubr.f32.mxu0 0.0
      %5959 = vmatmul.mubr.f32.gmra.mrb[0].mxu0 %v5683
      %v5960 = vpop.f32.mrb[0].mxu0
      %v5961 = vadd.f32 0.0, %v5960
      %v5962 = vpop.f32.mrb[0].mxu0
      %5963 = vmatprep.mubr.f32.mxu0 0.0
      %5964 = vmatmul.mubr.f32.gmra.mrb[0].mxu0 %v5686
      %v5965 = vpop.f32.mrb[0].mxu0
      %v5966 = vadd.f32 0.0, %v5965
      %v5967 = vpop.f32.mrb[0].mxu0
      %5968 = vmatprep.mubr.f32.mxu0 0.0
      %5969 = vmatmul.mubr.f32.gmra.mrb[0].mxu0 %v5689
      %v5970 = vpop.f32.mrb[0].mxu0
      %v5971 = vadd.f32 0.0, %v5970
      %v5972 = vpop.f32.mrb[0].mxu0
      %5973 = vmatprep.mubr.f32.mxu0 0.0
      %5974 = vmatmul.mubr.f32.gmra.mrb[0].mxu0 %v5692
      %v5975 = vpop.f32.mrb[0].mxu0
      %v5976 = vadd.f32 0.0, %v5975
      %v5977 = vpop.f32.mrb[0].mxu0
      %5978 = vmatprep.mubr.f32.mxu0 0.0
      %5979 = vmatmul.mubr.f32.gmra.mrb[0].mxu0 %v5695
      %v5980 = vpop.f32.mrb[0].mxu0
      %v5981 = vadd.f32 0.0, %v5980
      %v5982 = vpop.f32.mrb[0].mxu0
      %5983 = vmatprep.mubr.f32.mxu0 0.0
      %5984 = vmatmul.mubr.f32.gmra.mrb[0].mxu0 %v5698
      %v5985 = vpop.f32.mrb[0].mxu0
      %v5986 = vadd.f32 0.0, %v5985
      %v5987 = vpop.f32.mrb[0].mxu0
      %5988 = vmatprep.mubr.f32.mxu0 0.0
      %5989 = vmatmul.mubr.f32.gmra.mrb[0].mxu0 %v5701
      %v5990 = vpop.f32.mrb[0].mxu0
      %v5991 = vadd.f32 0.0, %v5990
      %v5992 = vpop.f32.mrb[0].mxu0
      %5993 = vmatprep.mubr.f32.mxu0 0.0
      %5994 = vmatmul.mubr.f32.gmra.mrb[0].mxu0 %v5704
      %v5995 = vpop.f32.mrb[0].mxu0
      %v5996 = vadd.f32 0.0, %v5995
      %v5997 = vpop.f32.mrb[0].mxu0
      %5998 = vmatprep.mubr.f32.mxu0 0.0
      %5999 = vmatmul.mubr.f32.gmra.mrb[0].mxu0 %v5707
      %v6000 = vpop.f32.mrb[0].mxu0
      %v6001 = vadd.f32 0.0, %v6000
      %v6002 = vpop.f32.mrb[0].mxu0
      %6003 = vmatprep.mubr.f32.mxu0 0.0
      %6004 = vmatmul.mubr.f32.gmra.mrb[0].mxu0 %v5710
      %v6005 = vpop.f32.mrb[0].mxu0
      %v6006 = vadd.f32 0.0, %v6005
      %v6007 = vpop.f32.mrb[0].mxu0
      %6008 = vmatprep.mubr.f32.mxu0 0.0
      %6009 = vmatmul.mubr.f32.gmra.mrb[0].mxu0 %v5713
      %v6010 = vpop.f32.mrb[0].mxu0
      %v6011 = vadd.f32 0.0, %v6010
      %v6012 = vpop.f32.mrb[0].mxu0
      %6013 = vmatprep.mubr.f32.mxu0 0.0
      %6014 = vmatmul.mubr.f32.gmra.mrb[0].mxu0 %v5716
      %v6015 = vpop.f32.mrb[0].mxu0
      %v6016 = vadd.f32 0.0, %v6015
      %v6017 = vpop.f32.mrb[0].mxu0
      %6018 = vmatprep.mubr.f32.mxu0 0.0
      %6019 = vmatmul.mubr.f32.gmra.mrb[0].mxu0 %v5719
      %v6020 = vpop.f32.mrb[0].mxu0
      %v6021 = vadd.f32 0.0, %v6020
      %v6022 = vpop.f32.mrb[0].mxu0
      %6023 = vmatprep.mubr.f32.mxu0 0.0
      %6024 = vmatmul.mubr.f32.gmra.mrb[0].mxu0 %v5722
      %v6025 = vpop.f32.mrb[0].mxu0
      %v6026 = vadd.f32 0.0, %v6025
      %v6027 = vpop.f32.mrb[0].mxu0
      %6028 = vmatprep.mubr.f32.mxu0 0.0
      %6029 = vmatmul.mubr.f32.gmra.mrb[0].mxu0 %v5725
      %v6030 = vpop.f32.mrb[0].mxu0
      %v6031 = vadd.f32 0.0, %v6030
      %v6032 = vpop.f32.mrb[0].mxu0
      %6033 = vmatprep.mubr.f32.mxu0 0.0
      %6034 = vmatmul.mubr.f32.gmra.mrb[0].mxu0 %v5728
      %v6035 = vpop.f32.mrb[0].mxu0
      %v6036 = vadd.f32 0.0, %v6035
      %v6037 = vpop.f32.mrb[0].mxu0
      %6038 = vmatprep.mubr.f32.mxu0 0.0
      %6039 = vmatmul.mubr.f32.gmra.mrb[0].mxu0 %v5731
      %v6040 = vpop.f32.mrb[0].mxu0
      %v6041 = vadd.f32 0.0, %v6040
      %v6042 = vpop.f32.mrb[0].mxu0
      %6043 = vmatprep.mubr.f32.mxu0 0.0
      %6044 = vmatmul.mubr.f32.gmra.mrb[0].mxu0 %v5734
      %v6045 = vpop.f32.mrb[0].mxu0
      %v6046 = vadd.f32 0.0, %v6045
      %v6047 = vpop.f32.mrb[0].mxu0
      %6048 = vmatprep.mubr.f32.mxu0 0.0
      %6049 = vmatmul.mubr.f32.gmra.mrb[0].mxu0 %v5737
      %v6050 = vpop.f32.mrb[0].mxu0
      %v6051 = vadd.f32 0.0, %v6050
      %v6052 = vpop.f32.mrb[0].mxu0
      %6053 = vmatprep.mubr.f32.mxu0 0.0
      %6054 = vmatmul.mubr.f32.gmra.mrb[0].mxu0 %v5740
      %v6055 = vpop.f32.mrb[0].mxu0
      %v6056 = vadd.f32 0.0, %v6055
      %v6057 = vpop.f32.mrb[0].mxu0
      %6058 = vmatprep.mubr.f32.mxu0 0.0
      %6059 = vmatmul.mubr.f32.gmra.mrb[0].mxu0 %v5743
      %v6060 = vpop.f32.mrb[0].mxu0
      %v6061 = vadd.f32 0.0, %v6060
      %v6062 = vpop.f32.mrb[0].mxu0
      %6063 = vmatprep.mubr.f32.mxu0 0.0
      %6064 = vmatmul.mubr.f32.gmra.mrb[0].mxu0 %v5746
      %v6065 = vpop.f32.mrb[0].mxu0
      %v6066 = vadd.f32 0.0, %v6065
      %v6067 = vpop.f32.mrb[0].mxu0
      %6068 = vmatprep.mubr.f32.mxu0 0.0
      %6069 = vmatmul.mubr.f32.gmra.mrb[0].mxu0 %v5749
      %v6070 = vpop.f32.mrb[0].mxu0
      %v6071 = vadd.f32 0.0, %v6070
      %v6072 = vpop.f32.mrb[0].mxu0
      %6073 = vmatprep.mubr.f32.mxu0 0.0
      %6074 = vmatmul.mubr.f32.gmra.mrb[0].mxu0 %v5752
      %v6075 = vpop.f32.mrb[0].mxu0
      %v6076 = vadd.f32 0.0, %v6075
      %v6077 = vpop.f32.mrb[0].mxu0
      %6078 = vmatprep.mubr.f32.mxu0 0.0
      %6079 = vmatmul.mubr.f32.gmra.mrb[0].mxu0 %v5755
      %v6080 = vpop.f32.mrb[0].mxu0
      %v6081 = vadd.f32 0.0, %v6080
      %v6082 = vpop.f32.mrb[0].mxu0
      %6083 = vmatprep.mubr.f32.mxu0 0.0
      %6084 = vmatmul.mubr.f32.gmra.mrb[0].mxu0 %v5758
      %v6085 = vpop.f32.mrb[0].mxu0
      %v6086 = vadd.f32 0.0, %v6085
      %v6087 = vpop.f32.mrb[0].mxu0
      %6088 = vmatprep.mubr.f32.mxu0 0.0
      %6089 = vmatmul.mubr.f32.gmra.mrb[0].mxu0 %v5761
      %v6090 = vpop.f32.mrb[0].mxu0
      %v6091 = vadd.f32 0.0, %v6090
      %v6092 = vpop.f32.mrb[0].mxu0
      %6093 = vmatprep.mubr.f32.mxu0 0.0
      %6094 = vmatmul.mubr.f32.gmra.mrb[0].mxu0 %v5764
      %v6095 = vpop.f32.mrb[0].mxu0
      %v6096 = vadd.f32 0.0, %v6095
      %v6097 = vpop.f32.mrb[0].mxu0
      %6098 = vmatprep.mubr.f32.mxu0 0.0
      %6099 = vmatmul.mubr.f32.gmra.mrb[0].mxu0 %v5767
      %v6100 = vpop.f32.mrb[0].mxu0
      %v6101 = vadd.f32 0.0, %v6100
      %v6102 = vpop.f32.mrb[0].mxu0
      %6103 = vmatprep.mubr.f32.mxu0 0.0
      %6104 = vmatmul.mubr.f32.gmra.mrb[0].mxu0 %v5770
      %v6105 = vpop.f32.mrb[0].mxu0
      %v6106 = vadd.f32 0.0, %v6105
      %v6107 = vpop.f32.mrb[0].mxu0
      %6108 = vmatprep.mubr.f32.mxu0 0.0
      %6109 = vmatmul.mubr.f32.gmra.mrb[0].mxu0 %v5773
      %v6110 = vpop.f32.mrb[0].mxu0
      %v6111 = vadd.f32 0.0, %v6110
      %v6112 = vpop.f32.mrb[0].mxu0
      %6113 = vmatprep.mubr.f32.mxu0 0.0
      %6114 = vmatmul.mubr.f32.gmra.mrb[0].mxu0 %v5776
      %v6115 = vpop.f32.mrb[0].mxu0
      %v6116 = vadd.f32 0.0, %v6115
      %v6117 = vpop.f32.mrb[0].mxu0
      %6118 = vmatprep.mubr.f32.mxu0 0.0
      %6119 = vmatmul.mubr.f32.gmra.mrb[0].mxu0 %v5779
      %v6120 = vpop.f32.mrb[0].mxu0
      %v6121 = vadd.f32 0.0, %v6120
      %v6122 = vpop.f32.mrb[0].mxu0
      %6123 = vmatprep.mubr.f32.mxu0 0.0
      %6124 = vmatmul.mubr.f32.gmra.mrb[0].mxu0 %v5782
      %v6125 = vpop.f32.mrb[0].mxu0
      %v6126 = vadd.f32 0.0, %v6125
      %v6127 = vpop.f32.mrb[0].mxu0
      %6128 = vmatprep.mubr.f32.mxu0 0.0
      %6129 = vmatmul.mubr.f32.gmra.mrb[0].mxu0 %v5785
      %v6130 = vpop.f32.mrb[0].mxu0
      %v6131 = vadd.f32 0.0, %v6130
      %v6132 = vpop.f32.mrb[0].mxu0
      %6133 = vmatprep.mubr.f32.mxu0 0.0
      %6134 = vmatmul.mubr.f32.gmra.mrb[0].mxu0 %v5788
      %v6135 = vpop.f32.mrb[0].mxu0
      %v6136 = vadd.f32 0.0, %v6135
      %v6137 = vpop.f32.mrb[0].mxu0
      %6138 = vmatprep.mubr.f32.mxu0 0.0
      %6139 = vmatmul.mubr.f32.gmra.mrb[0].mxu0 %v5791
      %v6140 = vpop.f32.mrb[0].mxu0
      %v6141 = vadd.f32 0.0, %v6140
      %v6142 = vpop.f32.mrb[0].mxu0
      %6143 = vmatprep.mubr.f32.mxu0 0.0
      %6144 = vmatmul.mubr.f32.gmra.mrb[0].mxu0 %v5794
      %v6145 = vpop.f32.mrb[0].mxu0
      %v6146 = vadd.f32 0.0, %v6145
      %v6147 = vpop.f32.mrb[0].mxu0
      %6148 = vmatprep.mubr.f32.mxu0 0.0
      %6149 = vmatmul.mubr.f32.gmra.mrb[0].mxu0 %v5797
      %v6150 = vpop.f32.mrb[0].mxu0
      %v6151 = vadd.f32 0.0, %v6150
      %v6152 = vpop.f32.mrb[0].mxu0
      %6153 = vmatprep.mubr.f32.mxu0 0.0
      %6154 = vmatmul.mubr.f32.gmra.mrb[0].mxu0 %v5800
      %v6155 = vpop.f32.mrb[0].mxu0
      %v6156 = vadd.f32 0.0, %v6155
      %v6157 = vpop.f32.mrb[0].mxu0
      %6158 = vmatprep.mubr.f32.mxu0 0.0
      %6159 = vmatmul.mubr.f32.gmra.mrb[0].mxu0 %v5803
      %v6160 = vpop.f32.mrb[0].mxu0
      %v6161 = vadd.f32 0.0, %v6160
      %v6162 = vpop.f32.mrb[0].mxu0
      %6163 = vmatprep.mubr.f32.mxu0 0.0
      %6164 = vmatmul.mubr.f32.gmra.mrb[0].mxu0 %v5806
      %v6165 = vpop.f32.mrb[0].mxu0
      %v6166 = vadd.f32 0.0, %v6165
      %v6167 = vpop.f32.mrb[0].mxu0
      %6168 = vmatprep.mubr.f32.mxu0 0.0
      %6169 = vmatmul.mubr.f32.gmra.mrb[0].mxu0 %v5809
      %v6170 = vpop.f32.mrb[0].mxu0
      %v6171 = vadd.f32 0.0, %v6170
      %v6172 = vpop.f32.mrb[0].mxu0
      %6173 = vmatprep.mubr.f32.mxu0 0.0
      %6174 = vmatmul.mubr.f32.gmra.mrb[0].mxu0 %v5812
      %v6175 = vpop.f32.mrb[0].mxu0
      %v6176 = vadd.f32 0.0, %v6175
      %v6177 = vpop.f32.mrb[0].mxu0
      %6178 = vmatprep.mubr.f32.mxu0 0.0
      %6179 = vmatmul.mubr.f32.gmra.mrb[0].mxu0 %v5815
      %v6180 = vpop.f32.mrb[0].mxu0
      %v6181 = vadd.f32 0.0, %v6180
      %v6182 = vpop.f32.mrb[0].mxu0
      %6183 = vmatprep.mubr.f32.mxu0 0.0
      %6184 = vmatmul.mubr.f32.gmra.mrb[0].mxu0 %v5818
      %v6185 = vpop.f32.mrb[0].mxu0
      %v6186 = vadd.f32 0.0, %v6185
      %v6187 = vpop.f32.mrb[0].mxu0
      %6188 = vmatprep.mubr.f32.mxu0 0.0
      %6189 = vmatmul.mubr.f32.gmra.mrb[0].mxu0 %v5821
      %v6190 = vpop.f32.mrb[0].mxu0
      %v6191 = vadd.f32 0.0, %v6190
      %v6192 = vpop.f32.mrb[0].mxu0
      %6193 = vmatprep.mubr.f32.mxu0 0.0
      %6194 = vmatmul.mubr.f32.gmra.mrb[0].mxu0 %v5824
      %v6195 = vpop.f32.mrb[0].mxu0
      %v6196 = vadd.f32 0.0, %v6195
      %v6197 = vpop.f32.mrb[0].mxu0
      %6198 = vmatprep.mubr.f32.mxu0 0.0
      %6199 = vmatmul.mubr.f32.gmra.mrb[0].mxu0 %v5827
      %v6200 = vpop.f32.mrb[0].mxu0
      %v6201 = vadd.f32 0.0, %v6200
      %v6202 = vpop.f32.mrb[0].mxu0
      %6203 = vmatprep.mubr.f32.mxu0 0.0
      %6204 = vmatmul.mubr.f32.gmra.mrb[0].mxu0 %v5830
      %v6205 = vpop.f32.mrb[0].mxu0
      %v6206 = vadd.f32 0.0, %v6205
      %v6207 = vpop.f32.mrb[0].mxu0
      %6208 = vmatprep.mubr.f32.mxu0 0.0
      %6209 = vmatmul.mubr.f32.gmra.mrb[0].mxu0 %v5833
      %v6210 = vpop.f32.mrb[0].mxu0
      %v6211 = vadd.f32 0.0, %v6210
      %v6212 = vpop.f32.mrb[0].mxu0
      %6213 = vmatprep.mubr.f32.mxu0 0.0
      %6214 = vmatmul.mubr.f32.gmra.mrb[0].mxu0 %v5836
      %v6215 = vpop.f32.mrb[0].mxu0
      %v6216 = vadd.f32 0.0, %v6215
      %v6217 = vpop.f32.mrb[0].mxu0
      %6218 = vmatprep.mubr.f32.mxu0 0.0
      %6219 = vmatmul.mubr.f32.gmra.mrb[0].mxu0 %v5839
      %v6220 = vpop.f32.mrb[0].mxu0
      %v6221 = vadd.f32 0.0, %v6220
      %v6222 = vpop.f32.mrb[0].mxu0
      %6223 = vmatprep.mubr.f32.mxu0 0.0
      %6224 = vmatmul.mubr.f32.gmra.mrb[0].mxu0 %v5842
      %v6225 = vpop.f32.mrb[0].mxu0
      %v6226 = vadd.f32 0.0, %v6225
      %v6227 = vpop.f32.mrb[0].mxu0
      %6228 = vdwg.mxu0
      %v6229 = vadd.f32 %v5514, %v5911
      %v6230 = vadd.f32 %v5515, %v5916
      %v6231 = vadd.f32 %v5516, %v5921
      %v6232 = vadd.f32 %v5517, %v5926
      %v6233 = vadd.f32 %v5518, %v5931
      %v6234 = vadd.f32 %v5519, %v5936
      %v6235 = vadd.f32 %v5520, %v5941
      %v6236 = vadd.f32 %v5521, %v5946
      %v6237 = vadd.f32 %v5522, %v5951
      %v6238 = vadd.f32 %v5523, %v5956
      %v6239 = vadd.f32 %v5524, %v5961
      %v6240 = vadd.f32 %v5525, %v5966
      %v6241 = vadd.f32 %v5526, %v5971
      %v6242 = vadd.f32 %v5527, %v5976
      %v6243 = vadd.f32 %v5528, %v5981
      %v6244 = vadd.f32 %v5529, %v5986
      %v6245 = vadd.f32 %v5530, %v5991
      %v6246 = vadd.f32 %v5531, %v5996
      %v6247 = vadd.f32 %v5532, %v6001
      %v6248 = vadd.f32 %v5533, %v6006
      %v6249 = vadd.f32 %v5534, %v6011
      %v6250 = vadd.f32 %v5535, %v6016
      %v6251 = vadd.f32 %v5536, %v6021
      %v6252 = vadd.f32 %v5537, %v6026
      %v6253 = vadd.f32 %v5538, %v6031
      %v6254 = vadd.f32 %v5539, %v6036
      %v6255 = vadd.f32 %v5540, %v6041
      %v6256 = vadd.f32 %v5541, %v6046
      %v6257 = vadd.f32 %v5542, %v6051
      %v6258 = vadd.f32 %v5543, %v6056
      %v6259 = vadd.f32 %v5544, %v6061
      %v6260 = vadd.f32 %v5545, %v6066
      %v6261 = vadd.f32 %v5546, %v6071
      %v6262 = vadd.f32 %v5547, %v6076
      %v6263 = vadd.f32 %v5548, %v6081
      %v6264 = vadd.f32 %v5549, %v6086
      %v6265 = vadd.f32 %v5550, %v6091
      %v6266 = vadd.f32 %v5551, %v6096
      %v6267 = vadd.f32 %v5552, %v6101
      %v6268 = vadd.f32 %v5553, %v6106
      %v6269 = vadd.f32 %v5554, %v6111
      %v6270 = vadd.f32 %v5555, %v6116
      %v6271 = vadd.f32 %v5556, %v6121
      %v6272 = vadd.f32 %v5557, %v6126
      %v6273 = vadd.f32 %v5558, %v6131
      %v6274 = vadd.f32 %v5559, %v6136
      %v6275 = vadd.f32 %v5560, %v6141
      %v6276 = vadd.f32 %v5561, %v6146
      %v6277 = vadd.f32 %v5562, %v6151
      %v6278 = vadd.f32 %v5563, %v6156
      %v6279 = vadd.f32 %v5564, %v6161
      %v6280 = vadd.f32 %v5565, %v6166
      %v6281 = vadd.f32 %v5566, %v6171
      %v6282 = vadd.f32 %v5567, %v6176
      %v6283 = vadd.f32 %v5568, %v6181
      %v6284 = vadd.f32 %v5569, %v6186
      %v6285 = vadd.f32 %v5570, %v6191
      %v6286 = vadd.f32 %v5571, %v6196
      %v6287 = vadd.f32 %v5572, %v6201
      %v6288 = vadd.f32 %v5573, %v6206
      %v6289 = vadd.f32 %v5574, %v6211
      %v6290 = vadd.f32 %v5575, %v6216
      %v6291 = vadd.f32 %v5576, %v6221
      %v6292 = vadd.f32 %v5577, %v6226
      %v6293 = vld [vmem:[#allocation3 + $0x80] sm:$0xff]
      %v6294 = vld [vmem:[#allocation3 + $0x88] sm:$0xff]
      %v6295 = vld [vmem:[#allocation3 + $0x90] sm:$0xff]
      %v6296 = vld [vmem:[#allocation3 + $0x98] sm:$0xff]
      %v6297 = vld [vmem:[#allocation3 + $0xa0] sm:$0xff]
      %v6298 = vld [vmem:[#allocation3 + $0xa8] sm:$0xff]
      %v6299 = vld [vmem:[#allocation3 + $0xb0] sm:$0xff]
      %v6300 = vld [vmem:[#allocation3 + $0xb8] sm:$0xff]
      %v6301 = vld [vmem:[#allocation3 + $0xc0] sm:$0xff]
      %v6302 = vld [vmem:[#allocation3 + $0xc8] sm:$0xff]
      %v6303 = vld [vmem:[#allocation3 + $0xd0] sm:$0xff]
      %v6304 = vld [vmem:[#allocation3 + $0xd8] sm:$0xff]
      %v6305 = vld [vmem:[#allocation3 + $0xe0] sm:$0xff]
      %v6306 = vld [vmem:[#allocation3 + $0xe8] sm:$0xff]
      %v6307 = vld [vmem:[#allocation3 + $0xf0] sm:$0xff]
      %v6308 = vld [vmem:[#allocation3 + $0xf8] sm:$0xff]
      %v6309 = vld [vmem:[#allocation3 + $0x100] sm:$0xff]
      %v6310 = vld [vmem:[#allocation3 + $0x108] sm:$0xff]
      %v6311 = vld [vmem:[#allocation3 + $0x110] sm:$0xff]
      %v6312 = vld [vmem:[#allocation3 + $0x118] sm:$0xff]
      %v6313 = vld [vmem:[#allocation3 + $0x120] sm:$0xff]
      %v6314 = vld [vmem:[#allocation3 + $0x128] sm:$0xff]
      %v6315 = vld [vmem:[#allocation3 + $0x130] sm:$0xff]
      %v6316 = vld [vmem:[#allocation3 + $0x138] sm:$0xff]
      %v6317 = vld [vmem:[#allocation3 + $0x140] sm:$0xff]
      %v6318 = vld [vmem:[#allocation3 + $0x148] sm:$0xff]
      %v6319 = vld [vmem:[#allocation3 + $0x150] sm:$0xff]
      %v6320 = vld [vmem:[#allocation3 + $0x158] sm:$0xff]
      %v6321 = vld [vmem:[#allocation3 + $0x160] sm:$0xff]
      %v6322 = vld [vmem:[#allocation3 + $0x168] sm:$0xff]
      %v6323 = vld [vmem:[#allocation3 + $0x170] sm:$0xff]
      %v6324 = vld [vmem:[#allocation3 + $0x178] sm:$0xff]
      %v6325 = vld [vmem:[#allocation3 + $0x180] sm:$0xff]
      %v6326 = vld [vmem:[#allocation3 + $0x188] sm:$0xff]
      %v6327 = vld [vmem:[#allocation3 + $0x190] sm:$0xff]
      %v6328 = vld [vmem:[#allocation3 + $0x198] sm:$0xff]
      %v6329 = vld [vmem:[#allocation3 + $0x1a0] sm:$0xff]
      %v6330 = vld [vmem:[#allocation3 + $0x1a8] sm:$0xff]
      %v6331 = vld [vmem:[#allocation3 + $0x1b0] sm:$0xff]
      %v6332 = vld [vmem:[#allocation3 + $0x1b8] sm:$0xff]
      %v6333 = vld [vmem:[#allocation3 + $0x1c0] sm:$0xff]
      %v6334 = vld [vmem:[#allocation3 + $0x1c8] sm:$0xff]
      %v6335 = vld [vmem:[#allocation3 + $0x1d0] sm:$0xff]
      %v6336 = vld [vmem:[#allocation3 + $0x1d8] sm:$0xff]
      %v6337 = vld [vmem:[#allocation3 + $0x1e0] sm:$0xff]
      %v6338 = vld [vmem:[#allocation3 + $0x1e8] sm:$0xff]
      %v6339 = vld [vmem:[#allocation3 + $0x1f0] sm:$0xff]
      %v6340 = vld [vmem:[#allocation3 + $0x1f8] sm:$0xff]
      %v6341 = vld [vmem:[#allocation3 + $0x200] sm:$0xff]
      %v6342 = vld [vmem:[#allocation3 + $0x208] sm:$0xff]
      %v6343 = vld [vmem:[#allocation3 + $0x210] sm:$0xff]
      %v6344 = vld [vmem:[#allocation3 + $0x218] sm:$0xff]
      %v6345 = vld [vmem:[#allocation3 + $0x220] sm:$0xff]
      %v6346 = vld [vmem:[#allocation3 + $0x228] sm:$0xff]
      %v6347 = vld [vmem:[#allocation3 + $0x230] sm:$0xff]
      %v6348 = vld [vmem:[#allocation3 + $0x238] sm:$0xff]
      %v6349 = vld [vmem:[#allocation3 + $0x240] sm:$0xff]
      %v6350 = vld [vmem:[#allocation3 + $0x248] sm:$0xff]
      %v6351 = vld [vmem:[#allocation3 + $0x250] sm:$0xff]
      %v6352 = vld [vmem:[#allocation3 + $0x258] sm:$0xff]
      %v6353 = vld [vmem:[#allocation3 + $0x260] sm:$0xff]
      %v6354 = vld [vmem:[#allocation3 + $0x268] sm:$0xff]
      %v6355 = vld [vmem:[#allocation3 + $0x270] sm:$0xff]
      %v6356 = vld [vmem:[#allocation3 + $0x278] sm:$0xff]
      %s6357 = scalar_lea.vmem %s3, 144
      %v6358 = vld [vmem:[%s6357] sm:$0xff]
      %v6359 = vld [vmem:[%s6357 + $0x8] sm:$0xff]
      %v6360 = vld [vmem:[%s6357 + $0x10] sm:$0xff]
      %v6361 = vld [vmem:[%s6357 + $0x18] sm:$0xff]
      %v6362 = vld [vmem:[%s6357 + $0x20] sm:$0xff]
      %v6363 = vld [vmem:[%s6357 + $0x28] sm:$0xff]
      %v6364 = vld [vmem:[%s6357 + $0x30] sm:$0xff]
      %v6365 = vld [vmem:[%s6357 + $0x38] sm:$0xff]
      %v6366 = vld [vmem:[%s6357 + $0x40] sm:$0xff]
      %v6368 = vsel %vm4936, %v6293, 0
      %v6371 = vsel %vm4936, %v6294, 0
      %v6374 = vsel %vm4936, %v6295, 0
      %v6377 = vsel %vm4936, %v6296, 0
      %v6380 = vsel %vm4936, %v6297, 0
      %v6383 = vsel %vm4936, %v6298, 0
      %v6386 = vsel %vm4936, %v6299, 0
      %v6389 = vsel %vm4936, %v6300, 0
      %v6392 = vsel %vm4936, %v6301, 0
      %v6395 = vsel %vm4936, %v6302, 0
      %v6398 = vsel %vm4936, %v6303, 0
      %v6401 = vsel %vm4936, %v6304, 0
      %v6404 = vsel %vm4936, %v6305, 0
      %v6407 = vsel %vm4936, %v6306, 0
      %v6410 = vsel %vm4936, %v6307, 0
      %v6413 = vsel %vm4936, %v6308, 0
      %v6416 = vsel %vm4936, %v6309, 0
      %v6419 = vsel %vm4936, %v6310, 0
      %v6422 = vsel %vm4936, %v6311, 0
      %v6425 = vsel %vm4936, %v6312, 0
      %v6428 = vsel %vm4936, %v6313, 0
      %v6431 = vsel %vm4936, %v6314, 0
      %v6434 = vsel %vm4936, %v6315, 0
      %v6437 = vsel %vm4936, %v6316, 0
      %v6440 = vsel %vm4936, %v6317, 0
      %v6443 = vsel %vm4936, %v6318, 0
      %v6446 = vsel %vm4936, %v6319, 0
      %v6449 = vsel %vm4936, %v6320, 0
      %v6452 = vsel %vm4936, %v6321, 0
      %v6455 = vsel %vm4936, %v6322, 0
      %v6458 = vsel %vm4936, %v6323, 0
      %v6461 = vsel %vm4936, %v6324, 0
      %v6464 = vsel %vm4936, %v6325, 0
      %v6467 = vsel %vm4936, %v6326, 0
      %v6470 = vsel %vm4936, %v6327, 0
      %v6473 = vsel %vm4936, %v6328, 0
      %v6476 = vsel %vm4936, %v6329, 0
      %v6479 = vsel %vm4936, %v6330, 0
      %v6482 = vsel %vm4936, %v6331, 0
      %v6485 = vsel %vm4936, %v6332, 0
      %v6488 = vsel %vm4936, %v6333, 0
      %v6491 = vsel %vm4936, %v6334, 0
      %v6494 = vsel %vm4936, %v6335, 0
      %v6497 = vsel %vm4936, %v6336, 0
      %v6500 = vsel %vm4936, %v6337, 0
      %v6503 = vsel %vm4936, %v6338, 0
      %v6506 = vsel %vm4936, %v6339, 0
      %v6509 = vsel %vm4936, %v6340, 0
      %v6512 = vsel %vm4936, %v6341, 0
      %v6515 = vsel %vm4936, %v6342, 0
      %v6518 = vsel %vm4936, %v6343, 0
      %v6521 = vsel %vm4936, %v6344, 0
      %v6524 = vsel %vm4936, %v6345, 0
      %v6527 = vsel %vm4936, %v6346, 0
      %v6530 = vsel %vm4936, %v6347, 0
      %v6533 = vsel %vm4936, %v6348, 0
      %v6536 = vsel %vm4936, %v6349, 0
      %v6539 = vsel %vm4936, %v6350, 0
      %v6542 = vsel %vm4936, %v6351, 0
      %v6545 = vsel %vm4936, %v6352, 0
      %v6548 = vsel %vm4936, %v6353, 0
      %v6551 = vsel %vm4936, %v6354, 0
      %v6554 = vsel %vm4936, %v6355, 0
      %v6557 = vsel %vm4936, %v6356, 0
      %6559 = vmatprep.subr.mxu0 0.0
      %6560 = vmatpush1.msra.mxu0 %v6358
      %6561 = vmatprep.subr.mxu0 0.0
      %6562 = vmatpush1.msra.mxu0 %v6359
      %6563 = vmatprep.subr.mxu0 0.0
      %6564 = vmatpush1.msra.mxu0 %v6360
      %6565 = vmatprep.subr.mxu0 0.0
      %6566 = vmatpush1.msra.mxu0 %v6361
      %6567 = vmatprep.subr.mxu0 0.0
      %6568 = vmatpush1.msra.mxu0 %v6362
      %6569 = vmatprep.subr.mxu0 0.0
      %6570 = vmatpush1.msra.mxu0 %v6363
      %6571 = vmatprep.subr.mxu0 0.0
      %6572 = vmatpush1.msra.mxu0 %v6364
      %6573 = vmatprep.subr.mxu0 0.0
      %6574 = vmatpush1.msra.mxu0 %v6365
      %6575 = vmatprep.subr.mxu0 0.0
      %6576 = vmatpush1.msra.mxu0 %v6366
      %6577 = vmatprep.subr.mxu0 0.0
      %6578 = vmatpush1.msra.mxu0 0.0
      %6579 = vmatprep.subr.mxu0 0.0
      %6580 = vmatpush1.msra.mxu0 0.0
      %6581 = vmatprep.subr.mxu0 0.0
      %6582 = vmatpush1.msra.mxu0 0.0
      %6583 = vmatprep.subr.mxu0 0.0
      %6584 = vmatpush1.msra.mxu0 0.0
      %6585 = vmatprep.subr.mxu0 0.0
      %6586 = vmatpush1.msra.mxu0 0.0
      %6587 = vmatprep.subr.mxu0 0.0
      %6588 = vmatpush1.msra.mxu0 0.0
      %6589 = vmatprep.subr.mxu0 0.0
      %6590 = vmatpush1.msra.mxu0 0.0
      %6591 = vmatprep.subr.mxu0 0.0
      %6592 = vmatpush1.msra.mxu0 0.0
      %6593 = vmatprep.subr.mxu0 0.0
      %6594 = vmatpush1.msra.mxu0 0.0
      %6595 = vmatprep.subr.mxu0 0.0
      %6596 = vmatpush1.msra.mxu0 0.0
      %6597 = vmatprep.subr.mxu0 0.0
      %6598 = vmatpush1.msra.mxu0 0.0
      %6599 = vmatprep.subr.mxu0 0.0
      %6600 = vmatpush1.msra.mxu0 0.0
      %6601 = vmatprep.subr.mxu0 0.0
      %6602 = vmatpush1.msra.mxu0 0.0
      %6603 = vmatprep.subr.mxu0 0.0
      %6604 = vmatpush1.msra.mxu0 0.0
      %6605 = vmatprep.subr.mxu0 0.0
      %6606 = vmatpush1.msra.mxu0 0.0
      %6607 = vmatprep.subr.mxu0 0.0
      %6608 = vmatpush1.msra.mxu0 0.0
      %6609 = vmatprep.subr.mxu0 0.0
      %6610 = vmatpush1.msra.mxu0 0.0
      %6611 = vmatprep.subr.mxu0 0.0
      %6612 = vmatpush1.msra.mxu0 0.0
      %6613 = vmatprep.subr.mxu0 0.0
      %6614 = vmatpush1.msra.mxu0 0.0
      %6615 = vmatprep.subr.mxu0 0.0
      %6616 = vmatpush1.msra.mxu0 0.0
      %6617 = vmatprep.subr.mxu0 0.0
      %6618 = vmatpush1.msra.mxu0 0.0
      %6619 = vmatprep.subr.mxu0 0.0
      %6620 = vmatpush1.msra.mxu0 0.0
      %6621 = vmatprep.subr.mxu0 0.0
      %6622 = vmatpush1.msra.mxu0 0.0
      %6623 = vmatprep.mubr.f32.mxu0 0.0
      %6624 = vmatmul.mubr.f32.gmra.mrb[0].mxu0 %v6368
      %v6625 = vpop.f32.mrb[0].mxu0
      %v6626 = vadd.f32 0.0, %v6625
      %v6627 = vpop.f32.mrb[0].mxu0
      %6628 = vmatprep.mubr.f32.mxu0 0.0
      %6629 = vmatmul.mubr.f32.gmra.mrb[0].mxu0 %v6371
      %v6630 = vpop.f32.mrb[0].mxu0
      %v6631 = vadd.f32 0.0, %v6630
      %v6632 = vpop.f32.mrb[0].mxu0
      %6633 = vmatprep.mubr.f32.mxu0 0.0
      %6634 = vmatmul.mubr.f32.gmra.mrb[0].mxu0 %v6374
      %v6635 = vpop.f32.mrb[0].mxu0
      %v6636 = vadd.f32 0.0, %v6635
      %v6637 = vpop.f32.mrb[0].mxu0
      %6638 = vmatprep.mubr.f32.mxu0 0.0
      %6639 = vmatmul.mubr.f32.gmra.mrb[0].mxu0 %v6377
      %v6640 = vpop.f32.mrb[0].mxu0
      %v6641 = vadd.f32 0.0, %v6640
      %v6642 = vpop.f32.mrb[0].mxu0
      %6643 = vmatprep.mubr.f32.mxu0 0.0
      %6644 = vmatmul.mubr.f32.gmra.mrb[0].mxu0 %v6380
      %v6645 = vpop.f32.mrb[0].mxu0
      %v6646 = vadd.f32 0.0, %v6645
      %v6647 = vpop.f32.mrb[0].mxu0
      %6648 = vmatprep.mubr.f32.mxu0 0.0
      %6649 = vmatmul.mubr.f32.gmra.mrb[0].mxu0 %v6383
      %v6650 = vpop.f32.mrb[0].mxu0
      %v6651 = vadd.f32 0.0, %v6650
      %v6652 = vpop.f32.mrb[0].mxu0
      %6653 = vmatprep.mubr.f32.mxu0 0.0
      %6654 = vmatmul.mubr.f32.gmra.mrb[0].mxu0 %v6386
      %v6655 = vpop.f32.mrb[0].mxu0
      %v6656 = vadd.f32 0.0, %v6655
      %v6657 = vpop.f32.mrb[0].mxu0
      %6658 = vmatprep.mubr.f32.mxu0 0.0
      %6659 = vmatmul.mubr.f32.gmra.mrb[0].mxu0 %v6389
      %v6660 = vpop.f32.mrb[0].mxu0
      %v6661 = vadd.f32 0.0, %v6660
      %v6662 = vpop.f32.mrb[0].mxu0
      %6663 = vmatprep.mubr.f32.mxu0 0.0
      %6664 = vmatmul.mubr.f32.gmra.mrb[0].mxu0 %v6392
      %v6665 = vpop.f32.mrb[0].mxu0
      %v6666 = vadd.f32 0.0, %v6665
      %v6667 = vpop.f32.mrb[0].mxu0
      %6668 = vmatprep.mubr.f32.mxu0 0.0
      %6669 = vmatmul.mubr.f32.gmra.mrb[0].mxu0 %v6395
      %v6670 = vpop.f32.mrb[0].mxu0
      %v6671 = vadd.f32 0.0, %v6670
      %v6672 = vpop.f32.mrb[0].mxu0
      %6673 = vmatprep.mubr.f32.mxu0 0.0
      %6674 = vmatmul.mubr.f32.gmra.mrb[0].mxu0 %v6398
      %v6675 = vpop.f32.mrb[0].mxu0
      %v6676 = vadd.f32 0.0, %v6675
      %v6677 = vpop.f32.mrb[0].mxu0
      %6678 = vmatprep.mubr.f32.mxu0 0.0
      %6679 = vmatmul.mubr.f32.gmra.mrb[0].mxu0 %v6401
      %v6680 = vpop.f32.mrb[0].mxu0
      %v6681 = vadd.f32 0.0, %v6680
      %v6682 = vpop.f32.mrb[0].mxu0
      %6683 = vmatprep.mubr.f32.mxu0 0.0
      %6684 = vmatmul.mubr.f32.gmra.mrb[0].mxu0 %v6404
      %v6685 = vpop.f32.mrb[0].mxu0
      %v6686 = vadd.f32 0.0, %v6685
      %v6687 = vpop.f32.mrb[0].mxu0
      %6688 = vmatprep.mubr.f32.mxu0 0.0
      %6689 = vmatmul.mubr.f32.gmra.mrb[0].mxu0 %v6407
      %v6690 = vpop.f32.mrb[0].mxu0
      %v6691 = vadd.f32 0.0, %v6690
      %v6692 = vpop.f32.mrb[0].mxu0
      %6693 = vmatprep.mubr.f32.mxu0 0.0
      %6694 = vmatmul.mubr.f32.gmra.mrb[0].mxu0 %v6410
      %v6695 = vpop.f32.mrb[0].mxu0
      %v6696 = vadd.f32 0.0, %v6695
      %v6697 = vpop.f32.mrb[0].mxu0
      %6698 = vmatprep.mubr.f32.mxu0 0.0
      %6699 = vmatmul.mubr.f32.gmra.mrb[0].mxu0 %v6413
      %v6700 = vpop.f32.mrb[0].mxu0
      %v6701 = vadd.f32 0.0, %v6700
      %v6702 = vpop.f32.mrb[0].mxu0
      %6703 = vmatprep.mubr.f32.mxu0 0.0
      %6704 = vmatmul.mubr.f32.gmra.mrb[0].mxu0 %v6416
      %v6705 = vpop.f32.mrb[0].mxu0
      %v6706 = vadd.f32 0.0, %v6705
      %v6707 = vpop.f32.mrb[0].mxu0
      %6708 = vmatprep.mubr.f32.mxu0 0.0
      %6709 = vmatmul.mubr.f32.gmra.mrb[0].mxu0 %v6419
      %v6710 = vpop.f32.mrb[0].mxu0
      %v6711 = vadd.f32 0.0, %v6710
      %v6712 = vpop.f32.mrb[0].mxu0
      %6713 = vmatprep.mubr.f32.mxu0 0.0
      %6714 = vmatmul.mubr.f32.gmra.mrb[0].mxu0 %v6422
      %v6715 = vpop.f32.mrb[0].mxu0
      %v6716 = vadd.f32 0.0, %v6715
      %v6717 = vpop.f32.mrb[0].mxu0
      %6718 = vmatprep.mubr.f32.mxu0 0.0
      %6719 = vmatmul.mubr.f32.gmra.mrb[0].mxu0 %v6425
      %v6720 = vpop.f32.mrb[0].mxu0
      %v6721 = vadd.f32 0.0, %v6720
      %v6722 = vpop.f32.mrb[0].mxu0
      %6723 = vmatprep.mubr.f32.mxu0 0.0
      %6724 = vmatmul.mubr.f32.gmra.mrb[0].mxu0 %v6428
      %v6725 = vpop.f32.mrb[0].mxu0
      %v6726 = vadd.f32 0.0, %v6725
      %v6727 = vpop.f32.mrb[0].mxu0
      %6728 = vmatprep.mubr.f32.mxu0 0.0
      %6729 = vmatmul.mubr.f32.gmra.mrb[0].mxu0 %v6431
      %v6730 = vpop.f32.mrb[0].mxu0
      %v6731 = vadd.f32 0.0, %v6730
      %v6732 = vpop.f32.mrb[0].mxu0
      %6733 = vmatprep.mubr.f32.mxu0 0.0
      %6734 = vmatmul.mubr.f32.gmra.mrb[0].mxu0 %v6434
      %v6735 = vpop.f32.mrb[0].mxu0
      %v6736 = vadd.f32 0.0, %v6735
      %v6737 = vpop.f32.mrb[0].mxu0
      %6738 = vmatprep.mubr.f32.mxu0 0.0
      %6739 = vmatmul.mubr.f32.gmra.mrb[0].mxu0 %v6437
      %v6740 = vpop.f32.mrb[0].mxu0
      %v6741 = vadd.f32 0.0, %v6740
      %v6742 = vpop.f32.mrb[0].mxu0
      %6743 = vmatprep.mubr.f32.mxu0 0.0
      %6744 = vmatmul.mubr.f32.gmra.mrb[0].mxu0 %v6440
      %v6745 = vpop.f32.mrb[0].mxu0
      %v6746 = vadd.f32 0.0, %v6745
      %v6747 = vpop.f32.mrb[0].mxu0
      %6748 = vmatprep.mubr.f32.mxu0 0.0
      %6749 = vmatmul.mubr.f32.gmra.mrb[0].mxu0 %v6443
      %v6750 = vpop.f32.mrb[0].mxu0
      %v6751 = vadd.f32 0.0, %v6750
      %v6752 = vpop.f32.mrb[0].mxu0
      %6753 = vmatprep.mubr.f32.mxu0 0.0
      %6754 = vmatmul.mubr.f32.gmra.mrb[0].mxu0 %v6446
      %v6755 = vpop.f32.mrb[0].mxu0
      %v6756 = vadd.f32 0.0, %v6755
      %v6757 = vpop.f32.mrb[0].mxu0
      %6758 = vmatprep.mubr.f32.mxu0 0.0
      %6759 = vmatmul.mubr.f32.gmra.mrb[0].mxu0 %v6449
      %v6760 = vpop.f32.mrb[0].mxu0
      %v6761 = vadd.f32 0.0, %v6760
      %v6762 = vpop.f32.mrb[0].mxu0
      %6763 = vmatprep.mubr.f32.mxu0 0.0
      %6764 = vmatmul.mubr.f32.gmra.mrb[0].mxu0 %v6452
      %v6765 = vpop.f32.mrb[0].mxu0
      %v6766 = vadd.f32 0.0, %v6765
      %v6767 = vpop.f32.mrb[0].mxu0
      %6768 = vmatprep.mubr.f32.mxu0 0.0
      %6769 = vmatmul.mubr.f32.gmra.mrb[0].mxu0 %v6455
      %v6770 = vpop.f32.mrb[0].mxu0
      %v6771 = vadd.f32 0.0, %v6770
      %v6772 = vpop.f32.mrb[0].mxu0
      %6773 = vmatprep.mubr.f32.mxu0 0.0
      %6774 = vmatmul.mubr.f32.gmra.mrb[0].mxu0 %v6458
      %v6775 = vpop.f32.mrb[0].mxu0
      %v6776 = vadd.f32 0.0, %v6775
      %v6777 = vpop.f32.mrb[0].mxu0
      %6778 = vmatprep.mubr.f32.mxu0 0.0
      %6779 = vmatmul.mubr.f32.gmra.mrb[0].mxu0 %v6461
      %v6780 = vpop.f32.mrb[0].mxu0
      %v6781 = vadd.f32 0.0, %v6780
      %v6782 = vpop.f32.mrb[0].mxu0
      %6783 = vmatprep.mubr.f32.mxu0 0.0
      %6784 = vmatmul.mubr.f32.gmra.mrb[0].mxu0 %v6464
      %v6785 = vpop.f32.mrb[0].mxu0
      %v6786 = vadd.f32 0.0, %v6785
      %v6787 = vpop.f32.mrb[0].mxu0
      %6788 = vmatprep.mubr.f32.mxu0 0.0
      %6789 = vmatmul.mubr.f32.gmra.mrb[0].mxu0 %v6467
      %v6790 = vpop.f32.mrb[0].mxu0
      %v6791 = vadd.f32 0.0, %v6790
      %v6792 = vpop.f32.mrb[0].mxu0
      %6793 = vmatprep.mubr.f32.mxu0 0.0
      %6794 = vmatmul.mubr.f32.gmra.mrb[0].mxu0 %v6470
      %v6795 = vpop.f32.mrb[0].mxu0
      %v6796 = vadd.f32 0.0, %v6795
      %v6797 = vpop.f32.mrb[0].mxu0
      %6798 = vmatprep.mubr.f32.mxu0 0.0
      %6799 = vmatmul.mubr.f32.gmra.mrb[0].mxu0 %v6473
      %v6800 = vpop.f32.mrb[0].mxu0
      %v6801 = vadd.f32 0.0, %v6800
      %v6802 = vpop.f32.mrb[0].mxu0
      %6803 = vmatprep.mubr.f32.mxu0 0.0
      %6804 = vmatmul.mubr.f32.gmra.mrb[0].mxu0 %v6476
      %v6805 = vpop.f32.mrb[0].mxu0
      %v6806 = vadd.f32 0.0, %v6805
      %v6807 = vpop.f32.mrb[0].mxu0
      %6808 = vmatprep.mubr.f32.mxu0 0.0
      %6809 = vmatmul.mubr.f32.gmra.mrb[0].mxu0 %v6479
      %v6810 = vpop.f32.mrb[0].mxu0
      %v6811 = vadd.f32 0.0, %v6810
      %v6812 = vpop.f32.mrb[0].mxu0
      %6813 = vmatprep.mubr.f32.mxu0 0.0
      %6814 = vmatmul.mubr.f32.gmra.mrb[0].mxu0 %v6482
      %v6815 = vpop.f32.mrb[0].mxu0
      %v6816 = vadd.f32 0.0, %v6815
      %v6817 = vpop.f32.mrb[0].mxu0
      %6818 = vmatprep.mubr.f32.mxu0 0.0
      %6819 = vmatmul.mubr.f32.gmra.mrb[0].mxu0 %v6485
      %v6820 = vpop.f32.mrb[0].mxu0
      %v6821 = vadd.f32 0.0, %v6820
      %v6822 = vpop.f32.mrb[0].mxu0
      %6823 = vmatprep.mubr.f32.mxu0 0.0
      %6824 = vmatmul.mubr.f32.gmra.mrb[0].mxu0 %v6488
      %v6825 = vpop.f32.mrb[0].mxu0
      %v6826 = vadd.f32 0.0, %v6825
      %v6827 = vpop.f32.mrb[0].mxu0
      %6828 = vmatprep.mubr.f32.mxu0 0.0
      %6829 = vmatmul.mubr.f32.gmra.mrb[0].mxu0 %v6491
      %v6830 = vpop.f32.mrb[0].mxu0
      %v6831 = vadd.f32 0.0, %v6830
      %v6832 = vpop.f32.mrb[0].mxu0
      %6833 = vmatprep.mubr.f32.mxu0 0.0
      %6834 = vmatmul.mubr.f32.gmra.mrb[0].mxu0 %v6494
      %v6835 = vpop.f32.mrb[0].mxu0
      %v6836 = vadd.f32 0.0, %v6835
      %v6837 = vpop.f32.mrb[0].mxu0
      %6838 = vmatprep.mubr.f32.mxu0 0.0
      %6839 = vmatmul.mubr.f32.gmra.mrb[0].mxu0 %v6497
      %v6840 = vpop.f32.mrb[0].mxu0
      %v6841 = vadd.f32 0.0, %v6840
      %v6842 = vpop.f32.mrb[0].mxu0
      %6843 = vmatprep.mubr.f32.mxu0 0.0
      %6844 = vmatmul.mubr.f32.gmra.mrb[0].mxu0 %v6500
      %v6845 = vpop.f32.mrb[0].mxu0
      %v6846 = vadd.f32 0.0, %v6845
      %v6847 = vpop.f32.mrb[0].mxu0
      %6848 = vmatprep.mubr.f32.mxu0 0.0
      %6849 = vmatmul.mubr.f32.gmra.mrb[0].mxu0 %v6503
      %v6850 = vpop.f32.mrb[0].mxu0
      %v6851 = vadd.f32 0.0, %v6850
      %v6852 = vpop.f32.mrb[0].mxu0
      %6853 = vmatprep.mubr.f32.mxu0 0.0
      %6854 = vmatmul.mubr.f32.gmra.mrb[0].mxu0 %v6506
      %v6855 = vpop.f32.mrb[0].mxu0
      %v6856 = vadd.f32 0.0, %v6855
      %v6857 = vpop.f32.mrb[0].mxu0
      %6858 = vmatprep.mubr.f32.mxu0 0.0
      %6859 = vmatmul.mubr.f32.gmra.mrb[0].mxu0 %v6509
      %v6860 = vpop.f32.mrb[0].mxu0
      %v6861 = vadd.f32 0.0, %v6860
      %v6862 = vpop.f32.mrb[0].mxu0
      %6863 = vmatprep.mubr.f32.mxu0 0.0
      %6864 = vmatmul.mubr.f32.gmra.mrb[0].mxu0 %v6512
      %v6865 = vpop.f32.mrb[0].mxu0
      %v6866 = vadd.f32 0.0, %v6865
      %v6867 = vpop.f32.mrb[0].mxu0
      %6868 = vmatprep.mubr.f32.mxu0 0.0
      %6869 = vmatmul.mubr.f32.gmra.mrb[0].mxu0 %v6515
      %v6870 = vpop.f32.mrb[0].mxu0
      %v6871 = vadd.f32 0.0, %v6870
      %v6872 = vpop.f32.mrb[0].mxu0
      %6873 = vmatprep.mubr.f32.mxu0 0.0
      %6874 = vmatmul.mubr.f32.gmra.mrb[0].mxu0 %v6518
      %v6875 = vpop.f32.mrb[0].mxu0
      %v6876 = vadd.f32 0.0, %v6875
      %v6877 = vpop.f32.mrb[0].mxu0
      %6878 = vmatprep.mubr.f32.mxu0 0.0
      %6879 = vmatmul.mubr.f32.gmra.mrb[0].mxu0 %v6521
      %v6880 = vpop.f32.mrb[0].mxu0
      %v6881 = vadd.f32 0.0, %v6880
      %v6882 = vpop.f32.mrb[0].mxu0
      %6883 = vmatprep.mubr.f32.mxu0 0.0
      %6884 = vmatmul.mubr.f32.gmra.mrb[0].mxu0 %v6524
      %v6885 = vpop.f32.mrb[0].mxu0
      %v6886 = vadd.f32 0.0, %v6885
      %v6887 = vpop.f32.mrb[0].mxu0
      %6888 = vmatprep.mubr.f32.mxu0 0.0
      %6889 = vmatmul.mubr.f32.gmra.mrb[0].mxu0 %v6527
      %v6890 = vpop.f32.mrb[0].mxu0
      %v6891 = vadd.f32 0.0, %v6890
      %v6892 = vpop.f32.mrb[0].mxu0
      %6893 = vmatprep.mubr.f32.mxu0 0.0
      %6894 = vmatmul.mubr.f32.gmra.mrb[0].mxu0 %v6530
      %v6895 = vpop.f32.mrb[0].mxu0
      %v6896 = vadd.f32 0.0, %v6895
      %v6897 = vpop.f32.mrb[0].mxu0
      %6898 = vmatprep.mubr.f32.mxu0 0.0
      %6899 = vmatmul.mubr.f32.gmra.mrb[0].mxu0 %v6533
      %v6900 = vpop.f32.mrb[0].mxu0
      %v6901 = vadd.f32 0.0, %v6900
      %v6902 = vpop.f32.mrb[0].mxu0
      %6903 = vmatprep.mubr.f32.mxu0 0.0
      %6904 = vmatmul.mubr.f32.gmra.mrb[0].mxu0 %v6536
      %v6905 = vpop.f32.mrb[0].mxu0
      %v6906 = vadd.f32 0.0, %v6905
      %v6907 = vpop.f32.mrb[0].mxu0
      %6908 = vmatprep.mubr.f32.mxu0 0.0
      %6909 = vmatmul.mubr.f32.gmra.mrb[0].mxu0 %v6539
      %v6910 = vpop.f32.mrb[0].mxu0
      %v6911 = vadd.f32 0.0, %v6910
      %v6912 = vpop.f32.mrb[0].mxu0
      %6913 = vmatprep.mubr.f32.mxu0 0.0
      %6914 = vmatmul.mubr.f32.gmra.mrb[0].mxu0 %v6542
      %v6915 = vpop.f32.mrb[0].mxu0
      %v6916 = vadd.f32 0.0, %v6915
      %v6917 = vpop.f32.mrb[0].mxu0
      %6918 = vmatprep.mubr.f32.mxu0 0.0
      %6919 = vmatmul.mubr.f32.gmra.mrb[0].mxu0 %v6545
      %v6920 = vpop.f32.mrb[0].mxu0
      %v6921 = vadd.f32 0.0, %v6920
      %v6922 = vpop.f32.mrb[0].mxu0
      %6923 = vmatprep.mubr.f32.mxu0 0.0
      %6924 = vmatmul.mubr.f32.gmra.mrb[0].mxu0 %v6548
      %v6925 = vpop.f32.mrb[0].mxu0
      %v6926 = vadd.f32 0.0, %v6925
      %v6927 = vpop.f32.mrb[0].mxu0
      %6928 = vmatprep.mubr.f32.mxu0 0.0
      %6929 = vmatmul.mubr.f32.gmra.mrb[0].mxu0 %v6551
      %v6930 = vpop.f32.mrb[0].mxu0
      %v6931 = vadd.f32 0.0, %v6930
      %v6932 = vpop.f32.mrb[0].mxu0
      %6933 = vmatprep.mubr.f32.mxu0 0.0
      %6934 = vmatmul.mubr.f32.gmra.mrb[0].mxu0 %v6554
      %v6935 = vpop.f32.mrb[0].mxu0
      %v6936 = vadd.f32 0.0, %v6935
      %v6937 = vpop.f32.mrb[0].mxu0
      %6938 = vmatprep.mubr.f32.mxu0 0.0
      %6939 = vmatmul.mubr.f32.gmra.mrb[0].mxu0 %v6557
      %v6940 = vpop.f32.mrb[0].mxu0
      %v6941 = vadd.f32 0.0, %v6940
      %v6942 = vpop.f32.mrb[0].mxu0
      %6943 = vdwg.mxu0
      %v6944 = vadd.f32 %v6229, %v6626
      %v6945 = vadd.f32 %v6230, %v6631
      %v6946 = vadd.f32 %v6231, %v6636
      %v6947 = vadd.f32 %v6232, %v6641
      %v6948 = vadd.f32 %v6233, %v6646
      %v6949 = vadd.f32 %v6234, %v6651
      %v6950 = vadd.f32 %v6235, %v6656
      %v6951 = vadd.f32 %v6236, %v6661
      %v6952 = vadd.f32 %v6237, %v6666
      %v6953 = vadd.f32 %v6238, %v6671
      %v6954 = vadd.f32 %v6239, %v6676
      %v6955 = vadd.f32 %v6240, %v6681
      %v6956 = vadd.f32 %v6241, %v6686
      %v6957 = vadd.f32 %v6242, %v6691
      %v6958 = vadd.f32 %v6243, %v6696
      %v6959 = vadd.f32 %v6244, %v6701
      %v6960 = vadd.f32 %v6245, %v6706
      %v6961 = vadd.f32 %v6246, %v6711
      %v6962 = vadd.f32 %v6247, %v6716
      %v6963 = vadd.f32 %v6248, %v6721
      %v6964 = vadd.f32 %v6249, %v6726
      %v6965 = vadd.f32 %v6250, %v6731
      %v6966 = vadd.f32 %v6251, %v6736
      %v6967 = vadd.f32 %v6252, %v6741
      %v6968 = vadd.f32 %v6253, %v6746
      %v6969 = vadd.f32 %v6254, %v6751
      %v6970 = vadd.f32 %v6255, %v6756
      %v6971 = vadd.f32 %v6256, %v6761
      %v6972 = vadd.f32 %v6257, %v6766
      %v6973 = vadd.f32 %v6258, %v6771
      %v6974 = vadd.f32 %v6259, %v6776
      %v6975 = vadd.f32 %v6260, %v6781
      %v6976 = vadd.f32 %v6261, %v6786
      %v6977 = vadd.f32 %v6262, %v6791
      %v6978 = vadd.f32 %v6263, %v6796
      %v6979 = vadd.f32 %v6264, %v6801
      %v6980 = vadd.f32 %v6265, %v6806
      %v6981 = vadd.f32 %v6266, %v6811
      %v6982 = vadd.f32 %v6267, %v6816
      %v6983 = vadd.f32 %v6268, %v6821
      %v6984 = vadd.f32 %v6269, %v6826
      %v6985 = vadd.f32 %v6270, %v6831
      %v6986 = vadd.f32 %v6271, %v6836
      %v6987 = vadd.f32 %v6272, %v6841
      %v6988 = vadd.f32 %v6273, %v6846
      %v6989 = vadd.f32 %v6274, %v6851
      %v6990 = vadd.f32 %v6275, %v6856
      %v6991 = vadd.f32 %v6276, %v6861
      %v6992 = vadd.f32 %v6277, %v6866
      %v6993 = vadd.f32 %v6278, %v6871
      %v6994 = vadd.f32 %v6279, %v6876
      %v6995 = vadd.f32 %v6280, %v6881
      %v6996 = vadd.f32 %v6281, %v6886
      %v6997 = vadd.f32 %v6282, %v6891
      %v6998 = vadd.f32 %v6283, %v6896
      %v6999 = vadd.f32 %v6284, %v6901
      %v7000 = vadd.f32 %v6285, %v6906
      %v7001 = vadd.f32 %v6286, %v6911
      %v7002 = vadd.f32 %v6287, %v6916
      %v7003 = vadd.f32 %v6288, %v6921
      %v7004 = vadd.f32 %v6289, %v6926
      %v7005 = vadd.f32 %v6290, %v6931
      %v7006 = vadd.f32 %v6291, %v6936
      %v7007 = vadd.f32 %v6292, %v6941
      %7008 = vst.msk [vmem:[%s224] sm:$0xff] %vm495, %v6944
      %7009 = vst.msk [vmem:[%s224 + $0x8] sm:$0xff] %vm495, %v6945
      %7010 = vst.msk [vmem:[%s224 + $0x10] sm:$0xff] %vm495, %v6946
      %7011 = vst.msk [vmem:[%s224 + $0x18] sm:$0xff] %vm495, %v6947
      %7012 = vst.msk [vmem:[%s224 + $0x20] sm:$0xff] %vm495, %v6948
      %7013 = vst.msk [vmem:[%s224 + $0x28] sm:$0xff] %vm495, %v6949
      %7014 = vst.msk [vmem:[%s224 + $0x30] sm:$0xff] %vm495, %v6950
      %7015 = vst.msk [vmem:[%s224 + $0x38] sm:$0xff] %vm495, %v6951
      %7016 = vst.msk [vmem:[%s224 + $0x40] sm:$0xff] %vm495, %v6952
      %7017 = vst.msk [vmem:[%s224 + $0x48] sm:$0xff] %vm495, %v6953
      %7018 = vst.msk [vmem:[%s224 + $0x50] sm:$0xff] %vm495, %v6954
      %7019 = vst.msk [vmem:[%s224 + $0x58] sm:$0xff] %vm495, %v6955
      %7020 = vst.msk [vmem:[%s224 + $0x60] sm:$0xff] %vm495, %v6956
      %7021 = vst.msk [vmem:[%s224 + $0x68] sm:$0xff] %vm495, %v6957
      %7022 = vst.msk [vmem:[%s224 + $0x70] sm:$0xff] %vm495, %v6958
      %7023 = vst.msk [vmem:[%s224 + $0x78] sm:$0xff] %vm495, %v6959
      %7024 = vst.msk [vmem:[%s224 + $0x80] sm:$0xff] %vm495, %v6960
      %7025 = vst.msk [vmem:[%s224 + $0x88] sm:$0xff] %vm495, %v6961
      %7026 = vst.msk [vmem:[%s224 + $0x90] sm:$0xff] %vm495, %v6962
      %7027 = vst.msk [vmem:[%s224 + $0x98] sm:$0xff] %vm495, %v6963
      %7028 = vst.msk [vmem:[%s224 + $0xa0] sm:$0xff] %vm495, %v6964
      %7029 = vst.msk [vmem:[%s224 + $0xa8] sm:$0xff] %vm495, %v6965
      %7030 = vst.msk [vmem:[%s224 + $0xb0] sm:$0xff] %vm495, %v6966
      %7031 = vst.msk [vmem:[%s224 + $0xb8] sm:$0xff] %vm495, %v6967
      %7032 = vst.msk [vmem:[%s224 + $0xc0] sm:$0xff] %vm495, %v6968
      %7033 = vst.msk [vmem:[%s224 + $0xc8] sm:$0xff] %vm495, %v6969
      %7034 = vst.msk [vmem:[%s224 + $0xd0] sm:$0xff] %vm495, %v6970
      %7035 = vst.msk [vmem:[%s224 + $0xd8] sm:$0xff] %vm495, %v6971
      %7036 = vst.msk [vmem:[%s224 + $0xe0] sm:$0xff] %vm495, %v6972
      %7037 = vst.msk [vmem:[%s224 + $0xe8] sm:$0xff] %vm495, %v6973
      %7038 = vst.msk [vmem:[%s224 + $0xf0] sm:$0xff] %vm495, %v6974
      %7039 = vst.msk [vmem:[%s224 + $0xf8] sm:$0xff] %vm495, %v6975
      %7040 = vst.msk [vmem:[%s224 + $0x100] sm:$0xff] %vm495, %v6976
      %7041 = vst.msk [vmem:[%s224 + $0x108] sm:$0xff] %vm495, %v6977
      %7042 = vst.msk [vmem:[%s224 + $0x110] sm:$0xff] %vm495, %v6978
      %7043 = vst.msk [vmem:[%s224 + $0x118] sm:$0xff] %vm495, %v6979
      %7044 = vst.msk [vmem:[%s224 + $0x120] sm:$0xff] %vm495, %v6980
      %7045 = vst.msk [vmem:[%s224 + $0x128] sm:$0xff] %vm495, %v6981
      %7046 = vst.msk [vmem:[%s224 + $0x130] sm:$0xff] %vm495, %v6982
      %7047 = vst.msk [vmem:[%s224 + $0x138] sm:$0xff] %vm495, %v6983
      %7048 = vst.msk [vmem:[%s224 + $0x140] sm:$0xff] %vm495, %v6984
      %7049 = vst.msk [vmem:[%s224 + $0x148] sm:$0xff] %vm495, %v6985
      %7050 = vst.msk [vmem:[%s224 + $0x150] sm:$0xff] %vm495, %v6986
      %7051 = vst.msk [vmem:[%s224 + $0x158] sm:$0xff] %vm495, %v6987
      %7052 = vst.msk [vmem:[%s224 + $0x160] sm:$0xff] %vm495, %v6988
      %7053 = vst.msk [vmem:[%s224 + $0x168] sm:$0xff] %vm495, %v6989
      %7054 = vst.msk [vmem:[%s224 + $0x170] sm:$0xff] %vm495, %v6990
      %7055 = vst.msk [vmem:[%s224 + $0x178] sm:$0xff] %vm495, %v6991
      %7056 = vst.msk [vmem:[%s224 + $0x180] sm:$0xff] %vm495, %v6992
      %7057 = vst.msk [vmem:[%s224 + $0x188] sm:$0xff] %vm495, %v6993
      %7058 = vst.msk [vmem:[%s224 + $0x190] sm:$0xff] %vm495, %v6994
      %7059 = vst.msk [vmem:[%s224 + $0x198] sm:$0xff] %vm495, %v6995
      %7060 = vst.msk [vmem:[%s224 + $0x1a0] sm:$0xff] %vm495, %v6996
      %7061 = vst.msk [vmem:[%s224 + $0x1a8] sm:$0xff] %vm495, %v6997
      %7062 = vst.msk [vmem:[%s224 + $0x1b0] sm:$0xff] %vm495, %v6998
      %7063 = vst.msk [vmem:[%s224 + $0x1b8] sm:$0xff] %vm495, %v6999
      %7064 = vst.msk [vmem:[%s224 + $0x1c0] sm:$0xff] %vm495, %v7000
      %7065 = vst.msk [vmem:[%s224 + $0x1c8] sm:$0xff] %vm495, %v7001
      %7066 = vst.msk [vmem:[%s224 + $0x1d0] sm:$0xff] %vm495, %v7002
      %7067 = vst.msk [vmem:[%s224 + $0x1d8] sm:$0xff] %vm495, %v7003
      %7068 = vst.msk [vmem:[%s224 + $0x1e0] sm:$0xff] %vm495, %v7004
      %7069 = vst.msk [vmem:[%s224 + $0x1e8] sm:$0xff] %vm495, %v7005
      %7070 = vst.msk [vmem:[%s224 + $0x1f0] sm:$0xff] %vm495, %v7006
      %7071 = vst.msk [vmem:[%s224 + $0x1f8] sm:$0xff] %vm495, %v7007
      %p7072 = scmp.lt.s32.totalorder %s16, 1
      %s7073 = scalar_select %p7072, %s16, 1
      %s7074 = smul.addr %s7073, 64
      %s7075 = smul.addr %s7074, 8
      %s7076 = scalar_lea.vmem %s5, %s7075
      // Predicated region
      $region41: #{double_conv3d.3} parent=39 // pred_check
        %p7077 = pneg %p144
      $region42: #{double_conv3d.3} parent=39 // pred_check_branch
        %7079 = sbr.rel (%p7077) target = $region44
      $region43: #{double_conv3d.3} parent=39 // pred_region
        _
      $region44: #{double_conv3d.3} parent=39 // pred_fallthru
        _
    $region40: #{double_conv3d.3} parent=5 // pred_fallthru
      _
    %p7080 = scmp.le.s32.totalorder 2, %s11
    // Predicated region
    $region45: #{double_conv3d.3} parent=5 // pred_check
      %p7081 = pneg %p7080
    $region46: #{double_conv3d.3} parent=5 // pred_check_branch
      %7083 = sbr.rel (%p7081) target = $region48
    $region47: #{double_conv3d.3} parent=5 // pred_region
      %s7084 = ssub.s32 %s11, 2
      // Predicated region
      $region49: #{double_conv3d.3} parent=47 // pred_check
        %p7085 = pneg %p150
      $region50: #{double_conv3d.3} parent=47 // pred_check_branch
        %7087 = sbr.rel (%p7085) target = $region52
      $region51: #{double_conv3d.3} parent=47 // pred_region
        %p7088 = scmp.lt.s32.totalorder %s17, 1
        %s7089 = scalar_select %p7088, %s17, 1
        %s7090 = smul.addr %s7089, 64
        %s7091 = smul.addr %s7090, 8
        %s7092 = scalar_lea.vmem %s5, %s7091
      $region52: #{double_conv3d.3} parent=47 // pred_fallthru
        _
    $region48: #{double_conv3d.3} parent=5 // pred_fallthru
      _
  $region6: #{double_conv3d.3} parent=0 // loop_footer
    %s15 = sadd.s32 1, %s11
  $region7: #{double_conv3d.3} parent=0 // loop_footer_branch
    %10 = sbr.rel target = $region3
  $region8: #{double_conv3d.3} parent=0 // loop_exit
    _

</llo_original>
